<compile_context>
chip_gen: v5e
topology: v5e:2x2
jax: 0.10.0
libtpu: 0.0.40
codegen_flags: <defaults>
</compile_context>

<pallas_src>
import jax
import jax.numpy as jnp
from jax.experimental import pallas as pl
from jax.experimental.pallas import tpu as pltpu


def convmodel_kernel(p1_ref, qw1_ref, qb1_ref, qw2_ref, qb2_ref, wl_ref,
                     bl_ref, out_ref):
    f32 = jnp.float32
    bf16 = jnp.bfloat16
    N = out_ref.shape[0]

    def maxpool2(h):
        # Pool H first: reshape only regroups whole (W, C) tiles (no sublane
        # split), then the sublane-splitting W reshape runs on half the data.
        n, hh, ww, c = h.shape
        h = h.reshape(n, hh // 2, 2, ww, c)
        h = jnp.maximum(h[:, :, 0], h[:, :, 1])            # (n, hh/2, ww, c)
        h = h.reshape(n, hh // 2, ww // 2, 2, c)
        return jnp.maximum(h[:, :, :, 0], h[:, :, :, 1])   # (n, hh/2, ww/2, c)

    def batchnorm(h, eps=1e-5):
        # training-mode BN, affine at init (weight=1, bias=0) -> pure
        # normalization with whole-batch biased stats; one-pass mean / E[x^2].
        n, hh, ww, c = h.shape
        flat = h.reshape(n * hh * ww, c)
        inv_cnt = 1.0 / float(n * hh * ww)
        mean = jnp.sum(flat, axis=0, keepdims=True) * inv_cnt        # (1, c)
        ex2 = jnp.sum(flat * flat, axis=0, keepdims=True) * inv_cnt  # (1, c)
        var = ex2 - mean * mean
        return (h - mean) * jax.lax.rsqrt(var + eps)

    # ---- conv1: single im2col MXU matmul, K padded 25 -> 32 ----
    # p1_ref: (N*576, 32) bf16, qw1_ref: (32, 32) bf16 (zero rows 25..31)
    a1 = jnp.dot(p1_ref[...], qw1_ref[...], preferred_element_type=f32)
    h = jnp.maximum(a1 + qb1_ref[...], 0.0).reshape(N, 24, 24, 32)
    h = batchnorm(maxpool2(h))                         # (N, 12, 12, 32) f32

    # ---- conv2: single im2col MXU matmul, K padded 800 -> 896 ----
    # Cast to bf16 once BEFORE the slice/concat relayouts; build 128-lane
    # aligned groups (4 taps * 32 ch), 6 full groups + zero-padded tail.
    h16 = h.astype(bf16)
    H2 = W2 = 8
    taps = [h16[:, kh:kh + H2, kw:kw + W2, :]
            for kh in range(5) for kw in range(5)]     # 25 x (N, 8, 8, 32)
    groups = [jnp.concatenate(taps[4 * g:4 * g + 4], axis=-1)
              for g in range(6)]                       # 6 x (N, 8, 8, 128)
    groups.append(jnp.concatenate(
        [taps[24], jnp.zeros((N, H2, W2, 96), bf16)], axis=-1))
    p2 = jnp.concatenate(groups, axis=-1)              # (N, 8, 8, 896)
    p2 = p2.reshape(N * H2 * W2, 896)                  # leading-dim collapse
    a2 = jnp.dot(p2, qw2_ref[...], preferred_element_type=f32)   # (N*64, 64)
    h2 = jnp.maximum(a2 + qb2_ref[...], 0.0).reshape(N, H2, W2, 64)
    h2 = batchnorm(maxpool2(h2))                       # (N, 4, 4, 64) f32

    # ---- linear(1024 -> 10, padded to 128 output lanes): one MXU matmul ----
    # Flatten = bf16 slices concatenated in 128-lane pairs (2 * 64 ch); column
    # order hh*256 + ww*64 + c matches the wrapper's (4, 4, 64, 128) weight.
    h2r = h2.astype(bf16).reshape(N, 16, 64)           # leading-dims collapse
    pairs = [jnp.concatenate([h2r[:, 2 * i, :], h2r[:, 2 * i + 1, :]], axis=-1)
             for i in range(8)]                        # 8 x (N, 128)
    flat = jnp.concatenate(pairs, axis=-1)             # (N, 1024) bf16
    out = jnp.dot(flat, wl_ref[...], preferred_element_type=f32)  # (N, 128)
    out_ref[...] = out + bl_ref[...]


def init_params(key):
    """Deterministic synthetic parameters matching the PyTorch shapes."""
    k1, k2, k3 = jax.random.split(key, 3)

    def xavier_normal(k, shape, fan_in, fan_out):
        std = (2.0 / (fan_in + fan_out)) ** 0.5
        return std * jax.random.normal(k, shape, dtype=jnp.float32)

    w1 = xavier_normal(k1, (32, 1, 5, 5), 1 * 25, 32 * 25)      # OIHW
    b1 = jnp.zeros((32,), jnp.float32)
    w2 = xavier_normal(k2, (64, 32, 5, 5), 32 * 25, 64 * 25)    # OIHW
    b2 = jnp.zeros((64,), jnp.float32)
    # nn.Linear(1024, 10): weight (10, 1024); 1024 flattens (C=64, H=4, W=4)
    wl = xavier_normal(k3, (10, 64, 4, 4), 1024, 10)
    bl = jnp.zeros((10,), jnp.float32)
    return w1, b1, w2, b2, wl, bl


@jax.jit
def conv_model_forward(x_nchw, params):
    w1, b1, w2, b2, wl, bl = params
    N = x_nchw.shape[0]
    f32, bf16 = jnp.float32, jnp.bfloat16
    q = lambda t: 2.0 * jax.nn.sigmoid(t) - 1.0   # quantize_concrete, eval path

    # ---- plain-JAX layout plumbing (runs once per call, outside the kernel) --
    # conv1 im2col: (N, 1, 28, 28) NCHW -> (N*576, 32) bf16, tap = kh*5 + kw,
    # K zero-padded 25 -> 32.
    x2d = x_nchw[:, 0].astype(f32)                                 # (N, 28, 28)
    taps = [x2d[:, kh:kh + 24, kw:kw + 24]
            for kh in range(5) for kw in range(5)]
    p1 = jnp.stack(taps, axis=-1)                                  # (N,24,24,25)
    p1 = jnp.pad(p1, ((0, 0), (0, 0), (0, 0), (0, 7)))
    p1 = p1.reshape(N * 576, 32).astype(bf16)

    # Weights: quantize + reorder to the kernel's im2col/flatten order + bf16.
    #   conv: OIHW -> HWIO -> (KH*KW*Cin, Cout); row = (kh*5+kw)*Cin + cin.
    #   linear: (10, 64, 4, 4) -> (4, 4, 64, 10) -> (1024, 10); row =
    #   hh*256 + ww*64 + c (== PyTorch NCHW x.view(N, -1) ordering), then
    #   padded to 128 output lanes.
    w1_mat = q(jnp.transpose(w1, (2, 3, 1, 0)).reshape(25, 32))
    w1_mat = jnp.pad(w1_mat, ((0, 7), (0, 0))).astype(bf16)        # (32, 32)
    w2_mat = q(jnp.transpose(w2, (2, 3, 1, 0)).reshape(800, 64))
    w2_mat = jnp.pad(w2_mat, ((0, 96), (0, 0))).astype(bf16)       # (896, 64)
    wl_mat = jnp.transpose(wl, (2, 3, 1, 0)).reshape(1024, 10)
    wl_mat = jnp.pad(wl_mat, ((0, 0), (0, 118))).astype(bf16)      # (1024, 128)
    b1_2d = q(b1).reshape(1, 32).astype(f32)
    b2_2d = q(b2).reshape(1, 64).astype(f32)
    bl_2d = jnp.pad(bl.reshape(1, 10), ((0, 0), (0, 118))).astype(f32)

    vmem = pl.BlockSpec(memory_space=pltpu.MemorySpace.VMEM)
    # Gridless (whole-batch BN semantics; N=2); working set is a few MiB, well
    # inside every generation's default scoped VMEM limit.
    out = pl.pallas_call(
        convmodel_kernel,
        out_shape=jax.ShapeDtypeStruct((N, 128), jnp.float32),
        in_specs=[vmem] * 7,
        out_specs=vmem,
    )(p1, w1_mat, b1_2d, w2_mat, b2_2d, wl_mat, bl_2d)
    return out[:, :10]


def reference_forward(x_nchw, params):
    """Pure-JAX (XLA) f32 reference with PyTorch NCHW semantics."""
    w1, b1, w2, b2, wl, bl = params
    q = lambda t: 2.0 * jax.nn.sigmoid(t) - 1.0

    def conv(x, w, b):
        y = jax.lax.conv_general_dilated(
            x, q(w), (1, 1), 'VALID',
            dimension_numbers=('NCHW', 'OIHW', 'NCHW'))
        return y + q(b)[None, :, None, None]

    def pool(x):
        return jax.lax.reduce_window(x, -jnp.inf, jax.lax.max,
                                     (1, 1, 2, 2), (1, 1, 2, 2), 'VALID')

    def bn(x):
        m = jnp.mean(x, axis=(0, 2, 3), keepdims=True)
        v = jnp.mean((x - m) ** 2, axis=(0, 2, 3), keepdims=True)
        return (x - m) / jnp.sqrt(v + 1e-5)

    h = bn(pool(jax.nn.relu(conv(x_nchw, w1, b1))))
    h = bn(pool(jax.nn.relu(conv(h, w2, b2))))
    flat = h.reshape(h.shape[0], -1)            # NCHW (channel-major) flatten
    return flat @ wl.reshape(10, 1024).T + bl


if __name__ == "__main__":
    key = jax.random.PRNGKey(0)
    kx, kp = jax.random.split(key)
    # Input shape is forced by Linear(1024, 10): (N, 1, 28, 28) NCHW.
    x = jax.random.normal(kx, (2, 1, 28, 28), dtype=jnp.float32)
    params = init_params(kp)

    out = jax.block_until_ready(conv_model_forward(x, params))
    assert out.shape == (2, 10) and out.dtype == jnp.float32

    ref = reference_forward(x, params)
    max_err = float(jnp.max(jnp.abs(out - ref)))
    assert max_err < 5e-2, f"mismatch vs reference, max abs err = {max_err}"

    print("KERNEL_OK")
</pallas_src>

<mosaic_0001>
module attributes {stable_mosaic.version = 11 : i64} {
  func.func @convmodel_kernel(%arg0: memref<1152x32xbf16, #tpu.memory_space<vmem>>, %arg1: memref<32x32xbf16, #tpu.memory_space<vmem>>, %arg2: memref<1x32xf32, #tpu.memory_space<vmem>>, %arg3: memref<896x64xbf16, #tpu.memory_space<vmem>>, %arg4: memref<1x64xf32, #tpu.memory_space<vmem>>, %arg5: memref<1024x128xbf16, #tpu.memory_space<vmem>>, %arg6: memref<1x128xf32, #tpu.memory_space<vmem>>, %arg7: memref<2x128xf32, #tpu.memory_space<vmem>>) attributes {dimension_semantics = [], scalar_prefetch = 0 : i64, scratch_operands = 0 : i64, tpu.core_type = #tpu.core_type<tc>} {
    %c0 = arith.constant 0 : index
    %c0_0 = arith.constant 0 : index
    %0 = vector.load %arg0[%c0, %c0_0] : memref<1152x32xbf16, #tpu.memory_space<vmem>>, vector<1152x32xbf16>
    %c0_1 = arith.constant 0 : index
    %c0_2 = arith.constant 0 : index
    %1 = vector.load %arg1[%c0_1, %c0_2] : memref<32x32xbf16, #tpu.memory_space<vmem>>, vector<32x32xbf16>
    %cst = arith.constant dense<0.000000e+00> : vector<1152x32xf32>
    %2 = tpu.matmul %0, %1, %cst {dimension_numbers = #tpu.dot_dimension_numbers<[1], [0], [0], [1], [0, 0, 1, 1], [], []>} : vector<1152x32xbf16>, vector<32x32xbf16>, vector<1152x32xf32> -> vector<1152x32xf32>
    %c0_3 = arith.constant 0 : index
    %c0_4 = arith.constant 0 : index
    %3 = vector.load %arg2[%c0_3, %c0_4] : memref<1x32xf32, #tpu.memory_space<vmem>>, vector<1x32xf32>
    %4 = vector.broadcast %3 : vector<1x32xf32> to vector<1152x32xf32>
    %5 = arith.addf %2, %4 : vector<1152x32xf32>
    %cst_5 = arith.constant 0.000000e+00 : f32
    %6 = vector.broadcast %cst_5 : f32 to vector<1152x32xf32>
    %7 = arith.maximumf %5, %6 : vector<1152x32xf32>
    %8 = vector.shape_cast %7 : vector<1152x32xf32> to vector<2x24x24x32xf32>
    %9 = vector.shape_cast %8 : vector<2x24x24x32xf32> to vector<2x12x2x24x32xf32>
    %10 = vector.extract_strided_slice %9 {offsets = [0, 0, 0, 0, 0], sizes = [2, 12, 1, 24, 32], strides = [1, 1, 1, 1, 1]} : vector<2x12x2x24x32xf32> to vector<2x12x1x24x32xf32>
    %11 = vector.shape_cast %10 : vector<2x12x1x24x32xf32> to vector<2x12x24x32xf32>
    %12 = vector.extract_strided_slice %9 {offsets = [0, 0, 1, 0, 0], sizes = [2, 12, 1, 24, 32], strides = [1, 1, 1, 1, 1]} : vector<2x12x2x24x32xf32> to vector<2x12x1x24x32xf32>
    %13 = vector.shape_cast %12 : vector<2x12x1x24x32xf32> to vector<2x12x24x32xf32>
    %14 = arith.maximumf %11, %13 : vector<2x12x24x32xf32>
    %15 = vector.shape_cast %14 : vector<2x12x24x32xf32> to vector<2x12x12x2x32xf32>
    %16 = vector.extract_strided_slice %15 {offsets = [0, 0, 0, 0, 0], sizes = [2, 12, 12, 1, 32], strides = [1, 1, 1, 1, 1]} : vector<2x12x12x2x32xf32> to vector<2x12x12x1x32xf32>
    %17 = vector.shape_cast %16 : vector<2x12x12x1x32xf32> to vector<2x12x12x32xf32>
    %18 = vector.extract_strided_slice %15 {offsets = [0, 0, 0, 1, 0], sizes = [2, 12, 12, 1, 32], strides = [1, 1, 1, 1, 1]} : vector<2x12x12x2x32xf32> to vector<2x12x12x1x32xf32>
    %19 = vector.shape_cast %18 : vector<2x12x12x1x32xf32> to vector<2x12x12x32xf32>
    %20 = arith.maximumf %17, %19 : vector<2x12x12x32xf32>
    %21 = vector.shape_cast %20 : vector<2x12x12x32xf32> to vector<288x32xf32>
    %cst_6 = arith.constant dense<0.000000e+00> : vector<32xf32>
    %22 = vector.multi_reduction <add>, %21, %cst_6 [0] : vector<288x32xf32> to vector<32xf32>
    %23 = vector.shape_cast %22 : vector<32xf32> to vector<1x32xf32>
    %cst_7 = arith.constant 0.00347222225 : f32
    %24 = vector.broadcast %cst_7 : f32 to vector<1x32xf32>
    %25 = arith.mulf %23, %24 : vector<1x32xf32>
    %26 = arith.mulf %21, %21 : vector<288x32xf32>
    %cst_8 = arith.constant dense<0.000000e+00> : vector<32xf32>
    %27 = vector.multi_reduction <add>, %26, %cst_8 [0] : vector<288x32xf32> to vector<32xf32>
    %28 = vector.shape_cast %27 : vector<32xf32> to vector<1x32xf32>
    %cst_9 = arith.constant 0.00347222225 : f32
    %29 = vector.broadcast %cst_9 : f32 to vector<1x32xf32>
    %30 = arith.mulf %28, %29 : vector<1x32xf32>
    %31 = arith.mulf %25, %25 : vector<1x32xf32>
    %32 = arith.subf %30, %31 : vector<1x32xf32>
    %33 = vector.shape_cast %25 : vector<1x32xf32> to vector<1x1x1x32xf32>
    %34 = vector.broadcast %33 : vector<1x1x1x32xf32> to vector<2x12x12x32xf32>
    %35 = arith.subf %20, %34 : vector<2x12x12x32xf32>
    %cst_10 = arith.constant 9.99999974E-6 : f32
    %36 = vector.broadcast %cst_10 : f32 to vector<1x32xf32>
    %37 = arith.addf %32, %36 : vector<1x32xf32>
    %38 = math.rsqrt %37 : vector<1x32xf32>
    %39 = vector.shape_cast %38 : vector<1x32xf32> to vector<1x1x1x32xf32>
    %40 = vector.broadcast %39 : vector<1x1x1x32xf32> to vector<2x12x12x32xf32>
    %41 = arith.mulf %35, %40 : vector<2x12x12x32xf32>
    %42 = arith.truncf %41 : vector<2x12x12x32xf32> to vector<2x12x12x32xbf16>
    %43 = vector.extract_strided_slice %42 {offsets = [0, 0, 0, 0], sizes = [2, 8, 8, 32], strides = [1, 1, 1, 1]} : vector<2x12x12x32xbf16> to vector<2x8x8x32xbf16>
    %44 = vector.extract_strided_slice %42 {offsets = [0, 0, 1, 0], sizes = [2, 8, 8, 32], strides = [1, 1, 1, 1]} : vector<2x12x12x32xbf16> to vector<2x8x8x32xbf16>
    %45 = vector.extract_strided_slice %42 {offsets = [0, 0, 2, 0], sizes = [2, 8, 8, 32], strides = [1, 1, 1, 1]} : vector<2x12x12x32xbf16> to vector<2x8x8x32xbf16>
    %46 = vector.extract_strided_slice %42 {offsets = [0, 0, 3, 0], sizes = [2, 8, 8, 32], strides = [1, 1, 1, 1]} : vector<2x12x12x32xbf16> to vector<2x8x8x32xbf16>
    %47 = vector.extract_strided_slice %42 {offsets = [0, 0, 4, 0], sizes = [2, 8, 8, 32], strides = [1, 1, 1, 1]} : vector<2x12x12x32xbf16> to vector<2x8x8x32xbf16>
    %48 = vector.extract_strided_slice %42 {offsets = [0, 1, 0, 0], sizes = [2, 8, 8, 32], strides = [1, 1, 1, 1]} : vector<2x12x12x32xbf16> to vector<2x8x8x32xbf16>
    %49 = vector.extract_strided_slice %42 {offsets = [0, 1, 1, 0], sizes = [2, 8, 8, 32], strides = [1, 1, 1, 1]} : vector<2x12x12x32xbf16> to vector<2x8x8x32xbf16>
    %50 = vector.extract_strided_slice %42 {offsets = [0, 1, 2, 0], sizes = [2, 8, 8, 32], strides = [1, 1, 1, 1]} : vector<2x12x12x32xbf16> to vector<2x8x8x32xbf16>
    %51 = vector.extract_strided_slice %42 {offsets = [0, 1, 3, 0], sizes = [2, 8, 8, 32], strides = [1, 1, 1, 1]} : vector<2x12x12x32xbf16> to vector<2x8x8x32xbf16>
    %52 = vector.extract_strided_slice %42 {offsets = [0, 1, 4, 0], sizes = [2, 8, 8, 32], strides = [1, 1, 1, 1]} : vector<2x12x12x32xbf16> to vector<2x8x8x32xbf16>
    %53 = vector.extract_strided_slice %42 {offsets = [0, 2, 0, 0], sizes = [2, 8, 8, 32], strides = [1, 1, 1, 1]} : vector<2x12x12x32xbf16> to vector<2x8x8x32xbf16>
    %54 = vector.extract_strided_slice %42 {offsets = [0, 2, 1, 0], sizes = [2, 8, 8, 32], strides = [1, 1, 1, 1]} : vector<2x12x12x32xbf16> to vector<2x8x8x32xbf16>
    %55 = vector.extract_strided_slice %42 {offsets = [0, 2, 2, 0], sizes = [2, 8, 8, 32], strides = [1, 1, 1, 1]} : vector<2x12x12x32xbf16> to vector<2x8x8x32xbf16>
    %56 = vector.extract_strided_slice %42 {offsets = [0, 2, 3, 0], sizes = [2, 8, 8, 32], strides = [1, 1, 1, 1]} : vector<2x12x12x32xbf16> to vector<2x8x8x32xbf16>
    %57 = vector.extract_strided_slice %42 {offsets = [0, 2, 4, 0], sizes = [2, 8, 8, 32], strides = [1, 1, 1, 1]} : vector<2x12x12x32xbf16> to vector<2x8x8x32xbf16>
    %58 = vector.extract_strided_slice %42 {offsets = [0, 3, 0, 0], sizes = [2, 8, 8, 32], strides = [1, 1, 1, 1]} : vector<2x12x12x32xbf16> to vector<2x8x8x32xbf16>
    %59 = vector.extract_strided_slice %42 {offsets = [0, 3, 1, 0], sizes = [2, 8, 8, 32], strides = [1, 1, 1, 1]} : vector<2x12x12x32xbf16> to vector<2x8x8x32xbf16>
    %60 = vector.extract_strided_slice %42 {offsets = [0, 3, 2, 0], sizes = [2, 8, 8, 32], strides = [1, 1, 1, 1]} : vector<2x12x12x32xbf16> to vector<2x8x8x32xbf16>
    %61 = vector.extract_strided_slice %42 {offsets = [0, 3, 3, 0], sizes = [2, 8, 8, 32], strides = [1, 1, 1, 1]} : vector<2x12x12x32xbf16> to vector<2x8x8x32xbf16>
    %62 = vector.extract_strided_slice %42 {offsets = [0, 3, 4, 0], sizes = [2, 8, 8, 32], strides = [1, 1, 1, 1]} : vector<2x12x12x32xbf16> to vector<2x8x8x32xbf16>
    %63 = vector.extract_strided_slice %42 {offsets = [0, 4, 0, 0], sizes = [2, 8, 8, 32], strides = [1, 1, 1, 1]} : vector<2x12x12x32xbf16> to vector<2x8x8x32xbf16>
    %64 = vector.extract_strided_slice %42 {offsets = [0, 4, 1, 0], sizes = [2, 8, 8, 32], strides = [1, 1, 1, 1]} : vector<2x12x12x32xbf16> to vector<2x8x8x32xbf16>
    %65 = vector.extract_strided_slice %42 {offsets = [0, 4, 2, 0], sizes = [2, 8, 8, 32], strides = [1, 1, 1, 1]} : vector<2x12x12x32xbf16> to vector<2x8x8x32xbf16>
    %66 = vector.extract_strided_slice %42 {offsets = [0, 4, 3, 0], sizes = [2, 8, 8, 32], strides = [1, 1, 1, 1]} : vector<2x12x12x32xbf16> to vector<2x8x8x32xbf16>
    %67 = vector.extract_strided_slice %42 {offsets = [0, 4, 4, 0], sizes = [2, 8, 8, 32], strides = [1, 1, 1, 1]} : vector<2x12x12x32xbf16> to vector<2x8x8x32xbf16>
    %68 = tpu.concatenate %43, %44, %45, %46 in 3 : vector<2x8x8x32xbf16>, vector<2x8x8x32xbf16>, vector<2x8x8x32xbf16>, vector<2x8x8x32xbf16> -> vector<2x8x8x128xbf16>
    %69 = tpu.concatenate %47, %48, %49, %50 in 3 : vector<2x8x8x32xbf16>, vector<2x8x8x32xbf16>, vector<2x8x8x32xbf16>, vector<2x8x8x32xbf16> -> vector<2x8x8x128xbf16>
    %70 = tpu.concatenate %51, %52, %53, %54 in 3 : vector<2x8x8x32xbf16>, vector<2x8x8x32xbf16>, vector<2x8x8x32xbf16>, vector<2x8x8x32xbf16> -> vector<2x8x8x128xbf16>
    %71 = tpu.concatenate %55, %56, %57, %58 in 3 : vector<2x8x8x32xbf16>, vector<2x8x8x32xbf16>, vector<2x8x8x32xbf16>, vector<2x8x8x32xbf16> -> vector<2x8x8x128xbf16>
    %72 = tpu.concatenate %59, %60, %61, %62 in 3 : vector<2x8x8x32xbf16>, vector<2x8x8x32xbf16>, vector<2x8x8x32xbf16>, vector<2x8x8x32xbf16> -> vector<2x8x8x128xbf16>
    %73 = tpu.concatenate %63, %64, %65, %66 in 3 : vector<2x8x8x32xbf16>, vector<2x8x8x32xbf16>, vector<2x8x8x32xbf16>, vector<2x8x8x32xbf16> -> vector<2x8x8x128xbf16>
    %cst_11 = arith.constant 0.000000e+00 : bf16
    %74 = vector.broadcast %cst_11 : bf16 to vector<2x8x8x96xbf16>
    %75 = tpu.concatenate %67, %74 in 3 : vector<2x8x8x32xbf16>, vector<2x8x8x96xbf16> -> vector<2x8x8x128xbf16>
    %76 = tpu.concatenate %68, %69, %70, %71, %72, %73, %75 in 3 : vector<2x8x8x128xbf16>, vector<2x8x8x128xbf16>, vector<2x8x8x128xbf16>, vector<2x8x8x128xbf16>, vector<2x8x8x128xbf16>, vector<2x8x8x128xbf16>, vector<2x8x8x128xbf16> -> vector<2x8x8x896xbf16>
    %77 = vector.shape_cast %76 : vector<2x8x8x896xbf16> to vector<128x896xbf16>
    %c0_12 = arith.constant 0 : index
    %c0_13 = arith.constant 0 : index
    %78 = vector.load %arg3[%c0_12, %c0_13] : memref<896x64xbf16, #tpu.memory_space<vmem>>, vector<896x64xbf16>
    %cst_14 = arith.constant dense<0.000000e+00> : vector<128x64xf32>
    %79 = tpu.matmul %77, %78, %cst_14 {dimension_numbers = #tpu.dot_dimension_numbers<[1], [0], [0], [1], [0, 0, 1, 1], [], []>} : vector<128x896xbf16>, vector<896x64xbf16>, vector<128x64xf32> -> vector<128x64xf32>
    %c0_15 = arith.constant 0 : index
    %c0_16 = arith.constant 0 : index
    %80 = vector.load %arg4[%c0_15, %c0_16] : memref<1x64xf32, #tpu.memory_space<vmem>>, vector<1x64xf32>
    %81 = vector.broadcast %80 : vector<1x64xf32> to vector<128x64xf32>
    %82 = arith.addf %79, %81 : vector<128x64xf32>
    %cst_17 = arith.constant 0.000000e+00 : f32
    %83 = vector.broadcast %cst_17 : f32 to vector<128x64xf32>
    %84 = arith.maximumf %82, %83 : vector<128x64xf32>
    %85 = vector.shape_cast %84 : vector<128x64xf32> to vector<2x8x8x64xf32>
    %86 = vector.shape_cast %85 : vector<2x8x8x64xf32> to vector<2x4x2x8x64xf32>
    %87 = vector.extract_strided_slice %86 {offsets = [0, 0, 0, 0, 0], sizes = [2, 4, 1, 8, 64], strides = [1, 1, 1, 1, 1]} : vector<2x4x2x8x64xf32> to vector<2x4x1x8x64xf32>
    %88 = vector.shape_cast %87 : vector<2x4x1x8x64xf32> to vector<2x4x8x64xf32>
    %89 = vector.extract_strided_slice %86 {offsets = [0, 0, 1, 0, 0], sizes = [2, 4, 1, 8, 64], strides = [1, 1, 1, 1, 1]} : vector<2x4x2x8x64xf32> to vector<2x4x1x8x64xf32>
    %90 = vector.shape_cast %89 : vector<2x4x1x8x64xf32> to vector<2x4x8x64xf32>
    %91 = arith.maximumf %88, %90 : vector<2x4x8x64xf32>
    %92 = vector.shape_cast %91 : vector<2x4x8x64xf32> to vector<2x4x4x2x64xf32>
    %93 = vector.extract_strided_slice %92 {offsets = [0, 0, 0, 0, 0], sizes = [2, 4, 4, 1, 64], strides = [1, 1, 1, 1, 1]} : vector<2x4x4x2x64xf32> to vector<2x4x4x1x64xf32>
    %94 = vector.shape_cast %93 : vector<2x4x4x1x64xf32> to vector<2x4x4x64xf32>
    %95 = vector.extract_strided_slice %92 {offsets = [0, 0, 0, 1, 0], sizes = [2, 4, 4, 1, 64], strides = [1, 1, 1, 1, 1]} : vector<2x4x4x2x64xf32> to vector<2x4x4x1x64xf32>
    %96 = vector.shape_cast %95 : vector<2x4x4x1x64xf32> to vector<2x4x4x64xf32>
    %97 = arith.maximumf %94, %96 : vector<2x4x4x64xf32>
    %98 = vector.shape_cast %97 : vector<2x4x4x64xf32> to vector<32x64xf32>
    %cst_18 = arith.constant dense<0.000000e+00> : vector<64xf32>
    %99 = vector.multi_reduction <add>, %98, %cst_18 [0] : vector<32x64xf32> to vector<64xf32>
    %100 = vector.shape_cast %99 : vector<64xf32> to vector<1x64xf32>
    %cst_19 = arith.constant 3.125000e-02 : f32
    %101 = vector.broadcast %cst_19 : f32 to vector<1x64xf32>
    %102 = arith.mulf %100, %101 : vector<1x64xf32>
    %103 = arith.mulf %98, %98 : vector<32x64xf32>
    %cst_20 = arith.constant dense<0.000000e+00> : vector<64xf32>
    %104 = vector.multi_reduction <add>, %103, %cst_20 [0] : vector<32x64xf32> to vector<64xf32>
    %105 = vector.shape_cast %104 : vector<64xf32> to vector<1x64xf32>
    %cst_21 = arith.constant 3.125000e-02 : f32
    %106 = vector.broadcast %cst_21 : f32 to vector<1x64xf32>
    %107 = arith.mulf %105, %106 : vector<1x64xf32>
    %108 = arith.mulf %102, %102 : vector<1x64xf32>
    %109 = arith.subf %107, %108 : vector<1x64xf32>
    %110 = vector.shape_cast %102 : vector<1x64xf32> to vector<1x1x1x64xf32>
    %111 = vector.broadcast %110 : vector<1x1x1x64xf32> to vector<2x4x4x64xf32>
    %112 = arith.subf %97, %111 : vector<2x4x4x64xf32>
    %cst_22 = arith.constant 9.99999974E-6 : f32
    %113 = vector.broadcast %cst_22 : f32 to vector<1x64xf32>
    %114 = arith.addf %109, %113 : vector<1x64xf32>
    %115 = math.rsqrt %114 : vector<1x64xf32>
    %116 = vector.shape_cast %115 : vector<1x64xf32> to vector<1x1x1x64xf32>
    %117 = vector.broadcast %116 : vector<1x1x1x64xf32> to vector<2x4x4x64xf32>
    %118 = arith.mulf %112, %117 : vector<2x4x4x64xf32>
    %119 = arith.truncf %118 : vector<2x4x4x64xf32> to vector<2x4x4x64xbf16>
    %120 = vector.shape_cast %119 : vector<2x4x4x64xbf16> to vector<2x16x64xbf16>
    %121 = vector.extract_strided_slice %120 {offsets = [0, 0, 0], sizes = [2, 1, 64], strides = [1, 1, 1]} : vector<2x16x64xbf16> to vector<2x1x64xbf16>
    %122 = vector.shape_cast %121 : vector<2x1x64xbf16> to vector<2x64xbf16>
    %123 = vector.extract_strided_slice %120 {offsets = [0, 1, 0], sizes = [2, 1, 64], strides = [1, 1, 1]} : vector<2x16x64xbf16> to vector<2x1x64xbf16>
    %124 = vector.shape_cast %123 : vector<2x1x64xbf16> to vector<2x64xbf16>
    %125 = tpu.concatenate %122, %124 in 1 : vector<2x64xbf16>, vector<2x64xbf16> -> vector<2x128xbf16>
    %126 = vector.extract_strided_slice %120 {offsets = [0, 2, 0], sizes = [2, 1, 64], strides = [1, 1, 1]} : vector<2x16x64xbf16> to vector<2x1x64xbf16>
    %127 = vector.shape_cast %126 : vector<2x1x64xbf16> to vector<2x64xbf16>
    %128 = vector.extract_strided_slice %120 {offsets = [0, 3, 0], sizes = [2, 1, 64], strides = [1, 1, 1]} : vector<2x16x64xbf16> to vector<2x1x64xbf16>
    %129 = vector.shape_cast %128 : vector<2x1x64xbf16> to vector<2x64xbf16>
    %130 = tpu.concatenate %127, %129 in 1 : vector<2x64xbf16>, vector<2x64xbf16> -> vector<2x128xbf16>
    %131 = vector.extract_strided_slice %120 {offsets = [0, 4, 0], sizes = [2, 1, 64], strides = [1, 1, 1]} : vector<2x16x64xbf16> to vector<2x1x64xbf16>
    %132 = vector.shape_cast %131 : vector<2x1x64xbf16> to vector<2x64xbf16>
    %133 = vector.extract_strided_slice %120 {offsets = [0, 5, 0], sizes = [2, 1, 64], strides = [1, 1, 1]} : vector<2x16x64xbf16> to vector<2x1x64xbf16>
    %134 = vector.shape_cast %133 : vector<2x1x64xbf16> to vector<2x64xbf16>
    %135 = tpu.concatenate %132, %134 in 1 : vector<2x64xbf16>, vector<2x64xbf16> -> vector<2x128xbf16>
    %136 = vector.extract_strided_slice %120 {offsets = [0, 6, 0], sizes = [2, 1, 64], strides = [1, 1, 1]} : vector<2x16x64xbf16> to vector<2x1x64xbf16>
    %137 = vector.shape_cast %136 : vector<2x1x64xbf16> to vector<2x64xbf16>
    %138 = vector.extract_strided_slice %120 {offsets = [0, 7, 0], sizes = [2, 1, 64], strides = [1, 1, 1]} : vector<2x16x64xbf16> to vector<2x1x64xbf16>
    %139 = vector.shape_cast %138 : vector<2x1x64xbf16> to vector<2x64xbf16>
    %140 = tpu.concatenate %137, %139 in 1 : vector<2x64xbf16>, vector<2x64xbf16> -> vector<2x128xbf16>
    %141 = vector.extract_strided_slice %120 {offsets = [0, 8, 0], sizes = [2, 1, 64], strides = [1, 1, 1]} : vector<2x16x64xbf16> to vector<2x1x64xbf16>
    %142 = vector.shape_cast %141 : vector<2x1x64xbf16> to vector<2x64xbf16>
    %143 = vector.extract_strided_slice %120 {offsets = [0, 9, 0], sizes = [2, 1, 64], strides = [1, 1, 1]} : vector<2x16x64xbf16> to vector<2x1x64xbf16>
    %144 = vector.shape_cast %143 : vector<2x1x64xbf16> to vector<2x64xbf16>
    %145 = tpu.concatenate %142, %144 in 1 : vector<2x64xbf16>, vector<2x64xbf16> -> vector<2x128xbf16>
    %146 = vector.extract_strided_slice %120 {offsets = [0, 10, 0], sizes = [2, 1, 64], strides = [1, 1, 1]} : vector<2x16x64xbf16> to vector<2x1x64xbf16>
    %147 = vector.shape_cast %146 : vector<2x1x64xbf16> to vector<2x64xbf16>
    %148 = vector.extract_strided_slice %120 {offsets = [0, 11, 0], sizes = [2, 1, 64], strides = [1, 1, 1]} : vector<2x16x64xbf16> to vector<2x1x64xbf16>
    %149 = vector.shape_cast %148 : vector<2x1x64xbf16> to vector<2x64xbf16>
    %150 = tpu.concatenate %147, %149 in 1 : vector<2x64xbf16>, vector<2x64xbf16> -> vector<2x128xbf16>
    %151 = vector.extract_strided_slice %120 {offsets = [0, 12, 0], sizes = [2, 1, 64], strides = [1, 1, 1]} : vector<2x16x64xbf16> to vector<2x1x64xbf16>
    %152 = vector.shape_cast %151 : vector<2x1x64xbf16> to vector<2x64xbf16>
    %153 = vector.extract_strided_slice %120 {offsets = [0, 13, 0], sizes = [2, 1, 64], strides = [1, 1, 1]} : vector<2x16x64xbf16> to vector<2x1x64xbf16>
    %154 = vector.shape_cast %153 : vector<2x1x64xbf16> to vector<2x64xbf16>
    %155 = tpu.concatenate %152, %154 in 1 : vector<2x64xbf16>, vector<2x64xbf16> -> vector<2x128xbf16>
    %156 = vector.extract_strided_slice %120 {offsets = [0, 14, 0], sizes = [2, 1, 64], strides = [1, 1, 1]} : vector<2x16x64xbf16> to vector<2x1x64xbf16>
    %157 = vector.shape_cast %156 : vector<2x1x64xbf16> to vector<2x64xbf16>
    %158 = vector.extract_strided_slice %120 {offsets = [0, 15, 0], sizes = [2, 1, 64], strides = [1, 1, 1]} : vector<2x16x64xbf16> to vector<2x1x64xbf16>
    %159 = vector.shape_cast %158 : vector<2x1x64xbf16> to vector<2x64xbf16>
    %160 = tpu.concatenate %157, %159 in 1 : vector<2x64xbf16>, vector<2x64xbf16> -> vector<2x128xbf16>
    %161 = tpu.concatenate %125, %130, %135, %140, %145, %150, %155, %160 in 1 : vector<2x128xbf16>, vector<2x128xbf16>, vector<2x128xbf16>, vector<2x128xbf16>, vector<2x128xbf16>, vector<2x128xbf16>, vector<2x128xbf16>, vector<2x128xbf16> -> vector<2x1024xbf16>
    %c0_23 = arith.constant 0 : index
    %c0_24 = arith.constant 0 : index
    %162 = vector.load %arg5[%c0_23, %c0_24] : memref<1024x128xbf16, #tpu.memory_space<vmem>>, vector<1024x128xbf16>
    %cst_25 = arith.constant dense<0.000000e+00> : vector<2x128xf32>
    %163 = tpu.matmul %161, %162, %cst_25 {dimension_numbers = #tpu.dot_dimension_numbers<[1], [0], [0], [1], [0, 0, 1, 1], [], []>} : vector<2x1024xbf16>, vector<1024x128xbf16>, vector<2x128xf32> -> vector<2x128xf32>
    %c0_26 = arith.constant 0 : index
    %c0_27 = arith.constant 0 : index
    %164 = vector.load %arg6[%c0_26, %c0_27] : memref<1x128xf32, #tpu.memory_space<vmem>>, vector<1x128xf32>
    %165 = vector.broadcast %164 : vector<1x128xf32> to vector<2x128xf32>
    %166 = arith.addf %163, %165 : vector<2x128xf32>
    %c0_28 = arith.constant 0 : index
    %c0_29 = arith.constant 0 : index
    %167 = vector.load %arg7[%c0_28, %c0_29] : memref<2x128xf32, #tpu.memory_space<vmem>>, vector<2x128xf32>
    tpu.vector_store %arg7[%c0_28, %c0_29], %166 {strides = array<i32>} : memref<2x128xf32, #tpu.memory_space<vmem>>, vector<2x128xf32>,
    return
  }
}

</mosaic_0001>

<llo_original>
// kernel: conv_model_forward.1
$region0: #{conv_model_forward.1}
  #allocation0 [shape = 'u32[]', space=smem, size = 0x4, offset = 0x4, fixed_abs, tag = 'smem constant byte address 0x4 - core index']
  #allocation1 [shape = 'u32[72,128]{1,0:T(1,128)}', space=vmem, size = 0x9000, scoped, tag = 'internal scratch']
  %s0 = inlined_call_operand.vmem [shape: bf16[1152,32], index: 0, kind: input, shape index: {}]
  %s1 = inlined_call_operand.vmem [shape: bf16[32,32], index: 1, kind: input, shape index: {}]
  %s2 = inlined_call_operand.vmem [shape: f32[1,32], index: 2, kind: input, shape index: {}]
  %s3 = inlined_call_operand.vmem [shape: bf16[896,64], index: 3, kind: input, shape index: {}]
  %s4 = inlined_call_operand.vmem [shape: f32[1,64], index: 4, kind: input, shape index: {}]
  %s5 = inlined_call_operand.vmem [shape: bf16[1024,128], index: 5, kind: input, shape index: {}]
  %s6 = inlined_call_operand.vmem [shape: f32[1,128], index: 6, kind: input, shape index: {}]
  %s7 = inlined_call_operand.hbm [shape: f32[2,128], index: 7, kind: output, shape index: {}]
  %s8 = sld [smem:[#allocation0]]
  $region38: #{conv_model_forward.1} parent=0
    _
  %s10 = ssub.s32 1, %s8
  %s11 = scalar_select 0, %s10, %s8
  $region1: #{conv_model_forward.1} parent=0
    #allocation2 [shape = 'u8[1024]{0}', space=vmem, size = 0x400, scoped, tag = 'output window, operand 0, single buffered']
    #allocation3 [shape = 's32[1]{0}', space=sflag, size = 0x4, scoped, tag = 'scoped memory for conv_model_forward.1']
    %12 = vsyncpa [#allocation3], 0
    // Predicated region
    $region2: #{conv_model_forward.1} parent=1 // pred_check
      _
    $region3: #{conv_model_forward.1} parent=1 // pred_check_branch
      %14 = sbr.rel (0) target = $region5
    $region4: #{conv_model_forward.1} parent=1 // pred_region
      _
    $region5: #{conv_model_forward.1} parent=1 // pred_fallthru
      _
    // Predicated region
    $region6: #{conv_model_forward.1} parent=1 // pred_check
      _
    $region7: #{conv_model_forward.1} parent=1 // pred_check_branch
      %16 = sbr.rel (0) target = $region9
    $region8: #{conv_model_forward.1} parent=1 // pred_region
      _
    $region9: #{conv_model_forward.1} parent=1 // pred_fallthru
      _
    // Predicated region
    $region10: #{conv_model_forward.1} parent=1 // pred_check
      _
    $region11: #{conv_model_forward.1} parent=1 // pred_check_branch
      %18 = sbr.rel (0) target = $region13
    $region12: #{conv_model_forward.1} parent=1 // pred_region
      _
    $region13: #{conv_model_forward.1} parent=1 // pred_fallthru
      _
    // Predicated region
    $region14: #{conv_model_forward.1} parent=1 // pred_check
      _
    $region15: #{conv_model_forward.1} parent=1 // pred_check_branch
      %20 = sbr.rel (0) target = $region17
    $region16: #{conv_model_forward.1} parent=1 // pred_region
      _
    $region17: #{conv_model_forward.1} parent=1 // pred_fallthru
      _
    // Predicated region
    $region18: #{conv_model_forward.1} parent=1 // pred_check
      _
    $region19: #{conv_model_forward.1} parent=1 // pred_check_branch
      %22 = sbr.rel (0) target = $region21
    $region20: #{conv_model_forward.1} parent=1 // pred_region
      _
    $region21: #{conv_model_forward.1} parent=1 // pred_fallthru
      _
    // Predicated region
    $region22: #{conv_model_forward.1} parent=1 // pred_check
      _
    $region23: #{conv_model_forward.1} parent=1 // pred_check_branch
      %24 = sbr.rel (0) target = $region25
    $region24: #{conv_model_forward.1} parent=1 // pred_region
      _
    $region25: #{conv_model_forward.1} parent=1 // pred_fallthru
      _
    // Predicated region
    $region26: #{conv_model_forward.1} parent=1 // pred_check
      _
    $region27: #{conv_model_forward.1} parent=1 // pred_check_branch
      %26 = sbr.rel (0) target = $region29
    $region28: #{conv_model_forward.1} parent=1 // pred_region
      _
    $region29: #{conv_model_forward.1} parent=1 // pred_fallthru
      _
    %v28 = vld [vmem:[%s0] sm:$0xf]
    %v29 = vld [vmem:[%s0 + $0x4] sm:$0xf]
    %v30 = vld [vmem:[%s0 + $0x8] sm:$0xf]
    %v31 = vld [vmem:[%s0 + $0xc] sm:$0xf]
    %v32 = vld [vmem:[%s0 + $0x10] sm:$0xf]
    %v33 = vld [vmem:[%s0 + $0x14] sm:$0xf]
    %v34 = vld [vmem:[%s0 + $0x18] sm:$0xf]
    %v35 = vld [vmem:[%s0 + $0x1c] sm:$0xf]
    %v36 = vld [vmem:[%s0 + $0x20] sm:$0xf]
    %v37 = vld [vmem:[%s0 + $0x24] sm:$0xf]
    %v38 = vld [vmem:[%s0 + $0x28] sm:$0xf]
    %v39 = vld [vmem:[%s0 + $0x2c] sm:$0xf]
    %v40 = vld [vmem:[%s0 + $0x30] sm:$0xf]
    %v41 = vld [vmem:[%s0 + $0x34] sm:$0xf]
    %v42 = vld [vmem:[%s0 + $0x38] sm:$0xf]
    %v43 = vld [vmem:[%s0 + $0x3c] sm:$0xf]
    %v44 = vld [vmem:[%s0 + $0x40] sm:$0xf]
    %v45 = vld [vmem:[%s0 + $0x44] sm:$0xf]
    %v46 = vld [vmem:[%s0 + $0x48] sm:$0xf]
    %v47 = vld [vmem:[%s0 + $0x4c] sm:$0xf]
    %v48 = vld [vmem:[%s0 + $0x50] sm:$0xf]
    %v49 = vld [vmem:[%s0 + $0x54] sm:$0xf]
    %v50 = vld [vmem:[%s0 + $0x58] sm:$0xf]
    %v51 = vld [vmem:[%s0 + $0x5c] sm:$0xf]
    %v52 = vld [vmem:[%s0 + $0x60] sm:$0xf]
    %v53 = vld [vmem:[%s0 + $0x64] sm:$0xf]
    %v54 = vld [vmem:[%s0 + $0x68] sm:$0xf]
    %v55 = vld [vmem:[%s0 + $0x6c] sm:$0xf]
    %v56 = vld [vmem:[%s0 + $0x70] sm:$0xf]
    %v57 = vld [vmem:[%s0 + $0x74] sm:$0xf]
    %v58 = vld [vmem:[%s0 + $0x78] sm:$0xf]
    %v59 = vld [vmem:[%s0 + $0x7c] sm:$0xf]
    %v60 = vld [vmem:[%s0 + $0x80] sm:$0xf]
    %v61 = vld [vmem:[%s0 + $0x84] sm:$0xf]
    %v62 = vld [vmem:[%s0 + $0x88] sm:$0xf]
    %v63 = vld [vmem:[%s0 + $0x8c] sm:$0xf]
    %v64 = vld [vmem:[%s0 + $0x90] sm:$0xf]
    %v65 = vld [vmem:[%s0 + $0x94] sm:$0xf]
    %v66 = vld [vmem:[%s0 + $0x98] sm:$0xf]
    %v67 = vld [vmem:[%s0 + $0x9c] sm:$0xf]
    %v68 = vld [vmem:[%s0 + $0xa0] sm:$0xf]
    %v69 = vld [vmem:[%s0 + $0xa4] sm:$0xf]
    %v70 = vld [vmem:[%s0 + $0xa8] sm:$0xf]
    %v71 = vld [vmem:[%s0 + $0xac] sm:$0xf]
    %v72 = vld [vmem:[%s0 + $0xb0] sm:$0xf]
    %v73 = vld [vmem:[%s0 + $0xb4] sm:$0xf]
    %v74 = vld [vmem:[%s0 + $0xb8] sm:$0xf]
    %v75 = vld [vmem:[%s0 + $0xbc] sm:$0xf]
    %v76 = vld [vmem:[%s0 + $0xc0] sm:$0xf]
    %v77 = vld [vmem:[%s0 + $0xc4] sm:$0xf]
    %v78 = vld [vmem:[%s0 + $0xc8] sm:$0xf]
    %v79 = vld [vmem:[%s0 + $0xcc] sm:$0xf]
    %v80 = vld [vmem:[%s0 + $0xd0] sm:$0xf]
    %v81 = vld [vmem:[%s0 + $0xd4] sm:$0xf]
    %v82 = vld [vmem:[%s0 + $0xd8] sm:$0xf]
    %v83 = vld [vmem:[%s0 + $0xdc] sm:$0xf]
    %v84 = vld [vmem:[%s0 + $0xe0] sm:$0xf]
    %v85 = vld [vmem:[%s0 + $0xe4] sm:$0xf]
    %v86 = vld [vmem:[%s0 + $0xe8] sm:$0xf]
    %v87 = vld [vmem:[%s0 + $0xec] sm:$0xf]
    %v88 = vld [vmem:[%s0 + $0xf0] sm:$0xf]
    %v89 = vld [vmem:[%s0 + $0xf4] sm:$0xf]
    %v90 = vld [vmem:[%s0 + $0xf8] sm:$0xf]
    %v91 = vld [vmem:[%s0 + $0xfc] sm:$0xf]
    %v92 = vld [vmem:[%s0 + $0x100] sm:$0xf]
    %v93 = vld [vmem:[%s0 + $0x104] sm:$0xf]
    %v94 = vld [vmem:[%s0 + $0x108] sm:$0xf]
    %v95 = vld [vmem:[%s0 + $0x10c] sm:$0xf]
    %v96 = vld [vmem:[%s0 + $0x110] sm:$0xf]
    %v97 = vld [vmem:[%s0 + $0x114] sm:$0xf]
    %v98 = vld [vmem:[%s0 + $0x118] sm:$0xf]
    %v99 = vld [vmem:[%s0 + $0x11c] sm:$0xf]
    %v100 = vld [vmem:[%s0 + $0x120] sm:$0xf]
    %v101 = vld [vmem:[%s0 + $0x124] sm:$0xf]
    %v102 = vld [vmem:[%s0 + $0x128] sm:$0xf]
    %v103 = vld [vmem:[%s0 + $0x12c] sm:$0xf]
    %v104 = vld [vmem:[%s0 + $0x130] sm:$0xf]
    %v105 = vld [vmem:[%s0 + $0x134] sm:$0xf]
    %v106 = vld [vmem:[%s0 + $0x138] sm:$0xf]
    %v107 = vld [vmem:[%s0 + $0x13c] sm:$0xf]
    %v108 = vld [vmem:[%s0 + $0x140] sm:$0xf]
    %v109 = vld [vmem:[%s0 + $0x144] sm:$0xf]
    %v110 = vld [vmem:[%s0 + $0x148] sm:$0xf]
    %v111 = vld [vmem:[%s0 + $0x14c] sm:$0xf]
    %v112 = vld [vmem:[%s0 + $0x150] sm:$0xf]
    %v113 = vld [vmem:[%s0 + $0x154] sm:$0xf]
    %v114 = vld [vmem:[%s0 + $0x158] sm:$0xf]
    %v115 = vld [vmem:[%s0 + $0x15c] sm:$0xf]
    %v116 = vld [vmem:[%s0 + $0x160] sm:$0xf]
    %v117 = vld [vmem:[%s0 + $0x164] sm:$0xf]
    %v118 = vld [vmem:[%s0 + $0x168] sm:$0xf]
    %v119 = vld [vmem:[%s0 + $0x16c] sm:$0xf]
    %v120 = vld [vmem:[%s0 + $0x170] sm:$0xf]
    %v121 = vld [vmem:[%s0 + $0x174] sm:$0xf]
    %v122 = vld [vmem:[%s0 + $0x178] sm:$0xf]
    %v123 = vld [vmem:[%s0 + $0x17c] sm:$0xf]
    %v124 = vld [vmem:[%s0 + $0x180] sm:$0xf]
    %v125 = vld [vmem:[%s0 + $0x184] sm:$0xf]
    %v126 = vld [vmem:[%s0 + $0x188] sm:$0xf]
    %v127 = vld [vmem:[%s0 + $0x18c] sm:$0xf]
    %v128 = vld [vmem:[%s0 + $0x190] sm:$0xf]
    %v129 = vld [vmem:[%s0 + $0x194] sm:$0xf]
    %v130 = vld [vmem:[%s0 + $0x198] sm:$0xf]
    %v131 = vld [vmem:[%s0 + $0x19c] sm:$0xf]
    %v132 = vld [vmem:[%s0 + $0x1a0] sm:$0xf]
    %v133 = vld [vmem:[%s0 + $0x1a4] sm:$0xf]
    %v134 = vld [vmem:[%s0 + $0x1a8] sm:$0xf]
    %v135 = vld [vmem:[%s0 + $0x1ac] sm:$0xf]
    %v136 = vld [vmem:[%s0 + $0x1b0] sm:$0xf]
    %v137 = vld [vmem:[%s0 + $0x1b4] sm:$0xf]
    %v138 = vld [vmem:[%s0 + $0x1b8] sm:$0xf]
    %v139 = vld [vmem:[%s0 + $0x1bc] sm:$0xf]
    %v140 = vld [vmem:[%s0 + $0x1c0] sm:$0xf]
    %v141 = vld [vmem:[%s0 + $0x1c4] sm:$0xf]
    %v142 = vld [vmem:[%s0 + $0x1c8] sm:$0xf]
    %v143 = vld [vmem:[%s0 + $0x1cc] sm:$0xf]
    %v144 = vld [vmem:[%s0 + $0x1d0] sm:$0xf]
    %v145 = vld [vmem:[%s0 + $0x1d4] sm:$0xf]
    %v146 = vld [vmem:[%s0 + $0x1d8] sm:$0xf]
    %v147 = vld [vmem:[%s0 + $0x1dc] sm:$0xf]
    %v148 = vld [vmem:[%s0 + $0x1e0] sm:$0xf]
    %v149 = vld [vmem:[%s0 + $0x1e4] sm:$0xf]
    %v150 = vld [vmem:[%s0 + $0x1e8] sm:$0xf]
    %v151 = vld [vmem:[%s0 + $0x1ec] sm:$0xf]
    %v152 = vld [vmem:[%s0 + $0x1f0] sm:$0xf]
    %v153 = vld [vmem:[%s0 + $0x1f4] sm:$0xf]
    %v154 = vld [vmem:[%s0 + $0x1f8] sm:$0xf]
    %v155 = vld [vmem:[%s0 + $0x1fc] sm:$0xf]
    %v156 = vld [vmem:[%s0 + $0x200] sm:$0xf]
    %v157 = vld [vmem:[%s0 + $0x204] sm:$0xf]
    %v158 = vld [vmem:[%s0 + $0x208] sm:$0xf]
    %v159 = vld [vmem:[%s0 + $0x20c] sm:$0xf]
    %v160 = vld [vmem:[%s0 + $0x210] sm:$0xf]
    %v161 = vld [vmem:[%s0 + $0x214] sm:$0xf]
    %v162 = vld [vmem:[%s0 + $0x218] sm:$0xf]
    %v163 = vld [vmem:[%s0 + $0x21c] sm:$0xf]
    %v164 = vld [vmem:[%s0 + $0x220] sm:$0xf]
    %v165 = vld [vmem:[%s0 + $0x224] sm:$0xf]
    %v166 = vld [vmem:[%s0 + $0x228] sm:$0xf]
    %v167 = vld [vmem:[%s0 + $0x22c] sm:$0xf]
    %v168 = vld [vmem:[%s0 + $0x230] sm:$0xf]
    %v169 = vld [vmem:[%s0 + $0x234] sm:$0xf]
    %v170 = vld [vmem:[%s0 + $0x238] sm:$0xf]
    %v171 = vld [vmem:[%s0 + $0x23c] sm:$0xf]
    %v172 = vld [vmem:[%s1] sm:$0xf]
    %v173 = vld [vmem:[%s1 + $0x4] sm:$0xf]
    %v174 = vld [vmem:[%s1 + $0x8] sm:$0xf]
    %v175 = vld [vmem:[%s1 + $0xc] sm:$0xf]
    %v176 = vld [vmem:[%s2] sm:$0x1]
    %v178 = vperm.slane %v176, 0
    %v324 = vunpack.c.l.b16 %v28
    %v325 = vunpack.c.l.b16 %v29
    %v326 = vunpack.c.l.b16 %v30
    %v327 = vunpack.c.l.b16 %v31
    %v328 = vunpack.c.l.b16 %v32
    %v329 = vunpack.c.l.b16 %v33
    %v330 = vunpack.c.l.b16 %v34
    %v331 = vunpack.c.l.b16 %v35
    %v332 = vunpack.c.l.b16 %v36
    %v333 = vunpack.c.l.b16 %v37
    %v334 = vunpack.c.l.b16 %v38
    %v335 = vunpack.c.l.b16 %v39
    %v336 = vunpack.c.l.b16 %v40
    %v337 = vunpack.c.l.b16 %v41
    %v338 = vunpack.c.l.b16 %v42
    %v339 = vunpack.c.l.b16 %v43
    %v340 = vunpack.c.l.b16 %v44
    %v341 = vunpack.c.l.b16 %v45
    %v342 = vunpack.c.l.b16 %v46
    %v343 = vunpack.c.l.b16 %v47
    %v344 = vunpack.c.l.b16 %v48
    %v345 = vunpack.c.l.b16 %v49
    %v346 = vunpack.c.l.b16 %v50
    %v347 = vunpack.c.l.b16 %v51
    %v348 = vunpack.c.l.b16 %v52
    %v349 = vunpack.c.l.b16 %v53
    %v350 = vunpack.c.l.b16 %v54
    %v351 = vunpack.c.l.b16 %v55
    %v352 = vunpack.c.l.b16 %v56
    %v353 = vunpack.c.l.b16 %v57
    %v354 = vunpack.c.l.b16 %v58
    %v355 = vunpack.c.l.b16 %v59
    %v356 = vunpack.c.l.b16 %v60
    %v357 = vunpack.c.l.b16 %v61
    %v358 = vunpack.c.l.b16 %v62
    %v359 = vunpack.c.l.b16 %v63
    %v360 = vunpack.c.l.b16 %v64
    %v361 = vunpack.c.l.b16 %v65
    %v362 = vunpack.c.l.b16 %v66
    %v363 = vunpack.c.l.b16 %v67
    %v364 = vunpack.c.l.b16 %v68
    %v365 = vunpack.c.l.b16 %v69
    %v366 = vunpack.c.l.b16 %v70
    %v367 = vunpack.c.l.b16 %v71
    %v368 = vunpack.c.l.b16 %v72
    %v369 = vunpack.c.l.b16 %v73
    %v370 = vunpack.c.l.b16 %v74
    %v371 = vunpack.c.l.b16 %v75
    %v372 = vunpack.c.l.b16 %v76
    %v373 = vunpack.c.l.b16 %v77
    %v374 = vunpack.c.l.b16 %v78
    %v375 = vunpack.c.l.b16 %v79
    %v376 = vunpack.c.l.b16 %v80
    %v377 = vunpack.c.l.b16 %v81
    %v378 = vunpack.c.l.b16 %v82
    %v379 = vunpack.c.l.b16 %v83
    %v380 = vunpack.c.l.b16 %v84
    %v381 = vunpack.c.l.b16 %v85
    %v382 = vunpack.c.l.b16 %v86
    %v383 = vunpack.c.l.b16 %v87
    %v384 = vunpack.c.l.b16 %v88
    %v385 = vunpack.c.l.b16 %v89
    %v386 = vunpack.c.l.b16 %v90
    %v387 = vunpack.c.l.b16 %v91
    %v388 = vunpack.c.l.b16 %v92
    %v389 = vunpack.c.l.b16 %v93
    %v390 = vunpack.c.l.b16 %v94
    %v391 = vunpack.c.l.b16 %v95
    %v392 = vunpack.c.l.b16 %v96
    %v393 = vunpack.c.l.b16 %v97
    %v394 = vunpack.c.l.b16 %v98
    %v395 = vunpack.c.l.b16 %v99
    %v396 = vunpack.c.l.b16 %v100
    %v397 = vunpack.c.l.b16 %v101
    %v398 = vunpack.c.l.b16 %v102
    %v399 = vunpack.c.l.b16 %v103
    %v400 = vunpack.c.l.b16 %v104
    %v401 = vunpack.c.l.b16 %v105
    %v402 = vunpack.c.l.b16 %v106
    %v403 = vunpack.c.l.b16 %v107
    %v404 = vunpack.c.l.b16 %v108
    %v405 = vunpack.c.l.b16 %v109
    %v406 = vunpack.c.l.b16 %v110
    %v407 = vunpack.c.l.b16 %v111
    %v408 = vunpack.c.l.b16 %v112
    %v409 = vunpack.c.l.b16 %v113
    %v410 = vunpack.c.l.b16 %v114
    %v411 = vunpack.c.l.b16 %v115
    %v412 = vunpack.c.l.b16 %v116
    %v413 = vunpack.c.l.b16 %v117
    %v414 = vunpack.c.l.b16 %v118
    %v415 = vunpack.c.l.b16 %v119
    %v416 = vunpack.c.l.b16 %v120
    %v417 = vunpack.c.l.b16 %v121
    %v418 = vunpack.c.l.b16 %v122
    %v419 = vunpack.c.l.b16 %v123
    %v420 = vunpack.c.l.b16 %v124
    %v421 = vunpack.c.l.b16 %v125
    %v422 = vunpack.c.l.b16 %v126
    %v423 = vunpack.c.l.b16 %v127
    %v424 = vunpack.c.l.b16 %v128
    %v425 = vunpack.c.l.b16 %v129
    %v426 = vunpack.c.l.b16 %v130
    %v427 = vunpack.c.l.b16 %v131
    %v428 = vunpack.c.l.b16 %v132
    %v429 = vunpack.c.l.b16 %v133
    %v430 = vunpack.c.l.b16 %v134
    %v431 = vunpack.c.l.b16 %v135
    %v432 = vunpack.c.l.b16 %v136
    %v433 = vunpack.c.l.b16 %v137
    %v434 = vunpack.c.l.b16 %v138
    %v435 = vunpack.c.l.b16 %v139
    %v436 = vunpack.c.l.b16 %v140
    %v437 = vunpack.c.l.b16 %v141
    %v438 = vunpack.c.l.b16 %v142
    %v439 = vunpack.c.l.b16 %v143
    %v440 = vunpack.c.l.b16 %v144
    %v441 = vunpack.c.l.b16 %v145
    %v442 = vunpack.c.l.b16 %v146
    %v443 = vunpack.c.l.b16 %v147
    %v444 = vunpack.c.l.b16 %v148
    %v445 = vunpack.c.l.b16 %v149
    %v446 = vunpack.c.l.b16 %v150
    %v447 = vunpack.c.l.b16 %v151
    %v448 = vunpack.c.l.b16 %v152
    %v449 = vunpack.c.l.b16 %v153
    %v450 = vunpack.c.l.b16 %v154
    %v451 = vunpack.c.l.b16 %v155
    %v452 = vunpack.c.l.b16 %v156
    %v453 = vunpack.c.l.b16 %v157
    %v454 = vunpack.c.l.b16 %v158
    %v455 = vunpack.c.l.b16 %v159
    %v456 = vunpack.c.l.b16 %v160
    %v457 = vunpack.c.l.b16 %v161
    %v458 = vunpack.c.l.b16 %v162
    %v459 = vunpack.c.l.b16 %v163
    %v460 = vunpack.c.l.b16 %v164
    %v461 = vunpack.c.l.b16 %v165
    %v462 = vunpack.c.l.b16 %v166
    %v463 = vunpack.c.l.b16 %v167
    %v464 = vunpack.c.l.b16 %v168
    %v465 = vunpack.c.l.b16 %v169
    %v466 = vunpack.c.l.b16 %v170
    %v467 = vunpack.c.l.b16 %v171
    %v468 = vpack.c.b16 %v325, %v324
    %v469 = vpack.c.b16 %v327, %v326
    %v470 = vpack.c.b16 %v329, %v328
    %v471 = vpack.c.b16 %v331, %v330
    %v472 = vpack.c.b16 %v333, %v332
    %v473 = vpack.c.b16 %v335, %v334
    %v474 = vpack.c.b16 %v337, %v336
    %v475 = vpack.c.b16 %v339, %v338
    %v476 = vpack.c.b16 %v341, %v340
    %v477 = vpack.c.b16 %v343, %v342
    %v478 = vpack.c.b16 %v345, %v344
    %v479 = vpack.c.b16 %v347, %v346
    %v480 = vpack.c.b16 %v349, %v348
    %v481 = vpack.c.b16 %v351, %v350
    %v482 = vpack.c.b16 %v353, %v352
    %v483 = vpack.c.b16 %v355, %v354
    %v484 = vpack.c.b16 %v357, %v356
    %v485 = vpack.c.b16 %v359, %v358
    %v486 = vpack.c.b16 %v361, %v360
    %v487 = vpack.c.b16 %v363, %v362
    %v488 = vpack.c.b16 %v365, %v364
    %v489 = vpack.c.b16 %v367, %v366
    %v490 = vpack.c.b16 %v369, %v368
    %v491 = vpack.c.b16 %v371, %v370
    %v492 = vpack.c.b16 %v373, %v372
    %v493 = vpack.c.b16 %v375, %v374
    %v494 = vpack.c.b16 %v377, %v376
    %v495 = vpack.c.b16 %v379, %v378
    %v496 = vpack.c.b16 %v381, %v380
    %v497 = vpack.c.b16 %v383, %v382
    %v498 = vpack.c.b16 %v385, %v384
    %v499 = vpack.c.b16 %v387, %v386
    %v500 = vpack.c.b16 %v389, %v388
    %v501 = vpack.c.b16 %v391, %v390
    %v502 = vpack.c.b16 %v393, %v392
    %v503 = vpack.c.b16 %v395, %v394
    %v504 = vpack.c.b16 %v397, %v396
    %v505 = vpack.c.b16 %v399, %v398
    %v506 = vpack.c.b16 %v401, %v400
    %v507 = vpack.c.b16 %v403, %v402
    %v508 = vpack.c.b16 %v405, %v404
    %v509 = vpack.c.b16 %v407, %v406
    %v510 = vpack.c.b16 %v409, %v408
    %v511 = vpack.c.b16 %v411, %v410
    %v512 = vpack.c.b16 %v413, %v412
    %v513 = vpack.c.b16 %v415, %v414
    %v514 = vpack.c.b16 %v417, %v416
    %v515 = vpack.c.b16 %v419, %v418
    %v516 = vpack.c.b16 %v421, %v420
    %v517 = vpack.c.b16 %v423, %v422
    %v518 = vpack.c.b16 %v425, %v424
    %v519 = vpack.c.b16 %v427, %v426
    %v520 = vpack.c.b16 %v429, %v428
    %v521 = vpack.c.b16 %v431, %v430
    %v522 = vpack.c.b16 %v433, %v432
    %v523 = vpack.c.b16 %v435, %v434
    %v524 = vpack.c.b16 %v437, %v436
    %v525 = vpack.c.b16 %v439, %v438
    %v526 = vpack.c.b16 %v441, %v440
    %v527 = vpack.c.b16 %v443, %v442
    %v528 = vpack.c.b16 %v445, %v444
    %v529 = vpack.c.b16 %v447, %v446
    %v530 = vpack.c.b16 %v449, %v448
    %v531 = vpack.c.b16 %v451, %v450
    %v532 = vpack.c.b16 %v453, %v452
    %v533 = vpack.c.b16 %v455, %v454
    %v534 = vpack.c.b16 %v457, %v456
    %v535 = vpack.c.b16 %v459, %v458
    %v536 = vpack.c.b16 %v461, %v460
    %v537 = vpack.c.b16 %v463, %v462
    %v538 = vpack.c.b16 %v465, %v464
    %v539 = vpack.c.b16 %v467, %v466
    %v544 = vunpack.c.l.b16 %v172
    %v545 = vunpack.c.l.b16 %v173
    %v546 = vunpack.c.l.b16 %v174
    %v547 = vunpack.c.l.b16 %v175
    %v548 = vpack.c.b16 %v545, %v544
    %v549 = vpack.c.b16 %v547, %v546
    %vm552 = vcmask 261120
    %v554 = vsel %vm552, %v468, 0
    %v557 = vsel %vm552, %v469, 0
    %v560 = vsel %vm552, %v470, 0
    %v563 = vsel %vm552, %v471, 0
    %v566 = vsel %vm552, %v472, 0
    %v569 = vsel %vm552, %v473, 0
    %v572 = vsel %vm552, %v474, 0
    %v575 = vsel %vm552, %v475, 0
    %v578 = vsel %vm552, %v476, 0
    %v581 = vsel %vm552, %v477, 0
    %v584 = vsel %vm552, %v478, 0
    %v587 = vsel %vm552, %v479, 0
    %v590 = vsel %vm552, %v480, 0
    %v593 = vsel %vm552, %v481, 0
    %v596 = vsel %vm552, %v482, 0
    %v599 = vsel %vm552, %v483, 0
    %v602 = vsel %vm552, %v484, 0
    %v605 = vsel %vm552, %v485, 0
    %v608 = vsel %vm552, %v486, 0
    %v611 = vsel %vm552, %v487, 0
    %v614 = vsel %vm552, %v488, 0
    %v617 = vsel %vm552, %v489, 0
    %v620 = vsel %vm552, %v490, 0
    %v623 = vsel %vm552, %v491, 0
    %v626 = vsel %vm552, %v492, 0
    %v629 = vsel %vm552, %v493, 0
    %v632 = vsel %vm552, %v494, 0
    %v635 = vsel %vm552, %v495, 0
    %v638 = vsel %vm552, %v496, 0
    %v641 = vsel %vm552, %v497, 0
    %v644 = vsel %vm552, %v498, 0
    %v647 = vsel %vm552, %v499, 0
    %v650 = vsel %vm552, %v500, 0
    %v653 = vsel %vm552, %v501, 0
    %v656 = vsel %vm552, %v502, 0
    %v659 = vsel %vm552, %v503, 0
    %v662 = vsel %vm552, %v504, 0
    %v665 = vsel %vm552, %v505, 0
    %v668 = vsel %vm552, %v506, 0
    %v671 = vsel %vm552, %v507, 0
    %v674 = vsel %vm552, %v508, 0
    %v677 = vsel %vm552, %v509, 0
    %v680 = vsel %vm552, %v510, 0
    %v683 = vsel %vm552, %v511, 0
    %v686 = vsel %vm552, %v512, 0
    %v689 = vsel %vm552, %v513, 0
    %v692 = vsel %vm552, %v514, 0
    %v695 = vsel %vm552, %v515, 0
    %v698 = vsel %vm552, %v516, 0
    %v701 = vsel %vm552, %v517, 0
    %v704 = vsel %vm552, %v518, 0
    %v707 = vsel %vm552, %v519, 0
    %v710 = vsel %vm552, %v520, 0
    %v713 = vsel %vm552, %v521, 0
    %v716 = vsel %vm552, %v522, 0
    %v719 = vsel %vm552, %v523, 0
    %v722 = vsel %vm552, %v524, 0
    %v725 = vsel %vm552, %v525, 0
    %v728 = vsel %vm552, %v526, 0
    %v731 = vsel %vm552, %v527, 0
    %v734 = vsel %vm552, %v528, 0
    %v737 = vsel %vm552, %v529, 0
    %v740 = vsel %vm552, %v530, 0
    %v743 = vsel %vm552, %v531, 0
    %v746 = vsel %vm552, %v532, 0
    %v749 = vsel %vm552, %v533, 0
    %v752 = vsel %vm552, %v534, 0
    %v755 = vsel %vm552, %v535, 0
    %v758 = vsel %vm552, %v536, 0
    %v761 = vsel %vm552, %v537, 0
    %v764 = vsel %vm552, %v538, 0
    %v767 = vsel %vm552, %v539, 0
    %769 = vmatpush.bf16.msra.mxu0 0
    %770 = vmatpush.bf16.msra.mxu0 0
    %771 = vmatpush.bf16.msra.mxu0 0
    %772 = vmatpush.bf16.msra.mxu0 0
    %773 = vmatpush.bf16.msra.mxu0 0
    %774 = vmatpush.bf16.msra.mxu0 0
    %775 = vmatpush.bf16.msra.mxu0 %v549
    %776 = vmatpush.bf16.msra.mxu0 %v548
    %777 = vmatmul.bf16.gmra.mxu0 %v554
    %v778 = vpop.f32.mrf.mxu0
    %v779 = vadd.f32 %v178, %v778
    %v780 = vpop.f32.mrf.mxu0
    %v781 = vadd.f32 %v178, %v780
    %782 = vmatmul.bf16.gmra.mxu0 %v557
    %v783 = vpop.f32.mrf.mxu0
    %v784 = vadd.f32 %v178, %v783
    %v785 = vpop.f32.mrf.mxu0
    %v786 = vadd.f32 %v178, %v785
    %787 = vmatmul.bf16.gmra.mxu0 %v560
    %v788 = vpop.f32.mrf.mxu0
    %v789 = vadd.f32 %v178, %v788
    %v790 = vpop.f32.mrf.mxu0
    %v791 = vadd.f32 %v178, %v790
    %792 = vmatmul.bf16.gmra.mxu0 %v563
    %v793 = vpop.f32.mrf.mxu0
    %v794 = vadd.f32 %v178, %v793
    %v795 = vpop.f32.mrf.mxu0
    %v796 = vadd.f32 %v178, %v795
    %797 = vmatmul.bf16.gmra.mxu0 %v566
    %v798 = vpop.f32.mrf.mxu0
    %v799 = vadd.f32 %v178, %v798
    %v800 = vpop.f32.mrf.mxu0
    %v801 = vadd.f32 %v178, %v800
    %802 = vmatmul.bf16.gmra.mxu0 %v569
    %v803 = vpop.f32.mrf.mxu0
    %v804 = vadd.f32 %v178, %v803
    %v805 = vpop.f32.mrf.mxu0
    %v806 = vadd.f32 %v178, %v805
    %807 = vmatmul.bf16.gmra.mxu0 %v572
    %v808 = vpop.f32.mrf.mxu0
    %v809 = vadd.f32 %v178, %v808
    %v810 = vpop.f32.mrf.mxu0
    %v811 = vadd.f32 %v178, %v810
    %812 = vmatmul.bf16.gmra.mxu0 %v575
    %v813 = vpop.f32.mrf.mxu0
    %v814 = vadd.f32 %v178, %v813
    %v815 = vpop.f32.mrf.mxu0
    %v816 = vadd.f32 %v178, %v815
    %817 = vmatmul.bf16.gmra.mxu0 %v578
    %v818 = vpop.f32.mrf.mxu0
    %v819 = vadd.f32 %v178, %v818
    %v820 = vpop.f32.mrf.mxu0
    %v821 = vadd.f32 %v178, %v820
    %822 = vmatmul.bf16.gmra.mxu0 %v581
    %v823 = vpop.f32.mrf.mxu0
    %v824 = vadd.f32 %v178, %v823
    %v825 = vpop.f32.mrf.mxu0
    %v826 = vadd.f32 %v178, %v825
    %827 = vmatmul.bf16.gmra.mxu0 %v584
    %v828 = vpop.f32.mrf.mxu0
    %v829 = vadd.f32 %v178, %v828
    %v830 = vpop.f32.mrf.mxu0
    %v831 = vadd.f32 %v178, %v830
    %832 = vmatmul.bf16.gmra.mxu0 %v587
    %v833 = vpop.f32.mrf.mxu0
    %v834 = vadd.f32 %v178, %v833
    %v835 = vpop.f32.mrf.mxu0
    %v836 = vadd.f32 %v178, %v835
    %837 = vmatmul.bf16.gmra.mxu0 %v590
    %v838 = vpop.f32.mrf.mxu0
    %v839 = vadd.f32 %v178, %v838
    %v840 = vpop.f32.mrf.mxu0
    %v841 = vadd.f32 %v178, %v840
    %842 = vmatmul.bf16.gmra.mxu0 %v593
    %v843 = vpop.f32.mrf.mxu0
    %v844 = vadd.f32 %v178, %v843
    %v845 = vpop.f32.mrf.mxu0
    %v846 = vadd.f32 %v178, %v845
    %847 = vmatmul.bf16.gmra.mxu0 %v596
    %v848 = vpop.f32.mrf.mxu0
    %v849 = vadd.f32 %v178, %v848
    %v850 = vpop.f32.mrf.mxu0
    %v851 = vadd.f32 %v178, %v850
    %852 = vmatmul.bf16.gmra.mxu0 %v599
    %v853 = vpop.f32.mrf.mxu0
    %v854 = vadd.f32 %v178, %v853
    %v855 = vpop.f32.mrf.mxu0
    %v856 = vadd.f32 %v178, %v855
    %857 = vmatmul.bf16.gmra.mxu0 %v602
    %v858 = vpop.f32.mrf.mxu0
    %v859 = vadd.f32 %v178, %v858
    %v860 = vpop.f32.mrf.mxu0
    %v861 = vadd.f32 %v178, %v860
    %862 = vmatmul.bf16.gmra.mxu0 %v605
    %v863 = vpop.f32.mrf.mxu0
    %v864 = vadd.f32 %v178, %v863
    %v865 = vpop.f32.mrf.mxu0
    %v866 = vadd.f32 %v178, %v865
    %867 = vmatmul.bf16.gmra.mxu0 %v608
    %v868 = vpop.f32.mrf.mxu0
    %v869 = vadd.f32 %v178, %v868
    %v870 = vpop.f32.mrf.mxu0
    %v871 = vadd.f32 %v178, %v870
    %872 = vmatmul.bf16.gmra.mxu0 %v611
    %v873 = vpop.f32.mrf.mxu0
    %v874 = vadd.f32 %v178, %v873
    %v875 = vpop.f32.mrf.mxu0
    %v876 = vadd.f32 %v178, %v875
    %877 = vmatmul.bf16.gmra.mxu0 %v614
    %v878 = vpop.f32.mrf.mxu0
    %v879 = vadd.f32 %v178, %v878
    %v880 = vpop.f32.mrf.mxu0
    %v881 = vadd.f32 %v178, %v880
    %882 = vmatmul.bf16.gmra.mxu0 %v617
    %v883 = vpop.f32.mrf.mxu0
    %v884 = vadd.f32 %v178, %v883
    %v885 = vpop.f32.mrf.mxu0
    %v886 = vadd.f32 %v178, %v885
    %887 = vmatmul.bf16.gmra.mxu0 %v620
    %v888 = vpop.f32.mrf.mxu0
    %v889 = vadd.f32 %v178, %v888
    %v890 = vpop.f32.mrf.mxu0
    %v891 = vadd.f32 %v178, %v890
    %892 = vmatmul.bf16.gmra.mxu0 %v623
    %v893 = vpop.f32.mrf.mxu0
    %v894 = vadd.f32 %v178, %v893
    %v895 = vpop.f32.mrf.mxu0
    %v896 = vadd.f32 %v178, %v895
    %897 = vmatmul.bf16.gmra.mxu0 %v626
    %v898 = vpop.f32.mrf.mxu0
    %v899 = vadd.f32 %v178, %v898
    %v900 = vpop.f32.mrf.mxu0
    %v901 = vadd.f32 %v178, %v900
    %902 = vmatmul.bf16.gmra.mxu0 %v629
    %v903 = vpop.f32.mrf.mxu0
    %v904 = vadd.f32 %v178, %v903
    %v905 = vpop.f32.mrf.mxu0
    %v906 = vadd.f32 %v178, %v905
    %907 = vmatmul.bf16.gmra.mxu0 %v632
    %v908 = vpop.f32.mrf.mxu0
    %v909 = vadd.f32 %v178, %v908
    %v910 = vpop.f32.mrf.mxu0
    %v911 = vadd.f32 %v178, %v910
    %912 = vmatmul.bf16.gmra.mxu0 %v635
    %v913 = vpop.f32.mrf.mxu0
    %v914 = vadd.f32 %v178, %v913
    %v915 = vpop.f32.mrf.mxu0
    %v916 = vadd.f32 %v178, %v915
    %917 = vmatmul.bf16.gmra.mxu0 %v638
    %v918 = vpop.f32.mrf.mxu0
    %v919 = vadd.f32 %v178, %v918
    %v920 = vpop.f32.mrf.mxu0
    %v921 = vadd.f32 %v178, %v920
    %922 = vmatmul.bf16.gmra.mxu0 %v641
    %v923 = vpop.f32.mrf.mxu0
    %v924 = vadd.f32 %v178, %v923
    %v925 = vpop.f32.mrf.mxu0
    %v926 = vadd.f32 %v178, %v925
    %927 = vmatmul.bf16.gmra.mxu0 %v644
    %v928 = vpop.f32.mrf.mxu0
    %v929 = vadd.f32 %v178, %v928
    %v930 = vpop.f32.mrf.mxu0
    %v931 = vadd.f32 %v178, %v930
    %932 = vmatmul.bf16.gmra.mxu0 %v647
    %v933 = vpop.f32.mrf.mxu0
    %v934 = vadd.f32 %v178, %v933
    %v935 = vpop.f32.mrf.mxu0
    %v936 = vadd.f32 %v178, %v935
    %937 = vmatmul.bf16.gmra.mxu0 %v650
    %v938 = vpop.f32.mrf.mxu0
    %v939 = vadd.f32 %v178, %v938
    %v940 = vpop.f32.mrf.mxu0
    %v941 = vadd.f32 %v178, %v940
    %942 = vmatmul.bf16.gmra.mxu0 %v653
    %v943 = vpop.f32.mrf.mxu0
    %v944 = vadd.f32 %v178, %v943
    %v945 = vpop.f32.mrf.mxu0
    %v946 = vadd.f32 %v178, %v945
    %947 = vmatmul.bf16.gmra.mxu0 %v656
    %v948 = vpop.f32.mrf.mxu0
    %v949 = vadd.f32 %v178, %v948
    %v950 = vpop.f32.mrf.mxu0
    %v951 = vadd.f32 %v178, %v950
    %952 = vmatmul.bf16.gmra.mxu0 %v659
    %v953 = vpop.f32.mrf.mxu0
    %v954 = vadd.f32 %v178, %v953
    %v955 = vpop.f32.mrf.mxu0
    %v956 = vadd.f32 %v178, %v955
    %957 = vmatmul.bf16.gmra.mxu0 %v662
    %v958 = vpop.f32.mrf.mxu0
    %v959 = vadd.f32 %v178, %v958
    %v960 = vpop.f32.mrf.mxu0
    %v961 = vadd.f32 %v178, %v960
    %962 = vmatmul.bf16.gmra.mxu0 %v665
    %v963 = vpop.f32.mrf.mxu0
    %v964 = vadd.f32 %v178, %v963
    %v965 = vpop.f32.mrf.mxu0
    %v966 = vadd.f32 %v178, %v965
    %967 = vmatmul.bf16.gmra.mxu0 %v668
    %v968 = vpop.f32.mrf.mxu0
    %v969 = vadd.f32 %v178, %v968
    %v970 = vpop.f32.mrf.mxu0
    %v971 = vadd.f32 %v178, %v970
    %972 = vmatmul.bf16.gmra.mxu0 %v671
    %v973 = vpop.f32.mrf.mxu0
    %v974 = vadd.f32 %v178, %v973
    %v975 = vpop.f32.mrf.mxu0
    %v976 = vadd.f32 %v178, %v975
    %977 = vmatmul.bf16.gmra.mxu0 %v674
    %v978 = vpop.f32.mrf.mxu0
    %v979 = vadd.f32 %v178, %v978
    %v980 = vpop.f32.mrf.mxu0
    %v981 = vadd.f32 %v178, %v980
    %982 = vmatmul.bf16.gmra.mxu0 %v677
    %v983 = vpop.f32.mrf.mxu0
    %v984 = vadd.f32 %v178, %v983
    %v985 = vpop.f32.mrf.mxu0
    %v986 = vadd.f32 %v178, %v985
    %987 = vmatmul.bf16.gmra.mxu0 %v680
    %v988 = vpop.f32.mrf.mxu0
    %v989 = vadd.f32 %v178, %v988
    %v990 = vpop.f32.mrf.mxu0
    %v991 = vadd.f32 %v178, %v990
    %992 = vmatmul.bf16.gmra.mxu0 %v683
    %v993 = vpop.f32.mrf.mxu0
    %v994 = vadd.f32 %v178, %v993
    %v995 = vpop.f32.mrf.mxu0
    %v996 = vadd.f32 %v178, %v995
    %997 = vmatmul.bf16.gmra.mxu0 %v686
    %v998 = vpop.f32.mrf.mxu0
    %v999 = vadd.f32 %v178, %v998
    %v1000 = vpop.f32.mrf.mxu0
    %v1001 = vadd.f32 %v178, %v1000
    %1002 = vmatmul.bf16.gmra.mxu0 %v689
    %v1003 = vpop.f32.mrf.mxu0
    %v1004 = vadd.f32 %v178, %v1003
    %v1005 = vpop.f32.mrf.mxu0
    %v1006 = vadd.f32 %v178, %v1005
    %1007 = vmatmul.bf16.gmra.mxu0 %v692
    %v1008 = vpop.f32.mrf.mxu0
    %v1009 = vadd.f32 %v178, %v1008
    %v1010 = vpop.f32.mrf.mxu0
    %v1011 = vadd.f32 %v178, %v1010
    %1012 = vmatmul.bf16.gmra.mxu0 %v695
    %v1013 = vpop.f32.mrf.mxu0
    %v1014 = vadd.f32 %v178, %v1013
    %v1015 = vpop.f32.mrf.mxu0
    %v1016 = vadd.f32 %v178, %v1015
    %1017 = vmatmul.bf16.gmra.mxu0 %v698
    %v1018 = vpop.f32.mrf.mxu0
    %v1019 = vadd.f32 %v178, %v1018
    %v1020 = vpop.f32.mrf.mxu0
    %v1021 = vadd.f32 %v178, %v1020
    %1022 = vmatmul.bf16.gmra.mxu0 %v701
    %v1023 = vpop.f32.mrf.mxu0
    %v1024 = vadd.f32 %v178, %v1023
    %v1025 = vpop.f32.mrf.mxu0
    %v1026 = vadd.f32 %v178, %v1025
    %1027 = vmatmul.bf16.gmra.mxu0 %v704
    %v1028 = vpop.f32.mrf.mxu0
    %v1029 = vadd.f32 %v178, %v1028
    %v1030 = vpop.f32.mrf.mxu0
    %v1031 = vadd.f32 %v178, %v1030
    %1032 = vmatmul.bf16.gmra.mxu0 %v707
    %v1033 = vpop.f32.mrf.mxu0
    %v1034 = vadd.f32 %v178, %v1033
    %v1035 = vpop.f32.mrf.mxu0
    %v1036 = vadd.f32 %v178, %v1035
    %1037 = vmatmul.bf16.gmra.mxu0 %v710
    %v1038 = vpop.f32.mrf.mxu0
    %v1039 = vadd.f32 %v178, %v1038
    %v1040 = vpop.f32.mrf.mxu0
    %v1041 = vadd.f32 %v178, %v1040
    %1042 = vmatmul.bf16.gmra.mxu0 %v713
    %v1043 = vpop.f32.mrf.mxu0
    %v1044 = vadd.f32 %v178, %v1043
    %v1045 = vpop.f32.mrf.mxu0
    %v1046 = vadd.f32 %v178, %v1045
    %1047 = vmatmul.bf16.gmra.mxu0 %v716
    %v1048 = vpop.f32.mrf.mxu0
    %v1049 = vadd.f32 %v178, %v1048
    %v1050 = vpop.f32.mrf.mxu0
    %v1051 = vadd.f32 %v178, %v1050
    %1052 = vmatmul.bf16.gmra.mxu0 %v719
    %v1053 = vpop.f32.mrf.mxu0
    %v1054 = vadd.f32 %v178, %v1053
    %v1055 = vpop.f32.mrf.mxu0
    %v1056 = vadd.f32 %v178, %v1055
    %1057 = vmatmul.bf16.gmra.mxu0 %v722
    %v1058 = vpop.f32.mrf.mxu0
    %v1059 = vadd.f32 %v178, %v1058
    %v1060 = vpop.f32.mrf.mxu0
    %v1061 = vadd.f32 %v178, %v1060
    %1062 = vmatmul.bf16.gmra.mxu0 %v725
    %v1063 = vpop.f32.mrf.mxu0
    %v1064 = vadd.f32 %v178, %v1063
    %v1065 = vpop.f32.mrf.mxu0
    %v1066 = vadd.f32 %v178, %v1065
    %1067 = vmatmul.bf16.gmra.mxu0 %v728
    %v1068 = vpop.f32.mrf.mxu0
    %v1069 = vadd.f32 %v178, %v1068
    %v1070 = vpop.f32.mrf.mxu0
    %v1071 = vadd.f32 %v178, %v1070
    %1072 = vmatmul.bf16.gmra.mxu0 %v731
    %v1073 = vpop.f32.mrf.mxu0
    %v1074 = vadd.f32 %v178, %v1073
    %v1075 = vpop.f32.mrf.mxu0
    %v1076 = vadd.f32 %v178, %v1075
    %1077 = vmatmul.bf16.gmra.mxu0 %v734
    %v1078 = vpop.f32.mrf.mxu0
    %v1079 = vadd.f32 %v178, %v1078
    %v1080 = vpop.f32.mrf.mxu0
    %v1081 = vadd.f32 %v178, %v1080
    %1082 = vmatmul.bf16.gmra.mxu0 %v737
    %v1083 = vpop.f32.mrf.mxu0
    %v1084 = vadd.f32 %v178, %v1083
    %v1085 = vpop.f32.mrf.mxu0
    %v1086 = vadd.f32 %v178, %v1085
    %1087 = vmatmul.bf16.gmra.mxu0 %v740
    %v1088 = vpop.f32.mrf.mxu0
    %v1089 = vadd.f32 %v178, %v1088
    %v1090 = vpop.f32.mrf.mxu0
    %v1091 = vadd.f32 %v178, %v1090
    %1092 = vmatmul.bf16.gmra.mxu0 %v743
    %v1093 = vpop.f32.mrf.mxu0
    %v1094 = vadd.f32 %v178, %v1093
    %v1095 = vpop.f32.mrf.mxu0
    %v1096 = vadd.f32 %v178, %v1095
    %1097 = vmatmul.bf16.gmra.mxu0 %v746
    %v1098 = vpop.f32.mrf.mxu0
    %v1099 = vadd.f32 %v178, %v1098
    %v1100 = vpop.f32.mrf.mxu0
    %v1101 = vadd.f32 %v178, %v1100
    %1102 = vmatmul.bf16.gmra.mxu0 %v749
    %v1103 = vpop.f32.mrf.mxu0
    %v1104 = vadd.f32 %v178, %v1103
    %v1105 = vpop.f32.mrf.mxu0
    %v1106 = vadd.f32 %v178, %v1105
    %1107 = vmatmul.bf16.gmra.mxu0 %v752
    %v1108 = vpop.f32.mrf.mxu0
    %v1109 = vadd.f32 %v178, %v1108
    %v1110 = vpop.f32.mrf.mxu0
    %v1111 = vadd.f32 %v178, %v1110
    %1112 = vmatmul.bf16.gmra.mxu0 %v755
    %v1113 = vpop.f32.mrf.mxu0
    %v1114 = vadd.f32 %v178, %v1113
    %v1115 = vpop.f32.mrf.mxu0
    %v1116 = vadd.f32 %v178, %v1115
    %1117 = vmatmul.bf16.gmra.mxu0 %v758
    %v1118 = vpop.f32.mrf.mxu0
    %v1119 = vadd.f32 %v178, %v1118
    %v1120 = vpop.f32.mrf.mxu0
    %v1121 = vadd.f32 %v178, %v1120
    %1122 = vmatmul.bf16.gmra.mxu0 %v761
    %v1123 = vpop.f32.mrf.mxu0
    %v1124 = vadd.f32 %v178, %v1123
    %v1125 = vpop.f32.mrf.mxu0
    %v1126 = vadd.f32 %v178, %v1125
    %1127 = vmatmul.bf16.gmra.mxu0 %v764
    %v1128 = vpop.f32.mrf.mxu0
    %v1129 = vadd.f32 %v178, %v1128
    %v1130 = vpop.f32.mrf.mxu0
    %v1131 = vadd.f32 %v178, %v1130
    %1132 = vmatmul.bf16.gmra.mxu0 %v767
    %v1133 = vpop.f32.mrf.mxu0
    %v1134 = vadd.f32 %v178, %v1133
    %v1135 = vpop.f32.mrf.mxu0
    %v1136 = vadd.f32 %v178, %v1135
    %1137 = vdwg.mxu0
    %v1138 = vmax.f32 %v779, 0.0
    %v1139 = vmax.f32 %v781, 0.0
    %v1140 = vmax.f32 %v784, 0.0
    %v1141 = vmax.f32 %v786, 0.0
    %v1142 = vmax.f32 %v789, 0.0
    %v1143 = vmax.f32 %v791, 0.0
    %v1144 = vmax.f32 %v794, 0.0
    %v1145 = vmax.f32 %v796, 0.0
    %v1146 = vmax.f32 %v799, 0.0
    %v1147 = vmax.f32 %v801, 0.0
    %v1148 = vmax.f32 %v804, 0.0
    %v1149 = vmax.f32 %v806, 0.0
    %v1150 = vmax.f32 %v809, 0.0
    %v1151 = vmax.f32 %v811, 0.0
    %v1152 = vmax.f32 %v814, 0.0
    %v1153 = vmax.f32 %v816, 0.0
    %v1154 = vmax.f32 %v819, 0.0
    %v1155 = vmax.f32 %v821, 0.0
    %v1156 = vmax.f32 %v824, 0.0
    %v1157 = vmax.f32 %v826, 0.0
    %v1158 = vmax.f32 %v829, 0.0
    %v1159 = vmax.f32 %v831, 0.0
    %v1160 = vmax.f32 %v834, 0.0
    %v1161 = vmax.f32 %v836, 0.0
    %v1162 = vmax.f32 %v839, 0.0
    %v1163 = vmax.f32 %v841, 0.0
    %v1164 = vmax.f32 %v844, 0.0
    %v1165 = vmax.f32 %v846, 0.0
    %v1166 = vmax.f32 %v849, 0.0
    %v1167 = vmax.f32 %v851, 0.0
    %v1168 = vmax.f32 %v854, 0.0
    %v1169 = vmax.f32 %v856, 0.0
    %v1170 = vmax.f32 %v859, 0.0
    %v1171 = vmax.f32 %v861, 0.0
    %v1172 = vmax.f32 %v864, 0.0
    %v1173 = vmax.f32 %v866, 0.0
    %v1174 = vmax.f32 %v869, 0.0
    %v1175 = vmax.f32 %v871, 0.0
    %v1176 = vmax.f32 %v874, 0.0
    %v1177 = vmax.f32 %v876, 0.0
    %v1178 = vmax.f32 %v879, 0.0
    %v1179 = vmax.f32 %v881, 0.0
    %v1180 = vmax.f32 %v884, 0.0
    %v1181 = vmax.f32 %v886, 0.0
    %v1182 = vmax.f32 %v889, 0.0
    %v1183 = vmax.f32 %v891, 0.0
    %v1184 = vmax.f32 %v894, 0.0
    %v1185 = vmax.f32 %v896, 0.0
    %v1186 = vmax.f32 %v899, 0.0
    %v1187 = vmax.f32 %v901, 0.0
    %v1188 = vmax.f32 %v904, 0.0
    %v1189 = vmax.f32 %v906, 0.0
    %v1190 = vmax.f32 %v909, 0.0
    %v1191 = vmax.f32 %v911, 0.0
    %v1192 = vmax.f32 %v914, 0.0
    %v1193 = vmax.f32 %v916, 0.0
    %v1194 = vmax.f32 %v919, 0.0
    %v1195 = vmax.f32 %v921, 0.0
    %v1196 = vmax.f32 %v924, 0.0
    %v1197 = vmax.f32 %v926, 0.0
    %v1198 = vmax.f32 %v929, 0.0
    %v1199 = vmax.f32 %v931, 0.0
    %v1200 = vmax.f32 %v934, 0.0
    %v1201 = vmax.f32 %v936, 0.0
    %v1202 = vmax.f32 %v939, 0.0
    %v1203 = vmax.f32 %v941, 0.0
    %v1204 = vmax.f32 %v944, 0.0
    %v1205 = vmax.f32 %v946, 0.0
    %v1206 = vmax.f32 %v949, 0.0
    %v1207 = vmax.f32 %v951, 0.0
    %v1208 = vmax.f32 %v954, 0.0
    %v1209 = vmax.f32 %v956, 0.0
    %v1210 = vmax.f32 %v959, 0.0
    %v1211 = vmax.f32 %v961, 0.0
    %v1212 = vmax.f32 %v964, 0.0
    %v1213 = vmax.f32 %v966, 0.0
    %v1214 = vmax.f32 %v969, 0.0
    %v1215 = vmax.f32 %v971, 0.0
    %v1216 = vmax.f32 %v974, 0.0
    %v1217 = vmax.f32 %v976, 0.0
    %v1218 = vmax.f32 %v979, 0.0
    %v1219 = vmax.f32 %v981, 0.0
    %v1220 = vmax.f32 %v984, 0.0
    %v1221 = vmax.f32 %v986, 0.0
    %v1222 = vmax.f32 %v989, 0.0
    %v1223 = vmax.f32 %v991, 0.0
    %v1224 = vmax.f32 %v994, 0.0
    %v1225 = vmax.f32 %v996, 0.0
    %v1226 = vmax.f32 %v999, 0.0
    %v1227 = vmax.f32 %v1001, 0.0
    %v1228 = vmax.f32 %v1004, 0.0
    %v1229 = vmax.f32 %v1006, 0.0
    %v1230 = vmax.f32 %v1009, 0.0
    %v1231 = vmax.f32 %v1011, 0.0
    %v1232 = vmax.f32 %v1014, 0.0
    %v1233 = vmax.f32 %v1016, 0.0
    %v1234 = vmax.f32 %v1019, 0.0
    %v1235 = vmax.f32 %v1021, 0.0
    %v1236 = vmax.f32 %v1024, 0.0
    %v1237 = vmax.f32 %v1026, 0.0
    %v1238 = vmax.f32 %v1029, 0.0
    %v1239 = vmax.f32 %v1031, 0.0
    %v1240 = vmax.f32 %v1034, 0.0
    %v1241 = vmax.f32 %v1036, 0.0
    %v1242 = vmax.f32 %v1039, 0.0
    %v1243 = vmax.f32 %v1041, 0.0
    %v1244 = vmax.f32 %v1044, 0.0
    %v1245 = vmax.f32 %v1046, 0.0
    %v1246 = vmax.f32 %v1049, 0.0
    %v1247 = vmax.f32 %v1051, 0.0
    %v1248 = vmax.f32 %v1054, 0.0
    %v1249 = vmax.f32 %v1056, 0.0
    %v1250 = vmax.f32 %v1059, 0.0
    %v1251 = vmax.f32 %v1061, 0.0
    %v1252 = vmax.f32 %v1064, 0.0
    %v1253 = vmax.f32 %v1066, 0.0
    %v1254 = vmax.f32 %v1069, 0.0
    %v1255 = vmax.f32 %v1071, 0.0
    %v1256 = vmax.f32 %v1074, 0.0
    %v1257 = vmax.f32 %v1076, 0.0
    %v1258 = vmax.f32 %v1079, 0.0
    %v1259 = vmax.f32 %v1081, 0.0
    %v1260 = vmax.f32 %v1084, 0.0
    %v1261 = vmax.f32 %v1086, 0.0
    %v1262 = vmax.f32 %v1089, 0.0
    %v1263 = vmax.f32 %v1091, 0.0
    %v1264 = vmax.f32 %v1094, 0.0
    %v1265 = vmax.f32 %v1096, 0.0
    %v1266 = vmax.f32 %v1099, 0.0
    %v1267 = vmax.f32 %v1101, 0.0
    %v1268 = vmax.f32 %v1104, 0.0
    %v1269 = vmax.f32 %v1106, 0.0
    %v1270 = vmax.f32 %v1109, 0.0
    %v1271 = vmax.f32 %v1111, 0.0
    %v1272 = vmax.f32 %v1114, 0.0
    %v1273 = vmax.f32 %v1116, 0.0
    %v1274 = vmax.f32 %v1119, 0.0
    %v1275 = vmax.f32 %v1121, 0.0
    %v1276 = vmax.f32 %v1124, 0.0
    %v1277 = vmax.f32 %v1126, 0.0
    %v1278 = vmax.f32 %v1129, 0.0
    %v1279 = vmax.f32 %v1131, 0.0
    %v1280 = vmax.f32 %v1134, 0.0
    %v1281 = vmax.f32 %v1136, 0.0
    %v1282 = vmax.f32 %v1138, %v1141
    %v1283 = vmax.f32 %v1139, %v1142
    %v1284 = vmax.f32 %v1140, %v1143
    %v1285 = vmax.f32 %v1144, %v1147
    %v1286 = vmax.f32 %v1145, %v1148
    %v1287 = vmax.f32 %v1146, %v1149
    %v1288 = vmax.f32 %v1150, %v1153
    %v1289 = vmax.f32 %v1151, %v1154
    %v1290 = vmax.f32 %v1152, %v1155
    %v1291 = vmax.f32 %v1156, %v1159
    %v1292 = vmax.f32 %v1157, %v1160
    %v1293 = vmax.f32 %v1158, %v1161
    %v1294 = vmax.f32 %v1162, %v1165
    %v1295 = vmax.f32 %v1163, %v1166
    %v1296 = vmax.f32 %v1164, %v1167
    %v1297 = vmax.f32 %v1168, %v1171
    %v1298 = vmax.f32 %v1169, %v1172
    %v1299 = vmax.f32 %v1170, %v1173
    %v1300 = vmax.f32 %v1174, %v1177
    %v1301 = vmax.f32 %v1175, %v1178
    %v1302 = vmax.f32 %v1176, %v1179
    %v1303 = vmax.f32 %v1180, %v1183
    %v1304 = vmax.f32 %v1181, %v1184
    %v1305 = vmax.f32 %v1182, %v1185
    %v1306 = vmax.f32 %v1186, %v1189
    %v1307 = vmax.f32 %v1187, %v1190
    %v1308 = vmax.f32 %v1188, %v1191
    %v1309 = vmax.f32 %v1192, %v1195
    %v1310 = vmax.f32 %v1193, %v1196
    %v1311 = vmax.f32 %v1194, %v1197
    %v1312 = vmax.f32 %v1198, %v1201
    %v1313 = vmax.f32 %v1199, %v1202
    %v1314 = vmax.f32 %v1200, %v1203
    %v1315 = vmax.f32 %v1204, %v1207
    %v1316 = vmax.f32 %v1205, %v1208
    %v1317 = vmax.f32 %v1206, %v1209
    %v1318 = vmax.f32 %v1210, %v1213
    %v1319 = vmax.f32 %v1211, %v1214
    %v1320 = vmax.f32 %v1212, %v1215
    %v1321 = vmax.f32 %v1216, %v1219
    %v1322 = vmax.f32 %v1217, %v1220
    %v1323 = vmax.f32 %v1218, %v1221
    %v1324 = vmax.f32 %v1222, %v1225
    %v1325 = vmax.f32 %v1223, %v1226
    %v1326 = vmax.f32 %v1224, %v1227
    %v1327 = vmax.f32 %v1228, %v1231
    %v1328 = vmax.f32 %v1229, %v1232
    %v1329 = vmax.f32 %v1230, %v1233
    %v1330 = vmax.f32 %v1234, %v1237
    %v1331 = vmax.f32 %v1235, %v1238
    %v1332 = vmax.f32 %v1236, %v1239
    %v1333 = vmax.f32 %v1240, %v1243
    %v1334 = vmax.f32 %v1241, %v1244
    %v1335 = vmax.f32 %v1242, %v1245
    %v1336 = vmax.f32 %v1246, %v1249
    %v1337 = vmax.f32 %v1247, %v1250
    %v1338 = vmax.f32 %v1248, %v1251
    %v1339 = vmax.f32 %v1252, %v1255
    %v1340 = vmax.f32 %v1253, %v1256
    %v1341 = vmax.f32 %v1254, %v1257
    %v1342 = vmax.f32 %v1258, %v1261
    %v1343 = vmax.f32 %v1259, %v1262
    %v1344 = vmax.f32 %v1260, %v1263
    %v1345 = vmax.f32 %v1264, %v1267
    %v1346 = vmax.f32 %v1265, %v1268
    %v1347 = vmax.f32 %v1266, %v1269
    %v1348 = vmax.f32 %v1270, %v1273
    %v1349 = vmax.f32 %v1271, %v1274
    %v1350 = vmax.f32 %v1272, %v1275
    %v1351 = vmax.f32 %v1276, %v1279
    %v1352 = vmax.f32 %v1277, %v1280
    %v1353 = vmax.f32 %v1278, %v1281
    %v1426 = vrot.slane %v1282, 2
    %v1427 = vrot.slane %v1282, 4
    %v1428 = vrot.slane %v1282, 6
    %v1429 = vrot.slane %v1283, 2
    %v1430 = vrot.slane %v1283, 4
    %v1431 = vrot.slane %v1283, 6
    %v1432 = vrot.slane %v1284, 2
    %v1433 = vrot.slane %v1284, 4
    %v1434 = vrot.slane %v1284, 6
    %v1435 = vrot.slane %v1285, 2
    %v1436 = vrot.slane %v1285, 4
    %v1437 = vrot.slane %v1285, 6
    %v1438 = vrot.slane %v1286, 2
    %v1439 = vrot.slane %v1286, 4
    %v1440 = vrot.slane %v1286, 6
    %v1441 = vrot.slane %v1287, 2
    %v1442 = vrot.slane %v1287, 4
    %v1443 = vrot.slane %v1287, 6
    %v1444 = vrot.slane %v1288, 2
    %v1445 = vrot.slane %v1288, 4
    %v1446 = vrot.slane %v1288, 6
    %v1447 = vrot.slane %v1289, 2
    %v1448 = vrot.slane %v1289, 4
    %v1449 = vrot.slane %v1289, 6
    %v1450 = vrot.slane %v1290, 2
    %v1451 = vrot.slane %v1290, 4
    %v1452 = vrot.slane %v1290, 6
    %v1453 = vrot.slane %v1291, 2
    %v1454 = vrot.slane %v1291, 4
    %v1455 = vrot.slane %v1291, 6
    %v1456 = vrot.slane %v1292, 2
    %v1457 = vrot.slane %v1292, 4
    %v1458 = vrot.slane %v1292, 6
    %v1459 = vrot.slane %v1293, 2
    %v1460 = vrot.slane %v1293, 4
    %v1461 = vrot.slane %v1293, 6
    %v1462 = vrot.slane %v1294, 2
    %v1463 = vrot.slane %v1294, 4
    %v1464 = vrot.slane %v1294, 6
    %v1465 = vrot.slane %v1295, 2
    %v1466 = vrot.slane %v1295, 4
    %v1467 = vrot.slane %v1295, 6
    %v1468 = vrot.slane %v1296, 2
    %v1469 = vrot.slane %v1296, 4
    %v1470 = vrot.slane %v1296, 6
    %v1471 = vrot.slane %v1297, 2
    %v1472 = vrot.slane %v1297, 4
    %v1473 = vrot.slane %v1297, 6
    %v1474 = vrot.slane %v1298, 2
    %v1475 = vrot.slane %v1298, 4
    %v1476 = vrot.slane %v1298, 6
    %v1477 = vrot.slane %v1299, 2
    %v1478 = vrot.slane %v1299, 4
    %v1479 = vrot.slane %v1299, 6
    %v1480 = vrot.slane %v1300, 2
    %v1481 = vrot.slane %v1300, 4
    %v1482 = vrot.slane %v1300, 6
    %v1483 = vrot.slane %v1301, 2
    %v1484 = vrot.slane %v1301, 4
    %v1485 = vrot.slane %v1301, 6
    %v1486 = vrot.slane %v1302, 2
    %v1487 = vrot.slane %v1302, 4
    %v1488 = vrot.slane %v1302, 6
    %v1489 = vrot.slane %v1303, 2
    %v1490 = vrot.slane %v1303, 4
    %v1491 = vrot.slane %v1303, 6
    %v1492 = vrot.slane %v1304, 2
    %v1493 = vrot.slane %v1304, 4
    %v1494 = vrot.slane %v1304, 6
    %v1495 = vrot.slane %v1305, 2
    %v1496 = vrot.slane %v1305, 4
    %v1497 = vrot.slane %v1305, 6
    %v1498 = vrot.slane %v1306, 2
    %v1499 = vrot.slane %v1306, 4
    %v1500 = vrot.slane %v1306, 6
    %v1501 = vrot.slane %v1307, 2
    %v1502 = vrot.slane %v1307, 4
    %v1503 = vrot.slane %v1307, 6
    %v1504 = vrot.slane %v1308, 2
    %v1505 = vrot.slane %v1308, 4
    %v1506 = vrot.slane %v1308, 6
    %v1507 = vrot.slane %v1309, 2
    %v1508 = vrot.slane %v1309, 4
    %v1509 = vrot.slane %v1309, 6
    %v1510 = vrot.slane %v1310, 2
    %v1511 = vrot.slane %v1310, 4
    %v1512 = vrot.slane %v1310, 6
    %v1513 = vrot.slane %v1311, 2
    %v1514 = vrot.slane %v1311, 4
    %v1515 = vrot.slane %v1311, 6
    %v1516 = vrot.slane %v1312, 2
    %v1517 = vrot.slane %v1312, 4
    %v1518 = vrot.slane %v1312, 6
    %v1519 = vrot.slane %v1313, 2
    %v1520 = vrot.slane %v1313, 4
    %v1521 = vrot.slane %v1313, 6
    %v1522 = vrot.slane %v1314, 2
    %v1523 = vrot.slane %v1314, 4
    %v1524 = vrot.slane %v1314, 6
    %v1525 = vrot.slane %v1315, 2
    %v1526 = vrot.slane %v1315, 4
    %v1527 = vrot.slane %v1315, 6
    %v1528 = vrot.slane %v1316, 2
    %v1529 = vrot.slane %v1316, 4
    %v1530 = vrot.slane %v1316, 6
    %v1531 = vrot.slane %v1317, 2
    %v1532 = vrot.slane %v1317, 4
    %v1533 = vrot.slane %v1317, 6
    %v1534 = vrot.slane %v1318, 2
    %v1535 = vrot.slane %v1318, 4
    %v1536 = vrot.slane %v1318, 6
    %v1537 = vrot.slane %v1319, 2
    %v1538 = vrot.slane %v1319, 4
    %v1539 = vrot.slane %v1319, 6
    %v1540 = vrot.slane %v1320, 2
    %v1541 = vrot.slane %v1320, 4
    %v1542 = vrot.slane %v1320, 6
    %v1543 = vrot.slane %v1321, 2
    %v1544 = vrot.slane %v1321, 4
    %v1545 = vrot.slane %v1321, 6
    %v1546 = vrot.slane %v1322, 2
    %v1547 = vrot.slane %v1322, 4
    %v1548 = vrot.slane %v1322, 6
    %v1549 = vrot.slane %v1323, 2
    %v1550 = vrot.slane %v1323, 4
    %v1551 = vrot.slane %v1323, 6
    %v1552 = vrot.slane %v1324, 2
    %v1553 = vrot.slane %v1324, 4
    %v1554 = vrot.slane %v1324, 6
    %v1555 = vrot.slane %v1325, 2
    %v1556 = vrot.slane %v1325, 4
    %v1557 = vrot.slane %v1325, 6
    %v1558 = vrot.slane %v1326, 2
    %v1559 = vrot.slane %v1326, 4
    %v1560 = vrot.slane %v1326, 6
    %v1561 = vrot.slane %v1327, 2
    %v1562 = vrot.slane %v1327, 4
    %v1563 = vrot.slane %v1327, 6
    %v1564 = vrot.slane %v1328, 2
    %v1565 = vrot.slane %v1328, 4
    %v1566 = vrot.slane %v1328, 6
    %v1567 = vrot.slane %v1329, 2
    %v1568 = vrot.slane %v1329, 4
    %v1569 = vrot.slane %v1329, 6
    %v1570 = vrot.slane %v1330, 2
    %v1571 = vrot.slane %v1330, 4
    %v1572 = vrot.slane %v1330, 6
    %v1573 = vrot.slane %v1331, 2
    %v1574 = vrot.slane %v1331, 4
    %v1575 = vrot.slane %v1331, 6
    %v1576 = vrot.slane %v1332, 2
    %v1577 = vrot.slane %v1332, 4
    %v1578 = vrot.slane %v1332, 6
    %v1579 = vrot.slane %v1333, 2
    %v1580 = vrot.slane %v1333, 4
    %v1581 = vrot.slane %v1333, 6
    %v1582 = vrot.slane %v1334, 2
    %v1583 = vrot.slane %v1334, 4
    %v1584 = vrot.slane %v1334, 6
    %v1585 = vrot.slane %v1335, 2
    %v1586 = vrot.slane %v1335, 4
    %v1587 = vrot.slane %v1335, 6
    %v1588 = vrot.slane %v1336, 2
    %v1589 = vrot.slane %v1336, 4
    %v1590 = vrot.slane %v1336, 6
    %v1591 = vrot.slane %v1337, 2
    %v1592 = vrot.slane %v1337, 4
    %v1593 = vrot.slane %v1337, 6
    %v1594 = vrot.slane %v1338, 2
    %v1595 = vrot.slane %v1338, 4
    %v1596 = vrot.slane %v1338, 6
    %v1597 = vrot.slane %v1339, 2
    %v1598 = vrot.slane %v1339, 4
    %v1599 = vrot.slane %v1339, 6
    %v1600 = vrot.slane %v1340, 2
    %v1601 = vrot.slane %v1340, 4
    %v1602 = vrot.slane %v1340, 6
    %v1603 = vrot.slane %v1341, 2
    %v1604 = vrot.slane %v1341, 4
    %v1605 = vrot.slane %v1341, 6
    %v1606 = vrot.slane %v1342, 2
    %v1607 = vrot.slane %v1342, 4
    %v1608 = vrot.slane %v1342, 6
    %v1609 = vrot.slane %v1343, 2
    %v1610 = vrot.slane %v1343, 4
    %v1611 = vrot.slane %v1343, 6
    %v1612 = vrot.slane %v1344, 2
    %v1613 = vrot.slane %v1344, 4
    %v1614 = vrot.slane %v1344, 6
    %v1615 = vrot.slane %v1345, 2
    %v1616 = vrot.slane %v1345, 4
    %v1617 = vrot.slane %v1345, 6
    %v1618 = vrot.slane %v1346, 2
    %v1619 = vrot.slane %v1346, 4
    %v1620 = vrot.slane %v1346, 6
    %v1621 = vrot.slane %v1347, 2
    %v1622 = vrot.slane %v1347, 4
    %v1623 = vrot.slane %v1347, 6
    %v1624 = vrot.slane %v1348, 2
    %v1625 = vrot.slane %v1348, 4
    %v1626 = vrot.slane %v1348, 6
    %v1627 = vrot.slane %v1349, 2
    %v1628 = vrot.slane %v1349, 4
    %v1629 = vrot.slane %v1349, 6
    %v1630 = vrot.slane %v1350, 2
    %v1631 = vrot.slane %v1350, 4
    %v1632 = vrot.slane %v1350, 6
    %v1633 = vrot.slane %v1351, 2
    %v1634 = vrot.slane %v1351, 4
    %v1635 = vrot.slane %v1351, 6
    %v1636 = vrot.slane %v1352, 2
    %v1637 = vrot.slane %v1352, 4
    %v1638 = vrot.slane %v1352, 6
    %v1639 = vrot.slane %v1353, 2
    %v1640 = vrot.slane %v1353, 4
    %v1641 = vrot.slane %v1353, 6
    %v1858 = vrot.slane %v1282, 7
    %v1859 = vrot.slane %v1858, 2
    %v1860 = vrot.slane %v1426, 7
    %v1861 = vrot.slane %v1860, 2
    %v1862 = vrot.slane %v1427, 7
    %v1863 = vrot.slane %v1862, 2
    %v1864 = vrot.slane %v1428, 7
    %v1865 = vrot.slane %v1864, 2
    %v1866 = vrot.slane %v1283, 7
    %v1867 = vrot.slane %v1866, 2
    %v1868 = vrot.slane %v1429, 7
    %v1869 = vrot.slane %v1868, 2
    %v1870 = vrot.slane %v1430, 7
    %v1871 = vrot.slane %v1870, 2
    %v1872 = vrot.slane %v1431, 7
    %v1873 = vrot.slane %v1872, 2
    %v1874 = vrot.slane %v1284, 7
    %v1875 = vrot.slane %v1874, 2
    %v1876 = vrot.slane %v1432, 7
    %v1877 = vrot.slane %v1876, 2
    %v1878 = vrot.slane %v1433, 7
    %v1879 = vrot.slane %v1878, 2
    %v1880 = vrot.slane %v1434, 7
    %v1881 = vrot.slane %v1880, 2
    %v1882 = vrot.slane %v1285, 7
    %v1883 = vrot.slane %v1882, 2
    %v1884 = vrot.slane %v1435, 7
    %v1885 = vrot.slane %v1884, 2
    %v1886 = vrot.slane %v1436, 7
    %v1887 = vrot.slane %v1886, 2
    %v1888 = vrot.slane %v1437, 7
    %v1889 = vrot.slane %v1888, 2
    %v1890 = vrot.slane %v1286, 7
    %v1891 = vrot.slane %v1890, 2
    %v1892 = vrot.slane %v1438, 7
    %v1893 = vrot.slane %v1892, 2
    %v1894 = vrot.slane %v1439, 7
    %v1895 = vrot.slane %v1894, 2
    %v1896 = vrot.slane %v1440, 7
    %v1897 = vrot.slane %v1896, 2
    %v1898 = vrot.slane %v1287, 7
    %v1899 = vrot.slane %v1898, 2
    %v1900 = vrot.slane %v1441, 7
    %v1901 = vrot.slane %v1900, 2
    %v1902 = vrot.slane %v1442, 7
    %v1903 = vrot.slane %v1902, 2
    %v1904 = vrot.slane %v1443, 7
    %v1905 = vrot.slane %v1904, 2
    %v1906 = vrot.slane %v1288, 7
    %v1907 = vrot.slane %v1906, 2
    %v1908 = vrot.slane %v1444, 7
    %v1909 = vrot.slane %v1908, 2
    %v1910 = vrot.slane %v1445, 7
    %v1911 = vrot.slane %v1910, 2
    %v1912 = vrot.slane %v1446, 7
    %v1913 = vrot.slane %v1912, 2
    %v1914 = vrot.slane %v1289, 7
    %v1915 = vrot.slane %v1914, 2
    %v1916 = vrot.slane %v1447, 7
    %v1917 = vrot.slane %v1916, 2
    %v1918 = vrot.slane %v1448, 7
    %v1919 = vrot.slane %v1918, 2
    %v1920 = vrot.slane %v1449, 7
    %v1921 = vrot.slane %v1920, 2
    %v1922 = vrot.slane %v1290, 7
    %v1923 = vrot.slane %v1922, 2
    %v1924 = vrot.slane %v1450, 7
    %v1925 = vrot.slane %v1924, 2
    %v1926 = vrot.slane %v1451, 7
    %v1927 = vrot.slane %v1926, 2
    %v1928 = vrot.slane %v1452, 7
    %v1929 = vrot.slane %v1928, 2
    %v1930 = vrot.slane %v1291, 7
    %v1931 = vrot.slane %v1930, 2
    %v1932 = vrot.slane %v1453, 7
    %v1933 = vrot.slane %v1932, 2
    %v1934 = vrot.slane %v1454, 7
    %v1935 = vrot.slane %v1934, 2
    %v1936 = vrot.slane %v1455, 7
    %v1937 = vrot.slane %v1936, 2
    %v1938 = vrot.slane %v1292, 7
    %v1939 = vrot.slane %v1938, 2
    %v1940 = vrot.slane %v1456, 7
    %v1941 = vrot.slane %v1940, 2
    %v1942 = vrot.slane %v1457, 7
    %v1943 = vrot.slane %v1942, 2
    %v1944 = vrot.slane %v1458, 7
    %v1945 = vrot.slane %v1944, 2
    %v1946 = vrot.slane %v1293, 7
    %v1947 = vrot.slane %v1946, 2
    %v1948 = vrot.slane %v1459, 7
    %v1949 = vrot.slane %v1948, 2
    %v1950 = vrot.slane %v1460, 7
    %v1951 = vrot.slane %v1950, 2
    %v1952 = vrot.slane %v1461, 7
    %v1953 = vrot.slane %v1952, 2
    %v1954 = vrot.slane %v1294, 7
    %v1955 = vrot.slane %v1954, 2
    %v1956 = vrot.slane %v1462, 7
    %v1957 = vrot.slane %v1956, 2
    %v1958 = vrot.slane %v1463, 7
    %v1959 = vrot.slane %v1958, 2
    %v1960 = vrot.slane %v1464, 7
    %v1961 = vrot.slane %v1960, 2
    %v1962 = vrot.slane %v1295, 7
    %v1963 = vrot.slane %v1962, 2
    %v1964 = vrot.slane %v1465, 7
    %v1965 = vrot.slane %v1964, 2
    %v1966 = vrot.slane %v1466, 7
    %v1967 = vrot.slane %v1966, 2
    %v1968 = vrot.slane %v1467, 7
    %v1969 = vrot.slane %v1968, 2
    %v1970 = vrot.slane %v1296, 7
    %v1971 = vrot.slane %v1970, 2
    %v1972 = vrot.slane %v1468, 7
    %v1973 = vrot.slane %v1972, 2
    %v1974 = vrot.slane %v1469, 7
    %v1975 = vrot.slane %v1974, 2
    %v1976 = vrot.slane %v1470, 7
    %v1977 = vrot.slane %v1976, 2
    %v1978 = vrot.slane %v1297, 7
    %v1979 = vrot.slane %v1978, 2
    %v1980 = vrot.slane %v1471, 7
    %v1981 = vrot.slane %v1980, 2
    %v1982 = vrot.slane %v1472, 7
    %v1983 = vrot.slane %v1982, 2
    %v1984 = vrot.slane %v1473, 7
    %v1985 = vrot.slane %v1984, 2
    %v1986 = vrot.slane %v1298, 7
    %v1987 = vrot.slane %v1986, 2
    %v1988 = vrot.slane %v1474, 7
    %v1989 = vrot.slane %v1988, 2
    %v1990 = vrot.slane %v1475, 7
    %v1991 = vrot.slane %v1990, 2
    %v1992 = vrot.slane %v1476, 7
    %v1993 = vrot.slane %v1992, 2
    %v1994 = vrot.slane %v1299, 7
    %v1995 = vrot.slane %v1994, 2
    %v1996 = vrot.slane %v1477, 7
    %v1997 = vrot.slane %v1996, 2
    %v1998 = vrot.slane %v1478, 7
    %v1999 = vrot.slane %v1998, 2
    %v2000 = vrot.slane %v1479, 7
    %v2001 = vrot.slane %v2000, 2
    %v2002 = vrot.slane %v1300, 7
    %v2003 = vrot.slane %v2002, 2
    %v2004 = vrot.slane %v1480, 7
    %v2005 = vrot.slane %v2004, 2
    %v2006 = vrot.slane %v1481, 7
    %v2007 = vrot.slane %v2006, 2
    %v2008 = vrot.slane %v1482, 7
    %v2009 = vrot.slane %v2008, 2
    %v2010 = vrot.slane %v1301, 7
    %v2011 = vrot.slane %v2010, 2
    %v2012 = vrot.slane %v1483, 7
    %v2013 = vrot.slane %v2012, 2
    %v2014 = vrot.slane %v1484, 7
    %v2015 = vrot.slane %v2014, 2
    %v2016 = vrot.slane %v1485, 7
    %v2017 = vrot.slane %v2016, 2
    %v2018 = vrot.slane %v1302, 7
    %v2019 = vrot.slane %v2018, 2
    %v2020 = vrot.slane %v1486, 7
    %v2021 = vrot.slane %v2020, 2
    %v2022 = vrot.slane %v1487, 7
    %v2023 = vrot.slane %v2022, 2
    %v2024 = vrot.slane %v1488, 7
    %v2025 = vrot.slane %v2024, 2
    %v2026 = vrot.slane %v1303, 7
    %v2027 = vrot.slane %v2026, 2
    %v2028 = vrot.slane %v1489, 7
    %v2029 = vrot.slane %v2028, 2
    %v2030 = vrot.slane %v1490, 7
    %v2031 = vrot.slane %v2030, 2
    %v2032 = vrot.slane %v1491, 7
    %v2033 = vrot.slane %v2032, 2
    %v2034 = vrot.slane %v1304, 7
    %v2035 = vrot.slane %v2034, 2
    %v2036 = vrot.slane %v1492, 7
    %v2037 = vrot.slane %v2036, 2
    %v2038 = vrot.slane %v1493, 7
    %v2039 = vrot.slane %v2038, 2
    %v2040 = vrot.slane %v1494, 7
    %v2041 = vrot.slane %v2040, 2
    %v2042 = vrot.slane %v1305, 7
    %v2043 = vrot.slane %v2042, 2
    %v2044 = vrot.slane %v1495, 7
    %v2045 = vrot.slane %v2044, 2
    %v2046 = vrot.slane %v1496, 7
    %v2047 = vrot.slane %v2046, 2
    %v2048 = vrot.slane %v1497, 7
    %v2049 = vrot.slane %v2048, 2
    %v2050 = vrot.slane %v1306, 7
    %v2051 = vrot.slane %v2050, 2
    %v2052 = vrot.slane %v1498, 7
    %v2053 = vrot.slane %v2052, 2
    %v2054 = vrot.slane %v1499, 7
    %v2055 = vrot.slane %v2054, 2
    %v2056 = vrot.slane %v1500, 7
    %v2057 = vrot.slane %v2056, 2
    %v2058 = vrot.slane %v1307, 7
    %v2059 = vrot.slane %v2058, 2
    %v2060 = vrot.slane %v1501, 7
    %v2061 = vrot.slane %v2060, 2
    %v2062 = vrot.slane %v1502, 7
    %v2063 = vrot.slane %v2062, 2
    %v2064 = vrot.slane %v1503, 7
    %v2065 = vrot.slane %v2064, 2
    %v2066 = vrot.slane %v1308, 7
    %v2067 = vrot.slane %v2066, 2
    %v2068 = vrot.slane %v1504, 7
    %v2069 = vrot.slane %v2068, 2
    %v2070 = vrot.slane %v1505, 7
    %v2071 = vrot.slane %v2070, 2
    %v2072 = vrot.slane %v1506, 7
    %v2073 = vrot.slane %v2072, 2
    %v2074 = vrot.slane %v1309, 7
    %v2075 = vrot.slane %v2074, 2
    %v2076 = vrot.slane %v1507, 7
    %v2077 = vrot.slane %v2076, 2
    %v2078 = vrot.slane %v1508, 7
    %v2079 = vrot.slane %v2078, 2
    %v2080 = vrot.slane %v1509, 7
    %v2081 = vrot.slane %v2080, 2
    %v2082 = vrot.slane %v1310, 7
    %v2083 = vrot.slane %v2082, 2
    %v2084 = vrot.slane %v1510, 7
    %v2085 = vrot.slane %v2084, 2
    %v2086 = vrot.slane %v1511, 7
    %v2087 = vrot.slane %v2086, 2
    %v2088 = vrot.slane %v1512, 7
    %v2089 = vrot.slane %v2088, 2
    %v2090 = vrot.slane %v1311, 7
    %v2091 = vrot.slane %v2090, 2
    %v2092 = vrot.slane %v1513, 7
    %v2093 = vrot.slane %v2092, 2
    %v2094 = vrot.slane %v1514, 7
    %v2095 = vrot.slane %v2094, 2
    %v2096 = vrot.slane %v1515, 7
    %v2097 = vrot.slane %v2096, 2
    %v2098 = vrot.slane %v1312, 7
    %v2099 = vrot.slane %v2098, 2
    %v2100 = vrot.slane %v1516, 7
    %v2101 = vrot.slane %v2100, 2
    %v2102 = vrot.slane %v1517, 7
    %v2103 = vrot.slane %v2102, 2
    %v2104 = vrot.slane %v1518, 7
    %v2105 = vrot.slane %v2104, 2
    %v2106 = vrot.slane %v1313, 7
    %v2107 = vrot.slane %v2106, 2
    %v2108 = vrot.slane %v1519, 7
    %v2109 = vrot.slane %v2108, 2
    %v2110 = vrot.slane %v1520, 7
    %v2111 = vrot.slane %v2110, 2
    %v2112 = vrot.slane %v1521, 7
    %v2113 = vrot.slane %v2112, 2
    %v2114 = vrot.slane %v1314, 7
    %v2115 = vrot.slane %v2114, 2
    %v2116 = vrot.slane %v1522, 7
    %v2117 = vrot.slane %v2116, 2
    %v2118 = vrot.slane %v1523, 7
    %v2119 = vrot.slane %v2118, 2
    %v2120 = vrot.slane %v1524, 7
    %v2121 = vrot.slane %v2120, 2
    %v2122 = vrot.slane %v1315, 7
    %v2123 = vrot.slane %v2122, 2
    %v2124 = vrot.slane %v1525, 7
    %v2125 = vrot.slane %v2124, 2
    %v2126 = vrot.slane %v1526, 7
    %v2127 = vrot.slane %v2126, 2
    %v2128 = vrot.slane %v1527, 7
    %v2129 = vrot.slane %v2128, 2
    %v2130 = vrot.slane %v1316, 7
    %v2131 = vrot.slane %v2130, 2
    %v2132 = vrot.slane %v1528, 7
    %v2133 = vrot.slane %v2132, 2
    %v2134 = vrot.slane %v1529, 7
    %v2135 = vrot.slane %v2134, 2
    %v2136 = vrot.slane %v1530, 7
    %v2137 = vrot.slane %v2136, 2
    %v2138 = vrot.slane %v1317, 7
    %v2139 = vrot.slane %v2138, 2
    %v2140 = vrot.slane %v1531, 7
    %v2141 = vrot.slane %v2140, 2
    %v2142 = vrot.slane %v1532, 7
    %v2143 = vrot.slane %v2142, 2
    %v2144 = vrot.slane %v1533, 7
    %v2145 = vrot.slane %v2144, 2
    %v2146 = vrot.slane %v1318, 7
    %v2147 = vrot.slane %v2146, 2
    %v2148 = vrot.slane %v1534, 7
    %v2149 = vrot.slane %v2148, 2
    %v2150 = vrot.slane %v1535, 7
    %v2151 = vrot.slane %v2150, 2
    %v2152 = vrot.slane %v1536, 7
    %v2153 = vrot.slane %v2152, 2
    %v2154 = vrot.slane %v1319, 7
    %v2155 = vrot.slane %v2154, 2
    %v2156 = vrot.slane %v1537, 7
    %v2157 = vrot.slane %v2156, 2
    %v2158 = vrot.slane %v1538, 7
    %v2159 = vrot.slane %v2158, 2
    %v2160 = vrot.slane %v1539, 7
    %v2161 = vrot.slane %v2160, 2
    %v2162 = vrot.slane %v1320, 7
    %v2163 = vrot.slane %v2162, 2
    %v2164 = vrot.slane %v1540, 7
    %v2165 = vrot.slane %v2164, 2
    %v2166 = vrot.slane %v1541, 7
    %v2167 = vrot.slane %v2166, 2
    %v2168 = vrot.slane %v1542, 7
    %v2169 = vrot.slane %v2168, 2
    %v2170 = vrot.slane %v1321, 7
    %v2171 = vrot.slane %v2170, 2
    %v2172 = vrot.slane %v1543, 7
    %v2173 = vrot.slane %v2172, 2
    %v2174 = vrot.slane %v1544, 7
    %v2175 = vrot.slane %v2174, 2
    %v2176 = vrot.slane %v1545, 7
    %v2177 = vrot.slane %v2176, 2
    %v2178 = vrot.slane %v1322, 7
    %v2179 = vrot.slane %v2178, 2
    %v2180 = vrot.slane %v1546, 7
    %v2181 = vrot.slane %v2180, 2
    %v2182 = vrot.slane %v1547, 7
    %v2183 = vrot.slane %v2182, 2
    %v2184 = vrot.slane %v1548, 7
    %v2185 = vrot.slane %v2184, 2
    %v2186 = vrot.slane %v1323, 7
    %v2187 = vrot.slane %v2186, 2
    %v2188 = vrot.slane %v1549, 7
    %v2189 = vrot.slane %v2188, 2
    %v2190 = vrot.slane %v1550, 7
    %v2191 = vrot.slane %v2190, 2
    %v2192 = vrot.slane %v1551, 7
    %v2193 = vrot.slane %v2192, 2
    %v2194 = vrot.slane %v1324, 7
    %v2195 = vrot.slane %v2194, 2
    %v2196 = vrot.slane %v1552, 7
    %v2197 = vrot.slane %v2196, 2
    %v2198 = vrot.slane %v1553, 7
    %v2199 = vrot.slane %v2198, 2
    %v2200 = vrot.slane %v1554, 7
    %v2201 = vrot.slane %v2200, 2
    %v2202 = vrot.slane %v1325, 7
    %v2203 = vrot.slane %v2202, 2
    %v2204 = vrot.slane %v1555, 7
    %v2205 = vrot.slane %v2204, 2
    %v2206 = vrot.slane %v1556, 7
    %v2207 = vrot.slane %v2206, 2
    %v2208 = vrot.slane %v1557, 7
    %v2209 = vrot.slane %v2208, 2
    %v2210 = vrot.slane %v1326, 7
    %v2211 = vrot.slane %v2210, 2
    %v2212 = vrot.slane %v1558, 7
    %v2213 = vrot.slane %v2212, 2
    %v2214 = vrot.slane %v1559, 7
    %v2215 = vrot.slane %v2214, 2
    %v2216 = vrot.slane %v1560, 7
    %v2217 = vrot.slane %v2216, 2
    %v2218 = vrot.slane %v1327, 7
    %v2219 = vrot.slane %v2218, 2
    %v2220 = vrot.slane %v1561, 7
    %v2221 = vrot.slane %v2220, 2
    %v2222 = vrot.slane %v1562, 7
    %v2223 = vrot.slane %v2222, 2
    %v2224 = vrot.slane %v1563, 7
    %v2225 = vrot.slane %v2224, 2
    %v2226 = vrot.slane %v1328, 7
    %v2227 = vrot.slane %v2226, 2
    %v2228 = vrot.slane %v1564, 7
    %v2229 = vrot.slane %v2228, 2
    %v2230 = vrot.slane %v1565, 7
    %v2231 = vrot.slane %v2230, 2
    %v2232 = vrot.slane %v1566, 7
    %v2233 = vrot.slane %v2232, 2
    %v2234 = vrot.slane %v1329, 7
    %v2235 = vrot.slane %v2234, 2
    %v2236 = vrot.slane %v1567, 7
    %v2237 = vrot.slane %v2236, 2
    %v2238 = vrot.slane %v1568, 7
    %v2239 = vrot.slane %v2238, 2
    %v2240 = vrot.slane %v1569, 7
    %v2241 = vrot.slane %v2240, 2
    %v2242 = vrot.slane %v1330, 7
    %v2243 = vrot.slane %v2242, 2
    %v2244 = vrot.slane %v1570, 7
    %v2245 = vrot.slane %v2244, 2
    %v2246 = vrot.slane %v1571, 7
    %v2247 = vrot.slane %v2246, 2
    %v2248 = vrot.slane %v1572, 7
    %v2249 = vrot.slane %v2248, 2
    %v2250 = vrot.slane %v1331, 7
    %v2251 = vrot.slane %v2250, 2
    %v2252 = vrot.slane %v1573, 7
    %v2253 = vrot.slane %v2252, 2
    %v2254 = vrot.slane %v1574, 7
    %v2255 = vrot.slane %v2254, 2
    %v2256 = vrot.slane %v1575, 7
    %v2257 = vrot.slane %v2256, 2
    %v2258 = vrot.slane %v1332, 7
    %v2259 = vrot.slane %v2258, 2
    %v2260 = vrot.slane %v1576, 7
    %v2261 = vrot.slane %v2260, 2
    %v2262 = vrot.slane %v1577, 7
    %v2263 = vrot.slane %v2262, 2
    %v2264 = vrot.slane %v1578, 7
    %v2265 = vrot.slane %v2264, 2
    %v2266 = vrot.slane %v1333, 7
    %v2267 = vrot.slane %v2266, 2
    %v2268 = vrot.slane %v1579, 7
    %v2269 = vrot.slane %v2268, 2
    %v2270 = vrot.slane %v1580, 7
    %v2271 = vrot.slane %v2270, 2
    %v2272 = vrot.slane %v1581, 7
    %v2273 = vrot.slane %v2272, 2
    %v2274 = vrot.slane %v1334, 7
    %v2275 = vrot.slane %v2274, 2
    %v2276 = vrot.slane %v1582, 7
    %v2277 = vrot.slane %v2276, 2
    %v2278 = vrot.slane %v1583, 7
    %v2279 = vrot.slane %v2278, 2
    %v2280 = vrot.slane %v1584, 7
    %v2281 = vrot.slane %v2280, 2
    %v2282 = vrot.slane %v1335, 7
    %v2283 = vrot.slane %v2282, 2
    %v2284 = vrot.slane %v1585, 7
    %v2285 = vrot.slane %v2284, 2
    %v2286 = vrot.slane %v1586, 7
    %v2287 = vrot.slane %v2286, 2
    %v2288 = vrot.slane %v1587, 7
    %v2289 = vrot.slane %v2288, 2
    %v2290 = vrot.slane %v1336, 7
    %v2291 = vrot.slane %v2290, 2
    %v2292 = vrot.slane %v1588, 7
    %v2293 = vrot.slane %v2292, 2
    %v2294 = vrot.slane %v1589, 7
    %v2295 = vrot.slane %v2294, 2
    %v2296 = vrot.slane %v1590, 7
    %v2297 = vrot.slane %v2296, 2
    %v2298 = vrot.slane %v1337, 7
    %v2299 = vrot.slane %v2298, 2
    %v2300 = vrot.slane %v1591, 7
    %v2301 = vrot.slane %v2300, 2
    %v2302 = vrot.slane %v1592, 7
    %v2303 = vrot.slane %v2302, 2
    %v2304 = vrot.slane %v1593, 7
    %v2305 = vrot.slane %v2304, 2
    %v2306 = vrot.slane %v1338, 7
    %v2307 = vrot.slane %v2306, 2
    %v2308 = vrot.slane %v1594, 7
    %v2309 = vrot.slane %v2308, 2
    %v2310 = vrot.slane %v1595, 7
    %v2311 = vrot.slane %v2310, 2
    %v2312 = vrot.slane %v1596, 7
    %v2313 = vrot.slane %v2312, 2
    %v2314 = vrot.slane %v1339, 7
    %v2315 = vrot.slane %v2314, 2
    %v2316 = vrot.slane %v1597, 7
    %v2317 = vrot.slane %v2316, 2
    %v2318 = vrot.slane %v1598, 7
    %v2319 = vrot.slane %v2318, 2
    %v2320 = vrot.slane %v1599, 7
    %v2321 = vrot.slane %v2320, 2
    %v2322 = vrot.slane %v1340, 7
    %v2323 = vrot.slane %v2322, 2
    %v2324 = vrot.slane %v1600, 7
    %v2325 = vrot.slane %v2324, 2
    %v2326 = vrot.slane %v1601, 7
    %v2327 = vrot.slane %v2326, 2
    %v2328 = vrot.slane %v1602, 7
    %v2329 = vrot.slane %v2328, 2
    %v2330 = vrot.slane %v1341, 7
    %v2331 = vrot.slane %v2330, 2
    %v2332 = vrot.slane %v1603, 7
    %v2333 = vrot.slane %v2332, 2
    %v2334 = vrot.slane %v1604, 7
    %v2335 = vrot.slane %v2334, 2
    %v2336 = vrot.slane %v1605, 7
    %v2337 = vrot.slane %v2336, 2
    %v2338 = vrot.slane %v1342, 7
    %v2339 = vrot.slane %v2338, 2
    %v2340 = vrot.slane %v1606, 7
    %v2341 = vrot.slane %v2340, 2
    %v2342 = vrot.slane %v1607, 7
    %v2343 = vrot.slane %v2342, 2
    %v2344 = vrot.slane %v1608, 7
    %v2345 = vrot.slane %v2344, 2
    %v2346 = vrot.slane %v1343, 7
    %v2347 = vrot.slane %v2346, 2
    %v2348 = vrot.slane %v1609, 7
    %v2349 = vrot.slane %v2348, 2
    %v2350 = vrot.slane %v1610, 7
    %v2351 = vrot.slane %v2350, 2
    %v2352 = vrot.slane %v1611, 7
    %v2353 = vrot.slane %v2352, 2
    %v2354 = vrot.slane %v1344, 7
    %v2355 = vrot.slane %v2354, 2
    %v2356 = vrot.slane %v1612, 7
    %v2357 = vrot.slane %v2356, 2
    %v2358 = vrot.slane %v1613, 7
    %v2359 = vrot.slane %v2358, 2
    %v2360 = vrot.slane %v1614, 7
    %v2361 = vrot.slane %v2360, 2
    %v2362 = vrot.slane %v1345, 7
    %v2363 = vrot.slane %v2362, 2
    %v2364 = vrot.slane %v1615, 7
    %v2365 = vrot.slane %v2364, 2
    %v2366 = vrot.slane %v1616, 7
    %v2367 = vrot.slane %v2366, 2
    %v2368 = vrot.slane %v1617, 7
    %v2369 = vrot.slane %v2368, 2
    %v2370 = vrot.slane %v1346, 7
    %v2371 = vrot.slane %v2370, 2
    %v2372 = vrot.slane %v1618, 7
    %v2373 = vrot.slane %v2372, 2
    %v2374 = vrot.slane %v1619, 7
    %v2375 = vrot.slane %v2374, 2
    %v2376 = vrot.slane %v1620, 7
    %v2377 = vrot.slane %v2376, 2
    %v2378 = vrot.slane %v1347, 7
    %v2379 = vrot.slane %v2378, 2
    %v2380 = vrot.slane %v1621, 7
    %v2381 = vrot.slane %v2380, 2
    %v2382 = vrot.slane %v1622, 7
    %v2383 = vrot.slane %v2382, 2
    %v2384 = vrot.slane %v1623, 7
    %v2385 = vrot.slane %v2384, 2
    %v2386 = vrot.slane %v1348, 7
    %v2387 = vrot.slane %v2386, 2
    %v2388 = vrot.slane %v1624, 7
    %v2389 = vrot.slane %v2388, 2
    %v2390 = vrot.slane %v1625, 7
    %v2391 = vrot.slane %v2390, 2
    %v2392 = vrot.slane %v1626, 7
    %v2393 = vrot.slane %v2392, 2
    %v2394 = vrot.slane %v1349, 7
    %v2395 = vrot.slane %v2394, 2
    %v2396 = vrot.slane %v1627, 7
    %v2397 = vrot.slane %v2396, 2
    %v2398 = vrot.slane %v1628, 7
    %v2399 = vrot.slane %v2398, 2
    %v2400 = vrot.slane %v1629, 7
    %v2401 = vrot.slane %v2400, 2
    %v2402 = vrot.slane %v1350, 7
    %v2403 = vrot.slane %v2402, 2
    %v2404 = vrot.slane %v1630, 7
    %v2405 = vrot.slane %v2404, 2
    %v2406 = vrot.slane %v1631, 7
    %v2407 = vrot.slane %v2406, 2
    %v2408 = vrot.slane %v1632, 7
    %v2409 = vrot.slane %v2408, 2
    %v2410 = vrot.slane %v1351, 7
    %v2411 = vrot.slane %v2410, 2
    %v2412 = vrot.slane %v1633, 7
    %v2413 = vrot.slane %v2412, 2
    %v2414 = vrot.slane %v1634, 7
    %v2415 = vrot.slane %v2414, 2
    %v2416 = vrot.slane %v1635, 7
    %v2417 = vrot.slane %v2416, 2
    %v2418 = vrot.slane %v1352, 7
    %v2419 = vrot.slane %v2418, 2
    %v2420 = vrot.slane %v1636, 7
    %v2421 = vrot.slane %v2420, 2
    %v2422 = vrot.slane %v1637, 7
    %v2423 = vrot.slane %v2422, 2
    %v2424 = vrot.slane %v1638, 7
    %v2425 = vrot.slane %v2424, 2
    %v2426 = vrot.slane %v1353, 7
    %v2427 = vrot.slane %v2426, 2
    %v2428 = vrot.slane %v1639, 7
    %v2429 = vrot.slane %v2428, 2
    %v2430 = vrot.slane %v1640, 7
    %v2431 = vrot.slane %v2430, 2
    %v2432 = vrot.slane %v1641, 7
    %v2433 = vrot.slane %v2432, 2
    %v2722 = vmax.f32 %v1282, %v1859
    %v2723 = vmax.f32 %v1426, %v1861
    %v2724 = vmax.f32 %v1427, %v1863
    %v2725 = vmax.f32 %v1428, %v1865
    %v2726 = vmax.f32 %v1283, %v1867
    %v2727 = vmax.f32 %v1429, %v1869
    %v2728 = vmax.f32 %v1430, %v1871
    %v2729 = vmax.f32 %v1431, %v1873
    %v2730 = vmax.f32 %v1284, %v1875
    %v2731 = vmax.f32 %v1432, %v1877
    %v2732 = vmax.f32 %v1433, %v1879
    %v2733 = vmax.f32 %v1434, %v1881
    %v2734 = vmax.f32 %v1285, %v1883
    %v2735 = vmax.f32 %v1435, %v1885
    %v2736 = vmax.f32 %v1436, %v1887
    %v2737 = vmax.f32 %v1437, %v1889
    %v2738 = vmax.f32 %v1286, %v1891
    %v2739 = vmax.f32 %v1438, %v1893
    %v2740 = vmax.f32 %v1439, %v1895
    %v2741 = vmax.f32 %v1440, %v1897
    %v2742 = vmax.f32 %v1287, %v1899
    %v2743 = vmax.f32 %v1441, %v1901
    %v2744 = vmax.f32 %v1442, %v1903
    %v2745 = vmax.f32 %v1443, %v1905
    %v2746 = vmax.f32 %v1288, %v1907
    %v2747 = vmax.f32 %v1444, %v1909
    %v2748 = vmax.f32 %v1445, %v1911
    %v2749 = vmax.f32 %v1446, %v1913
    %v2750 = vmax.f32 %v1289, %v1915
    %v2751 = vmax.f32 %v1447, %v1917
    %v2752 = vmax.f32 %v1448, %v1919
    %v2753 = vmax.f32 %v1449, %v1921
    %v2754 = vmax.f32 %v1290, %v1923
    %v2755 = vmax.f32 %v1450, %v1925
    %v2756 = vmax.f32 %v1451, %v1927
    %v2757 = vmax.f32 %v1452, %v1929
    %v2758 = vmax.f32 %v1291, %v1931
    %v2759 = vmax.f32 %v1453, %v1933
    %v2760 = vmax.f32 %v1454, %v1935
    %v2761 = vmax.f32 %v1455, %v1937
    %v2762 = vmax.f32 %v1292, %v1939
    %v2763 = vmax.f32 %v1456, %v1941
    %v2764 = vmax.f32 %v1457, %v1943
    %v2765 = vmax.f32 %v1458, %v1945
    %v2766 = vmax.f32 %v1293, %v1947
    %v2767 = vmax.f32 %v1459, %v1949
    %v2768 = vmax.f32 %v1460, %v1951
    %v2769 = vmax.f32 %v1461, %v1953
    %v2770 = vmax.f32 %v1294, %v1955
    %v2771 = vmax.f32 %v1462, %v1957
    %v2772 = vmax.f32 %v1463, %v1959
    %v2773 = vmax.f32 %v1464, %v1961
    %v2774 = vmax.f32 %v1295, %v1963
    %v2775 = vmax.f32 %v1465, %v1965
    %v2776 = vmax.f32 %v1466, %v1967
    %v2777 = vmax.f32 %v1467, %v1969
    %v2778 = vmax.f32 %v1296, %v1971
    %v2779 = vmax.f32 %v1468, %v1973
    %v2780 = vmax.f32 %v1469, %v1975
    %v2781 = vmax.f32 %v1470, %v1977
    %v2782 = vmax.f32 %v1297, %v1979
    %v2783 = vmax.f32 %v1471, %v1981
    %v2784 = vmax.f32 %v1472, %v1983
    %v2785 = vmax.f32 %v1473, %v1985
    %v2786 = vmax.f32 %v1298, %v1987
    %v2787 = vmax.f32 %v1474, %v1989
    %v2788 = vmax.f32 %v1475, %v1991
    %v2789 = vmax.f32 %v1476, %v1993
    %v2790 = vmax.f32 %v1299, %v1995
    %v2791 = vmax.f32 %v1477, %v1997
    %v2792 = vmax.f32 %v1478, %v1999
    %v2793 = vmax.f32 %v1479, %v2001
    %v2794 = vmax.f32 %v1300, %v2003
    %v2795 = vmax.f32 %v1480, %v2005
    %v2796 = vmax.f32 %v1481, %v2007
    %v2797 = vmax.f32 %v1482, %v2009
    %v2798 = vmax.f32 %v1301, %v2011
    %v2799 = vmax.f32 %v1483, %v2013
    %v2800 = vmax.f32 %v1484, %v2015
    %v2801 = vmax.f32 %v1485, %v2017
    %v2802 = vmax.f32 %v1302, %v2019
    %v2803 = vmax.f32 %v1486, %v2021
    %v2804 = vmax.f32 %v1487, %v2023
    %v2805 = vmax.f32 %v1488, %v2025
    %v2806 = vmax.f32 %v1303, %v2027
    %v2807 = vmax.f32 %v1489, %v2029
    %v2808 = vmax.f32 %v1490, %v2031
    %v2809 = vmax.f32 %v1491, %v2033
    %v2810 = vmax.f32 %v1304, %v2035
    %v2811 = vmax.f32 %v1492, %v2037
    %v2812 = vmax.f32 %v1493, %v2039
    %v2813 = vmax.f32 %v1494, %v2041
    %v2814 = vmax.f32 %v1305, %v2043
    %v2815 = vmax.f32 %v1495, %v2045
    %v2816 = vmax.f32 %v1496, %v2047
    %v2817 = vmax.f32 %v1497, %v2049
    %v2818 = vmax.f32 %v1306, %v2051
    %v2819 = vmax.f32 %v1498, %v2053
    %v2820 = vmax.f32 %v1499, %v2055
    %v2821 = vmax.f32 %v1500, %v2057
    %v2822 = vmax.f32 %v1307, %v2059
    %v2823 = vmax.f32 %v1501, %v2061
    %v2824 = vmax.f32 %v1502, %v2063
    %v2825 = vmax.f32 %v1503, %v2065
    %v2826 = vmax.f32 %v1308, %v2067
    %v2827 = vmax.f32 %v1504, %v2069
    %v2828 = vmax.f32 %v1505, %v2071
    %v2829 = vmax.f32 %v1506, %v2073
    %v2830 = vmax.f32 %v1309, %v2075
    %v2831 = vmax.f32 %v1507, %v2077
    %v2832 = vmax.f32 %v1508, %v2079
    %v2833 = vmax.f32 %v1509, %v2081
    %v2834 = vmax.f32 %v1310, %v2083
    %v2835 = vmax.f32 %v1510, %v2085
    %v2836 = vmax.f32 %v1511, %v2087
    %v2837 = vmax.f32 %v1512, %v2089
    %v2838 = vmax.f32 %v1311, %v2091
    %v2839 = vmax.f32 %v1513, %v2093
    %v2840 = vmax.f32 %v1514, %v2095
    %v2841 = vmax.f32 %v1515, %v2097
    %v2842 = vmax.f32 %v1312, %v2099
    %v2843 = vmax.f32 %v1516, %v2101
    %v2844 = vmax.f32 %v1517, %v2103
    %v2845 = vmax.f32 %v1518, %v2105
    %v2846 = vmax.f32 %v1313, %v2107
    %v2847 = vmax.f32 %v1519, %v2109
    %v2848 = vmax.f32 %v1520, %v2111
    %v2849 = vmax.f32 %v1521, %v2113
    %v2850 = vmax.f32 %v1314, %v2115
    %v2851 = vmax.f32 %v1522, %v2117
    %v2852 = vmax.f32 %v1523, %v2119
    %v2853 = vmax.f32 %v1524, %v2121
    %v2854 = vmax.f32 %v1315, %v2123
    %v2855 = vmax.f32 %v1525, %v2125
    %v2856 = vmax.f32 %v1526, %v2127
    %v2857 = vmax.f32 %v1527, %v2129
    %v2858 = vmax.f32 %v1316, %v2131
    %v2859 = vmax.f32 %v1528, %v2133
    %v2860 = vmax.f32 %v1529, %v2135
    %v2861 = vmax.f32 %v1530, %v2137
    %v2862 = vmax.f32 %v1317, %v2139
    %v2863 = vmax.f32 %v1531, %v2141
    %v2864 = vmax.f32 %v1532, %v2143
    %v2865 = vmax.f32 %v1533, %v2145
    %v2866 = vmax.f32 %v1318, %v2147
    %v2867 = vmax.f32 %v1534, %v2149
    %v2868 = vmax.f32 %v1535, %v2151
    %v2869 = vmax.f32 %v1536, %v2153
    %v2870 = vmax.f32 %v1319, %v2155
    %v2871 = vmax.f32 %v1537, %v2157
    %v2872 = vmax.f32 %v1538, %v2159
    %v2873 = vmax.f32 %v1539, %v2161
    %v2874 = vmax.f32 %v1320, %v2163
    %v2875 = vmax.f32 %v1540, %v2165
    %v2876 = vmax.f32 %v1541, %v2167
    %v2877 = vmax.f32 %v1542, %v2169
    %v2878 = vmax.f32 %v1321, %v2171
    %v2879 = vmax.f32 %v1543, %v2173
    %v2880 = vmax.f32 %v1544, %v2175
    %v2881 = vmax.f32 %v1545, %v2177
    %v2882 = vmax.f32 %v1322, %v2179
    %v2883 = vmax.f32 %v1546, %v2181
    %v2884 = vmax.f32 %v1547, %v2183
    %v2885 = vmax.f32 %v1548, %v2185
    %v2886 = vmax.f32 %v1323, %v2187
    %v2887 = vmax.f32 %v1549, %v2189
    %v2888 = vmax.f32 %v1550, %v2191
    %v2889 = vmax.f32 %v1551, %v2193
    %v2890 = vmax.f32 %v1324, %v2195
    %v2891 = vmax.f32 %v1552, %v2197
    %v2892 = vmax.f32 %v1553, %v2199
    %v2893 = vmax.f32 %v1554, %v2201
    %v2894 = vmax.f32 %v1325, %v2203
    %v2895 = vmax.f32 %v1555, %v2205
    %v2896 = vmax.f32 %v1556, %v2207
    %v2897 = vmax.f32 %v1557, %v2209
    %v2898 = vmax.f32 %v1326, %v2211
    %v2899 = vmax.f32 %v1558, %v2213
    %v2900 = vmax.f32 %v1559, %v2215
    %v2901 = vmax.f32 %v1560, %v2217
    %v2902 = vmax.f32 %v1327, %v2219
    %v2903 = vmax.f32 %v1561, %v2221
    %v2904 = vmax.f32 %v1562, %v2223
    %v2905 = vmax.f32 %v1563, %v2225
    %v2906 = vmax.f32 %v1328, %v2227
    %v2907 = vmax.f32 %v1564, %v2229
    %v2908 = vmax.f32 %v1565, %v2231
    %v2909 = vmax.f32 %v1566, %v2233
    %v2910 = vmax.f32 %v1329, %v2235
    %v2911 = vmax.f32 %v1567, %v2237
    %v2912 = vmax.f32 %v1568, %v2239
    %v2913 = vmax.f32 %v1569, %v2241
    %v2914 = vmax.f32 %v1330, %v2243
    %v2915 = vmax.f32 %v1570, %v2245
    %v2916 = vmax.f32 %v1571, %v2247
    %v2917 = vmax.f32 %v1572, %v2249
    %v2918 = vmax.f32 %v1331, %v2251
    %v2919 = vmax.f32 %v1573, %v2253
    %v2920 = vmax.f32 %v1574, %v2255
    %v2921 = vmax.f32 %v1575, %v2257
    %v2922 = vmax.f32 %v1332, %v2259
    %v2923 = vmax.f32 %v1576, %v2261
    %v2924 = vmax.f32 %v1577, %v2263
    %v2925 = vmax.f32 %v1578, %v2265
    %v2926 = vmax.f32 %v1333, %v2267
    %v2927 = vmax.f32 %v1579, %v2269
    %v2928 = vmax.f32 %v1580, %v2271
    %v2929 = vmax.f32 %v1581, %v2273
    %v2930 = vmax.f32 %v1334, %v2275
    %v2931 = vmax.f32 %v1582, %v2277
    %v2932 = vmax.f32 %v1583, %v2279
    %v2933 = vmax.f32 %v1584, %v2281
    %v2934 = vmax.f32 %v1335, %v2283
    %v2935 = vmax.f32 %v1585, %v2285
    %v2936 = vmax.f32 %v1586, %v2287
    %v2937 = vmax.f32 %v1587, %v2289
    %v2938 = vmax.f32 %v1336, %v2291
    %v2939 = vmax.f32 %v1588, %v2293
    %v2940 = vmax.f32 %v1589, %v2295
    %v2941 = vmax.f32 %v1590, %v2297
    %v2942 = vmax.f32 %v1337, %v2299
    %v2943 = vmax.f32 %v1591, %v2301
    %v2944 = vmax.f32 %v1592, %v2303
    %v2945 = vmax.f32 %v1593, %v2305
    %v2946 = vmax.f32 %v1338, %v2307
    %v2947 = vmax.f32 %v1594, %v2309
    %v2948 = vmax.f32 %v1595, %v2311
    %v2949 = vmax.f32 %v1596, %v2313
    %v2950 = vmax.f32 %v1339, %v2315
    %v2951 = vmax.f32 %v1597, %v2317
    %v2952 = vmax.f32 %v1598, %v2319
    %v2953 = vmax.f32 %v1599, %v2321
    %v2954 = vmax.f32 %v1340, %v2323
    %v2955 = vmax.f32 %v1600, %v2325
    %v2956 = vmax.f32 %v1601, %v2327
    %v2957 = vmax.f32 %v1602, %v2329
    %v2958 = vmax.f32 %v1341, %v2331
    %v2959 = vmax.f32 %v1603, %v2333
    %v2960 = vmax.f32 %v1604, %v2335
    %v2961 = vmax.f32 %v1605, %v2337
    %v2962 = vmax.f32 %v1342, %v2339
    %v2963 = vmax.f32 %v1606, %v2341
    %v2964 = vmax.f32 %v1607, %v2343
    %v2965 = vmax.f32 %v1608, %v2345
    %v2966 = vmax.f32 %v1343, %v2347
    %v2967 = vmax.f32 %v1609, %v2349
    %v2968 = vmax.f32 %v1610, %v2351
    %v2969 = vmax.f32 %v1611, %v2353
    %v2970 = vmax.f32 %v1344, %v2355
    %v2971 = vmax.f32 %v1612, %v2357
    %v2972 = vmax.f32 %v1613, %v2359
    %v2973 = vmax.f32 %v1614, %v2361
    %v2974 = vmax.f32 %v1345, %v2363
    %v2975 = vmax.f32 %v1615, %v2365
    %v2976 = vmax.f32 %v1616, %v2367
    %v2977 = vmax.f32 %v1617, %v2369
    %v2978 = vmax.f32 %v1346, %v2371
    %v2979 = vmax.f32 %v1618, %v2373
    %v2980 = vmax.f32 %v1619, %v2375
    %v2981 = vmax.f32 %v1620, %v2377
    %v2982 = vmax.f32 %v1347, %v2379
    %v2983 = vmax.f32 %v1621, %v2381
    %v2984 = vmax.f32 %v1622, %v2383
    %v2985 = vmax.f32 %v1623, %v2385
    %v2986 = vmax.f32 %v1348, %v2387
    %v2987 = vmax.f32 %v1624, %v2389
    %v2988 = vmax.f32 %v1625, %v2391
    %v2989 = vmax.f32 %v1626, %v2393
    %v2990 = vmax.f32 %v1349, %v2395
    %v2991 = vmax.f32 %v1627, %v2397
    %v2992 = vmax.f32 %v1628, %v2399
    %v2993 = vmax.f32 %v1629, %v2401
    %v2994 = vmax.f32 %v1350, %v2403
    %v2995 = vmax.f32 %v1630, %v2405
    %v2996 = vmax.f32 %v1631, %v2407
    %v2997 = vmax.f32 %v1632, %v2409
    %v2998 = vmax.f32 %v1351, %v2411
    %v2999 = vmax.f32 %v1633, %v2413
    %v3000 = vmax.f32 %v1634, %v2415
    %v3001 = vmax.f32 %v1635, %v2417
    %v3002 = vmax.f32 %v1352, %v2419
    %v3003 = vmax.f32 %v1636, %v2421
    %v3004 = vmax.f32 %v1637, %v2423
    %v3005 = vmax.f32 %v1638, %v2425
    %v3006 = vmax.f32 %v1353, %v2427
    %v3007 = vmax.f32 %v1639, %v2429
    %v3008 = vmax.f32 %v1640, %v2431
    %v3009 = vmax.f32 %v1641, %v2433
    %v3298 = vperm.slane %v2722, 0
    %v3299 = vperm.slane %v2723, 0
    %v3300 = vperm.slane %v2724, 0
    %v3301 = vperm.slane %v2725, 0
    %v3302 = vperm.slane %v2726, 0
    %v3303 = vperm.slane %v2727, 0
    %v3304 = vperm.slane %v2728, 0
    %v3305 = vperm.slane %v2729, 0
    %v3306 = vperm.slane %v2730, 0
    %v3307 = vperm.slane %v2731, 0
    %v3308 = vperm.slane %v2732, 0
    %v3309 = vperm.slane %v2733, 0
    %v3310 = vperm.slane %v2734, 0
    %v3311 = vperm.slane %v2735, 0
    %v3312 = vperm.slane %v2736, 0
    %v3313 = vperm.slane %v2737, 0
    %v3314 = vperm.slane %v2738, 0
    %v3315 = vperm.slane %v2739, 0
    %v3316 = vperm.slane %v2740, 0
    %v3317 = vperm.slane %v2741, 0
    %v3318 = vperm.slane %v2742, 0
    %v3319 = vperm.slane %v2743, 0
    %v3320 = vperm.slane %v2744, 0
    %v3321 = vperm.slane %v2745, 0
    %v3322 = vperm.slane %v2746, 0
    %v3323 = vperm.slane %v2747, 0
    %v3324 = vperm.slane %v2748, 0
    %v3325 = vperm.slane %v2749, 0
    %v3326 = vperm.slane %v2750, 0
    %v3327 = vperm.slane %v2751, 0
    %v3328 = vperm.slane %v2752, 0
    %v3329 = vperm.slane %v2753, 0
    %v3330 = vperm.slane %v2754, 0
    %v3331 = vperm.slane %v2755, 0
    %v3332 = vperm.slane %v2756, 0
    %v3333 = vperm.slane %v2757, 0
    %v3334 = vperm.slane %v2758, 0
    %v3335 = vperm.slane %v2759, 0
    %v3336 = vperm.slane %v2760, 0
    %v3337 = vperm.slane %v2761, 0
    %v3338 = vperm.slane %v2762, 0
    %v3339 = vperm.slane %v2763, 0
    %v3340 = vperm.slane %v2764, 0
    %v3341 = vperm.slane %v2765, 0
    %v3342 = vperm.slane %v2766, 0
    %v3343 = vperm.slane %v2767, 0
    %v3344 = vperm.slane %v2768, 0
    %v3345 = vperm.slane %v2769, 0
    %v3346 = vperm.slane %v2770, 0
    %v3347 = vperm.slane %v2771, 0
    %v3348 = vperm.slane %v2772, 0
    %v3349 = vperm.slane %v2773, 0
    %v3350 = vperm.slane %v2774, 0
    %v3351 = vperm.slane %v2775, 0
    %v3352 = vperm.slane %v2776, 0
    %v3353 = vperm.slane %v2777, 0
    %v3354 = vperm.slane %v2778, 0
    %v3355 = vperm.slane %v2779, 0
    %v3356 = vperm.slane %v2780, 0
    %v3357 = vperm.slane %v2781, 0
    %v3358 = vperm.slane %v2782, 0
    %v3359 = vperm.slane %v2783, 0
    %v3360 = vperm.slane %v2784, 0
    %v3361 = vperm.slane %v2785, 0
    %v3362 = vperm.slane %v2786, 0
    %v3363 = vperm.slane %v2787, 0
    %v3364 = vperm.slane %v2788, 0
    %v3365 = vperm.slane %v2789, 0
    %v3366 = vperm.slane %v2790, 0
    %v3367 = vperm.slane %v2791, 0
    %v3368 = vperm.slane %v2792, 0
    %v3369 = vperm.slane %v2793, 0
    %v3370 = vperm.slane %v2794, 0
    %v3371 = vperm.slane %v2795, 0
    %v3372 = vperm.slane %v2796, 0
    %v3373 = vperm.slane %v2797, 0
    %v3374 = vperm.slane %v2798, 0
    %v3375 = vperm.slane %v2799, 0
    %v3376 = vperm.slane %v2800, 0
    %v3377 = vperm.slane %v2801, 0
    %v3378 = vperm.slane %v2802, 0
    %v3379 = vperm.slane %v2803, 0
    %v3380 = vperm.slane %v2804, 0
    %v3381 = vperm.slane %v2805, 0
    %v3382 = vperm.slane %v2806, 0
    %v3383 = vperm.slane %v2807, 0
    %v3384 = vperm.slane %v2808, 0
    %v3385 = vperm.slane %v2809, 0
    %v3386 = vperm.slane %v2810, 0
    %v3387 = vperm.slane %v2811, 0
    %v3388 = vperm.slane %v2812, 0
    %v3389 = vperm.slane %v2813, 0
    %v3390 = vperm.slane %v2814, 0
    %v3391 = vperm.slane %v2815, 0
    %v3392 = vperm.slane %v2816, 0
    %v3393 = vperm.slane %v2817, 0
    %v3394 = vperm.slane %v2818, 0
    %v3395 = vperm.slane %v2819, 0
    %v3396 = vperm.slane %v2820, 0
    %v3397 = vperm.slane %v2821, 0
    %v3398 = vperm.slane %v2822, 0
    %v3399 = vperm.slane %v2823, 0
    %v3400 = vperm.slane %v2824, 0
    %v3401 = vperm.slane %v2825, 0
    %v3402 = vperm.slane %v2826, 0
    %v3403 = vperm.slane %v2827, 0
    %v3404 = vperm.slane %v2828, 0
    %v3405 = vperm.slane %v2829, 0
    %v3406 = vperm.slane %v2830, 0
    %v3407 = vperm.slane %v2831, 0
    %v3408 = vperm.slane %v2832, 0
    %v3409 = vperm.slane %v2833, 0
    %v3410 = vperm.slane %v2834, 0
    %v3411 = vperm.slane %v2835, 0
    %v3412 = vperm.slane %v2836, 0
    %v3413 = vperm.slane %v2837, 0
    %v3414 = vperm.slane %v2838, 0
    %v3415 = vperm.slane %v2839, 0
    %v3416 = vperm.slane %v2840, 0
    %v3417 = vperm.slane %v2841, 0
    %v3418 = vperm.slane %v2842, 0
    %v3419 = vperm.slane %v2843, 0
    %v3420 = vperm.slane %v2844, 0
    %v3421 = vperm.slane %v2845, 0
    %v3422 = vperm.slane %v2846, 0
    %v3423 = vperm.slane %v2847, 0
    %v3424 = vperm.slane %v2848, 0
    %v3425 = vperm.slane %v2849, 0
    %v3426 = vperm.slane %v2850, 0
    %v3427 = vperm.slane %v2851, 0
    %v3428 = vperm.slane %v2852, 0
    %v3429 = vperm.slane %v2853, 0
    %v3430 = vperm.slane %v2854, 0
    %v3431 = vperm.slane %v2855, 0
    %v3432 = vperm.slane %v2856, 0
    %v3433 = vperm.slane %v2857, 0
    %v3434 = vperm.slane %v2858, 0
    %v3435 = vperm.slane %v2859, 0
    %v3436 = vperm.slane %v2860, 0
    %v3437 = vperm.slane %v2861, 0
    %v3438 = vperm.slane %v2862, 0
    %v3439 = vperm.slane %v2863, 0
    %v3440 = vperm.slane %v2864, 0
    %v3441 = vperm.slane %v2865, 0
    %v3442 = vperm.slane %v2866, 0
    %v3443 = vperm.slane %v2867, 0
    %v3444 = vperm.slane %v2868, 0
    %v3445 = vperm.slane %v2869, 0
    %v3446 = vperm.slane %v2870, 0
    %v3447 = vperm.slane %v2871, 0
    %v3448 = vperm.slane %v2872, 0
    %v3449 = vperm.slane %v2873, 0
    %v3450 = vperm.slane %v2874, 0
    %v3451 = vperm.slane %v2875, 0
    %v3452 = vperm.slane %v2876, 0
    %v3453 = vperm.slane %v2877, 0
    %v3454 = vperm.slane %v2878, 0
    %v3455 = vperm.slane %v2879, 0
    %v3456 = vperm.slane %v2880, 0
    %v3457 = vperm.slane %v2881, 0
    %v3458 = vperm.slane %v2882, 0
    %v3459 = vperm.slane %v2883, 0
    %v3460 = vperm.slane %v2884, 0
    %v3461 = vperm.slane %v2885, 0
    %v3462 = vperm.slane %v2886, 0
    %v3463 = vperm.slane %v2887, 0
    %v3464 = vperm.slane %v2888, 0
    %v3465 = vperm.slane %v2889, 0
    %v3466 = vperm.slane %v2890, 0
    %v3467 = vperm.slane %v2891, 0
    %v3468 = vperm.slane %v2892, 0
    %v3469 = vperm.slane %v2893, 0
    %v3470 = vperm.slane %v2894, 0
    %v3471 = vperm.slane %v2895, 0
    %v3472 = vperm.slane %v2896, 0
    %v3473 = vperm.slane %v2897, 0
    %v3474 = vperm.slane %v2898, 0
    %v3475 = vperm.slane %v2899, 0
    %v3476 = vperm.slane %v2900, 0
    %v3477 = vperm.slane %v2901, 0
    %v3478 = vperm.slane %v2902, 0
    %v3479 = vperm.slane %v2903, 0
    %v3480 = vperm.slane %v2904, 0
    %v3481 = vperm.slane %v2905, 0
    %v3482 = vperm.slane %v2906, 0
    %v3483 = vperm.slane %v2907, 0
    %v3484 = vperm.slane %v2908, 0
    %v3485 = vperm.slane %v2909, 0
    %v3486 = vperm.slane %v2910, 0
    %v3487 = vperm.slane %v2911, 0
    %v3488 = vperm.slane %v2912, 0
    %v3489 = vperm.slane %v2913, 0
    %v3490 = vperm.slane %v2914, 0
    %v3491 = vperm.slane %v2915, 0
    %v3492 = vperm.slane %v2916, 0
    %v3493 = vperm.slane %v2917, 0
    %v3494 = vperm.slane %v2918, 0
    %v3495 = vperm.slane %v2919, 0
    %v3496 = vperm.slane %v2920, 0
    %v3497 = vperm.slane %v2921, 0
    %v3498 = vperm.slane %v2922, 0
    %v3499 = vperm.slane %v2923, 0
    %v3500 = vperm.slane %v2924, 0
    %v3501 = vperm.slane %v2925, 0
    %v3502 = vperm.slane %v2926, 0
    %v3503 = vperm.slane %v2927, 0
    %v3504 = vperm.slane %v2928, 0
    %v3505 = vperm.slane %v2929, 0
    %v3506 = vperm.slane %v2930, 0
    %v3507 = vperm.slane %v2931, 0
    %v3508 = vperm.slane %v2932, 0
    %v3509 = vperm.slane %v2933, 0
    %v3510 = vperm.slane %v2934, 0
    %v3511 = vperm.slane %v2935, 0
    %v3512 = vperm.slane %v2936, 0
    %v3513 = vperm.slane %v2937, 0
    %v3514 = vperm.slane %v2938, 0
    %v3515 = vperm.slane %v2939, 0
    %v3516 = vperm.slane %v2940, 0
    %v3517 = vperm.slane %v2941, 0
    %v3518 = vperm.slane %v2942, 0
    %v3519 = vperm.slane %v2943, 0
    %v3520 = vperm.slane %v2944, 0
    %v3521 = vperm.slane %v2945, 0
    %v3522 = vperm.slane %v2946, 0
    %v3523 = vperm.slane %v2947, 0
    %v3524 = vperm.slane %v2948, 0
    %v3525 = vperm.slane %v2949, 0
    %v3526 = vperm.slane %v2950, 0
    %v3527 = vperm.slane %v2951, 0
    %v3528 = vperm.slane %v2952, 0
    %v3529 = vperm.slane %v2953, 0
    %v3530 = vperm.slane %v2954, 0
    %v3531 = vperm.slane %v2955, 0
    %v3532 = vperm.slane %v2956, 0
    %v3533 = vperm.slane %v2957, 0
    %v3534 = vperm.slane %v2958, 0
    %v3535 = vperm.slane %v2959, 0
    %v3536 = vperm.slane %v2960, 0
    %v3537 = vperm.slane %v2961, 0
    %v3538 = vperm.slane %v2962, 0
    %v3539 = vperm.slane %v2963, 0
    %v3540 = vperm.slane %v2964, 0
    %v3541 = vperm.slane %v2965, 0
    %v3542 = vperm.slane %v2966, 0
    %v3543 = vperm.slane %v2967, 0
    %v3544 = vperm.slane %v2968, 0
    %v3545 = vperm.slane %v2969, 0
    %v3546 = vperm.slane %v2970, 0
    %v3547 = vperm.slane %v2971, 0
    %v3548 = vperm.slane %v2972, 0
    %v3549 = vperm.slane %v2973, 0
    %v3550 = vperm.slane %v2974, 0
    %v3551 = vperm.slane %v2975, 0
    %v3552 = vperm.slane %v2976, 0
    %v3553 = vperm.slane %v2977, 0
    %v3554 = vperm.slane %v2978, 0
    %v3555 = vperm.slane %v2979, 0
    %v3556 = vperm.slane %v2980, 0
    %v3557 = vperm.slane %v2981, 0
    %v3558 = vperm.slane %v2982, 0
    %v3559 = vperm.slane %v2983, 0
    %v3560 = vperm.slane %v2984, 0
    %v3561 = vperm.slane %v2985, 0
    %v3562 = vperm.slane %v2986, 0
    %v3563 = vperm.slane %v2987, 0
    %v3564 = vperm.slane %v2988, 0
    %v3565 = vperm.slane %v2989, 0
    %v3566 = vperm.slane %v2990, 0
    %v3567 = vperm.slane %v2991, 0
    %v3568 = vperm.slane %v2992, 0
    %v3569 = vperm.slane %v2993, 0
    %v3570 = vperm.slane %v2994, 0
    %v3571 = vperm.slane %v2995, 0
    %v3572 = vperm.slane %v2996, 0
    %v3573 = vperm.slane %v2997, 0
    %v3574 = vperm.slane %v2998, 0
    %v3575 = vperm.slane %v2999, 0
    %v3576 = vperm.slane %v3000, 0
    %v3577 = vperm.slane %v3001, 0
    %v3578 = vperm.slane %v3002, 0
    %v3579 = vperm.slane %v3003, 0
    %v3580 = vperm.slane %v3004, 0
    %v3581 = vperm.slane %v3005, 0
    %v3582 = vperm.slane %v3006, 0
    %v3583 = vperm.slane %v3007, 0
    %v3584 = vperm.slane %v3008, 0
    %v3585 = vperm.slane %v3009, 0
    %vm3586 = vcmask 1041409
    %v3587 = vsel %vm3586, %v3299, %v3298
    %vm3588 = vcmask 1042434
    %v3589 = vsel %vm3588, %v3300, %v3587
    %vm3590 = vcmask 1043459
    %v3591 = vsel %vm3590, %v3301, %v3589
    %vm3592 = vcmask 1044484
    %v3593 = vsel %vm3592, %v3302, %v3591
    %vm3594 = vcmask 1045509
    %v3595 = vsel %vm3594, %v3303, %v3593
    %vm3596 = vcmask 1046534
    %v3597 = vsel %vm3596, %v3304, %v3595
    %vm3598 = vcmask 1047559
    %v3599 = vsel %vm3598, %v3305, %v3597
    %v3600 = vsel %vm3586, %v3307, %v3306
    %v3601 = vsel %vm3588, %v3308, %v3600
    %v3602 = vsel %vm3590, %v3309, %v3601
    %v3603 = vsel %vm3592, %v3310, %v3602
    %v3604 = vsel %vm3594, %v3311, %v3603
    %v3605 = vsel %vm3596, %v3312, %v3604
    %v3606 = vsel %vm3598, %v3313, %v3605
    %v3607 = vsel %vm3586, %v3315, %v3314
    %v3608 = vsel %vm3588, %v3316, %v3607
    %v3609 = vsel %vm3590, %v3317, %v3608
    %v3610 = vsel %vm3592, %v3318, %v3609
    %v3611 = vsel %vm3594, %v3319, %v3610
    %v3612 = vsel %vm3596, %v3320, %v3611
    %v3613 = vsel %vm3598, %v3321, %v3612
    %v3614 = vsel %vm3586, %v3323, %v3322
    %v3615 = vsel %vm3588, %v3324, %v3614
    %v3616 = vsel %vm3590, %v3325, %v3615
    %v3617 = vsel %vm3592, %v3326, %v3616
    %v3618 = vsel %vm3594, %v3327, %v3617
    %v3619 = vsel %vm3596, %v3328, %v3618
    %v3620 = vsel %vm3598, %v3329, %v3619
    %v3621 = vsel %vm3586, %v3331, %v3330
    %v3622 = vsel %vm3588, %v3332, %v3621
    %v3623 = vsel %vm3590, %v3333, %v3622
    %v3624 = vsel %vm3592, %v3334, %v3623
    %v3625 = vsel %vm3594, %v3335, %v3624
    %v3626 = vsel %vm3596, %v3336, %v3625
    %v3627 = vsel %vm3598, %v3337, %v3626
    %v3628 = vsel %vm3586, %v3339, %v3338
    %v3629 = vsel %vm3588, %v3340, %v3628
    %v3630 = vsel %vm3590, %v3341, %v3629
    %v3631 = vsel %vm3592, %v3342, %v3630
    %v3632 = vsel %vm3594, %v3343, %v3631
    %v3633 = vsel %vm3596, %v3344, %v3632
    %v3634 = vsel %vm3598, %v3345, %v3633
    %v3635 = vsel %vm3586, %v3347, %v3346
    %v3636 = vsel %vm3588, %v3348, %v3635
    %v3637 = vsel %vm3590, %v3349, %v3636
    %v3638 = vsel %vm3592, %v3350, %v3637
    %v3639 = vsel %vm3594, %v3351, %v3638
    %v3640 = vsel %vm3596, %v3352, %v3639
    %v3641 = vsel %vm3598, %v3353, %v3640
    %v3642 = vsel %vm3586, %v3355, %v3354
    %v3643 = vsel %vm3588, %v3356, %v3642
    %v3644 = vsel %vm3590, %v3357, %v3643
    %v3645 = vsel %vm3592, %v3358, %v3644
    %v3646 = vsel %vm3594, %v3359, %v3645
    %v3647 = vsel %vm3596, %v3360, %v3646
    %v3648 = vsel %vm3598, %v3361, %v3647
    %v3649 = vsel %vm3586, %v3363, %v3362
    %v3650 = vsel %vm3588, %v3364, %v3649
    %v3651 = vsel %vm3590, %v3365, %v3650
    %v3652 = vsel %vm3592, %v3366, %v3651
    %v3653 = vsel %vm3594, %v3367, %v3652
    %v3654 = vsel %vm3596, %v3368, %v3653
    %v3655 = vsel %vm3598, %v3369, %v3654
    %v3656 = vsel %vm3586, %v3371, %v3370
    %v3657 = vsel %vm3588, %v3372, %v3656
    %v3658 = vsel %vm3590, %v3373, %v3657
    %v3659 = vsel %vm3592, %v3374, %v3658
    %v3660 = vsel %vm3594, %v3375, %v3659
    %v3661 = vsel %vm3596, %v3376, %v3660
    %v3662 = vsel %vm3598, %v3377, %v3661
    %v3663 = vsel %vm3586, %v3379, %v3378
    %v3664 = vsel %vm3588, %v3380, %v3663
    %v3665 = vsel %vm3590, %v3381, %v3664
    %v3666 = vsel %vm3592, %v3382, %v3665
    %v3667 = vsel %vm3594, %v3383, %v3666
    %v3668 = vsel %vm3596, %v3384, %v3667
    %v3669 = vsel %vm3598, %v3385, %v3668
    %v3670 = vsel %vm3586, %v3387, %v3386
    %v3671 = vsel %vm3588, %v3388, %v3670
    %v3672 = vsel %vm3590, %v3389, %v3671
    %v3673 = vsel %vm3592, %v3390, %v3672
    %v3674 = vsel %vm3594, %v3391, %v3673
    %v3675 = vsel %vm3596, %v3392, %v3674
    %v3676 = vsel %vm3598, %v3393, %v3675
    %v3677 = vsel %vm3586, %v3395, %v3394
    %v3678 = vsel %vm3588, %v3396, %v3677
    %v3679 = vsel %vm3590, %v3397, %v3678
    %v3680 = vsel %vm3592, %v3398, %v3679
    %v3681 = vsel %vm3594, %v3399, %v3680
    %v3682 = vsel %vm3596, %v3400, %v3681
    %v3683 = vsel %vm3598, %v3401, %v3682
    %v3684 = vsel %vm3586, %v3403, %v3402
    %v3685 = vsel %vm3588, %v3404, %v3684
    %v3686 = vsel %vm3590, %v3405, %v3685
    %v3687 = vsel %vm3592, %v3406, %v3686
    %v3688 = vsel %vm3594, %v3407, %v3687
    %v3689 = vsel %vm3596, %v3408, %v3688
    %v3690 = vsel %vm3598, %v3409, %v3689
    %v3691 = vsel %vm3586, %v3411, %v3410
    %v3692 = vsel %vm3588, %v3412, %v3691
    %v3693 = vsel %vm3590, %v3413, %v3692
    %v3694 = vsel %vm3592, %v3414, %v3693
    %v3695 = vsel %vm3594, %v3415, %v3694
    %v3696 = vsel %vm3596, %v3416, %v3695
    %v3697 = vsel %vm3598, %v3417, %v3696
    %v3698 = vsel %vm3586, %v3419, %v3418
    %v3699 = vsel %vm3588, %v3420, %v3698
    %v3700 = vsel %vm3590, %v3421, %v3699
    %v3701 = vsel %vm3592, %v3422, %v3700
    %v3702 = vsel %vm3594, %v3423, %v3701
    %v3703 = vsel %vm3596, %v3424, %v3702
    %v3704 = vsel %vm3598, %v3425, %v3703
    %v3705 = vsel %vm3586, %v3427, %v3426
    %v3706 = vsel %vm3588, %v3428, %v3705
    %v3707 = vsel %vm3590, %v3429, %v3706
    %v3708 = vsel %vm3592, %v3430, %v3707
    %v3709 = vsel %vm3594, %v3431, %v3708
    %v3710 = vsel %vm3596, %v3432, %v3709
    %v3711 = vsel %vm3598, %v3433, %v3710
    %v3712 = vsel %vm3586, %v3435, %v3434
    %v3713 = vsel %vm3588, %v3436, %v3712
    %v3714 = vsel %vm3590, %v3437, %v3713
    %v3715 = vsel %vm3592, %v3438, %v3714
    %v3716 = vsel %vm3594, %v3439, %v3715
    %v3717 = vsel %vm3596, %v3440, %v3716
    %v3718 = vsel %vm3598, %v3441, %v3717
    %v3719 = vsel %vm3586, %v3443, %v3442
    %v3720 = vsel %vm3588, %v3444, %v3719
    %v3721 = vsel %vm3590, %v3445, %v3720
    %v3722 = vsel %vm3592, %v3446, %v3721
    %v3723 = vsel %vm3594, %v3447, %v3722
    %v3724 = vsel %vm3596, %v3448, %v3723
    %v3725 = vsel %vm3598, %v3449, %v3724
    %v3726 = vsel %vm3586, %v3451, %v3450
    %v3727 = vsel %vm3588, %v3452, %v3726
    %v3728 = vsel %vm3590, %v3453, %v3727
    %v3729 = vsel %vm3592, %v3454, %v3728
    %v3730 = vsel %vm3594, %v3455, %v3729
    %v3731 = vsel %vm3596, %v3456, %v3730
    %v3732 = vsel %vm3598, %v3457, %v3731
    %v3733 = vsel %vm3586, %v3459, %v3458
    %v3734 = vsel %vm3588, %v3460, %v3733
    %v3735 = vsel %vm3590, %v3461, %v3734
    %v3736 = vsel %vm3592, %v3462, %v3735
    %v3737 = vsel %vm3594, %v3463, %v3736
    %v3738 = vsel %vm3596, %v3464, %v3737
    %v3739 = vsel %vm3598, %v3465, %v3738
    %v3740 = vsel %vm3586, %v3467, %v3466
    %v3741 = vsel %vm3588, %v3468, %v3740
    %v3742 = vsel %vm3590, %v3469, %v3741
    %v3743 = vsel %vm3592, %v3470, %v3742
    %v3744 = vsel %vm3594, %v3471, %v3743
    %v3745 = vsel %vm3596, %v3472, %v3744
    %v3746 = vsel %vm3598, %v3473, %v3745
    %v3747 = vsel %vm3586, %v3475, %v3474
    %v3748 = vsel %vm3588, %v3476, %v3747
    %v3749 = vsel %vm3590, %v3477, %v3748
    %v3750 = vsel %vm3592, %v3478, %v3749
    %v3751 = vsel %vm3594, %v3479, %v3750
    %v3752 = vsel %vm3596, %v3480, %v3751
    %v3753 = vsel %vm3598, %v3481, %v3752
    %v3754 = vsel %vm3586, %v3483, %v3482
    %v3755 = vsel %vm3588, %v3484, %v3754
    %v3756 = vsel %vm3590, %v3485, %v3755
    %v3757 = vsel %vm3592, %v3486, %v3756
    %v3758 = vsel %vm3594, %v3487, %v3757
    %v3759 = vsel %vm3596, %v3488, %v3758
    %v3760 = vsel %vm3598, %v3489, %v3759
    %v3761 = vsel %vm3586, %v3491, %v3490
    %v3762 = vsel %vm3588, %v3492, %v3761
    %v3763 = vsel %vm3590, %v3493, %v3762
    %v3764 = vsel %vm3592, %v3494, %v3763
    %v3765 = vsel %vm3594, %v3495, %v3764
    %v3766 = vsel %vm3596, %v3496, %v3765
    %v3767 = vsel %vm3598, %v3497, %v3766
    %v3768 = vsel %vm3586, %v3499, %v3498
    %v3769 = vsel %vm3588, %v3500, %v3768
    %v3770 = vsel %vm3590, %v3501, %v3769
    %v3771 = vsel %vm3592, %v3502, %v3770
    %v3772 = vsel %vm3594, %v3503, %v3771
    %v3773 = vsel %vm3596, %v3504, %v3772
    %v3774 = vsel %vm3598, %v3505, %v3773
    %v3775 = vsel %vm3586, %v3507, %v3506
    %v3776 = vsel %vm3588, %v3508, %v3775
    %v3777 = vsel %vm3590, %v3509, %v3776
    %v3778 = vsel %vm3592, %v3510, %v3777
    %v3779 = vsel %vm3594, %v3511, %v3778
    %v3780 = vsel %vm3596, %v3512, %v3779
    %v3781 = vsel %vm3598, %v3513, %v3780
    %v3782 = vsel %vm3586, %v3515, %v3514
    %v3783 = vsel %vm3588, %v3516, %v3782
    %v3784 = vsel %vm3590, %v3517, %v3783
    %v3785 = vsel %vm3592, %v3518, %v3784
    %v3786 = vsel %vm3594, %v3519, %v3785
    %v3787 = vsel %vm3596, %v3520, %v3786
    %v3788 = vsel %vm3598, %v3521, %v3787
    %v3789 = vsel %vm3586, %v3523, %v3522
    %v3790 = vsel %vm3588, %v3524, %v3789
    %v3791 = vsel %vm3590, %v3525, %v3790
    %v3792 = vsel %vm3592, %v3526, %v3791
    %v3793 = vsel %vm3594, %v3527, %v3792
    %v3794 = vsel %vm3596, %v3528, %v3793
    %v3795 = vsel %vm3598, %v3529, %v3794
    %v3796 = vsel %vm3586, %v3531, %v3530
    %v3797 = vsel %vm3588, %v3532, %v3796
    %v3798 = vsel %vm3590, %v3533, %v3797
    %v3799 = vsel %vm3592, %v3534, %v3798
    %v3800 = vsel %vm3594, %v3535, %v3799
    %v3801 = vsel %vm3596, %v3536, %v3800
    %v3802 = vsel %vm3598, %v3537, %v3801
    %v3803 = vsel %vm3586, %v3539, %v3538
    %v3804 = vsel %vm3588, %v3540, %v3803
    %v3805 = vsel %vm3590, %v3541, %v3804
    %v3806 = vsel %vm3592, %v3542, %v3805
    %v3807 = vsel %vm3594, %v3543, %v3806
    %v3808 = vsel %vm3596, %v3544, %v3807
    %v3809 = vsel %vm3598, %v3545, %v3808
    %v3810 = vsel %vm3586, %v3547, %v3546
    %v3811 = vsel %vm3588, %v3548, %v3810
    %v3812 = vsel %vm3590, %v3549, %v3811
    %v3813 = vsel %vm3592, %v3550, %v3812
    %v3814 = vsel %vm3594, %v3551, %v3813
    %v3815 = vsel %vm3596, %v3552, %v3814
    %v3816 = vsel %vm3598, %v3553, %v3815
    %v3817 = vsel %vm3586, %v3555, %v3554
    %v3818 = vsel %vm3588, %v3556, %v3817
    %v3819 = vsel %vm3590, %v3557, %v3818
    %v3820 = vsel %vm3592, %v3558, %v3819
    %v3821 = vsel %vm3594, %v3559, %v3820
    %v3822 = vsel %vm3596, %v3560, %v3821
    %v3823 = vsel %vm3598, %v3561, %v3822
    %v3824 = vsel %vm3586, %v3563, %v3562
    %v3825 = vsel %vm3588, %v3564, %v3824
    %v3826 = vsel %vm3590, %v3565, %v3825
    %v3827 = vsel %vm3592, %v3566, %v3826
    %v3828 = vsel %vm3594, %v3567, %v3827
    %v3829 = vsel %vm3596, %v3568, %v3828
    %v3830 = vsel %vm3598, %v3569, %v3829
    %v3831 = vsel %vm3586, %v3571, %v3570
    %v3832 = vsel %vm3588, %v3572, %v3831
    %v3833 = vsel %vm3590, %v3573, %v3832
    %v3834 = vsel %vm3592, %v3574, %v3833
    %v3835 = vsel %vm3594, %v3575, %v3834
    %v3836 = vsel %vm3596, %v3576, %v3835
    %v3837 = vsel %vm3598, %v3577, %v3836
    %v3838 = vsel %vm3586, %v3579, %v3578
    %v3839 = vsel %vm3588, %v3580, %v3838
    %v3840 = vsel %vm3590, %v3581, %v3839
    %v3841 = vsel %vm3592, %v3582, %v3840
    %v3842 = vsel %vm3594, %v3583, %v3841
    %v3843 = vsel %vm3596, %v3584, %v3842
    %v3844 = vsel %vm3598, %v3585, %v3843
    %v3881 = vsel %vm552, %v3599, 0.0
    %v3882 = vsel %vm552, %v3606, 0.0
    %v3883 = vadd.f32 %v3881, %v3882
    %v3884 = vsel %vm552, %v3613, 0.0
    %v3885 = vadd.f32 %v3883, %v3884
    %v3886 = vsel %vm552, %v3620, 0.0
    %v3887 = vadd.f32 %v3885, %v3886
    %v3888 = vsel %vm552, %v3627, 0.0
    %v3889 = vadd.f32 %v3887, %v3888
    %v3890 = vsel %vm552, %v3634, 0.0
    %v3891 = vadd.f32 %v3889, %v3890
    %v3892 = vsel %vm552, %v3641, 0.0
    %v3893 = vadd.f32 %v3891, %v3892
    %v3894 = vsel %vm552, %v3648, 0.0
    %v3895 = vadd.f32 %v3893, %v3894
    %v3896 = vsel %vm552, %v3655, 0.0
    %v3897 = vadd.f32 %v3895, %v3896
    %v3898 = vsel %vm552, %v3662, 0.0
    %v3899 = vadd.f32 %v3897, %v3898
    %v3900 = vsel %vm552, %v3669, 0.0
    %v3901 = vadd.f32 %v3899, %v3900
    %v3902 = vsel %vm552, %v3676, 0.0
    %v3903 = vadd.f32 %v3901, %v3902
    %v3904 = vsel %vm552, %v3683, 0.0
    %v3905 = vadd.f32 %v3903, %v3904
    %v3906 = vsel %vm552, %v3690, 0.0
    %v3907 = vadd.f32 %v3905, %v3906
    %v3908 = vsel %vm552, %v3697, 0.0
    %v3909 = vadd.f32 %v3907, %v3908
    %v3910 = vsel %vm552, %v3704, 0.0
    %v3911 = vadd.f32 %v3909, %v3910
    %v3912 = vsel %vm552, %v3711, 0.0
    %v3913 = vadd.f32 %v3911, %v3912
    %v3914 = vsel %vm552, %v3718, 0.0
    %v3915 = vadd.f32 %v3913, %v3914
    %v3916 = vsel %vm552, %v3725, 0.0
    %v3917 = vadd.f32 %v3915, %v3916
    %v3918 = vsel %vm552, %v3732, 0.0
    %v3919 = vadd.f32 %v3917, %v3918
    %v3920 = vsel %vm552, %v3739, 0.0
    %v3921 = vadd.f32 %v3919, %v3920
    %v3922 = vsel %vm552, %v3746, 0.0
    %v3923 = vadd.f32 %v3921, %v3922
    %v3924 = vsel %vm552, %v3753, 0.0
    %v3925 = vadd.f32 %v3923, %v3924
    %v3926 = vsel %vm552, %v3760, 0.0
    %v3927 = vadd.f32 %v3925, %v3926
    %v3928 = vsel %vm552, %v3767, 0.0
    %v3929 = vadd.f32 %v3927, %v3928
    %v3930 = vsel %vm552, %v3774, 0.0
    %v3931 = vadd.f32 %v3929, %v3930
    %v3932 = vsel %vm552, %v3781, 0.0
    %v3933 = vadd.f32 %v3931, %v3932
    %v3934 = vsel %vm552, %v3788, 0.0
    %v3935 = vadd.f32 %v3933, %v3934
    %v3936 = vsel %vm552, %v3795, 0.0
    %v3937 = vadd.f32 %v3935, %v3936
    %v3938 = vsel %vm552, %v3802, 0.0
    %v3939 = vadd.f32 %v3937, %v3938
    %v3940 = vsel %vm552, %v3809, 0.0
    %v3941 = vadd.f32 %v3939, %v3940
    %v3942 = vsel %vm552, %v3816, 0.0
    %v3943 = vadd.f32 %v3941, %v3942
    %v3944 = vsel %vm552, %v3823, 0.0
    %v3945 = vadd.f32 %v3943, %v3944
    %v3946 = vsel %vm552, %v3830, 0.0
    %v3947 = vadd.f32 %v3945, %v3946
    %v3948 = vsel %vm552, %v3837, 0.0
    %v3949 = vadd.f32 %v3947, %v3948
    %v3950 = vsel %vm552, %v3844, 0.0
    %v3951 = vadd.f32 %v3949, %v3950
    %v3952 = vrot.slane %v3951, 4
    %v3953 = vadd.f32 %v3951, %v3952
    %v3954 = vrot.slane %v3953, 2
    %v3955 = vadd.f32 %v3953, %v3954
    %v3956 = vrot.slane %v3955, 1
    %v3957 = vadd.f32 %v3955, %v3956
    %v3958 = vmul.f32 %v3957, 0.0034722222
    %v3959 = vmul.f32 %v2722, %v2722
    %v3960 = vmul.f32 %v2723, %v2723
    %v3961 = vmul.f32 %v2724, %v2724
    %v3962 = vmul.f32 %v2725, %v2725
    %v3963 = vmul.f32 %v2726, %v2726
    %v3964 = vmul.f32 %v2727, %v2727
    %v3965 = vmul.f32 %v2728, %v2728
    %v3966 = vmul.f32 %v2729, %v2729
    %v3967 = vmul.f32 %v2730, %v2730
    %v3968 = vmul.f32 %v2731, %v2731
    %v3969 = vmul.f32 %v2732, %v2732
    %v3970 = vmul.f32 %v2733, %v2733
    %v3971 = vmul.f32 %v2734, %v2734
    %v3972 = vmul.f32 %v2735, %v2735
    %v3973 = vmul.f32 %v2736, %v2736
    %v3974 = vmul.f32 %v2737, %v2737
    %v3975 = vmul.f32 %v2738, %v2738
    %v3976 = vmul.f32 %v2739, %v2739
    %v3977 = vmul.f32 %v2740, %v2740
    %v3978 = vmul.f32 %v2741, %v2741
    %v3979 = vmul.f32 %v2742, %v2742
    %v3980 = vmul.f32 %v2743, %v2743
    %v3981 = vmul.f32 %v2744, %v2744
    %v3982 = vmul.f32 %v2745, %v2745
    %v3983 = vmul.f32 %v2746, %v2746
    %v3984 = vmul.f32 %v2747, %v2747
    %v3985 = vmul.f32 %v2748, %v2748
    %v3986 = vmul.f32 %v2749, %v2749
    %v3987 = vmul.f32 %v2750, %v2750
    %v3988 = vmul.f32 %v2751, %v2751
    %v3989 = vmul.f32 %v2752, %v2752
    %v3990 = vmul.f32 %v2753, %v2753
    %v3991 = vmul.f32 %v2754, %v2754
    %v3992 = vmul.f32 %v2755, %v2755
    %v3993 = vmul.f32 %v2756, %v2756
    %v3994 = vmul.f32 %v2757, %v2757
    %v3995 = vmul.f32 %v2758, %v2758
    %v3996 = vmul.f32 %v2759, %v2759
    %v3997 = vmul.f32 %v2760, %v2760
    %v3998 = vmul.f32 %v2761, %v2761
    %v3999 = vmul.f32 %v2762, %v2762
    %v4000 = vmul.f32 %v2763, %v2763
    %v4001 = vmul.f32 %v2764, %v2764
    %v4002 = vmul.f32 %v2765, %v2765
    %v4003 = vmul.f32 %v2766, %v2766
    %v4004 = vmul.f32 %v2767, %v2767
    %v4005 = vmul.f32 %v2768, %v2768
    %v4006 = vmul.f32 %v2769, %v2769
    %v4007 = vmul.f32 %v2770, %v2770
    %v4008 = vmul.f32 %v2771, %v2771
    %v4009 = vmul.f32 %v2772, %v2772
    %v4010 = vmul.f32 %v2773, %v2773
    %v4011 = vmul.f32 %v2774, %v2774
    %v4012 = vmul.f32 %v2775, %v2775
    %v4013 = vmul.f32 %v2776, %v2776
    %v4014 = vmul.f32 %v2777, %v2777
    %v4015 = vmul.f32 %v2778, %v2778
    %v4016 = vmul.f32 %v2779, %v2779
    %v4017 = vmul.f32 %v2780, %v2780
    %v4018 = vmul.f32 %v2781, %v2781
    %v4019 = vmul.f32 %v2782, %v2782
    %v4020 = vmul.f32 %v2783, %v2783
    %v4021 = vmul.f32 %v2784, %v2784
    %v4022 = vmul.f32 %v2785, %v2785
    %v4023 = vmul.f32 %v2786, %v2786
    %v4024 = vmul.f32 %v2787, %v2787
    %v4025 = vmul.f32 %v2788, %v2788
    %v4026 = vmul.f32 %v2789, %v2789
    %v4027 = vmul.f32 %v2790, %v2790
    %v4028 = vmul.f32 %v2791, %v2791
    %v4029 = vmul.f32 %v2792, %v2792
    %v4030 = vmul.f32 %v2793, %v2793
    %v4031 = vmul.f32 %v2794, %v2794
    %v4032 = vmul.f32 %v2795, %v2795
    %v4033 = vmul.f32 %v2796, %v2796
    %v4034 = vmul.f32 %v2797, %v2797
    %v4035 = vmul.f32 %v2798, %v2798
    %v4036 = vmul.f32 %v2799, %v2799
    %v4037 = vmul.f32 %v2800, %v2800
    %v4038 = vmul.f32 %v2801, %v2801
    %v4039 = vmul.f32 %v2802, %v2802
    %v4040 = vmul.f32 %v2803, %v2803
    %v4041 = vmul.f32 %v2804, %v2804
    %v4042 = vmul.f32 %v2805, %v2805
    %v4043 = vmul.f32 %v2806, %v2806
    %v4044 = vmul.f32 %v2807, %v2807
    %v4045 = vmul.f32 %v2808, %v2808
    %v4046 = vmul.f32 %v2809, %v2809
    %v4047 = vmul.f32 %v2810, %v2810
    %v4048 = vmul.f32 %v2811, %v2811
    %v4049 = vmul.f32 %v2812, %v2812
    %v4050 = vmul.f32 %v2813, %v2813
    %v4051 = vmul.f32 %v2814, %v2814
    %v4052 = vmul.f32 %v2815, %v2815
    %v4053 = vmul.f32 %v2816, %v2816
    %v4054 = vmul.f32 %v2817, %v2817
    %v4055 = vmul.f32 %v2818, %v2818
    %v4056 = vmul.f32 %v2819, %v2819
    %v4057 = vmul.f32 %v2820, %v2820
    %v4058 = vmul.f32 %v2821, %v2821
    %v4059 = vmul.f32 %v2822, %v2822
    %v4060 = vmul.f32 %v2823, %v2823
    %v4061 = vmul.f32 %v2824, %v2824
    %v4062 = vmul.f32 %v2825, %v2825
    %v4063 = vmul.f32 %v2826, %v2826
    %v4064 = vmul.f32 %v2827, %v2827
    %v4065 = vmul.f32 %v2828, %v2828
    %v4066 = vmul.f32 %v2829, %v2829
    %v4067 = vmul.f32 %v2830, %v2830
    %v4068 = vmul.f32 %v2831, %v2831
    %v4069 = vmul.f32 %v2832, %v2832
    %v4070 = vmul.f32 %v2833, %v2833
    %v4071 = vmul.f32 %v2834, %v2834
    %v4072 = vmul.f32 %v2835, %v2835
    %v4073 = vmul.f32 %v2836, %v2836
    %v4074 = vmul.f32 %v2837, %v2837
    %v4075 = vmul.f32 %v2838, %v2838
    %v4076 = vmul.f32 %v2839, %v2839
    %v4077 = vmul.f32 %v2840, %v2840
    %v4078 = vmul.f32 %v2841, %v2841
    %v4079 = vmul.f32 %v2842, %v2842
    %v4080 = vmul.f32 %v2843, %v2843
    %v4081 = vmul.f32 %v2844, %v2844
    %v4082 = vmul.f32 %v2845, %v2845
    %v4083 = vmul.f32 %v2846, %v2846
    %v4084 = vmul.f32 %v2847, %v2847
    %v4085 = vmul.f32 %v2848, %v2848
    %v4086 = vmul.f32 %v2849, %v2849
    %v4087 = vmul.f32 %v2850, %v2850
    %v4088 = vmul.f32 %v2851, %v2851
    %v4089 = vmul.f32 %v2852, %v2852
    %v4090 = vmul.f32 %v2853, %v2853
    %v4091 = vmul.f32 %v2854, %v2854
    %v4092 = vmul.f32 %v2855, %v2855
    %v4093 = vmul.f32 %v2856, %v2856
    %v4094 = vmul.f32 %v2857, %v2857
    %v4095 = vmul.f32 %v2858, %v2858
    %v4096 = vmul.f32 %v2859, %v2859
    %v4097 = vmul.f32 %v2860, %v2860
    %v4098 = vmul.f32 %v2861, %v2861
    %v4099 = vmul.f32 %v2862, %v2862
    %v4100 = vmul.f32 %v2863, %v2863
    %v4101 = vmul.f32 %v2864, %v2864
    %v4102 = vmul.f32 %v2865, %v2865
    %v4103 = vmul.f32 %v2866, %v2866
    %v4104 = vmul.f32 %v2867, %v2867
    %v4105 = vmul.f32 %v2868, %v2868
    %v4106 = vmul.f32 %v2869, %v2869
    %v4107 = vmul.f32 %v2870, %v2870
    %v4108 = vmul.f32 %v2871, %v2871
    %v4109 = vmul.f32 %v2872, %v2872
    %v4110 = vmul.f32 %v2873, %v2873
    %v4111 = vmul.f32 %v2874, %v2874
    %v4112 = vmul.f32 %v2875, %v2875
    %v4113 = vmul.f32 %v2876, %v2876
    %v4114 = vmul.f32 %v2877, %v2877
    %v4115 = vmul.f32 %v2878, %v2878
    %v4116 = vmul.f32 %v2879, %v2879
    %v4117 = vmul.f32 %v2880, %v2880
    %v4118 = vmul.f32 %v2881, %v2881
    %v4119 = vmul.f32 %v2882, %v2882
    %v4120 = vmul.f32 %v2883, %v2883
    %v4121 = vmul.f32 %v2884, %v2884
    %v4122 = vmul.f32 %v2885, %v2885
    %v4123 = vmul.f32 %v2886, %v2886
    %v4124 = vmul.f32 %v2887, %v2887
    %v4125 = vmul.f32 %v2888, %v2888
    %v4126 = vmul.f32 %v2889, %v2889
    %v4127 = vmul.f32 %v2890, %v2890
    %v4128 = vmul.f32 %v2891, %v2891
    %v4129 = vmul.f32 %v2892, %v2892
    %v4130 = vmul.f32 %v2893, %v2893
    %v4131 = vmul.f32 %v2894, %v2894
    %v4132 = vmul.f32 %v2895, %v2895
    %v4133 = vmul.f32 %v2896, %v2896
    %v4134 = vmul.f32 %v2897, %v2897
    %v4135 = vmul.f32 %v2898, %v2898
    %v4136 = vmul.f32 %v2899, %v2899
    %v4137 = vmul.f32 %v2900, %v2900
    %v4138 = vmul.f32 %v2901, %v2901
    %v4139 = vmul.f32 %v2902, %v2902
    %v4140 = vmul.f32 %v2903, %v2903
    %v4141 = vmul.f32 %v2904, %v2904
    %v4142 = vmul.f32 %v2905, %v2905
    %v4143 = vmul.f32 %v2906, %v2906
    %v4144 = vmul.f32 %v2907, %v2907
    %v4145 = vmul.f32 %v2908, %v2908
    %v4146 = vmul.f32 %v2909, %v2909
    %v4147 = vmul.f32 %v2910, %v2910
    %v4148 = vmul.f32 %v2911, %v2911
    %v4149 = vmul.f32 %v2912, %v2912
    %v4150 = vmul.f32 %v2913, %v2913
    %v4151 = vmul.f32 %v2914, %v2914
    %v4152 = vmul.f32 %v2915, %v2915
    %v4153 = vmul.f32 %v2916, %v2916
    %v4154 = vmul.f32 %v2917, %v2917
    %v4155 = vmul.f32 %v2918, %v2918
    %v4156 = vmul.f32 %v2919, %v2919
    %v4157 = vmul.f32 %v2920, %v2920
    %v4158 = vmul.f32 %v2921, %v2921
    %v4159 = vmul.f32 %v2922, %v2922
    %v4160 = vmul.f32 %v2923, %v2923
    %v4161 = vmul.f32 %v2924, %v2924
    %v4162 = vmul.f32 %v2925, %v2925
    %v4163 = vmul.f32 %v2926, %v2926
    %v4164 = vmul.f32 %v2927, %v2927
    %v4165 = vmul.f32 %v2928, %v2928
    %v4166 = vmul.f32 %v2929, %v2929
    %v4167 = vmul.f32 %v2930, %v2930
    %v4168 = vmul.f32 %v2931, %v2931
    %v4169 = vmul.f32 %v2932, %v2932
    %v4170 = vmul.f32 %v2933, %v2933
    %v4171 = vmul.f32 %v2934, %v2934
    %v4172 = vmul.f32 %v2935, %v2935
    %v4173 = vmul.f32 %v2936, %v2936
    %v4174 = vmul.f32 %v2937, %v2937
    %v4175 = vmul.f32 %v2938, %v2938
    %v4176 = vmul.f32 %v2939, %v2939
    %v4177 = vmul.f32 %v2940, %v2940
    %v4178 = vmul.f32 %v2941, %v2941
    %v4179 = vmul.f32 %v2942, %v2942
    %v4180 = vmul.f32 %v2943, %v2943
    %v4181 = vmul.f32 %v2944, %v2944
    %v4182 = vmul.f32 %v2945, %v2945
    %v4183 = vmul.f32 %v2946, %v2946
    %v4184 = vmul.f32 %v2947, %v2947
    %v4185 = vmul.f32 %v2948, %v2948
    %v4186 = vmul.f32 %v2949, %v2949
    %v4187 = vmul.f32 %v2950, %v2950
    %v4188 = vmul.f32 %v2951, %v2951
    %v4189 = vmul.f32 %v2952, %v2952
    %v4190 = vmul.f32 %v2953, %v2953
    %v4191 = vmul.f32 %v2954, %v2954
    %v4192 = vmul.f32 %v2955, %v2955
    %v4193 = vmul.f32 %v2956, %v2956
    %v4194 = vmul.f32 %v2957, %v2957
    %v4195 = vmul.f32 %v2958, %v2958
    %v4196 = vmul.f32 %v2959, %v2959
    %v4197 = vmul.f32 %v2960, %v2960
    %v4198 = vmul.f32 %v2961, %v2961
    %v4199 = vmul.f32 %v2962, %v2962
    %v4200 = vmul.f32 %v2963, %v2963
    %v4201 = vmul.f32 %v2964, %v2964
    %v4202 = vmul.f32 %v2965, %v2965
    %v4203 = vmul.f32 %v2966, %v2966
    %v4204 = vmul.f32 %v2967, %v2967
    %v4205 = vmul.f32 %v2968, %v2968
    %v4206 = vmul.f32 %v2969, %v2969
    %v4207 = vmul.f32 %v2970, %v2970
    %v4208 = vmul.f32 %v2971, %v2971
    %v4209 = vmul.f32 %v2972, %v2972
    %v4210 = vmul.f32 %v2973, %v2973
    %v4211 = vmul.f32 %v2974, %v2974
    %v4212 = vmul.f32 %v2975, %v2975
    %v4213 = vmul.f32 %v2976, %v2976
    %v4214 = vmul.f32 %v2977, %v2977
    %v4215 = vmul.f32 %v2978, %v2978
    %v4216 = vmul.f32 %v2979, %v2979
    %v4217 = vmul.f32 %v2980, %v2980
    %v4218 = vmul.f32 %v2981, %v2981
    %v4219 = vmul.f32 %v2982, %v2982
    %v4220 = vmul.f32 %v2983, %v2983
    %v4221 = vmul.f32 %v2984, %v2984
    %v4222 = vmul.f32 %v2985, %v2985
    %v4223 = vmul.f32 %v2986, %v2986
    %v4224 = vmul.f32 %v2987, %v2987
    %v4225 = vmul.f32 %v2988, %v2988
    %v4226 = vmul.f32 %v2989, %v2989
    %v4227 = vmul.f32 %v2990, %v2990
    %v4228 = vmul.f32 %v2991, %v2991
    %v4229 = vmul.f32 %v2992, %v2992
    %v4230 = vmul.f32 %v2993, %v2993
    %v4231 = vmul.f32 %v2994, %v2994
    %v4232 = vmul.f32 %v2995, %v2995
    %v4233 = vmul.f32 %v2996, %v2996
    %v4234 = vmul.f32 %v2997, %v2997
    %v4235 = vmul.f32 %v2998, %v2998
    %v4236 = vmul.f32 %v2999, %v2999
    %v4237 = vmul.f32 %v3000, %v3000
    %v4238 = vmul.f32 %v3001, %v3001
    %v4239 = vmul.f32 %v3002, %v3002
    %v4240 = vmul.f32 %v3003, %v3003
    %v4241 = vmul.f32 %v3004, %v3004
    %v4242 = vmul.f32 %v3005, %v3005
    %v4243 = vmul.f32 %v3006, %v3006
    %v4244 = vmul.f32 %v3007, %v3007
    %v4245 = vmul.f32 %v3008, %v3008
    %v4246 = vmul.f32 %v3009, %v3009
    %v4535 = vperm.slane %v3959, 0
    %v4536 = vperm.slane %v3960, 0
    %v4537 = vperm.slane %v3961, 0
    %v4538 = vperm.slane %v3962, 0
    %v4539 = vperm.slane %v3963, 0
    %v4540 = vperm.slane %v3964, 0
    %v4541 = vperm.slane %v3965, 0
    %v4542 = vperm.slane %v3966, 0
    %v4543 = vperm.slane %v3967, 0
    %v4544 = vperm.slane %v3968, 0
    %v4545 = vperm.slane %v3969, 0
    %v4546 = vperm.slane %v3970, 0
    %v4547 = vperm.slane %v3971, 0
    %v4548 = vperm.slane %v3972, 0
    %v4549 = vperm.slane %v3973, 0
    %v4550 = vperm.slane %v3974, 0
    %v4551 = vperm.slane %v3975, 0
    %v4552 = vperm.slane %v3976, 0
    %v4553 = vperm.slane %v3977, 0
    %v4554 = vperm.slane %v3978, 0
    %v4555 = vperm.slane %v3979, 0
    %v4556 = vperm.slane %v3980, 0
    %v4557 = vperm.slane %v3981, 0
    %v4558 = vperm.slane %v3982, 0
    %v4559 = vperm.slane %v3983, 0
    %v4560 = vperm.slane %v3984, 0
    %v4561 = vperm.slane %v3985, 0
    %v4562 = vperm.slane %v3986, 0
    %v4563 = vperm.slane %v3987, 0
    %v4564 = vperm.slane %v3988, 0
    %v4565 = vperm.slane %v3989, 0
    %v4566 = vperm.slane %v3990, 0
    %v4567 = vperm.slane %v3991, 0
    %v4568 = vperm.slane %v3992, 0
    %v4569 = vperm.slane %v3993, 0
    %v4570 = vperm.slane %v3994, 0
    %v4571 = vperm.slane %v3995, 0
    %v4572 = vperm.slane %v3996, 0
    %v4573 = vperm.slane %v3997, 0
    %v4574 = vperm.slane %v3998, 0
    %v4575 = vperm.slane %v3999, 0
    %v4576 = vperm.slane %v4000, 0
    %v4577 = vperm.slane %v4001, 0
    %v4578 = vperm.slane %v4002, 0
    %v4579 = vperm.slane %v4003, 0
    %v4580 = vperm.slane %v4004, 0
    %v4581 = vperm.slane %v4005, 0
    %v4582 = vperm.slane %v4006, 0
    %v4583 = vperm.slane %v4007, 0
    %v4584 = vperm.slane %v4008, 0
    %v4585 = vperm.slane %v4009, 0
    %v4586 = vperm.slane %v4010, 0
    %v4587 = vperm.slane %v4011, 0
    %v4588 = vperm.slane %v4012, 0
    %v4589 = vperm.slane %v4013, 0
    %v4590 = vperm.slane %v4014, 0
    %v4591 = vperm.slane %v4015, 0
    %v4592 = vperm.slane %v4016, 0
    %v4593 = vperm.slane %v4017, 0
    %v4594 = vperm.slane %v4018, 0
    %v4595 = vperm.slane %v4019, 0
    %v4596 = vperm.slane %v4020, 0
    %v4597 = vperm.slane %v4021, 0
    %v4598 = vperm.slane %v4022, 0
    %v4599 = vperm.slane %v4023, 0
    %v4600 = vperm.slane %v4024, 0
    %v4601 = vperm.slane %v4025, 0
    %v4602 = vperm.slane %v4026, 0
    %v4603 = vperm.slane %v4027, 0
    %v4604 = vperm.slane %v4028, 0
    %v4605 = vperm.slane %v4029, 0
    %v4606 = vperm.slane %v4030, 0
    %v4607 = vperm.slane %v4031, 0
    %v4608 = vperm.slane %v4032, 0
    %v4609 = vperm.slane %v4033, 0
    %v4610 = vperm.slane %v4034, 0
    %v4611 = vperm.slane %v4035, 0
    %v4612 = vperm.slane %v4036, 0
    %v4613 = vperm.slane %v4037, 0
    %v4614 = vperm.slane %v4038, 0
    %v4615 = vperm.slane %v4039, 0
    %v4616 = vperm.slane %v4040, 0
    %v4617 = vperm.slane %v4041, 0
    %v4618 = vperm.slane %v4042, 0
    %v4619 = vperm.slane %v4043, 0
    %v4620 = vperm.slane %v4044, 0
    %v4621 = vperm.slane %v4045, 0
    %v4622 = vperm.slane %v4046, 0
    %v4623 = vperm.slane %v4047, 0
    %v4624 = vperm.slane %v4048, 0
    %v4625 = vperm.slane %v4049, 0
    %v4626 = vperm.slane %v4050, 0
    %v4627 = vperm.slane %v4051, 0
    %v4628 = vperm.slane %v4052, 0
    %v4629 = vperm.slane %v4053, 0
    %v4630 = vperm.slane %v4054, 0
    %v4631 = vperm.slane %v4055, 0
    %v4632 = vperm.slane %v4056, 0
    %v4633 = vperm.slane %v4057, 0
    %v4634 = vperm.slane %v4058, 0
    %v4635 = vperm.slane %v4059, 0
    %v4636 = vperm.slane %v4060, 0
    %v4637 = vperm.slane %v4061, 0
    %v4638 = vperm.slane %v4062, 0
    %v4639 = vperm.slane %v4063, 0
    %v4640 = vperm.slane %v4064, 0
    %v4641 = vperm.slane %v4065, 0
    %v4642 = vperm.slane %v4066, 0
    %v4643 = vperm.slane %v4067, 0
    %v4644 = vperm.slane %v4068, 0
    %v4645 = vperm.slane %v4069, 0
    %v4646 = vperm.slane %v4070, 0
    %v4647 = vperm.slane %v4071, 0
    %v4648 = vperm.slane %v4072, 0
    %v4649 = vperm.slane %v4073, 0
    %v4650 = vperm.slane %v4074, 0
    %v4651 = vperm.slane %v4075, 0
    %v4652 = vperm.slane %v4076, 0
    %v4653 = vperm.slane %v4077, 0
    %v4654 = vperm.slane %v4078, 0
    %v4655 = vperm.slane %v4079, 0
    %v4656 = vperm.slane %v4080, 0
    %v4657 = vperm.slane %v4081, 0
    %v4658 = vperm.slane %v4082, 0
    %v4659 = vperm.slane %v4083, 0
    %v4660 = vperm.slane %v4084, 0
    %v4661 = vperm.slane %v4085, 0
    %v4662 = vperm.slane %v4086, 0
    %v4663 = vperm.slane %v4087, 0
    %v4664 = vperm.slane %v4088, 0
    %v4665 = vperm.slane %v4089, 0
    %v4666 = vperm.slane %v4090, 0
    %v4667 = vperm.slane %v4091, 0
    %v4668 = vperm.slane %v4092, 0
    %v4669 = vperm.slane %v4093, 0
    %v4670 = vperm.slane %v4094, 0
    %v4671 = vperm.slane %v4095, 0
    %v4672 = vperm.slane %v4096, 0
    %v4673 = vperm.slane %v4097, 0
    %v4674 = vperm.slane %v4098, 0
    %v4675 = vperm.slane %v4099, 0
    %v4676 = vperm.slane %v4100, 0
    %v4677 = vperm.slane %v4101, 0
    %v4678 = vperm.slane %v4102, 0
    %v4679 = vperm.slane %v4103, 0
    %v4680 = vperm.slane %v4104, 0
    %v4681 = vperm.slane %v4105, 0
    %v4682 = vperm.slane %v4106, 0
    %v4683 = vperm.slane %v4107, 0
    %v4684 = vperm.slane %v4108, 0
    %v4685 = vperm.slane %v4109, 0
    %v4686 = vperm.slane %v4110, 0
    %v4687 = vperm.slane %v4111, 0
    %v4688 = vperm.slane %v4112, 0
    %v4689 = vperm.slane %v4113, 0
    %v4690 = vperm.slane %v4114, 0
    %v4691 = vperm.slane %v4115, 0
    %v4692 = vperm.slane %v4116, 0
    %v4693 = vperm.slane %v4117, 0
    %v4694 = vperm.slane %v4118, 0
    %v4695 = vperm.slane %v4119, 0
    %v4696 = vperm.slane %v4120, 0
    %v4697 = vperm.slane %v4121, 0
    %v4698 = vperm.slane %v4122, 0
    %v4699 = vperm.slane %v4123, 0
    %v4700 = vperm.slane %v4124, 0
    %v4701 = vperm.slane %v4125, 0
    %v4702 = vperm.slane %v4126, 0
    %v4703 = vperm.slane %v4127, 0
    %v4704 = vperm.slane %v4128, 0
    %v4705 = vperm.slane %v4129, 0
    %v4706 = vperm.slane %v4130, 0
    %v4707 = vperm.slane %v4131, 0
    %v4708 = vperm.slane %v4132, 0
    %v4709 = vperm.slane %v4133, 0
    %v4710 = vperm.slane %v4134, 0
    %v4711 = vperm.slane %v4135, 0
    %v4712 = vperm.slane %v4136, 0
    %v4713 = vperm.slane %v4137, 0
    %v4714 = vperm.slane %v4138, 0
    %v4715 = vperm.slane %v4139, 0
    %v4716 = vperm.slane %v4140, 0
    %v4717 = vperm.slane %v4141, 0
    %v4718 = vperm.slane %v4142, 0
    %v4719 = vperm.slane %v4143, 0
    %v4720 = vperm.slane %v4144, 0
    %v4721 = vperm.slane %v4145, 0
    %v4722 = vperm.slane %v4146, 0
    %v4723 = vperm.slane %v4147, 0
    %v4724 = vperm.slane %v4148, 0
    %v4725 = vperm.slane %v4149, 0
    %v4726 = vperm.slane %v4150, 0
    %v4727 = vperm.slane %v4151, 0
    %v4728 = vperm.slane %v4152, 0
    %v4729 = vperm.slane %v4153, 0
    %v4730 = vperm.slane %v4154, 0
    %v4731 = vperm.slane %v4155, 0
    %v4732 = vperm.slane %v4156, 0
    %v4733 = vperm.slane %v4157, 0
    %v4734 = vperm.slane %v4158, 0
    %v4735 = vperm.slane %v4159, 0
    %v4736 = vperm.slane %v4160, 0
    %v4737 = vperm.slane %v4161, 0
    %v4738 = vperm.slane %v4162, 0
    %v4739 = vperm.slane %v4163, 0
    %v4740 = vperm.slane %v4164, 0
    %v4741 = vperm.slane %v4165, 0
    %v4742 = vperm.slane %v4166, 0
    %v4743 = vperm.slane %v4167, 0
    %v4744 = vperm.slane %v4168, 0
    %v4745 = vperm.slane %v4169, 0
    %v4746 = vperm.slane %v4170, 0
    %v4747 = vperm.slane %v4171, 0
    %v4748 = vperm.slane %v4172, 0
    %v4749 = vperm.slane %v4173, 0
    %v4750 = vperm.slane %v4174, 0
    %v4751 = vperm.slane %v4175, 0
    %v4752 = vperm.slane %v4176, 0
    %v4753 = vperm.slane %v4177, 0
    %v4754 = vperm.slane %v4178, 0
    %v4755 = vperm.slane %v4179, 0
    %v4756 = vperm.slane %v4180, 0
    %v4757 = vperm.slane %v4181, 0
    %v4758 = vperm.slane %v4182, 0
    %v4759 = vperm.slane %v4183, 0
    %v4760 = vperm.slane %v4184, 0
    %v4761 = vperm.slane %v4185, 0
    %v4762 = vperm.slane %v4186, 0
    %v4763 = vperm.slane %v4187, 0
    %v4764 = vperm.slane %v4188, 0
    %v4765 = vperm.slane %v4189, 0
    %v4766 = vperm.slane %v4190, 0
    %v4767 = vperm.slane %v4191, 0
    %v4768 = vperm.slane %v4192, 0
    %v4769 = vperm.slane %v4193, 0
    %v4770 = vperm.slane %v4194, 0
    %v4771 = vperm.slane %v4195, 0
    %v4772 = vperm.slane %v4196, 0
    %v4773 = vperm.slane %v4197, 0
    %v4774 = vperm.slane %v4198, 0
    %v4775 = vperm.slane %v4199, 0
    %v4776 = vperm.slane %v4200, 0
    %v4777 = vperm.slane %v4201, 0
    %v4778 = vperm.slane %v4202, 0
    %v4779 = vperm.slane %v4203, 0
    %v4780 = vperm.slane %v4204, 0
    %v4781 = vperm.slane %v4205, 0
    %v4782 = vperm.slane %v4206, 0
    %v4783 = vperm.slane %v4207, 0
    %v4784 = vperm.slane %v4208, 0
    %v4785 = vperm.slane %v4209, 0
    %v4786 = vperm.slane %v4210, 0
    %v4787 = vperm.slane %v4211, 0
    %v4788 = vperm.slane %v4212, 0
    %v4789 = vperm.slane %v4213, 0
    %v4790 = vperm.slane %v4214, 0
    %v4791 = vperm.slane %v4215, 0
    %v4792 = vperm.slane %v4216, 0
    %v4793 = vperm.slane %v4217, 0
    %v4794 = vperm.slane %v4218, 0
    %v4795 = vperm.slane %v4219, 0
    %v4796 = vperm.slane %v4220, 0
    %v4797 = vperm.slane %v4221, 0
    %v4798 = vperm.slane %v4222, 0
    %v4799 = vperm.slane %v4223, 0
    %v4800 = vperm.slane %v4224, 0
    %v4801 = vperm.slane %v4225, 0
    %v4802 = vperm.slane %v4226, 0
    %v4803 = vperm.slane %v4227, 0
    %v4804 = vperm.slane %v4228, 0
    %v4805 = vperm.slane %v4229, 0
    %v4806 = vperm.slane %v4230, 0
    %v4807 = vperm.slane %v4231, 0
    %v4808 = vperm.slane %v4232, 0
    %v4809 = vperm.slane %v4233, 0
    %v4810 = vperm.slane %v4234, 0
    %v4811 = vperm.slane %v4235, 0
    %v4812 = vperm.slane %v4236, 0
    %v4813 = vperm.slane %v4237, 0
    %v4814 = vperm.slane %v4238, 0
    %v4815 = vperm.slane %v4239, 0
    %v4816 = vperm.slane %v4240, 0
    %v4817 = vperm.slane %v4241, 0
    %v4818 = vperm.slane %v4242, 0
    %v4819 = vperm.slane %v4243, 0
    %v4820 = vperm.slane %v4244, 0
    %v4821 = vperm.slane %v4245, 0
    %v4822 = vperm.slane %v4246, 0
    %v4823 = vsel %vm3586, %v4536, %v4535
    %v4824 = vsel %vm3588, %v4537, %v4823
    %v4825 = vsel %vm3590, %v4538, %v4824
    %v4826 = vsel %vm3592, %v4539, %v4825
    %v4827 = vsel %vm3594, %v4540, %v4826
    %v4828 = vsel %vm3596, %v4541, %v4827
    %v4829 = vsel %vm3598, %v4542, %v4828
    %v4830 = vsel %vm3586, %v4544, %v4543
    %v4831 = vsel %vm3588, %v4545, %v4830
    %v4832 = vsel %vm3590, %v4546, %v4831
    %v4833 = vsel %vm3592, %v4547, %v4832
    %v4834 = vsel %vm3594, %v4548, %v4833
    %v4835 = vsel %vm3596, %v4549, %v4834
    %v4836 = vsel %vm3598, %v4550, %v4835
    %v4837 = vsel %vm3586, %v4552, %v4551
    %v4838 = vsel %vm3588, %v4553, %v4837
    %v4839 = vsel %vm3590, %v4554, %v4838
    %v4840 = vsel %vm3592, %v4555, %v4839
    %v4841 = vsel %vm3594, %v4556, %v4840
    %v4842 = vsel %vm3596, %v4557, %v4841
    %v4843 = vsel %vm3598, %v4558, %v4842
    %v4844 = vsel %vm3586, %v4560, %v4559
    %v4845 = vsel %vm3588, %v4561, %v4844
    %v4846 = vsel %vm3590, %v4562, %v4845
    %v4847 = vsel %vm3592, %v4563, %v4846
    %v4848 = vsel %vm3594, %v4564, %v4847
    %v4849 = vsel %vm3596, %v4565, %v4848
    %v4850 = vsel %vm3598, %v4566, %v4849
    %v4851 = vsel %vm3586, %v4568, %v4567
    %v4852 = vsel %vm3588, %v4569, %v4851
    %v4853 = vsel %vm3590, %v4570, %v4852
    %v4854 = vsel %vm3592, %v4571, %v4853
    %v4855 = vsel %vm3594, %v4572, %v4854
    %v4856 = vsel %vm3596, %v4573, %v4855
    %v4857 = vsel %vm3598, %v4574, %v4856
    %v4858 = vsel %vm3586, %v4576, %v4575
    %v4859 = vsel %vm3588, %v4577, %v4858
    %v4860 = vsel %vm3590, %v4578, %v4859
    %v4861 = vsel %vm3592, %v4579, %v4860
    %v4862 = vsel %vm3594, %v4580, %v4861
    %v4863 = vsel %vm3596, %v4581, %v4862
    %v4864 = vsel %vm3598, %v4582, %v4863
    %v4865 = vsel %vm3586, %v4584, %v4583
    %v4866 = vsel %vm3588, %v4585, %v4865
    %v4867 = vsel %vm3590, %v4586, %v4866
    %v4868 = vsel %vm3592, %v4587, %v4867
    %v4869 = vsel %vm3594, %v4588, %v4868
    %v4870 = vsel %vm3596, %v4589, %v4869
    %v4871 = vsel %vm3598, %v4590, %v4870
    %v4872 = vsel %vm3586, %v4592, %v4591
    %v4873 = vsel %vm3588, %v4593, %v4872
    %v4874 = vsel %vm3590, %v4594, %v4873
    %v4875 = vsel %vm3592, %v4595, %v4874
    %v4876 = vsel %vm3594, %v4596, %v4875
    %v4877 = vsel %vm3596, %v4597, %v4876
    %v4878 = vsel %vm3598, %v4598, %v4877
    %v4879 = vsel %vm3586, %v4600, %v4599
    %v4880 = vsel %vm3588, %v4601, %v4879
    %v4881 = vsel %vm3590, %v4602, %v4880
    %v4882 = vsel %vm3592, %v4603, %v4881
    %v4883 = vsel %vm3594, %v4604, %v4882
    %v4884 = vsel %vm3596, %v4605, %v4883
    %v4885 = vsel %vm3598, %v4606, %v4884
    %v4886 = vsel %vm3586, %v4608, %v4607
    %v4887 = vsel %vm3588, %v4609, %v4886
    %v4888 = vsel %vm3590, %v4610, %v4887
    %v4889 = vsel %vm3592, %v4611, %v4888
    %v4890 = vsel %vm3594, %v4612, %v4889
    %v4891 = vsel %vm3596, %v4613, %v4890
    %v4892 = vsel %vm3598, %v4614, %v4891
    %v4893 = vsel %vm3586, %v4616, %v4615
    %v4894 = vsel %vm3588, %v4617, %v4893
    %v4895 = vsel %vm3590, %v4618, %v4894
    %v4896 = vsel %vm3592, %v4619, %v4895
    %v4897 = vsel %vm3594, %v4620, %v4896
    %v4898 = vsel %vm3596, %v4621, %v4897
    %v4899 = vsel %vm3598, %v4622, %v4898
    %v4900 = vsel %vm3586, %v4624, %v4623
    %v4901 = vsel %vm3588, %v4625, %v4900
    %v4902 = vsel %vm3590, %v4626, %v4901
    %v4903 = vsel %vm3592, %v4627, %v4902
    %v4904 = vsel %vm3594, %v4628, %v4903
    %v4905 = vsel %vm3596, %v4629, %v4904
    %v4906 = vsel %vm3598, %v4630, %v4905
    %v4907 = vsel %vm3586, %v4632, %v4631
    %v4908 = vsel %vm3588, %v4633, %v4907
    %v4909 = vsel %vm3590, %v4634, %v4908
    %v4910 = vsel %vm3592, %v4635, %v4909
    %v4911 = vsel %vm3594, %v4636, %v4910
    %v4912 = vsel %vm3596, %v4637, %v4911
    %v4913 = vsel %vm3598, %v4638, %v4912
    %v4914 = vsel %vm3586, %v4640, %v4639
    %v4915 = vsel %vm3588, %v4641, %v4914
    %v4916 = vsel %vm3590, %v4642, %v4915
    %v4917 = vsel %vm3592, %v4643, %v4916
    %v4918 = vsel %vm3594, %v4644, %v4917
    %v4919 = vsel %vm3596, %v4645, %v4918
    %v4920 = vsel %vm3598, %v4646, %v4919
    %v4921 = vsel %vm3586, %v4648, %v4647
    %v4922 = vsel %vm3588, %v4649, %v4921
    %v4923 = vsel %vm3590, %v4650, %v4922
    %v4924 = vsel %vm3592, %v4651, %v4923
    %v4925 = vsel %vm3594, %v4652, %v4924
    %v4926 = vsel %vm3596, %v4653, %v4925
    %v4927 = vsel %vm3598, %v4654, %v4926
    %v4928 = vsel %vm3586, %v4656, %v4655
    %v4929 = vsel %vm3588, %v4657, %v4928
    %v4930 = vsel %vm3590, %v4658, %v4929
    %v4931 = vsel %vm3592, %v4659, %v4930
    %v4932 = vsel %vm3594, %v4660, %v4931
    %v4933 = vsel %vm3596, %v4661, %v4932
    %v4934 = vsel %vm3598, %v4662, %v4933
    %v4935 = vsel %vm3586, %v4664, %v4663
    %v4936 = vsel %vm3588, %v4665, %v4935
    %v4937 = vsel %vm3590, %v4666, %v4936
    %v4938 = vsel %vm3592, %v4667, %v4937
    %v4939 = vsel %vm3594, %v4668, %v4938
    %v4940 = vsel %vm3596, %v4669, %v4939
    %v4941 = vsel %vm3598, %v4670, %v4940
    %v4942 = vsel %vm3586, %v4672, %v4671
    %v4943 = vsel %vm3588, %v4673, %v4942
    %v4944 = vsel %vm3590, %v4674, %v4943
    %v4945 = vsel %vm3592, %v4675, %v4944
    %v4946 = vsel %vm3594, %v4676, %v4945
    %v4947 = vsel %vm3596, %v4677, %v4946
    %v4948 = vsel %vm3598, %v4678, %v4947
    %v4949 = vsel %vm3586, %v4680, %v4679
    %v4950 = vsel %vm3588, %v4681, %v4949
    %v4951 = vsel %vm3590, %v4682, %v4950
    %v4952 = vsel %vm3592, %v4683, %v4951
    %v4953 = vsel %vm3594, %v4684, %v4952
    %v4954 = vsel %vm3596, %v4685, %v4953
    %v4955 = vsel %vm3598, %v4686, %v4954
    %v4956 = vsel %vm3586, %v4688, %v4687
    %v4957 = vsel %vm3588, %v4689, %v4956
    %v4958 = vsel %vm3590, %v4690, %v4957
    %v4959 = vsel %vm3592, %v4691, %v4958
    %v4960 = vsel %vm3594, %v4692, %v4959
    %v4961 = vsel %vm3596, %v4693, %v4960
    %v4962 = vsel %vm3598, %v4694, %v4961
    %v4963 = vsel %vm3586, %v4696, %v4695
    %v4964 = vsel %vm3588, %v4697, %v4963
    %v4965 = vsel %vm3590, %v4698, %v4964
    %v4966 = vsel %vm3592, %v4699, %v4965
    %v4967 = vsel %vm3594, %v4700, %v4966
    %v4968 = vsel %vm3596, %v4701, %v4967
    %v4969 = vsel %vm3598, %v4702, %v4968
    %v4970 = vsel %vm3586, %v4704, %v4703
    %v4971 = vsel %vm3588, %v4705, %v4970
    %v4972 = vsel %vm3590, %v4706, %v4971
    %v4973 = vsel %vm3592, %v4707, %v4972
    %v4974 = vsel %vm3594, %v4708, %v4973
    %v4975 = vsel %vm3596, %v4709, %v4974
    %v4976 = vsel %vm3598, %v4710, %v4975
    %v4977 = vsel %vm3586, %v4712, %v4711
    %v4978 = vsel %vm3588, %v4713, %v4977
    %v4979 = vsel %vm3590, %v4714, %v4978
    %v4980 = vsel %vm3592, %v4715, %v4979
    %v4981 = vsel %vm3594, %v4716, %v4980
    %v4982 = vsel %vm3596, %v4717, %v4981
    %v4983 = vsel %vm3598, %v4718, %v4982
    %v4984 = vsel %vm3586, %v4720, %v4719
    %v4985 = vsel %vm3588, %v4721, %v4984
    %v4986 = vsel %vm3590, %v4722, %v4985
    %v4987 = vsel %vm3592, %v4723, %v4986
    %v4988 = vsel %vm3594, %v4724, %v4987
    %v4989 = vsel %vm3596, %v4725, %v4988
    %v4990 = vsel %vm3598, %v4726, %v4989
    %v4991 = vsel %vm3586, %v4728, %v4727
    %v4992 = vsel %vm3588, %v4729, %v4991
    %v4993 = vsel %vm3590, %v4730, %v4992
    %v4994 = vsel %vm3592, %v4731, %v4993
    %v4995 = vsel %vm3594, %v4732, %v4994
    %v4996 = vsel %vm3596, %v4733, %v4995
    %v4997 = vsel %vm3598, %v4734, %v4996
    %v4998 = vsel %vm3586, %v4736, %v4735
    %v4999 = vsel %vm3588, %v4737, %v4998
    %v5000 = vsel %vm3590, %v4738, %v4999
    %v5001 = vsel %vm3592, %v4739, %v5000
    %v5002 = vsel %vm3594, %v4740, %v5001
    %v5003 = vsel %vm3596, %v4741, %v5002
    %v5004 = vsel %vm3598, %v4742, %v5003
    %v5005 = vsel %vm3586, %v4744, %v4743
    %v5006 = vsel %vm3588, %v4745, %v5005
    %v5007 = vsel %vm3590, %v4746, %v5006
    %v5008 = vsel %vm3592, %v4747, %v5007
    %v5009 = vsel %vm3594, %v4748, %v5008
    %v5010 = vsel %vm3596, %v4749, %v5009
    %v5011 = vsel %vm3598, %v4750, %v5010
    %v5012 = vsel %vm3586, %v4752, %v4751
    %v5013 = vsel %vm3588, %v4753, %v5012
    %v5014 = vsel %vm3590, %v4754, %v5013
    %v5015 = vsel %vm3592, %v4755, %v5014
    %v5016 = vsel %vm3594, %v4756, %v5015
    %v5017 = vsel %vm3596, %v4757, %v5016
    %v5018 = vsel %vm3598, %v4758, %v5017
    %v5019 = vsel %vm3586, %v4760, %v4759
    %v5020 = vsel %vm3588, %v4761, %v5019
    %v5021 = vsel %vm3590, %v4762, %v5020
    %v5022 = vsel %vm3592, %v4763, %v5021
    %v5023 = vsel %vm3594, %v4764, %v5022
    %v5024 = vsel %vm3596, %v4765, %v5023
    %v5025 = vsel %vm3598, %v4766, %v5024
    %v5026 = vsel %vm3586, %v4768, %v4767
    %v5027 = vsel %vm3588, %v4769, %v5026
    %v5028 = vsel %vm3590, %v4770, %v5027
    %v5029 = vsel %vm3592, %v4771, %v5028
    %v5030 = vsel %vm3594, %v4772, %v5029
    %v5031 = vsel %vm3596, %v4773, %v5030
    %v5032 = vsel %vm3598, %v4774, %v5031
    %v5033 = vsel %vm3586, %v4776, %v4775
    %v5034 = vsel %vm3588, %v4777, %v5033
    %v5035 = vsel %vm3590, %v4778, %v5034
    %v5036 = vsel %vm3592, %v4779, %v5035
    %v5037 = vsel %vm3594, %v4780, %v5036
    %v5038 = vsel %vm3596, %v4781, %v5037
    %v5039 = vsel %vm3598, %v4782, %v5038
    %v5040 = vsel %vm3586, %v4784, %v4783
    %v5041 = vsel %vm3588, %v4785, %v5040
    %v5042 = vsel %vm3590, %v4786, %v5041
    %v5043 = vsel %vm3592, %v4787, %v5042
    %v5044 = vsel %vm3594, %v4788, %v5043
    %v5045 = vsel %vm3596, %v4789, %v5044
    %v5046 = vsel %vm3598, %v4790, %v5045
    %v5047 = vsel %vm3586, %v4792, %v4791
    %v5048 = vsel %vm3588, %v4793, %v5047
    %v5049 = vsel %vm3590, %v4794, %v5048
    %v5050 = vsel %vm3592, %v4795, %v5049
    %v5051 = vsel %vm3594, %v4796, %v5050
    %v5052 = vsel %vm3596, %v4797, %v5051
    %v5053 = vsel %vm3598, %v4798, %v5052
    %v5054 = vsel %vm3586, %v4800, %v4799
    %v5055 = vsel %vm3588, %v4801, %v5054
    %v5056 = vsel %vm3590, %v4802, %v5055
    %v5057 = vsel %vm3592, %v4803, %v5056
    %v5058 = vsel %vm3594, %v4804, %v5057
    %v5059 = vsel %vm3596, %v4805, %v5058
    %v5060 = vsel %vm3598, %v4806, %v5059
    %v5061 = vsel %vm3586, %v4808, %v4807
    %v5062 = vsel %vm3588, %v4809, %v5061
    %v5063 = vsel %vm3590, %v4810, %v5062
    %v5064 = vsel %vm3592, %v4811, %v5063
    %v5065 = vsel %vm3594, %v4812, %v5064
    %v5066 = vsel %vm3596, %v4813, %v5065
    %v5067 = vsel %vm3598, %v4814, %v5066
    %v5068 = vsel %vm3586, %v4816, %v4815
    %v5069 = vsel %vm3588, %v4817, %v5068
    %v5070 = vsel %vm3590, %v4818, %v5069
    %v5071 = vsel %vm3592, %v4819, %v5070
    %v5072 = vsel %vm3594, %v4820, %v5071
    %v5073 = vsel %vm3596, %v4821, %v5072
    %v5074 = vsel %vm3598, %v4822, %v5073
    %v5111 = vsel %vm552, %v4829, 0.0
    %v5112 = vsel %vm552, %v4836, 0.0
    %v5113 = vadd.f32 %v5111, %v5112
    %v5114 = vsel %vm552, %v4843, 0.0
    %v5115 = vadd.f32 %v5113, %v5114
    %v5116 = vsel %vm552, %v4850, 0.0
    %v5117 = vadd.f32 %v5115, %v5116
    %v5118 = vsel %vm552, %v4857, 0.0
    %v5119 = vadd.f32 %v5117, %v5118
    %v5120 = vsel %vm552, %v4864, 0.0
    %v5121 = vadd.f32 %v5119, %v5120
    %v5122 = vsel %vm552, %v4871, 0.0
    %v5123 = vadd.f32 %v5121, %v5122
    %v5124 = vsel %vm552, %v4878, 0.0
    %v5125 = vadd.f32 %v5123, %v5124
    %v5126 = vsel %vm552, %v4885, 0.0
    %v5127 = vadd.f32 %v5125, %v5126
    %v5128 = vsel %vm552, %v4892, 0.0
    %v5129 = vadd.f32 %v5127, %v5128
    %v5130 = vsel %vm552, %v4899, 0.0
    %v5131 = vadd.f32 %v5129, %v5130
    %v5132 = vsel %vm552, %v4906, 0.0
    %v5133 = vadd.f32 %v5131, %v5132
    %v5134 = vsel %vm552, %v4913, 0.0
    %v5135 = vadd.f32 %v5133, %v5134
    %v5136 = vsel %vm552, %v4920, 0.0
    %v5137 = vadd.f32 %v5135, %v5136
    %v5138 = vsel %vm552, %v4927, 0.0
    %v5139 = vadd.f32 %v5137, %v5138
    %v5140 = vsel %vm552, %v4934, 0.0
    %v5141 = vadd.f32 %v5139, %v5140
    %v5142 = vsel %vm552, %v4941, 0.0
    %v5143 = vadd.f32 %v5141, %v5142
    %v5144 = vsel %vm552, %v4948, 0.0
    %v5145 = vadd.f32 %v5143, %v5144
    %v5146 = vsel %vm552, %v4955, 0.0
    %v5147 = vadd.f32 %v5145, %v5146
    %v5148 = vsel %vm552, %v4962, 0.0
    %v5149 = vadd.f32 %v5147, %v5148
    %v5150 = vsel %vm552, %v4969, 0.0
    %v5151 = vadd.f32 %v5149, %v5150
    %v5152 = vsel %vm552, %v4976, 0.0
    %v5153 = vadd.f32 %v5151, %v5152
    %v5154 = vsel %vm552, %v4983, 0.0
    %v5155 = vadd.f32 %v5153, %v5154
    %v5156 = vsel %vm552, %v4990, 0.0
    %v5157 = vadd.f32 %v5155, %v5156
    %v5158 = vsel %vm552, %v4997, 0.0
    %v5159 = vadd.f32 %v5157, %v5158
    %v5160 = vsel %vm552, %v5004, 0.0
    %v5161 = vadd.f32 %v5159, %v5160
    %v5162 = vsel %vm552, %v5011, 0.0
    %v5163 = vadd.f32 %v5161, %v5162
    %v5164 = vsel %vm552, %v5018, 0.0
    %v5165 = vadd.f32 %v5163, %v5164
    %v5166 = vsel %vm552, %v5025, 0.0
    %v5167 = vadd.f32 %v5165, %v5166
    %v5168 = vsel %vm552, %v5032, 0.0
    %v5169 = vadd.f32 %v5167, %v5168
    %v5170 = vsel %vm552, %v5039, 0.0
    %v5171 = vadd.f32 %v5169, %v5170
    %v5172 = vsel %vm552, %v5046, 0.0
    %v5173 = vadd.f32 %v5171, %v5172
    %v5174 = vsel %vm552, %v5053, 0.0
    %v5175 = vadd.f32 %v5173, %v5174
    %v5176 = vsel %vm552, %v5060, 0.0
    %v5177 = vadd.f32 %v5175, %v5176
    %v5178 = vsel %vm552, %v5067, 0.0
    %v5179 = vadd.f32 %v5177, %v5178
    %v5180 = vsel %vm552, %v5074, 0.0
    %v5181 = vadd.f32 %v5179, %v5180
    %v5182 = vrot.slane %v5181, 4
    %v5183 = vadd.f32 %v5181, %v5182
    %v5184 = vrot.slane %v5183, 2
    %v5185 = vadd.f32 %v5183, %v5184
    %v5186 = vrot.slane %v5185, 1
    %v5187 = vadd.f32 %v5185, %v5186
    %v5188 = vmul.f32 %v5187, 0.0034722222
    %v5189 = vmul.f32 %v3958, %v3958
    %v5190 = vsub.f32 %v5188, %v5189
    %v5191 = vperm.slane %v3958, 0
    %v5193 = vrot.slane %v5191, 2
    %v5194 = vrot.slane %v5191, 4
    %v5195 = vrot.slane %v5191, 6
    %v5196 = vrot.slane %v5191, 1
    %v5197 = vrot.slane %v5193, 1
    %v5198 = vrot.slane %v5194, 1
    %v5199 = vrot.slane %v5195, 1
    %v5208 = vsub.f32 %v2722, %v5191
    %v5209 = vsub.f32 %v2723, %v5196
    %v5210 = vsub.f32 %v2724, %v5193
    %v5211 = vsub.f32 %v2725, %v5197
    %v5212 = vsub.f32 %v2726, %v5194
    %v5213 = vsub.f32 %v2727, %v5198
    %v5214 = vsub.f32 %v2728, %v5195
    %v5215 = vsub.f32 %v2729, %v5199
    %v5216 = vsub.f32 %v2730, %v5191
    %v5217 = vsub.f32 %v2731, %v5196
    %v5218 = vsub.f32 %v2732, %v5193
    %v5219 = vsub.f32 %v2733, %v5197
    %v5220 = vsub.f32 %v2734, %v5191
    %v5221 = vsub.f32 %v2735, %v5196
    %v5222 = vsub.f32 %v2736, %v5193
    %v5223 = vsub.f32 %v2737, %v5197
    %v5224 = vsub.f32 %v2738, %v5194
    %v5225 = vsub.f32 %v2739, %v5198
    %v5226 = vsub.f32 %v2740, %v5195
    %v5227 = vsub.f32 %v2741, %v5199
    %v5228 = vsub.f32 %v2742, %v5191
    %v5229 = vsub.f32 %v2743, %v5196
    %v5230 = vsub.f32 %v2744, %v5193
    %v5231 = vsub.f32 %v2745, %v5197
    %v5232 = vsub.f32 %v2746, %v5191
    %v5233 = vsub.f32 %v2747, %v5196
    %v5234 = vsub.f32 %v2748, %v5193
    %v5235 = vsub.f32 %v2749, %v5197
    %v5236 = vsub.f32 %v2750, %v5194
    %v5237 = vsub.f32 %v2751, %v5198
    %v5238 = vsub.f32 %v2752, %v5195
    %v5239 = vsub.f32 %v2753, %v5199
    %v5240 = vsub.f32 %v2754, %v5191
    %v5241 = vsub.f32 %v2755, %v5196
    %v5242 = vsub.f32 %v2756, %v5193
    %v5243 = vsub.f32 %v2757, %v5197
    %v5244 = vsub.f32 %v2758, %v5191
    %v5245 = vsub.f32 %v2759, %v5196
    %v5246 = vsub.f32 %v2760, %v5193
    %v5247 = vsub.f32 %v2761, %v5197
    %v5248 = vsub.f32 %v2762, %v5194
    %v5249 = vsub.f32 %v2763, %v5198
    %v5250 = vsub.f32 %v2764, %v5195
    %v5251 = vsub.f32 %v2765, %v5199
    %v5252 = vsub.f32 %v2766, %v5191
    %v5253 = vsub.f32 %v2767, %v5196
    %v5254 = vsub.f32 %v2768, %v5193
    %v5255 = vsub.f32 %v2769, %v5197
    %v5256 = vsub.f32 %v2770, %v5191
    %v5257 = vsub.f32 %v2771, %v5196
    %v5258 = vsub.f32 %v2772, %v5193
    %v5259 = vsub.f32 %v2773, %v5197
    %v5260 = vsub.f32 %v2774, %v5194
    %v5261 = vsub.f32 %v2775, %v5198
    %v5262 = vsub.f32 %v2776, %v5195
    %v5263 = vsub.f32 %v2777, %v5199
    %v5264 = vsub.f32 %v2778, %v5191
    %v5265 = vsub.f32 %v2779, %v5196
    %v5266 = vsub.f32 %v2780, %v5193
    %v5267 = vsub.f32 %v2781, %v5197
    %v5268 = vsub.f32 %v2782, %v5191
    %v5269 = vsub.f32 %v2783, %v5196
    %v5270 = vsub.f32 %v2784, %v5193
    %v5271 = vsub.f32 %v2785, %v5197
    %v5272 = vsub.f32 %v2786, %v5194
    %v5273 = vsub.f32 %v2787, %v5198
    %v5274 = vsub.f32 %v2788, %v5195
    %v5275 = vsub.f32 %v2789, %v5199
    %v5276 = vsub.f32 %v2790, %v5191
    %v5277 = vsub.f32 %v2791, %v5196
    %v5278 = vsub.f32 %v2792, %v5193
    %v5279 = vsub.f32 %v2793, %v5197
    %v5280 = vsub.f32 %v2794, %v5191
    %v5281 = vsub.f32 %v2795, %v5196
    %v5282 = vsub.f32 %v2796, %v5193
    %v5283 = vsub.f32 %v2797, %v5197
    %v5284 = vsub.f32 %v2798, %v5194
    %v5285 = vsub.f32 %v2799, %v5198
    %v5286 = vsub.f32 %v2800, %v5195
    %v5287 = vsub.f32 %v2801, %v5199
    %v5288 = vsub.f32 %v2802, %v5191
    %v5289 = vsub.f32 %v2803, %v5196
    %v5290 = vsub.f32 %v2804, %v5193
    %v5291 = vsub.f32 %v2805, %v5197
    %v5292 = vsub.f32 %v2806, %v5191
    %v5293 = vsub.f32 %v2807, %v5196
    %v5294 = vsub.f32 %v2808, %v5193
    %v5295 = vsub.f32 %v2809, %v5197
    %v5296 = vsub.f32 %v2810, %v5194
    %v5297 = vsub.f32 %v2811, %v5198
    %v5298 = vsub.f32 %v2812, %v5195
    %v5299 = vsub.f32 %v2813, %v5199
    %v5300 = vsub.f32 %v2814, %v5191
    %v5301 = vsub.f32 %v2815, %v5196
    %v5302 = vsub.f32 %v2816, %v5193
    %v5303 = vsub.f32 %v2817, %v5197
    %v5304 = vsub.f32 %v2818, %v5191
    %v5305 = vsub.f32 %v2819, %v5196
    %v5306 = vsub.f32 %v2820, %v5193
    %v5307 = vsub.f32 %v2821, %v5197
    %v5308 = vsub.f32 %v2822, %v5194
    %v5309 = vsub.f32 %v2823, %v5198
    %v5310 = vsub.f32 %v2824, %v5195
    %v5311 = vsub.f32 %v2825, %v5199
    %v5312 = vsub.f32 %v2826, %v5191
    %v5313 = vsub.f32 %v2827, %v5196
    %v5314 = vsub.f32 %v2828, %v5193
    %v5315 = vsub.f32 %v2829, %v5197
    %v5316 = vsub.f32 %v2830, %v5191
    %v5317 = vsub.f32 %v2831, %v5196
    %v5318 = vsub.f32 %v2832, %v5193
    %v5319 = vsub.f32 %v2833, %v5197
    %v5320 = vsub.f32 %v2834, %v5194
    %v5321 = vsub.f32 %v2835, %v5198
    %v5322 = vsub.f32 %v2836, %v5195
    %v5323 = vsub.f32 %v2837, %v5199
    %v5324 = vsub.f32 %v2838, %v5191
    %v5325 = vsub.f32 %v2839, %v5196
    %v5326 = vsub.f32 %v2840, %v5193
    %v5327 = vsub.f32 %v2841, %v5197
    %v5328 = vsub.f32 %v2842, %v5191
    %v5329 = vsub.f32 %v2843, %v5196
    %v5330 = vsub.f32 %v2844, %v5193
    %v5331 = vsub.f32 %v2845, %v5197
    %v5332 = vsub.f32 %v2846, %v5194
    %v5333 = vsub.f32 %v2847, %v5198
    %v5334 = vsub.f32 %v2848, %v5195
    %v5335 = vsub.f32 %v2849, %v5199
    %v5336 = vsub.f32 %v2850, %v5191
    %v5337 = vsub.f32 %v2851, %v5196
    %v5338 = vsub.f32 %v2852, %v5193
    %v5339 = vsub.f32 %v2853, %v5197
    %v5340 = vsub.f32 %v2854, %v5191
    %v5341 = vsub.f32 %v2855, %v5196
    %v5342 = vsub.f32 %v2856, %v5193
    %v5343 = vsub.f32 %v2857, %v5197
    %v5344 = vsub.f32 %v2858, %v5194
    %v5345 = vsub.f32 %v2859, %v5198
    %v5346 = vsub.f32 %v2860, %v5195
    %v5347 = vsub.f32 %v2861, %v5199
    %v5348 = vsub.f32 %v2862, %v5191
    %v5349 = vsub.f32 %v2863, %v5196
    %v5350 = vsub.f32 %v2864, %v5193
    %v5351 = vsub.f32 %v2865, %v5197
    %v5352 = vsub.f32 %v2866, %v5191
    %v5353 = vsub.f32 %v2867, %v5196
    %v5354 = vsub.f32 %v2868, %v5193
    %v5355 = vsub.f32 %v2869, %v5197
    %v5356 = vsub.f32 %v2870, %v5194
    %v5357 = vsub.f32 %v2871, %v5198
    %v5358 = vsub.f32 %v2872, %v5195
    %v5359 = vsub.f32 %v2873, %v5199
    %v5360 = vsub.f32 %v2874, %v5191
    %v5361 = vsub.f32 %v2875, %v5196
    %v5362 = vsub.f32 %v2876, %v5193
    %v5363 = vsub.f32 %v2877, %v5197
    %v5364 = vsub.f32 %v2878, %v5191
    %v5365 = vsub.f32 %v2879, %v5196
    %v5366 = vsub.f32 %v2880, %v5193
    %v5367 = vsub.f32 %v2881, %v5197
    %v5368 = vsub.f32 %v2882, %v5194
    %v5369 = vsub.f32 %v2883, %v5198
    %v5370 = vsub.f32 %v2884, %v5195
    %v5371 = vsub.f32 %v2885, %v5199
    %v5372 = vsub.f32 %v2886, %v5191
    %v5373 = vsub.f32 %v2887, %v5196
    %v5374 = vsub.f32 %v2888, %v5193
    %v5375 = vsub.f32 %v2889, %v5197
    %v5376 = vsub.f32 %v2890, %v5191
    %v5377 = vsub.f32 %v2891, %v5196
    %v5378 = vsub.f32 %v2892, %v5193
    %v5379 = vsub.f32 %v2893, %v5197
    %v5380 = vsub.f32 %v2894, %v5194
    %v5381 = vsub.f32 %v2895, %v5198
    %v5382 = vsub.f32 %v2896, %v5195
    %v5383 = vsub.f32 %v2897, %v5199
    %v5384 = vsub.f32 %v2898, %v5191
    %v5385 = vsub.f32 %v2899, %v5196
    %v5386 = vsub.f32 %v2900, %v5193
    %v5387 = vsub.f32 %v2901, %v5197
    %v5388 = vsub.f32 %v2902, %v5191
    %v5389 = vsub.f32 %v2903, %v5196
    %v5390 = vsub.f32 %v2904, %v5193
    %v5391 = vsub.f32 %v2905, %v5197
    %v5392 = vsub.f32 %v2906, %v5194
    %v5393 = vsub.f32 %v2907, %v5198
    %v5394 = vsub.f32 %v2908, %v5195
    %v5395 = vsub.f32 %v2909, %v5199
    %v5396 = vsub.f32 %v2910, %v5191
    %v5397 = vsub.f32 %v2911, %v5196
    %v5398 = vsub.f32 %v2912, %v5193
    %v5399 = vsub.f32 %v2913, %v5197
    %v5400 = vsub.f32 %v2914, %v5191
    %v5401 = vsub.f32 %v2915, %v5196
    %v5402 = vsub.f32 %v2916, %v5193
    %v5403 = vsub.f32 %v2917, %v5197
    %v5404 = vsub.f32 %v2918, %v5194
    %v5405 = vsub.f32 %v2919, %v5198
    %v5406 = vsub.f32 %v2920, %v5195
    %v5407 = vsub.f32 %v2921, %v5199
    %v5408 = vsub.f32 %v2922, %v5191
    %v5409 = vsub.f32 %v2923, %v5196
    %v5410 = vsub.f32 %v2924, %v5193
    %v5411 = vsub.f32 %v2925, %v5197
    %v5412 = vsub.f32 %v2926, %v5191
    %v5413 = vsub.f32 %v2927, %v5196
    %v5414 = vsub.f32 %v2928, %v5193
    %v5415 = vsub.f32 %v2929, %v5197
    %v5416 = vsub.f32 %v2930, %v5194
    %v5417 = vsub.f32 %v2931, %v5198
    %v5418 = vsub.f32 %v2932, %v5195
    %v5419 = vsub.f32 %v2933, %v5199
    %v5420 = vsub.f32 %v2934, %v5191
    %v5421 = vsub.f32 %v2935, %v5196
    %v5422 = vsub.f32 %v2936, %v5193
    %v5423 = vsub.f32 %v2937, %v5197
    %v5424 = vsub.f32 %v2938, %v5191
    %v5425 = vsub.f32 %v2939, %v5196
    %v5426 = vsub.f32 %v2940, %v5193
    %v5427 = vsub.f32 %v2941, %v5197
    %v5428 = vsub.f32 %v2942, %v5194
    %v5429 = vsub.f32 %v2943, %v5198
    %v5430 = vsub.f32 %v2944, %v5195
    %v5431 = vsub.f32 %v2945, %v5199
    %v5432 = vsub.f32 %v2946, %v5191
    %v5433 = vsub.f32 %v2947, %v5196
    %v5434 = vsub.f32 %v2948, %v5193
    %v5435 = vsub.f32 %v2949, %v5197
    %v5436 = vsub.f32 %v2950, %v5191
    %v5437 = vsub.f32 %v2951, %v5196
    %v5438 = vsub.f32 %v2952, %v5193
    %v5439 = vsub.f32 %v2953, %v5197
    %v5440 = vsub.f32 %v2954, %v5194
    %v5441 = vsub.f32 %v2955, %v5198
    %v5442 = vsub.f32 %v2956, %v5195
    %v5443 = vsub.f32 %v2957, %v5199
    %v5444 = vsub.f32 %v2958, %v5191
    %v5445 = vsub.f32 %v2959, %v5196
    %v5446 = vsub.f32 %v2960, %v5193
    %v5447 = vsub.f32 %v2961, %v5197
    %v5448 = vsub.f32 %v2962, %v5191
    %v5449 = vsub.f32 %v2963, %v5196
    %v5450 = vsub.f32 %v2964, %v5193
    %v5451 = vsub.f32 %v2965, %v5197
    %v5452 = vsub.f32 %v2966, %v5194
    %v5453 = vsub.f32 %v2967, %v5198
    %v5454 = vsub.f32 %v2968, %v5195
    %v5455 = vsub.f32 %v2969, %v5199
    %v5456 = vsub.f32 %v2970, %v5191
    %v5457 = vsub.f32 %v2971, %v5196
    %v5458 = vsub.f32 %v2972, %v5193
    %v5459 = vsub.f32 %v2973, %v5197
    %v5460 = vsub.f32 %v2974, %v5191
    %v5461 = vsub.f32 %v2975, %v5196
    %v5462 = vsub.f32 %v2976, %v5193
    %v5463 = vsub.f32 %v2977, %v5197
    %v5464 = vsub.f32 %v2978, %v5194
    %v5465 = vsub.f32 %v2979, %v5198
    %v5466 = vsub.f32 %v2980, %v5195
    %v5467 = vsub.f32 %v2981, %v5199
    %v5468 = vsub.f32 %v2982, %v5191
    %v5469 = vsub.f32 %v2983, %v5196
    %v5470 = vsub.f32 %v2984, %v5193
    %v5471 = vsub.f32 %v2985, %v5197
    %v5472 = vsub.f32 %v2986, %v5191
    %v5473 = vsub.f32 %v2987, %v5196
    %v5474 = vsub.f32 %v2988, %v5193
    %v5475 = vsub.f32 %v2989, %v5197
    %v5476 = vsub.f32 %v2990, %v5194
    %v5477 = vsub.f32 %v2991, %v5198
    %v5478 = vsub.f32 %v2992, %v5195
    %v5479 = vsub.f32 %v2993, %v5199
    %v5480 = vsub.f32 %v2994, %v5191
    %v5481 = vsub.f32 %v2995, %v5196
    %v5482 = vsub.f32 %v2996, %v5193
    %v5483 = vsub.f32 %v2997, %v5197
    %v5484 = vsub.f32 %v2998, %v5191
    %v5485 = vsub.f32 %v2999, %v5196
    %v5486 = vsub.f32 %v3000, %v5193
    %v5487 = vsub.f32 %v3001, %v5197
    %v5488 = vsub.f32 %v3002, %v5194
    %v5489 = vsub.f32 %v3003, %v5198
    %v5490 = vsub.f32 %v3004, %v5195
    %v5491 = vsub.f32 %v3005, %v5199
    %v5492 = vsub.f32 %v3006, %v5191
    %v5493 = vsub.f32 %v3007, %v5196
    %v5494 = vsub.f32 %v3008, %v5193
    %v5495 = vsub.f32 %v3009, %v5197
    %v5496 = vadd.f32 %v5190, 1e-05
    %v5497 = vrsqrt.pop %v5496
    %v5498 = vmul.f32 %v5497, %v5496
    %v5499 = vmul.f32 %v5498, %v5497
    %v5500 = vmul.f32 0.5, %v5499
    %v5501 = vsub.f32 1.5, %v5500
    %v5502 = vmul.f32 %v5497, %v5501
    %vm5503 = vweird.f32 %v5496
    %vm5504 = vweird.f32 %v5497
    %vm5505 = vmor %vm5503, %vm5504
    %v5506 = vsel %vm5505, %v5497, %v5502
    %v5507 = vperm.slane %v5506, 0
    %v5509 = vrot.slane %v5507, 2
    %v5510 = vrot.slane %v5507, 4
    %v5511 = vrot.slane %v5507, 6
    %v5512 = vrot.slane %v5507, 1
    %v5513 = vrot.slane %v5509, 1
    %v5514 = vrot.slane %v5510, 1
    %v5515 = vrot.slane %v5511, 1
    %v5524 = vmul.f32 %v5208, %v5507
    %v5525 = vmul.f32 %v5209, %v5512
    %v5526 = vmul.f32 %v5210, %v5509
    %v5527 = vmul.f32 %v5211, %v5513
    %v5528 = vmul.f32 %v5212, %v5510
    %v5529 = vmul.f32 %v5213, %v5514
    %v5530 = vmul.f32 %v5214, %v5511
    %v5531 = vmul.f32 %v5215, %v5515
    %v5532 = vmul.f32 %v5216, %v5507
    %v5533 = vmul.f32 %v5217, %v5512
    %v5534 = vmul.f32 %v5218, %v5509
    %v5535 = vmul.f32 %v5219, %v5513
    %v5536 = vmul.f32 %v5220, %v5507
    %v5537 = vmul.f32 %v5221, %v5512
    %v5538 = vmul.f32 %v5222, %v5509
    %v5539 = vmul.f32 %v5223, %v5513
    %v5540 = vmul.f32 %v5224, %v5510
    %v5541 = vmul.f32 %v5225, %v5514
    %v5542 = vmul.f32 %v5226, %v5511
    %v5543 = vmul.f32 %v5227, %v5515
    %v5544 = vmul.f32 %v5228, %v5507
    %v5545 = vmul.f32 %v5229, %v5512
    %v5546 = vmul.f32 %v5230, %v5509
    %v5547 = vmul.f32 %v5231, %v5513
    %v5548 = vmul.f32 %v5232, %v5507
    %v5549 = vmul.f32 %v5233, %v5512
    %v5550 = vmul.f32 %v5234, %v5509
    %v5551 = vmul.f32 %v5235, %v5513
    %v5552 = vmul.f32 %v5236, %v5510
    %v5553 = vmul.f32 %v5237, %v5514
    %v5554 = vmul.f32 %v5238, %v5511
    %v5555 = vmul.f32 %v5239, %v5515
    %v5556 = vmul.f32 %v5240, %v5507
    %v5557 = vmul.f32 %v5241, %v5512
    %v5558 = vmul.f32 %v5242, %v5509
    %v5559 = vmul.f32 %v5243, %v5513
    %v5560 = vmul.f32 %v5244, %v5507
    %v5561 = vmul.f32 %v5245, %v5512
    %v5562 = vmul.f32 %v5246, %v5509
    %v5563 = vmul.f32 %v5247, %v5513
    %v5564 = vmul.f32 %v5248, %v5510
    %v5565 = vmul.f32 %v5249, %v5514
    %v5566 = vmul.f32 %v5250, %v5511
    %v5567 = vmul.f32 %v5251, %v5515
    %v5568 = vmul.f32 %v5252, %v5507
    %v5569 = vmul.f32 %v5253, %v5512
    %v5570 = vmul.f32 %v5254, %v5509
    %v5571 = vmul.f32 %v5255, %v5513
    %v5572 = vmul.f32 %v5256, %v5507
    %v5573 = vmul.f32 %v5257, %v5512
    %v5574 = vmul.f32 %v5258, %v5509
    %v5575 = vmul.f32 %v5259, %v5513
    %v5576 = vmul.f32 %v5260, %v5510
    %v5577 = vmul.f32 %v5261, %v5514
    %v5578 = vmul.f32 %v5262, %v5511
    %v5579 = vmul.f32 %v5263, %v5515
    %v5580 = vmul.f32 %v5264, %v5507
    %v5581 = vmul.f32 %v5265, %v5512
    %v5582 = vmul.f32 %v5266, %v5509
    %v5583 = vmul.f32 %v5267, %v5513
    %v5584 = vmul.f32 %v5268, %v5507
    %v5585 = vmul.f32 %v5269, %v5512
    %v5586 = vmul.f32 %v5270, %v5509
    %v5587 = vmul.f32 %v5271, %v5513
    %v5588 = vmul.f32 %v5272, %v5510
    %v5589 = vmul.f32 %v5273, %v5514
    %v5590 = vmul.f32 %v5274, %v5511
    %v5591 = vmul.f32 %v5275, %v5515
    %v5592 = vmul.f32 %v5276, %v5507
    %v5593 = vmul.f32 %v5277, %v5512
    %v5594 = vmul.f32 %v5278, %v5509
    %v5595 = vmul.f32 %v5279, %v5513
    %v5596 = vmul.f32 %v5280, %v5507
    %v5597 = vmul.f32 %v5281, %v5512
    %v5598 = vmul.f32 %v5282, %v5509
    %v5599 = vmul.f32 %v5283, %v5513
    %v5600 = vmul.f32 %v5284, %v5510
    %v5601 = vmul.f32 %v5285, %v5514
    %v5602 = vmul.f32 %v5286, %v5511
    %v5603 = vmul.f32 %v5287, %v5515
    %v5604 = vmul.f32 %v5288, %v5507
    %v5605 = vmul.f32 %v5289, %v5512
    %v5606 = vmul.f32 %v5290, %v5509
    %v5607 = vmul.f32 %v5291, %v5513
    %v5608 = vmul.f32 %v5292, %v5507
    %v5609 = vmul.f32 %v5293, %v5512
    %v5610 = vmul.f32 %v5294, %v5509
    %v5611 = vmul.f32 %v5295, %v5513
    %v5612 = vmul.f32 %v5296, %v5510
    %v5613 = vmul.f32 %v5297, %v5514
    %v5614 = vmul.f32 %v5298, %v5511
    %v5615 = vmul.f32 %v5299, %v5515
    %v5616 = vmul.f32 %v5300, %v5507
    %v5617 = vmul.f32 %v5301, %v5512
    %v5618 = vmul.f32 %v5302, %v5509
    %v5619 = vmul.f32 %v5303, %v5513
    %v5620 = vmul.f32 %v5304, %v5507
    %v5621 = vmul.f32 %v5305, %v5512
    %v5622 = vmul.f32 %v5306, %v5509
    %v5623 = vmul.f32 %v5307, %v5513
    %v5624 = vmul.f32 %v5308, %v5510
    %v5625 = vmul.f32 %v5309, %v5514
    %v5626 = vmul.f32 %v5310, %v5511
    %v5627 = vmul.f32 %v5311, %v5515
    %v5628 = vmul.f32 %v5312, %v5507
    %v5629 = vmul.f32 %v5313, %v5512
    %v5630 = vmul.f32 %v5314, %v5509
    %v5631 = vmul.f32 %v5315, %v5513
    %v5632 = vmul.f32 %v5316, %v5507
    %v5633 = vmul.f32 %v5317, %v5512
    %v5634 = vmul.f32 %v5318, %v5509
    %v5635 = vmul.f32 %v5319, %v5513
    %v5636 = vmul.f32 %v5320, %v5510
    %v5637 = vmul.f32 %v5321, %v5514
    %v5638 = vmul.f32 %v5322, %v5511
    %v5639 = vmul.f32 %v5323, %v5515
    %v5640 = vmul.f32 %v5324, %v5507
    %v5641 = vmul.f32 %v5325, %v5512
    %v5642 = vmul.f32 %v5326, %v5509
    %v5643 = vmul.f32 %v5327, %v5513
    %v5644 = vmul.f32 %v5328, %v5507
    %v5645 = vmul.f32 %v5329, %v5512
    %v5646 = vmul.f32 %v5330, %v5509
    %v5647 = vmul.f32 %v5331, %v5513
    %v5648 = vmul.f32 %v5332, %v5510
    %v5649 = vmul.f32 %v5333, %v5514
    %v5650 = vmul.f32 %v5334, %v5511
    %v5651 = vmul.f32 %v5335, %v5515
    %v5652 = vmul.f32 %v5336, %v5507
    %v5653 = vmul.f32 %v5337, %v5512
    %v5654 = vmul.f32 %v5338, %v5509
    %v5655 = vmul.f32 %v5339, %v5513
    %v5656 = vmul.f32 %v5340, %v5507
    %v5657 = vmul.f32 %v5341, %v5512
    %v5658 = vmul.f32 %v5342, %v5509
    %v5659 = vmul.f32 %v5343, %v5513
    %v5660 = vmul.f32 %v5344, %v5510
    %v5661 = vmul.f32 %v5345, %v5514
    %v5662 = vmul.f32 %v5346, %v5511
    %v5663 = vmul.f32 %v5347, %v5515
    %v5664 = vmul.f32 %v5348, %v5507
    %v5665 = vmul.f32 %v5349, %v5512
    %v5666 = vmul.f32 %v5350, %v5509
    %v5667 = vmul.f32 %v5351, %v5513
    %v5668 = vmul.f32 %v5352, %v5507
    %v5669 = vmul.f32 %v5353, %v5512
    %v5670 = vmul.f32 %v5354, %v5509
    %v5671 = vmul.f32 %v5355, %v5513
    %v5672 = vmul.f32 %v5356, %v5510
    %v5673 = vmul.f32 %v5357, %v5514
    %v5674 = vmul.f32 %v5358, %v5511
    %v5675 = vmul.f32 %v5359, %v5515
    %v5676 = vmul.f32 %v5360, %v5507
    %v5677 = vmul.f32 %v5361, %v5512
    %v5678 = vmul.f32 %v5362, %v5509
    %v5679 = vmul.f32 %v5363, %v5513
    %v5680 = vmul.f32 %v5364, %v5507
    %v5681 = vmul.f32 %v5365, %v5512
    %v5682 = vmul.f32 %v5366, %v5509
    %v5683 = vmul.f32 %v5367, %v5513
    %v5684 = vmul.f32 %v5368, %v5510
    %v5685 = vmul.f32 %v5369, %v5514
    %v5686 = vmul.f32 %v5370, %v5511
    %v5687 = vmul.f32 %v5371, %v5515
    %v5688 = vmul.f32 %v5372, %v5507
    %v5689 = vmul.f32 %v5373, %v5512
    %v5690 = vmul.f32 %v5374, %v5509
    %v5691 = vmul.f32 %v5375, %v5513
    %v5692 = vmul.f32 %v5376, %v5507
    %v5693 = vmul.f32 %v5377, %v5512
    %v5694 = vmul.f32 %v5378, %v5509
    %v5695 = vmul.f32 %v5379, %v5513
    %v5696 = vmul.f32 %v5380, %v5510
    %v5697 = vmul.f32 %v5381, %v5514
    %v5698 = vmul.f32 %v5382, %v5511
    %v5699 = vmul.f32 %v5383, %v5515
    %v5700 = vmul.f32 %v5384, %v5507
    %v5701 = vmul.f32 %v5385, %v5512
    %v5702 = vmul.f32 %v5386, %v5509
    %v5703 = vmul.f32 %v5387, %v5513
    %v5704 = vmul.f32 %v5388, %v5507
    %v5705 = vmul.f32 %v5389, %v5512
    %v5706 = vmul.f32 %v5390, %v5509
    %v5707 = vmul.f32 %v5391, %v5513
    %v5708 = vmul.f32 %v5392, %v5510
    %v5709 = vmul.f32 %v5393, %v5514
    %v5710 = vmul.f32 %v5394, %v5511
    %v5711 = vmul.f32 %v5395, %v5515
    %v5712 = vmul.f32 %v5396, %v5507
    %v5713 = vmul.f32 %v5397, %v5512
    %v5714 = vmul.f32 %v5398, %v5509
    %v5715 = vmul.f32 %v5399, %v5513
    %v5716 = vmul.f32 %v5400, %v5507
    %v5717 = vmul.f32 %v5401, %v5512
    %v5718 = vmul.f32 %v5402, %v5509
    %v5719 = vmul.f32 %v5403, %v5513
    %v5720 = vmul.f32 %v5404, %v5510
    %v5721 = vmul.f32 %v5405, %v5514
    %v5722 = vmul.f32 %v5406, %v5511
    %v5723 = vmul.f32 %v5407, %v5515
    %v5724 = vmul.f32 %v5408, %v5507
    %v5725 = vmul.f32 %v5409, %v5512
    %v5726 = vmul.f32 %v5410, %v5509
    %v5727 = vmul.f32 %v5411, %v5513
    %v5728 = vmul.f32 %v5412, %v5507
    %v5729 = vmul.f32 %v5413, %v5512
    %v5730 = vmul.f32 %v5414, %v5509
    %v5731 = vmul.f32 %v5415, %v5513
    %v5732 = vmul.f32 %v5416, %v5510
    %v5733 = vmul.f32 %v5417, %v5514
    %v5734 = vmul.f32 %v5418, %v5511
    %v5735 = vmul.f32 %v5419, %v5515
    %v5736 = vmul.f32 %v5420, %v5507
    %v5737 = vmul.f32 %v5421, %v5512
    %v5738 = vmul.f32 %v5422, %v5509
    %v5739 = vmul.f32 %v5423, %v5513
    %v5740 = vmul.f32 %v5424, %v5507
    %v5741 = vmul.f32 %v5425, %v5512
    %v5742 = vmul.f32 %v5426, %v5509
    %v5743 = vmul.f32 %v5427, %v5513
    %v5744 = vmul.f32 %v5428, %v5510
    %v5745 = vmul.f32 %v5429, %v5514
    %v5746 = vmul.f32 %v5430, %v5511
    %v5747 = vmul.f32 %v5431, %v5515
    %v5748 = vmul.f32 %v5432, %v5507
    %v5749 = vmul.f32 %v5433, %v5512
    %v5750 = vmul.f32 %v5434, %v5509
    %v5751 = vmul.f32 %v5435, %v5513
    %v5752 = vmul.f32 %v5436, %v5507
    %v5753 = vmul.f32 %v5437, %v5512
    %v5754 = vmul.f32 %v5438, %v5509
    %v5755 = vmul.f32 %v5439, %v5513
    %v5756 = vmul.f32 %v5440, %v5510
    %v5757 = vmul.f32 %v5441, %v5514
    %v5758 = vmul.f32 %v5442, %v5511
    %v5759 = vmul.f32 %v5443, %v5515
    %v5760 = vmul.f32 %v5444, %v5507
    %v5761 = vmul.f32 %v5445, %v5512
    %v5762 = vmul.f32 %v5446, %v5509
    %v5763 = vmul.f32 %v5447, %v5513
    %v5764 = vmul.f32 %v5448, %v5507
    %v5765 = vmul.f32 %v5449, %v5512
    %v5766 = vmul.f32 %v5450, %v5509
    %v5767 = vmul.f32 %v5451, %v5513
    %v5768 = vmul.f32 %v5452, %v5510
    %v5769 = vmul.f32 %v5453, %v5514
    %v5770 = vmul.f32 %v5454, %v5511
    %v5771 = vmul.f32 %v5455, %v5515
    %v5772 = vmul.f32 %v5456, %v5507
    %v5773 = vmul.f32 %v5457, %v5512
    %v5774 = vmul.f32 %v5458, %v5509
    %v5775 = vmul.f32 %v5459, %v5513
    %v5776 = vmul.f32 %v5460, %v5507
    %v5777 = vmul.f32 %v5461, %v5512
    %v5778 = vmul.f32 %v5462, %v5509
    %v5779 = vmul.f32 %v5463, %v5513
    %v5780 = vmul.f32 %v5464, %v5510
    %v5781 = vmul.f32 %v5465, %v5514
    %v5782 = vmul.f32 %v5466, %v5511
    %v5783 = vmul.f32 %v5467, %v5515
    %v5784 = vmul.f32 %v5468, %v5507
    %v5785 = vmul.f32 %v5469, %v5512
    %v5786 = vmul.f32 %v5470, %v5509
    %v5787 = vmul.f32 %v5471, %v5513
    %v5788 = vmul.f32 %v5472, %v5507
    %v5789 = vmul.f32 %v5473, %v5512
    %v5790 = vmul.f32 %v5474, %v5509
    %v5791 = vmul.f32 %v5475, %v5513
    %v5792 = vmul.f32 %v5476, %v5510
    %v5793 = vmul.f32 %v5477, %v5514
    %v5794 = vmul.f32 %v5478, %v5511
    %v5795 = vmul.f32 %v5479, %v5515
    %v5796 = vmul.f32 %v5480, %v5507
    %v5797 = vmul.f32 %v5481, %v5512
    %v5798 = vmul.f32 %v5482, %v5509
    %v5799 = vmul.f32 %v5483, %v5513
    %v5800 = vmul.f32 %v5484, %v5507
    %v5801 = vmul.f32 %v5485, %v5512
    %v5802 = vmul.f32 %v5486, %v5509
    %v5803 = vmul.f32 %v5487, %v5513
    %v5804 = vmul.f32 %v5488, %v5510
    %v5805 = vmul.f32 %v5489, %v5514
    %v5806 = vmul.f32 %v5490, %v5511
    %v5807 = vmul.f32 %v5491, %v5515
    %v5808 = vmul.f32 %v5492, %v5507
    %v5809 = vmul.f32 %v5493, %v5512
    %v5810 = vmul.f32 %v5494, %v5509
    %v5811 = vmul.f32 %v5495, %v5513
    %v5812 = vpack.c.bf16 %v5524, %v5524
    %v5813 = vpack.c.bf16 %v5525, %v5525
    %v5814 = vpack.c.bf16 %v5526, %v5526
    %v5815 = vpack.c.bf16 %v5527, %v5527
    %v5816 = vpack.c.bf16 %v5528, %v5528
    %v5817 = vpack.c.bf16 %v5529, %v5529
    %v5818 = vpack.c.bf16 %v5530, %v5530
    %v5819 = vpack.c.bf16 %v5531, %v5531
    %v5820 = vpack.c.bf16 %v5532, %v5532
    %v5821 = vpack.c.bf16 %v5533, %v5533
    %v5822 = vpack.c.bf16 %v5534, %v5534
    %v5823 = vpack.c.bf16 %v5535, %v5535
    %v5824 = vpack.c.bf16 %v5536, %v5536
    %v5825 = vpack.c.bf16 %v5537, %v5537
    %v5826 = vpack.c.bf16 %v5538, %v5538
    %v5827 = vpack.c.bf16 %v5539, %v5539
    %v5828 = vpack.c.bf16 %v5540, %v5540
    %v5829 = vpack.c.bf16 %v5541, %v5541
    %v5830 = vpack.c.bf16 %v5542, %v5542
    %v5831 = vpack.c.bf16 %v5543, %v5543
    %v5832 = vpack.c.bf16 %v5544, %v5544
    %v5833 = vpack.c.bf16 %v5545, %v5545
    %v5834 = vpack.c.bf16 %v5546, %v5546
    %v5835 = vpack.c.bf16 %v5547, %v5547
    %v5836 = vpack.c.bf16 %v5548, %v5548
    %v5837 = vpack.c.bf16 %v5549, %v5549
    %v5838 = vpack.c.bf16 %v5550, %v5550
    %v5839 = vpack.c.bf16 %v5551, %v5551
    %v5840 = vpack.c.bf16 %v5552, %v5552
    %v5841 = vpack.c.bf16 %v5553, %v5553
    %v5842 = vpack.c.bf16 %v5554, %v5554
    %v5843 = vpack.c.bf16 %v5555, %v5555
    %v5844 = vpack.c.bf16 %v5556, %v5556
    %v5845 = vpack.c.bf16 %v5557, %v5557
    %v5846 = vpack.c.bf16 %v5558, %v5558
    %v5847 = vpack.c.bf16 %v5559, %v5559
    %v5848 = vpack.c.bf16 %v5560, %v5560
    %v5849 = vpack.c.bf16 %v5561, %v5561
    %v5850 = vpack.c.bf16 %v5562, %v5562
    %v5851 = vpack.c.bf16 %v5563, %v5563
    %v5852 = vpack.c.bf16 %v5564, %v5564
    %v5853 = vpack.c.bf16 %v5565, %v5565
    %v5854 = vpack.c.bf16 %v5566, %v5566
    %v5855 = vpack.c.bf16 %v5567, %v5567
    %v5856 = vpack.c.bf16 %v5568, %v5568
    %v5857 = vpack.c.bf16 %v5569, %v5569
    %v5858 = vpack.c.bf16 %v5570, %v5570
    %v5859 = vpack.c.bf16 %v5571, %v5571
    %v5860 = vpack.c.bf16 %v5572, %v5572
    %v5861 = vpack.c.bf16 %v5573, %v5573
    %v5862 = vpack.c.bf16 %v5574, %v5574
    %v5863 = vpack.c.bf16 %v5575, %v5575
    %v5864 = vpack.c.bf16 %v5576, %v5576
    %v5865 = vpack.c.bf16 %v5577, %v5577
    %v5866 = vpack.c.bf16 %v5578, %v5578
    %v5867 = vpack.c.bf16 %v5579, %v5579
    %v5868 = vpack.c.bf16 %v5580, %v5580
    %v5869 = vpack.c.bf16 %v5581, %v5581
    %v5870 = vpack.c.bf16 %v5582, %v5582
    %v5871 = vpack.c.bf16 %v5583, %v5583
    %v5872 = vpack.c.bf16 %v5584, %v5584
    %v5873 = vpack.c.bf16 %v5585, %v5585
    %v5874 = vpack.c.bf16 %v5586, %v5586
    %v5875 = vpack.c.bf16 %v5587, %v5587
    %v5876 = vpack.c.bf16 %v5588, %v5588
    %v5877 = vpack.c.bf16 %v5589, %v5589
    %v5878 = vpack.c.bf16 %v5590, %v5590
    %v5879 = vpack.c.bf16 %v5591, %v5591
    %v5880 = vpack.c.bf16 %v5592, %v5592
    %v5881 = vpack.c.bf16 %v5593, %v5593
    %v5882 = vpack.c.bf16 %v5594, %v5594
    %v5883 = vpack.c.bf16 %v5595, %v5595
    %v5884 = vpack.c.bf16 %v5596, %v5596
    %v5885 = vpack.c.bf16 %v5597, %v5597
    %v5886 = vpack.c.bf16 %v5598, %v5598
    %v5887 = vpack.c.bf16 %v5599, %v5599
    %v5888 = vpack.c.bf16 %v5600, %v5600
    %v5889 = vpack.c.bf16 %v5601, %v5601
    %v5890 = vpack.c.bf16 %v5602, %v5602
    %v5891 = vpack.c.bf16 %v5603, %v5603
    %v5892 = vpack.c.bf16 %v5604, %v5604
    %v5893 = vpack.c.bf16 %v5605, %v5605
    %v5894 = vpack.c.bf16 %v5606, %v5606
    %v5895 = vpack.c.bf16 %v5607, %v5607
    %v5896 = vpack.c.bf16 %v5608, %v5608
    %v5897 = vpack.c.bf16 %v5609, %v5609
    %v5898 = vpack.c.bf16 %v5610, %v5610
    %v5899 = vpack.c.bf16 %v5611, %v5611
    %v5900 = vpack.c.bf16 %v5612, %v5612
    %v5901 = vpack.c.bf16 %v5613, %v5613
    %v5902 = vpack.c.bf16 %v5614, %v5614
    %v5903 = vpack.c.bf16 %v5615, %v5615
    %v5904 = vpack.c.bf16 %v5616, %v5616
    %v5905 = vpack.c.bf16 %v5617, %v5617
    %v5906 = vpack.c.bf16 %v5618, %v5618
    %v5907 = vpack.c.bf16 %v5619, %v5619
    %v5908 = vpack.c.bf16 %v5620, %v5620
    %v5909 = vpack.c.bf16 %v5621, %v5621
    %v5910 = vpack.c.bf16 %v5622, %v5622
    %v5911 = vpack.c.bf16 %v5623, %v5623
    %v5912 = vpack.c.bf16 %v5624, %v5624
    %v5913 = vpack.c.bf16 %v5625, %v5625
    %v5914 = vpack.c.bf16 %v5626, %v5626
    %v5915 = vpack.c.bf16 %v5627, %v5627
    %v5916 = vpack.c.bf16 %v5628, %v5628
    %v5917 = vpack.c.bf16 %v5629, %v5629
    %v5918 = vpack.c.bf16 %v5630, %v5630
    %v5919 = vpack.c.bf16 %v5631, %v5631
    %v5920 = vpack.c.bf16 %v5632, %v5632
    %v5921 = vpack.c.bf16 %v5633, %v5633
    %v5922 = vpack.c.bf16 %v5634, %v5634
    %v5923 = vpack.c.bf16 %v5635, %v5635
    %v5924 = vpack.c.bf16 %v5636, %v5636
    %v5925 = vpack.c.bf16 %v5637, %v5637
    %v5926 = vpack.c.bf16 %v5638, %v5638
    %v5927 = vpack.c.bf16 %v5639, %v5639
    %v5928 = vpack.c.bf16 %v5640, %v5640
    %v5929 = vpack.c.bf16 %v5641, %v5641
    %v5930 = vpack.c.bf16 %v5642, %v5642
    %v5931 = vpack.c.bf16 %v5643, %v5643
    %v5932 = vpack.c.bf16 %v5644, %v5644
    %v5933 = vpack.c.bf16 %v5645, %v5645
    %v5934 = vpack.c.bf16 %v5646, %v5646
    %v5935 = vpack.c.bf16 %v5647, %v5647
    %v5936 = vpack.c.bf16 %v5648, %v5648
    %v5937 = vpack.c.bf16 %v5649, %v5649
    %v5938 = vpack.c.bf16 %v5650, %v5650
    %v5939 = vpack.c.bf16 %v5651, %v5651
    %v5940 = vpack.c.bf16 %v5652, %v5652
    %v5941 = vpack.c.bf16 %v5653, %v5653
    %v5942 = vpack.c.bf16 %v5654, %v5654
    %v5943 = vpack.c.bf16 %v5655, %v5655
    %v5944 = vpack.c.bf16 %v5656, %v5656
    %v5945 = vpack.c.bf16 %v5657, %v5657
    %v5946 = vpack.c.bf16 %v5658, %v5658
    %v5947 = vpack.c.bf16 %v5659, %v5659
    %v5948 = vpack.c.bf16 %v5660, %v5660
    %v5949 = vpack.c.bf16 %v5661, %v5661
    %v5950 = vpack.c.bf16 %v5662, %v5662
    %v5951 = vpack.c.bf16 %v5663, %v5663
    %v5952 = vpack.c.bf16 %v5664, %v5664
    %v5953 = vpack.c.bf16 %v5665, %v5665
    %v5954 = vpack.c.bf16 %v5666, %v5666
    %v5955 = vpack.c.bf16 %v5667, %v5667
    %v5956 = vpack.c.bf16 %v5668, %v5668
    %v5957 = vpack.c.bf16 %v5669, %v5669
    %v5958 = vpack.c.bf16 %v5670, %v5670
    %v5959 = vpack.c.bf16 %v5671, %v5671
    %v5960 = vpack.c.bf16 %v5672, %v5672
    %v5961 = vpack.c.bf16 %v5673, %v5673
    %v5962 = vpack.c.bf16 %v5674, %v5674
    %v5963 = vpack.c.bf16 %v5675, %v5675
    %v5964 = vpack.c.bf16 %v5676, %v5676
    %v5965 = vpack.c.bf16 %v5677, %v5677
    %v5966 = vpack.c.bf16 %v5678, %v5678
    %v5967 = vpack.c.bf16 %v5679, %v5679
    %v5968 = vpack.c.bf16 %v5680, %v5680
    %v5969 = vpack.c.bf16 %v5681, %v5681
    %v5970 = vpack.c.bf16 %v5682, %v5682
    %v5971 = vpack.c.bf16 %v5683, %v5683
    %v5972 = vpack.c.bf16 %v5684, %v5684
    %v5973 = vpack.c.bf16 %v5685, %v5685
    %v5974 = vpack.c.bf16 %v5686, %v5686
    %v5975 = vpack.c.bf16 %v5687, %v5687
    %v5976 = vpack.c.bf16 %v5688, %v5688
    %v5977 = vpack.c.bf16 %v5689, %v5689
    %v5978 = vpack.c.bf16 %v5690, %v5690
    %v5979 = vpack.c.bf16 %v5691, %v5691
    %v5980 = vpack.c.bf16 %v5692, %v5692
    %v5981 = vpack.c.bf16 %v5693, %v5693
    %v5982 = vpack.c.bf16 %v5694, %v5694
    %v5983 = vpack.c.bf16 %v5695, %v5695
    %v5984 = vpack.c.bf16 %v5696, %v5696
    %v5985 = vpack.c.bf16 %v5697, %v5697
    %v5986 = vpack.c.bf16 %v5698, %v5698
    %v5987 = vpack.c.bf16 %v5699, %v5699
    %v5988 = vpack.c.bf16 %v5700, %v5700
    %v5989 = vpack.c.bf16 %v5701, %v5701
    %v5990 = vpack.c.bf16 %v5702, %v5702
    %v5991 = vpack.c.bf16 %v5703, %v5703
    %v5992 = vpack.c.bf16 %v5704, %v5704
    %v5993 = vpack.c.bf16 %v5705, %v5705
    %v5994 = vpack.c.bf16 %v5706, %v5706
    %v5995 = vpack.c.bf16 %v5707, %v5707
    %v5996 = vpack.c.bf16 %v5708, %v5708
    %v5997 = vpack.c.bf16 %v5709, %v5709
    %v5998 = vpack.c.bf16 %v5710, %v5710
    %v5999 = vpack.c.bf16 %v5711, %v5711
    %v6000 = vpack.c.bf16 %v5712, %v5712
    %v6001 = vpack.c.bf16 %v5713, %v5713
    %v6002 = vpack.c.bf16 %v5714, %v5714
    %v6003 = vpack.c.bf16 %v5715, %v5715
    %v6004 = vpack.c.bf16 %v5716, %v5716
    %v6005 = vpack.c.bf16 %v5717, %v5717
    %v6006 = vpack.c.bf16 %v5718, %v5718
    %v6007 = vpack.c.bf16 %v5719, %v5719
    %v6008 = vpack.c.bf16 %v5720, %v5720
    %v6009 = vpack.c.bf16 %v5721, %v5721
    %v6010 = vpack.c.bf16 %v5722, %v5722
    %v6011 = vpack.c.bf16 %v5723, %v5723
    %v6012 = vpack.c.bf16 %v5724, %v5724
    %v6013 = vpack.c.bf16 %v5725, %v5725
    %v6014 = vpack.c.bf16 %v5726, %v5726
    %v6015 = vpack.c.bf16 %v5727, %v5727
    %v6016 = vpack.c.bf16 %v5728, %v5728
    %v6017 = vpack.c.bf16 %v5729, %v5729
    %v6018 = vpack.c.bf16 %v5730, %v5730
    %v6019 = vpack.c.bf16 %v5731, %v5731
    %v6020 = vpack.c.bf16 %v5732, %v5732
    %v6021 = vpack.c.bf16 %v5733, %v5733
    %v6022 = vpack.c.bf16 %v5734, %v5734
    %v6023 = vpack.c.bf16 %v5735, %v5735
    %v6024 = vpack.c.bf16 %v5736, %v5736
    %v6025 = vpack.c.bf16 %v5737, %v5737
    %v6026 = vpack.c.bf16 %v5738, %v5738
    %v6027 = vpack.c.bf16 %v5739, %v5739
    %v6028 = vpack.c.bf16 %v5740, %v5740
    %v6029 = vpack.c.bf16 %v5741, %v5741
    %v6030 = vpack.c.bf16 %v5742, %v5742
    %v6031 = vpack.c.bf16 %v5743, %v5743
    %v6032 = vpack.c.bf16 %v5744, %v5744
    %v6033 = vpack.c.bf16 %v5745, %v5745
    %v6034 = vpack.c.bf16 %v5746, %v5746
    %v6035 = vpack.c.bf16 %v5747, %v5747
    %v6036 = vpack.c.bf16 %v5748, %v5748
    %v6037 = vpack.c.bf16 %v5749, %v5749
    %v6038 = vpack.c.bf16 %v5750, %v5750
    %v6039 = vpack.c.bf16 %v5751, %v5751
    %v6040 = vpack.c.bf16 %v5752, %v5752
    %v6041 = vpack.c.bf16 %v5753, %v5753
    %v6042 = vpack.c.bf16 %v5754, %v5754
    %v6043 = vpack.c.bf16 %v5755, %v5755
    %v6044 = vpack.c.bf16 %v5756, %v5756
    %v6045 = vpack.c.bf16 %v5757, %v5757
    %v6046 = vpack.c.bf16 %v5758, %v5758
    %v6047 = vpack.c.bf16 %v5759, %v5759
    %v6048 = vpack.c.bf16 %v5760, %v5760
    %v6049 = vpack.c.bf16 %v5761, %v5761
    %v6050 = vpack.c.bf16 %v5762, %v5762
    %v6051 = vpack.c.bf16 %v5763, %v5763
    %v6052 = vpack.c.bf16 %v5764, %v5764
    %v6053 = vpack.c.bf16 %v5765, %v5765
    %v6054 = vpack.c.bf16 %v5766, %v5766
    %v6055 = vpack.c.bf16 %v5767, %v5767
    %v6056 = vpack.c.bf16 %v5768, %v5768
    %v6057 = vpack.c.bf16 %v5769, %v5769
    %v6058 = vpack.c.bf16 %v5770, %v5770
    %v6059 = vpack.c.bf16 %v5771, %v5771
    %v6060 = vpack.c.bf16 %v5772, %v5772
    %v6061 = vpack.c.bf16 %v5773, %v5773
    %v6062 = vpack.c.bf16 %v5774, %v5774
    %v6063 = vpack.c.bf16 %v5775, %v5775
    %v6064 = vpack.c.bf16 %v5776, %v5776
    %v6065 = vpack.c.bf16 %v5777, %v5777
    %v6066 = vpack.c.bf16 %v5778, %v5778
    %v6067 = vpack.c.bf16 %v5779, %v5779
    %v6068 = vpack.c.bf16 %v5780, %v5780
    %v6069 = vpack.c.bf16 %v5781, %v5781
    %v6070 = vpack.c.bf16 %v5782, %v5782
    %v6071 = vpack.c.bf16 %v5783, %v5783
    %v6072 = vpack.c.bf16 %v5784, %v5784
    %v6073 = vpack.c.bf16 %v5785, %v5785
    %v6074 = vpack.c.bf16 %v5786, %v5786
    %v6075 = vpack.c.bf16 %v5787, %v5787
    %v6076 = vpack.c.bf16 %v5788, %v5788
    %v6077 = vpack.c.bf16 %v5789, %v5789
    %v6078 = vpack.c.bf16 %v5790, %v5790
    %v6079 = vpack.c.bf16 %v5791, %v5791
    %v6080 = vpack.c.bf16 %v5792, %v5792
    %v6081 = vpack.c.bf16 %v5793, %v5793
    %v6082 = vpack.c.bf16 %v5794, %v5794
    %v6083 = vpack.c.bf16 %v5795, %v5795
    %v6084 = vpack.c.bf16 %v5796, %v5796
    %v6085 = vpack.c.bf16 %v5797, %v5797
    %v6086 = vpack.c.bf16 %v5798, %v5798
    %v6087 = vpack.c.bf16 %v5799, %v5799
    %v6088 = vpack.c.bf16 %v5800, %v5800
    %v6089 = vpack.c.bf16 %v5801, %v5801
    %v6090 = vpack.c.bf16 %v5802, %v5802
    %v6091 = vpack.c.bf16 %v5803, %v5803
    %v6092 = vpack.c.bf16 %v5804, %v5804
    %v6093 = vpack.c.bf16 %v5805, %v5805
    %v6094 = vpack.c.bf16 %v5806, %v5806
    %v6095 = vpack.c.bf16 %v5807, %v5807
    %v6096 = vpack.c.bf16 %v5808, %v5808
    %v6097 = vpack.c.bf16 %v5809, %v5809
    %v6098 = vpack.c.bf16 %v5810, %v5810
    %v6099 = vpack.c.bf16 %v5811, %v5811
    %v6228 = vunpack.c.l.b16 %v5812
    %v6229 = vunpack.c.l.b16 %v5813
    %v6230 = vunpack.c.l.b16 %v5814
    %v6231 = vunpack.c.l.b16 %v5815
    %v6232 = vunpack.c.l.b16 %v5816
    %v6233 = vunpack.c.l.b16 %v5817
    %v6234 = vunpack.c.l.b16 %v5818
    %v6235 = vunpack.c.l.b16 %v5819
    %v6236 = vunpack.c.l.b16 %v5824
    %v6237 = vunpack.c.l.b16 %v5825
    %v6238 = vunpack.c.l.b16 %v5826
    %v6239 = vunpack.c.l.b16 %v5827
    %v6240 = vunpack.c.l.b16 %v5828
    %v6241 = vunpack.c.l.b16 %v5829
    %v6242 = vunpack.c.l.b16 %v5830
    %v6243 = vunpack.c.l.b16 %v5831
    %v6244 = vunpack.c.l.b16 %v5836
    %v6245 = vunpack.c.l.b16 %v5837
    %v6246 = vunpack.c.l.b16 %v5838
    %v6247 = vunpack.c.l.b16 %v5839
    %v6248 = vunpack.c.l.b16 %v5840
    %v6249 = vunpack.c.l.b16 %v5841
    %v6250 = vunpack.c.l.b16 %v5842
    %v6251 = vunpack.c.l.b16 %v5843
    %v6252 = vunpack.c.l.b16 %v5848
    %v6253 = vunpack.c.l.b16 %v5849
    %v6254 = vunpack.c.l.b16 %v5850
    %v6255 = vunpack.c.l.b16 %v5851
    %v6256 = vunpack.c.l.b16 %v5852
    %v6257 = vunpack.c.l.b16 %v5853
    %v6258 = vunpack.c.l.b16 %v5854
    %v6259 = vunpack.c.l.b16 %v5855
    %v6260 = vunpack.c.l.b16 %v5860
    %v6261 = vunpack.c.l.b16 %v5861
    %v6262 = vunpack.c.l.b16 %v5862
    %v6263 = vunpack.c.l.b16 %v5863
    %v6264 = vunpack.c.l.b16 %v5864
    %v6265 = vunpack.c.l.b16 %v5865
    %v6266 = vunpack.c.l.b16 %v5866
    %v6267 = vunpack.c.l.b16 %v5867
    %v6268 = vunpack.c.l.b16 %v5872
    %v6269 = vunpack.c.l.b16 %v5873
    %v6270 = vunpack.c.l.b16 %v5874
    %v6271 = vunpack.c.l.b16 %v5875
    %v6272 = vunpack.c.l.b16 %v5876
    %v6273 = vunpack.c.l.b16 %v5877
    %v6274 = vunpack.c.l.b16 %v5878
    %v6275 = vunpack.c.l.b16 %v5879
    %v6276 = vunpack.c.l.b16 %v5884
    %v6277 = vunpack.c.l.b16 %v5885
    %v6278 = vunpack.c.l.b16 %v5886
    %v6279 = vunpack.c.l.b16 %v5887
    %v6280 = vunpack.c.l.b16 %v5888
    %v6281 = vunpack.c.l.b16 %v5889
    %v6282 = vunpack.c.l.b16 %v5890
    %v6283 = vunpack.c.l.b16 %v5891
    %v6284 = vunpack.c.l.b16 %v5896
    %v6285 = vunpack.c.l.b16 %v5897
    %v6286 = vunpack.c.l.b16 %v5898
    %v6287 = vunpack.c.l.b16 %v5899
    %v6288 = vunpack.c.l.b16 %v5900
    %v6289 = vunpack.c.l.b16 %v5901
    %v6290 = vunpack.c.l.b16 %v5902
    %v6291 = vunpack.c.l.b16 %v5903
    %v6292 = vunpack.c.l.b16 %v5956
    %v6293 = vunpack.c.l.b16 %v5957
    %v6294 = vunpack.c.l.b16 %v5958
    %v6295 = vunpack.c.l.b16 %v5959
    %v6296 = vunpack.c.l.b16 %v5960
    %v6297 = vunpack.c.l.b16 %v5961
    %v6298 = vunpack.c.l.b16 %v5962
    %v6299 = vunpack.c.l.b16 %v5963
    %v6300 = vunpack.c.l.b16 %v5968
    %v6301 = vunpack.c.l.b16 %v5969
    %v6302 = vunpack.c.l.b16 %v5970
    %v6303 = vunpack.c.l.b16 %v5971
    %v6304 = vunpack.c.l.b16 %v5972
    %v6305 = vunpack.c.l.b16 %v5973
    %v6306 = vunpack.c.l.b16 %v5974
    %v6307 = vunpack.c.l.b16 %v5975
    %v6308 = vunpack.c.l.b16 %v5980
    %v6309 = vunpack.c.l.b16 %v5981
    %v6310 = vunpack.c.l.b16 %v5982
    %v6311 = vunpack.c.l.b16 %v5983
    %v6312 = vunpack.c.l.b16 %v5984
    %v6313 = vunpack.c.l.b16 %v5985
    %v6314 = vunpack.c.l.b16 %v5986
    %v6315 = vunpack.c.l.b16 %v5987
    %v6316 = vunpack.c.l.b16 %v5992
    %v6317 = vunpack.c.l.b16 %v5993
    %v6318 = vunpack.c.l.b16 %v5994
    %v6319 = vunpack.c.l.b16 %v5995
    %v6320 = vunpack.c.l.b16 %v5996
    %v6321 = vunpack.c.l.b16 %v5997
    %v6322 = vunpack.c.l.b16 %v5998
    %v6323 = vunpack.c.l.b16 %v5999
    %v6324 = vunpack.c.l.b16 %v6004
    %v6325 = vunpack.c.l.b16 %v6005
    %v6326 = vunpack.c.l.b16 %v6006
    %v6327 = vunpack.c.l.b16 %v6007
    %v6328 = vunpack.c.l.b16 %v6008
    %v6329 = vunpack.c.l.b16 %v6009
    %v6330 = vunpack.c.l.b16 %v6010
    %v6331 = vunpack.c.l.b16 %v6011
    %v6332 = vunpack.c.l.b16 %v6016
    %v6333 = vunpack.c.l.b16 %v6017
    %v6334 = vunpack.c.l.b16 %v6018
    %v6335 = vunpack.c.l.b16 %v6019
    %v6336 = vunpack.c.l.b16 %v6020
    %v6337 = vunpack.c.l.b16 %v6021
    %v6338 = vunpack.c.l.b16 %v6022
    %v6339 = vunpack.c.l.b16 %v6023
    %v6340 = vunpack.c.l.b16 %v6028
    %v6341 = vunpack.c.l.b16 %v6029
    %v6342 = vunpack.c.l.b16 %v6030
    %v6343 = vunpack.c.l.b16 %v6031
    %v6344 = vunpack.c.l.b16 %v6032
    %v6345 = vunpack.c.l.b16 %v6033
    %v6346 = vunpack.c.l.b16 %v6034
    %v6347 = vunpack.c.l.b16 %v6035
    %v6348 = vunpack.c.l.b16 %v6040
    %v6349 = vunpack.c.l.b16 %v6041
    %v6350 = vunpack.c.l.b16 %v6042
    %v6351 = vunpack.c.l.b16 %v6043
    %v6352 = vunpack.c.l.b16 %v6044
    %v6353 = vunpack.c.l.b16 %v6045
    %v6354 = vunpack.c.l.b16 %v6046
    %v6355 = vunpack.c.l.b16 %v6047
    %v6356 = vpack.c.b16 %v6228, %v6228
    %v6357 = vpack.c.b16 %v6229, %v6229
    %v6358 = vpack.c.b16 %v6230, %v6230
    %v6359 = vpack.c.b16 %v6231, %v6231
    %v6360 = vpack.c.b16 %v6232, %v6232
    %v6361 = vpack.c.b16 %v6233, %v6233
    %v6362 = vpack.c.b16 %v6234, %v6234
    %v6363 = vpack.c.b16 %v6235, %v6235
    %v6364 = vpack.c.b16 %v6236, %v6236
    %v6365 = vpack.c.b16 %v6237, %v6237
    %v6366 = vpack.c.b16 %v6238, %v6238
    %v6367 = vpack.c.b16 %v6239, %v6239
    %v6368 = vpack.c.b16 %v6240, %v6240
    %v6369 = vpack.c.b16 %v6241, %v6241
    %v6370 = vpack.c.b16 %v6242, %v6242
    %v6371 = vpack.c.b16 %v6243, %v6243
    %v6372 = vpack.c.b16 %v6244, %v6244
    %v6373 = vpack.c.b16 %v6245, %v6245
    %v6374 = vpack.c.b16 %v6246, %v6246
    %v6375 = vpack.c.b16 %v6247, %v6247
    %v6376 = vpack.c.b16 %v6248, %v6248
    %v6377 = vpack.c.b16 %v6249, %v6249
    %v6378 = vpack.c.b16 %v6250, %v6250
    %v6379 = vpack.c.b16 %v6251, %v6251
    %v6380 = vpack.c.b16 %v6252, %v6252
    %v6381 = vpack.c.b16 %v6253, %v6253
    %v6382 = vpack.c.b16 %v6254, %v6254
    %v6383 = vpack.c.b16 %v6255, %v6255
    %v6384 = vpack.c.b16 %v6256, %v6256
    %v6385 = vpack.c.b16 %v6257, %v6257
    %v6386 = vpack.c.b16 %v6258, %v6258
    %v6387 = vpack.c.b16 %v6259, %v6259
    %v6388 = vpack.c.b16 %v6260, %v6260
    %v6389 = vpack.c.b16 %v6261, %v6261
    %v6390 = vpack.c.b16 %v6262, %v6262
    %v6391 = vpack.c.b16 %v6263, %v6263
    %v6392 = vpack.c.b16 %v6264, %v6264
    %v6393 = vpack.c.b16 %v6265, %v6265
    %v6394 = vpack.c.b16 %v6266, %v6266
    %v6395 = vpack.c.b16 %v6267, %v6267
    %v6396 = vpack.c.b16 %v6268, %v6268
    %v6397 = vpack.c.b16 %v6269, %v6269
    %v6398 = vpack.c.b16 %v6270, %v6270
    %v6399 = vpack.c.b16 %v6271, %v6271
    %v6400 = vpack.c.b16 %v6272, %v6272
    %v6401 = vpack.c.b16 %v6273, %v6273
    %v6402 = vpack.c.b16 %v6274, %v6274
    %v6403 = vpack.c.b16 %v6275, %v6275
    %v6404 = vpack.c.b16 %v6276, %v6276
    %v6405 = vpack.c.b16 %v6277, %v6277
    %v6406 = vpack.c.b16 %v6278, %v6278
    %v6407 = vpack.c.b16 %v6279, %v6279
    %v6408 = vpack.c.b16 %v6280, %v6280
    %v6409 = vpack.c.b16 %v6281, %v6281
    %v6410 = vpack.c.b16 %v6282, %v6282
    %v6411 = vpack.c.b16 %v6283, %v6283
    %v6412 = vpack.c.b16 %v6284, %v6284
    %v6413 = vpack.c.b16 %v6285, %v6285
    %v6414 = vpack.c.b16 %v6286, %v6286
    %v6415 = vpack.c.b16 %v6287, %v6287
    %v6416 = vpack.c.b16 %v6288, %v6288
    %v6417 = vpack.c.b16 %v6289, %v6289
    %v6418 = vpack.c.b16 %v6290, %v6290
    %v6419 = vpack.c.b16 %v6291, %v6291
    %v6420 = vpack.c.b16 %v6292, %v6292
    %v6421 = vpack.c.b16 %v6293, %v6293
    %v6422 = vpack.c.b16 %v6294, %v6294
    %v6423 = vpack.c.b16 %v6295, %v6295
    %v6424 = vpack.c.b16 %v6296, %v6296
    %v6425 = vpack.c.b16 %v6297, %v6297
    %v6426 = vpack.c.b16 %v6298, %v6298
    %v6427 = vpack.c.b16 %v6299, %v6299
    %v6428 = vpack.c.b16 %v6300, %v6300
    %v6429 = vpack.c.b16 %v6301, %v6301
    %v6430 = vpack.c.b16 %v6302, %v6302
    %v6431 = vpack.c.b16 %v6303, %v6303
    %v6432 = vpack.c.b16 %v6304, %v6304
    %v6433 = vpack.c.b16 %v6305, %v6305
    %v6434 = vpack.c.b16 %v6306, %v6306
    %v6435 = vpack.c.b16 %v6307, %v6307
    %v6436 = vpack.c.b16 %v6308, %v6308
    %v6437 = vpack.c.b16 %v6309, %v6309
    %v6438 = vpack.c.b16 %v6310, %v6310
    %v6439 = vpack.c.b16 %v6311, %v6311
    %v6440 = vpack.c.b16 %v6312, %v6312
    %v6441 = vpack.c.b16 %v6313, %v6313
    %v6442 = vpack.c.b16 %v6314, %v6314
    %v6443 = vpack.c.b16 %v6315, %v6315
    %v6444 = vpack.c.b16 %v6316, %v6316
    %v6445 = vpack.c.b16 %v6317, %v6317
    %v6446 = vpack.c.b16 %v6318, %v6318
    %v6447 = vpack.c.b16 %v6319, %v6319
    %v6448 = vpack.c.b16 %v6320, %v6320
    %v6449 = vpack.c.b16 %v6321, %v6321
    %v6450 = vpack.c.b16 %v6322, %v6322
    %v6451 = vpack.c.b16 %v6323, %v6323
    %v6452 = vpack.c.b16 %v6324, %v6324
    %v6453 = vpack.c.b16 %v6325, %v6325
    %v6454 = vpack.c.b16 %v6326, %v6326
    %v6455 = vpack.c.b16 %v6327, %v6327
    %v6456 = vpack.c.b16 %v6328, %v6328
    %v6457 = vpack.c.b16 %v6329, %v6329
    %v6458 = vpack.c.b16 %v6330, %v6330
    %v6459 = vpack.c.b16 %v6331, %v6331
    %v6460 = vpack.c.b16 %v6332, %v6332
    %v6461 = vpack.c.b16 %v6333, %v6333
    %v6462 = vpack.c.b16 %v6334, %v6334
    %v6463 = vpack.c.b16 %v6335, %v6335
    %v6464 = vpack.c.b16 %v6336, %v6336
    %v6465 = vpack.c.b16 %v6337, %v6337
    %v6466 = vpack.c.b16 %v6338, %v6338
    %v6467 = vpack.c.b16 %v6339, %v6339
    %v6468 = vpack.c.b16 %v6340, %v6340
    %v6469 = vpack.c.b16 %v6341, %v6341
    %v6470 = vpack.c.b16 %v6342, %v6342
    %v6471 = vpack.c.b16 %v6343, %v6343
    %v6472 = vpack.c.b16 %v6344, %v6344
    %v6473 = vpack.c.b16 %v6345, %v6345
    %v6474 = vpack.c.b16 %v6346, %v6346
    %v6475 = vpack.c.b16 %v6347, %v6347
    %v6476 = vpack.c.b16 %v6348, %v6348
    %v6477 = vpack.c.b16 %v6349, %v6349
    %v6478 = vpack.c.b16 %v6350, %v6350
    %v6479 = vpack.c.b16 %v6351, %v6351
    %v6480 = vpack.c.b16 %v6352, %v6352
    %v6481 = vpack.c.b16 %v6353, %v6353
    %v6482 = vpack.c.b16 %v6354, %v6354
    %v6483 = vpack.c.b16 %v6355, %v6355
    %v6484 = vunpack.c.l.b16 %v6356
    %v6485 = vunpack.c.l.b16 %v6357
    %v6486 = vunpack.c.l.b16 %v6358
    %v6487 = vunpack.c.l.b16 %v6359
    %v6488 = vunpack.c.l.b16 %v6360
    %v6489 = vunpack.c.l.b16 %v6361
    %v6490 = vunpack.c.l.b16 %v6362
    %v6491 = vunpack.c.l.b16 %v6363
    %v6492 = vunpack.c.l.b16 %v6364
    %v6493 = vunpack.c.l.b16 %v6365
    %v6494 = vunpack.c.l.b16 %v6366
    %v6495 = vunpack.c.l.b16 %v6367
    %v6496 = vunpack.c.l.b16 %v6368
    %v6497 = vunpack.c.l.b16 %v6369
    %v6498 = vunpack.c.l.b16 %v6370
    %v6499 = vunpack.c.l.b16 %v6371
    %v6500 = vunpack.c.l.b16 %v6372
    %v6501 = vunpack.c.l.b16 %v6373
    %v6502 = vunpack.c.l.b16 %v6374
    %v6503 = vunpack.c.l.b16 %v6375
    %v6504 = vunpack.c.l.b16 %v6376
    %v6505 = vunpack.c.l.b16 %v6377
    %v6506 = vunpack.c.l.b16 %v6378
    %v6507 = vunpack.c.l.b16 %v6379
    %v6508 = vunpack.c.l.b16 %v6380
    %v6509 = vunpack.c.l.b16 %v6381
    %v6510 = vunpack.c.l.b16 %v6382
    %v6511 = vunpack.c.l.b16 %v6383
    %v6512 = vunpack.c.l.b16 %v6384
    %v6513 = vunpack.c.l.b16 %v6385
    %v6514 = vunpack.c.l.b16 %v6386
    %v6515 = vunpack.c.l.b16 %v6387
    %v6516 = vunpack.c.l.b16 %v6388
    %v6517 = vunpack.c.l.b16 %v6389
    %v6518 = vunpack.c.l.b16 %v6390
    %v6519 = vunpack.c.l.b16 %v6391
    %v6520 = vunpack.c.l.b16 %v6392
    %v6521 = vunpack.c.l.b16 %v6393
    %v6522 = vunpack.c.l.b16 %v6394
    %v6523 = vunpack.c.l.b16 %v6395
    %v6524 = vunpack.c.l.b16 %v6396
    %v6525 = vunpack.c.l.b16 %v6397
    %v6526 = vunpack.c.l.b16 %v6398
    %v6527 = vunpack.c.l.b16 %v6399
    %v6528 = vunpack.c.l.b16 %v6400
    %v6529 = vunpack.c.l.b16 %v6401
    %v6530 = vunpack.c.l.b16 %v6402
    %v6531 = vunpack.c.l.b16 %v6403
    %v6532 = vunpack.c.l.b16 %v6404
    %v6533 = vunpack.c.l.b16 %v6405
    %v6534 = vunpack.c.l.b16 %v6406
    %v6535 = vunpack.c.l.b16 %v6407
    %v6536 = vunpack.c.l.b16 %v6408
    %v6537 = vunpack.c.l.b16 %v6409
    %v6538 = vunpack.c.l.b16 %v6410
    %v6539 = vunpack.c.l.b16 %v6411
    %v6540 = vunpack.c.l.b16 %v6412
    %v6541 = vunpack.c.l.b16 %v6413
    %v6542 = vunpack.c.l.b16 %v6414
    %v6543 = vunpack.c.l.b16 %v6415
    %v6544 = vunpack.c.l.b16 %v6416
    %v6545 = vunpack.c.l.b16 %v6417
    %v6546 = vunpack.c.l.b16 %v6418
    %v6547 = vunpack.c.l.b16 %v6419
    %v6548 = vunpack.c.l.b16 %v6420
    %v6549 = vunpack.c.l.b16 %v6421
    %v6550 = vunpack.c.l.b16 %v6422
    %v6551 = vunpack.c.l.b16 %v6423
    %v6552 = vunpack.c.l.b16 %v6424
    %v6553 = vunpack.c.l.b16 %v6425
    %v6554 = vunpack.c.l.b16 %v6426
    %v6555 = vunpack.c.l.b16 %v6427
    %v6556 = vunpack.c.l.b16 %v6428
    %v6557 = vunpack.c.l.b16 %v6429
    %v6558 = vunpack.c.l.b16 %v6430
    %v6559 = vunpack.c.l.b16 %v6431
    %v6560 = vunpack.c.l.b16 %v6432
    %v6561 = vunpack.c.l.b16 %v6433
    %v6562 = vunpack.c.l.b16 %v6434
    %v6563 = vunpack.c.l.b16 %v6435
    %v6564 = vunpack.c.l.b16 %v6436
    %v6565 = vunpack.c.l.b16 %v6437
    %v6566 = vunpack.c.l.b16 %v6438
    %v6567 = vunpack.c.l.b16 %v6439
    %v6568 = vunpack.c.l.b16 %v6440
    %v6569 = vunpack.c.l.b16 %v6441
    %v6570 = vunpack.c.l.b16 %v6442
    %v6571 = vunpack.c.l.b16 %v6443
    %v6572 = vunpack.c.l.b16 %v6444
    %v6573 = vunpack.c.l.b16 %v6445
    %v6574 = vunpack.c.l.b16 %v6446
    %v6575 = vunpack.c.l.b16 %v6447
    %v6576 = vunpack.c.l.b16 %v6448
    %v6577 = vunpack.c.l.b16 %v6449
    %v6578 = vunpack.c.l.b16 %v6450
    %v6579 = vunpack.c.l.b16 %v6451
    %v6580 = vunpack.c.l.b16 %v6452
    %v6581 = vunpack.c.l.b16 %v6453
    %v6582 = vunpack.c.l.b16 %v6454
    %v6583 = vunpack.c.l.b16 %v6455
    %v6584 = vunpack.c.l.b16 %v6456
    %v6585 = vunpack.c.l.b16 %v6457
    %v6586 = vunpack.c.l.b16 %v6458
    %v6587 = vunpack.c.l.b16 %v6459
    %v6588 = vunpack.c.l.b16 %v6460
    %v6589 = vunpack.c.l.b16 %v6461
    %v6590 = vunpack.c.l.b16 %v6462
    %v6591 = vunpack.c.l.b16 %v6463
    %v6592 = vunpack.c.l.b16 %v6464
    %v6593 = vunpack.c.l.b16 %v6465
    %v6594 = vunpack.c.l.b16 %v6466
    %v6595 = vunpack.c.l.b16 %v6467
    %v6596 = vunpack.c.l.b16 %v6468
    %v6597 = vunpack.c.l.b16 %v6469
    %v6598 = vunpack.c.l.b16 %v6470
    %v6599 = vunpack.c.l.b16 %v6471
    %v6600 = vunpack.c.l.b16 %v6472
    %v6601 = vunpack.c.l.b16 %v6473
    %v6602 = vunpack.c.l.b16 %v6474
    %v6603 = vunpack.c.l.b16 %v6475
    %v6604 = vunpack.c.l.b16 %v6476
    %v6605 = vunpack.c.l.b16 %v6477
    %v6606 = vunpack.c.l.b16 %v6478
    %v6607 = vunpack.c.l.b16 %v6479
    %v6608 = vunpack.c.l.b16 %v6480
    %v6609 = vunpack.c.l.b16 %v6481
    %v6610 = vunpack.c.l.b16 %v6482
    %v6611 = vunpack.c.l.b16 %v6483
    %v6612 = vrot.slane %v6485, 7
    %v6613 = vsel %vm3586, %v6612, %v6484
    %v6614 = vrot.slane %v6486, 6
    %v6615 = vsel %vm3588, %v6614, %v6613
    %v6616 = vrot.slane %v6487, 5
    %v6617 = vsel %vm3590, %v6616, %v6615
    %v6618 = vrot.slane %v6488, 4
    %v6619 = vsel %vm3592, %v6618, %v6617
    %v6620 = vrot.slane %v6489, 3
    %v6621 = vsel %vm3594, %v6620, %v6619
    %v6622 = vrot.slane %v6490, 2
    %v6623 = vsel %vm3596, %v6622, %v6621
    %v6624 = vrot.slane %v6491, 1
    %v6625 = vsel %vm3598, %v6624, %v6623
    %v6626 = vrot.slane %v6493, 7
    %v6627 = vsel %vm3586, %v6626, %v6492
    %v6628 = vrot.slane %v6494, 6
    %v6629 = vsel %vm3588, %v6628, %v6627
    %v6630 = vrot.slane %v6495, 5
    %v6631 = vsel %vm3590, %v6630, %v6629
    %v6632 = vrot.slane %v6496, 4
    %v6633 = vsel %vm3592, %v6632, %v6631
    %v6634 = vrot.slane %v6497, 3
    %v6635 = vsel %vm3594, %v6634, %v6633
    %v6636 = vrot.slane %v6498, 2
    %v6637 = vsel %vm3596, %v6636, %v6635
    %v6638 = vrot.slane %v6499, 1
    %v6639 = vsel %vm3598, %v6638, %v6637
    %v6640 = vrot.slane %v6501, 7
    %v6641 = vsel %vm3586, %v6640, %v6500
    %v6642 = vrot.slane %v6502, 6
    %v6643 = vsel %vm3588, %v6642, %v6641
    %v6644 = vrot.slane %v6503, 5
    %v6645 = vsel %vm3590, %v6644, %v6643
    %v6646 = vrot.slane %v6504, 4
    %v6647 = vsel %vm3592, %v6646, %v6645
    %v6648 = vrot.slane %v6505, 3
    %v6649 = vsel %vm3594, %v6648, %v6647
    %v6650 = vrot.slane %v6506, 2
    %v6651 = vsel %vm3596, %v6650, %v6649
    %v6652 = vrot.slane %v6507, 1
    %v6653 = vsel %vm3598, %v6652, %v6651
    %v6654 = vrot.slane %v6509, 7
    %v6655 = vsel %vm3586, %v6654, %v6508
    %v6656 = vrot.slane %v6510, 6
    %v6657 = vsel %vm3588, %v6656, %v6655
    %v6658 = vrot.slane %v6511, 5
    %v6659 = vsel %vm3590, %v6658, %v6657
    %v6660 = vrot.slane %v6512, 4
    %v6661 = vsel %vm3592, %v6660, %v6659
    %v6662 = vrot.slane %v6513, 3
    %v6663 = vsel %vm3594, %v6662, %v6661
    %v6664 = vrot.slane %v6514, 2
    %v6665 = vsel %vm3596, %v6664, %v6663
    %v6666 = vrot.slane %v6515, 1
    %v6667 = vsel %vm3598, %v6666, %v6665
    %v6668 = vrot.slane %v6517, 7
    %v6669 = vsel %vm3586, %v6668, %v6516
    %v6670 = vrot.slane %v6518, 6
    %v6671 = vsel %vm3588, %v6670, %v6669
    %v6672 = vrot.slane %v6519, 5
    %v6673 = vsel %vm3590, %v6672, %v6671
    %v6674 = vrot.slane %v6520, 4
    %v6675 = vsel %vm3592, %v6674, %v6673
    %v6676 = vrot.slane %v6521, 3
    %v6677 = vsel %vm3594, %v6676, %v6675
    %v6678 = vrot.slane %v6522, 2
    %v6679 = vsel %vm3596, %v6678, %v6677
    %v6680 = vrot.slane %v6523, 1
    %v6681 = vsel %vm3598, %v6680, %v6679
    %v6682 = vrot.slane %v6525, 7
    %v6683 = vsel %vm3586, %v6682, %v6524
    %v6684 = vrot.slane %v6526, 6
    %v6685 = vsel %vm3588, %v6684, %v6683
    %v6686 = vrot.slane %v6527, 5
    %v6687 = vsel %vm3590, %v6686, %v6685
    %v6688 = vrot.slane %v6528, 4
    %v6689 = vsel %vm3592, %v6688, %v6687
    %v6690 = vrot.slane %v6529, 3
    %v6691 = vsel %vm3594, %v6690, %v6689
    %v6692 = vrot.slane %v6530, 2
    %v6693 = vsel %vm3596, %v6692, %v6691
    %v6694 = vrot.slane %v6531, 1
    %v6695 = vsel %vm3598, %v6694, %v6693
    %v6696 = vrot.slane %v6533, 7
    %v6697 = vsel %vm3586, %v6696, %v6532
    %v6698 = vrot.slane %v6534, 6
    %v6699 = vsel %vm3588, %v6698, %v6697
    %v6700 = vrot.slane %v6535, 5
    %v6701 = vsel %vm3590, %v6700, %v6699
    %v6702 = vrot.slane %v6536, 4
    %v6703 = vsel %vm3592, %v6702, %v6701
    %v6704 = vrot.slane %v6537, 3
    %v6705 = vsel %vm3594, %v6704, %v6703
    %v6706 = vrot.slane %v6538, 2
    %v6707 = vsel %vm3596, %v6706, %v6705
    %v6708 = vrot.slane %v6539, 1
    %v6709 = vsel %vm3598, %v6708, %v6707
    %v6710 = vrot.slane %v6541, 7
    %v6711 = vsel %vm3586, %v6710, %v6540
    %v6712 = vrot.slane %v6542, 6
    %v6713 = vsel %vm3588, %v6712, %v6711
    %v6714 = vrot.slane %v6543, 5
    %v6715 = vsel %vm3590, %v6714, %v6713
    %v6716 = vrot.slane %v6544, 4
    %v6717 = vsel %vm3592, %v6716, %v6715
    %v6718 = vrot.slane %v6545, 3
    %v6719 = vsel %vm3594, %v6718, %v6717
    %v6720 = vrot.slane %v6546, 2
    %v6721 = vsel %vm3596, %v6720, %v6719
    %v6722 = vrot.slane %v6547, 1
    %v6723 = vsel %vm3598, %v6722, %v6721
    %v6724 = vrot.slane %v6549, 7
    %v6725 = vsel %vm3586, %v6724, %v6548
    %v6726 = vrot.slane %v6550, 6
    %v6727 = vsel %vm3588, %v6726, %v6725
    %v6728 = vrot.slane %v6551, 5
    %v6729 = vsel %vm3590, %v6728, %v6727
    %v6730 = vrot.slane %v6552, 4
    %v6731 = vsel %vm3592, %v6730, %v6729
    %v6732 = vrot.slane %v6553, 3
    %v6733 = vsel %vm3594, %v6732, %v6731
    %v6734 = vrot.slane %v6554, 2
    %v6735 = vsel %vm3596, %v6734, %v6733
    %v6736 = vrot.slane %v6555, 1
    %v6737 = vsel %vm3598, %v6736, %v6735
    %v6738 = vrot.slane %v6557, 7
    %v6739 = vsel %vm3586, %v6738, %v6556
    %v6740 = vrot.slane %v6558, 6
    %v6741 = vsel %vm3588, %v6740, %v6739
    %v6742 = vrot.slane %v6559, 5
    %v6743 = vsel %vm3590, %v6742, %v6741
    %v6744 = vrot.slane %v6560, 4
    %v6745 = vsel %vm3592, %v6744, %v6743
    %v6746 = vrot.slane %v6561, 3
    %v6747 = vsel %vm3594, %v6746, %v6745
    %v6748 = vrot.slane %v6562, 2
    %v6749 = vsel %vm3596, %v6748, %v6747
    %v6750 = vrot.slane %v6563, 1
    %v6751 = vsel %vm3598, %v6750, %v6749
    %v6752 = vrot.slane %v6565, 7
    %v6753 = vsel %vm3586, %v6752, %v6564
    %v6754 = vrot.slane %v6566, 6
    %v6755 = vsel %vm3588, %v6754, %v6753
    %v6756 = vrot.slane %v6567, 5
    %v6757 = vsel %vm3590, %v6756, %v6755
    %v6758 = vrot.slane %v6568, 4
    %v6759 = vsel %vm3592, %v6758, %v6757
    %v6760 = vrot.slane %v6569, 3
    %v6761 = vsel %vm3594, %v6760, %v6759
    %v6762 = vrot.slane %v6570, 2
    %v6763 = vsel %vm3596, %v6762, %v6761
    %v6764 = vrot.slane %v6571, 1
    %v6765 = vsel %vm3598, %v6764, %v6763
    %v6766 = vrot.slane %v6573, 7
    %v6767 = vsel %vm3586, %v6766, %v6572
    %v6768 = vrot.slane %v6574, 6
    %v6769 = vsel %vm3588, %v6768, %v6767
    %v6770 = vrot.slane %v6575, 5
    %v6771 = vsel %vm3590, %v6770, %v6769
    %v6772 = vrot.slane %v6576, 4
    %v6773 = vsel %vm3592, %v6772, %v6771
    %v6774 = vrot.slane %v6577, 3
    %v6775 = vsel %vm3594, %v6774, %v6773
    %v6776 = vrot.slane %v6578, 2
    %v6777 = vsel %vm3596, %v6776, %v6775
    %v6778 = vrot.slane %v6579, 1
    %v6779 = vsel %vm3598, %v6778, %v6777
    %v6780 = vrot.slane %v6581, 7
    %v6781 = vsel %vm3586, %v6780, %v6580
    %v6782 = vrot.slane %v6582, 6
    %v6783 = vsel %vm3588, %v6782, %v6781
    %v6784 = vrot.slane %v6583, 5
    %v6785 = vsel %vm3590, %v6784, %v6783
    %v6786 = vrot.slane %v6584, 4
    %v6787 = vsel %vm3592, %v6786, %v6785
    %v6788 = vrot.slane %v6585, 3
    %v6789 = vsel %vm3594, %v6788, %v6787
    %v6790 = vrot.slane %v6586, 2
    %v6791 = vsel %vm3596, %v6790, %v6789
    %v6792 = vrot.slane %v6587, 1
    %v6793 = vsel %vm3598, %v6792, %v6791
    %v6794 = vrot.slane %v6589, 7
    %v6795 = vsel %vm3586, %v6794, %v6588
    %v6796 = vrot.slane %v6590, 6
    %v6797 = vsel %vm3588, %v6796, %v6795
    %v6798 = vrot.slane %v6591, 5
    %v6799 = vsel %vm3590, %v6798, %v6797
    %v6800 = vrot.slane %v6592, 4
    %v6801 = vsel %vm3592, %v6800, %v6799
    %v6802 = vrot.slane %v6593, 3
    %v6803 = vsel %vm3594, %v6802, %v6801
    %v6804 = vrot.slane %v6594, 2
    %v6805 = vsel %vm3596, %v6804, %v6803
    %v6806 = vrot.slane %v6595, 1
    %v6807 = vsel %vm3598, %v6806, %v6805
    %v6808 = vrot.slane %v6597, 7
    %v6809 = vsel %vm3586, %v6808, %v6596
    %v6810 = vrot.slane %v6598, 6
    %v6811 = vsel %vm3588, %v6810, %v6809
    %v6812 = vrot.slane %v6599, 5
    %v6813 = vsel %vm3590, %v6812, %v6811
    %v6814 = vrot.slane %v6600, 4
    %v6815 = vsel %vm3592, %v6814, %v6813
    %v6816 = vrot.slane %v6601, 3
    %v6817 = vsel %vm3594, %v6816, %v6815
    %v6818 = vrot.slane %v6602, 2
    %v6819 = vsel %vm3596, %v6818, %v6817
    %v6820 = vrot.slane %v6603, 1
    %v6821 = vsel %vm3598, %v6820, %v6819
    %v6822 = vrot.slane %v6605, 7
    %v6823 = vsel %vm3586, %v6822, %v6604
    %v6824 = vrot.slane %v6606, 6
    %v6825 = vsel %vm3588, %v6824, %v6823
    %v6826 = vrot.slane %v6607, 5
    %v6827 = vsel %vm3590, %v6826, %v6825
    %v6828 = vrot.slane %v6608, 4
    %v6829 = vsel %vm3592, %v6828, %v6827
    %v6830 = vrot.slane %v6609, 3
    %v6831 = vsel %vm3594, %v6830, %v6829
    %v6832 = vrot.slane %v6610, 2
    %v6833 = vsel %vm3596, %v6832, %v6831
    %v6834 = vrot.slane %v6611, 1
    %v6835 = vsel %vm3598, %v6834, %v6833
    %v6836 = vpack.c.b16 %v6625, %v6625
    %v6837 = vpack.c.b16 %v6639, %v6639
    %v6838 = vpack.c.b16 %v6653, %v6653
    %v6839 = vpack.c.b16 %v6667, %v6667
    %v6840 = vpack.c.b16 %v6681, %v6681
    %v6841 = vpack.c.b16 %v6695, %v6695
    %v6842 = vpack.c.b16 %v6709, %v6709
    %v6843 = vpack.c.b16 %v6723, %v6723
    %v6844 = vpack.c.b16 %v6737, %v6737
    %v6845 = vpack.c.b16 %v6751, %v6751
    %v6846 = vpack.c.b16 %v6765, %v6765
    %v6847 = vpack.c.b16 %v6779, %v6779
    %v6848 = vpack.c.b16 %v6793, %v6793
    %v6849 = vpack.c.b16 %v6807, %v6807
    %v6850 = vpack.c.b16 %v6821, %v6821
    %v6851 = vpack.c.b16 %v6835, %v6835
    %v6868 = vunpack.c.l.b16 %v5820
    %v6869 = vunpack.c.l.b16 %v5832
    %v6870 = vunpack.c.l.b16 %v5844
    %v6871 = vunpack.c.l.b16 %v5856
    %v6872 = vunpack.c.l.b16 %v5868
    %v6873 = vunpack.c.l.b16 %v5880
    %v6874 = vunpack.c.l.b16 %v5892
    %v6875 = vunpack.c.l.b16 %v5904
    %v6876 = vunpack.c.l.b16 %v5964
    %v6877 = vunpack.c.l.b16 %v5976
    %v6878 = vunpack.c.l.b16 %v5988
    %v6879 = vunpack.c.l.b16 %v6000
    %v6880 = vunpack.c.l.b16 %v6012
    %v6881 = vunpack.c.l.b16 %v6024
    %v6882 = vunpack.c.l.b16 %v6036
    %v6883 = vunpack.c.l.b16 %v6048
    %v6884 = vpack.c.b16 %v6868, %v6868
    %v6885 = vpack.c.b16 %v6869, %v6869
    %v6886 = vpack.c.b16 %v6870, %v6870
    %v6887 = vpack.c.b16 %v6871, %v6871
    %v6888 = vpack.c.b16 %v6872, %v6872
    %v6889 = vpack.c.b16 %v6873, %v6873
    %v6890 = vpack.c.b16 %v6874, %v6874
    %v6891 = vpack.c.b16 %v6875, %v6875
    %v6892 = vpack.c.b16 %v6876, %v6876
    %v6893 = vpack.c.b16 %v6877, %v6877
    %v6894 = vpack.c.b16 %v6878, %v6878
    %v6895 = vpack.c.b16 %v6879, %v6879
    %v6896 = vpack.c.b16 %v6880, %v6880
    %v6897 = vpack.c.b16 %v6881, %v6881
    %v6898 = vpack.c.b16 %v6882, %v6882
    %v6899 = vpack.c.b16 %v6883, %v6883
    %v6900 = vunpack.c.l.b16 %v6884
    %v6901 = vunpack.c.l.b16 %v6885
    %v6902 = vunpack.c.l.b16 %v6886
    %v6903 = vunpack.c.l.b16 %v6887
    %v6904 = vunpack.c.l.b16 %v6888
    %v6905 = vunpack.c.l.b16 %v6889
    %v6906 = vunpack.c.l.b16 %v6890
    %v6907 = vunpack.c.l.b16 %v6891
    %v6908 = vunpack.c.l.b16 %v6892
    %v6909 = vunpack.c.l.b16 %v6893
    %v6910 = vunpack.c.l.b16 %v6894
    %v6911 = vunpack.c.l.b16 %v6895
    %v6912 = vunpack.c.l.b16 %v6896
    %v6913 = vunpack.c.l.b16 %v6897
    %v6914 = vunpack.c.l.b16 %v6898
    %v6915 = vunpack.c.l.b16 %v6899
    %v6916 = vrot.slane %v6486, 7
    %v6917 = vsel %vm3586, %v6916, %v6485
    %v6918 = vrot.slane %v6487, 6
    %v6919 = vsel %vm3588, %v6918, %v6917
    %v6920 = vrot.slane %v6488, 5
    %v6921 = vsel %vm3590, %v6920, %v6919
    %v6922 = vrot.slane %v6489, 4
    %v6923 = vsel %vm3592, %v6922, %v6921
    %v6924 = vrot.slane %v6490, 3
    %v6925 = vsel %vm3594, %v6924, %v6923
    %v6926 = vrot.slane %v6491, 2
    %v6927 = vsel %vm3596, %v6926, %v6925
    %v6928 = vrot.slane %v6900, 1
    %v6929 = vsel %vm3598, %v6928, %v6927
    %v6930 = vrot.slane %v6494, 7
    %v6931 = vsel %vm3586, %v6930, %v6493
    %v6932 = vrot.slane %v6495, 6
    %v6933 = vsel %vm3588, %v6932, %v6931
    %v6934 = vrot.slane %v6496, 5
    %v6935 = vsel %vm3590, %v6934, %v6933
    %v6936 = vrot.slane %v6497, 4
    %v6937 = vsel %vm3592, %v6936, %v6935
    %v6938 = vrot.slane %v6498, 3
    %v6939 = vsel %vm3594, %v6938, %v6937
    %v6940 = vrot.slane %v6499, 2
    %v6941 = vsel %vm3596, %v6940, %v6939
    %v6942 = vrot.slane %v6901, 1
    %v6943 = vsel %vm3598, %v6942, %v6941
    %v6944 = vrot.slane %v6502, 7
    %v6945 = vsel %vm3586, %v6944, %v6501
    %v6946 = vrot.slane %v6503, 6
    %v6947 = vsel %vm3588, %v6946, %v6945
    %v6948 = vrot.slane %v6504, 5
    %v6949 = vsel %vm3590, %v6948, %v6947
    %v6950 = vrot.slane %v6505, 4
    %v6951 = vsel %vm3592, %v6950, %v6949
    %v6952 = vrot.slane %v6506, 3
    %v6953 = vsel %vm3594, %v6952, %v6951
    %v6954 = vrot.slane %v6507, 2
    %v6955 = vsel %vm3596, %v6954, %v6953
    %v6956 = vrot.slane %v6902, 1
    %v6957 = vsel %vm3598, %v6956, %v6955
    %v6958 = vrot.slane %v6510, 7
    %v6959 = vsel %vm3586, %v6958, %v6509
    %v6960 = vrot.slane %v6511, 6
    %v6961 = vsel %vm3588, %v6960, %v6959
    %v6962 = vrot.slane %v6512, 5
    %v6963 = vsel %vm3590, %v6962, %v6961
    %v6964 = vrot.slane %v6513, 4
    %v6965 = vsel %vm3592, %v6964, %v6963
    %v6966 = vrot.slane %v6514, 3
    %v6967 = vsel %vm3594, %v6966, %v6965
    %v6968 = vrot.slane %v6515, 2
    %v6969 = vsel %vm3596, %v6968, %v6967
    %v6970 = vrot.slane %v6903, 1
    %v6971 = vsel %vm3598, %v6970, %v6969
    %v6972 = vrot.slane %v6518, 7
    %v6973 = vsel %vm3586, %v6972, %v6517
    %v6974 = vrot.slane %v6519, 6
    %v6975 = vsel %vm3588, %v6974, %v6973
    %v6976 = vrot.slane %v6520, 5
    %v6977 = vsel %vm3590, %v6976, %v6975
    %v6978 = vrot.slane %v6521, 4
    %v6979 = vsel %vm3592, %v6978, %v6977
    %v6980 = vrot.slane %v6522, 3
    %v6981 = vsel %vm3594, %v6980, %v6979
    %v6982 = vrot.slane %v6523, 2
    %v6983 = vsel %vm3596, %v6982, %v6981
    %v6984 = vrot.slane %v6904, 1
    %v6985 = vsel %vm3598, %v6984, %v6983
    %v6986 = vrot.slane %v6526, 7
    %v6987 = vsel %vm3586, %v6986, %v6525
    %v6988 = vrot.slane %v6527, 6
    %v6989 = vsel %vm3588, %v6988, %v6987
    %v6990 = vrot.slane %v6528, 5
    %v6991 = vsel %vm3590, %v6990, %v6989
    %v6992 = vrot.slane %v6529, 4
    %v6993 = vsel %vm3592, %v6992, %v6991
    %v6994 = vrot.slane %v6530, 3
    %v6995 = vsel %vm3594, %v6994, %v6993
    %v6996 = vrot.slane %v6531, 2
    %v6997 = vsel %vm3596, %v6996, %v6995
    %v6998 = vrot.slane %v6905, 1
    %v6999 = vsel %vm3598, %v6998, %v6997
    %v7000 = vrot.slane %v6534, 7
    %v7001 = vsel %vm3586, %v7000, %v6533
    %v7002 = vrot.slane %v6535, 6
    %v7003 = vsel %vm3588, %v7002, %v7001
    %v7004 = vrot.slane %v6536, 5
    %v7005 = vsel %vm3590, %v7004, %v7003
    %v7006 = vrot.slane %v6537, 4
    %v7007 = vsel %vm3592, %v7006, %v7005
    %v7008 = vrot.slane %v6538, 3
    %v7009 = vsel %vm3594, %v7008, %v7007
    %v7010 = vrot.slane %v6539, 2
    %v7011 = vsel %vm3596, %v7010, %v7009
    %v7012 = vrot.slane %v6906, 1
    %v7013 = vsel %vm3598, %v7012, %v7011
    %v7014 = vrot.slane %v6542, 7
    %v7015 = vsel %vm3586, %v7014, %v6541
    %v7016 = vrot.slane %v6543, 6
    %v7017 = vsel %vm3588, %v7016, %v7015
    %v7018 = vrot.slane %v6544, 5
    %v7019 = vsel %vm3590, %v7018, %v7017
    %v7020 = vrot.slane %v6545, 4
    %v7021 = vsel %vm3592, %v7020, %v7019
    %v7022 = vrot.slane %v6546, 3
    %v7023 = vsel %vm3594, %v7022, %v7021
    %v7024 = vrot.slane %v6547, 2
    %v7025 = vsel %vm3596, %v7024, %v7023
    %v7026 = vrot.slane %v6907, 1
    %v7027 = vsel %vm3598, %v7026, %v7025
    %v7028 = vrot.slane %v6550, 7
    %v7029 = vsel %vm3586, %v7028, %v6549
    %v7030 = vrot.slane %v6551, 6
    %v7031 = vsel %vm3588, %v7030, %v7029
    %v7032 = vrot.slane %v6552, 5
    %v7033 = vsel %vm3590, %v7032, %v7031
    %v7034 = vrot.slane %v6553, 4
    %v7035 = vsel %vm3592, %v7034, %v7033
    %v7036 = vrot.slane %v6554, 3
    %v7037 = vsel %vm3594, %v7036, %v7035
    %v7038 = vrot.slane %v6555, 2
    %v7039 = vsel %vm3596, %v7038, %v7037
    %v7040 = vrot.slane %v6908, 1
    %v7041 = vsel %vm3598, %v7040, %v7039
    %v7042 = vrot.slane %v6558, 7
    %v7043 = vsel %vm3586, %v7042, %v6557
    %v7044 = vrot.slane %v6559, 6
    %v7045 = vsel %vm3588, %v7044, %v7043
    %v7046 = vrot.slane %v6560, 5
    %v7047 = vsel %vm3590, %v7046, %v7045
    %v7048 = vrot.slane %v6561, 4
    %v7049 = vsel %vm3592, %v7048, %v7047
    %v7050 = vrot.slane %v6562, 3
    %v7051 = vsel %vm3594, %v7050, %v7049
    %v7052 = vrot.slane %v6563, 2
    %v7053 = vsel %vm3596, %v7052, %v7051
    %v7054 = vrot.slane %v6909, 1
    %v7055 = vsel %vm3598, %v7054, %v7053
    %v7056 = vrot.slane %v6566, 7
    %v7057 = vsel %vm3586, %v7056, %v6565
    %v7058 = vrot.slane %v6567, 6
    %v7059 = vsel %vm3588, %v7058, %v7057
    %v7060 = vrot.slane %v6568, 5
    %v7061 = vsel %vm3590, %v7060, %v7059
    %v7062 = vrot.slane %v6569, 4
    %v7063 = vsel %vm3592, %v7062, %v7061
    %v7064 = vrot.slane %v6570, 3
    %v7065 = vsel %vm3594, %v7064, %v7063
    %v7066 = vrot.slane %v6571, 2
    %v7067 = vsel %vm3596, %v7066, %v7065
    %v7068 = vrot.slane %v6910, 1
    %v7069 = vsel %vm3598, %v7068, %v7067
    %v7070 = vrot.slane %v6574, 7
    %v7071 = vsel %vm3586, %v7070, %v6573
    %v7072 = vrot.slane %v6575, 6
    %v7073 = vsel %vm3588, %v7072, %v7071
    %v7074 = vrot.slane %v6576, 5
    %v7075 = vsel %vm3590, %v7074, %v7073
    %v7076 = vrot.slane %v6577, 4
    %v7077 = vsel %vm3592, %v7076, %v7075
    %v7078 = vrot.slane %v6578, 3
    %v7079 = vsel %vm3594, %v7078, %v7077
    %v7080 = vrot.slane %v6579, 2
    %v7081 = vsel %vm3596, %v7080, %v7079
    %v7082 = vrot.slane %v6911, 1
    %v7083 = vsel %vm3598, %v7082, %v7081
    %v7084 = vrot.slane %v6582, 7
    %v7085 = vsel %vm3586, %v7084, %v6581
    %v7086 = vrot.slane %v6583, 6
    %v7087 = vsel %vm3588, %v7086, %v7085
    %v7088 = vrot.slane %v6584, 5
    %v7089 = vsel %vm3590, %v7088, %v7087
    %v7090 = vrot.slane %v6585, 4
    %v7091 = vsel %vm3592, %v7090, %v7089
    %v7092 = vrot.slane %v6586, 3
    %v7093 = vsel %vm3594, %v7092, %v7091
    %v7094 = vrot.slane %v6587, 2
    %v7095 = vsel %vm3596, %v7094, %v7093
    %v7096 = vrot.slane %v6912, 1
    %v7097 = vsel %vm3598, %v7096, %v7095
    %v7098 = vrot.slane %v6590, 7
    %v7099 = vsel %vm3586, %v7098, %v6589
    %v7100 = vrot.slane %v6591, 6
    %v7101 = vsel %vm3588, %v7100, %v7099
    %v7102 = vrot.slane %v6592, 5
    %v7103 = vsel %vm3590, %v7102, %v7101
    %v7104 = vrot.slane %v6593, 4
    %v7105 = vsel %vm3592, %v7104, %v7103
    %v7106 = vrot.slane %v6594, 3
    %v7107 = vsel %vm3594, %v7106, %v7105
    %v7108 = vrot.slane %v6595, 2
    %v7109 = vsel %vm3596, %v7108, %v7107
    %v7110 = vrot.slane %v6913, 1
    %v7111 = vsel %vm3598, %v7110, %v7109
    %v7112 = vrot.slane %v6598, 7
    %v7113 = vsel %vm3586, %v7112, %v6597
    %v7114 = vrot.slane %v6599, 6
    %v7115 = vsel %vm3588, %v7114, %v7113
    %v7116 = vrot.slane %v6600, 5
    %v7117 = vsel %vm3590, %v7116, %v7115
    %v7118 = vrot.slane %v6601, 4
    %v7119 = vsel %vm3592, %v7118, %v7117
    %v7120 = vrot.slane %v6602, 3
    %v7121 = vsel %vm3594, %v7120, %v7119
    %v7122 = vrot.slane %v6603, 2
    %v7123 = vsel %vm3596, %v7122, %v7121
    %v7124 = vrot.slane %v6914, 1
    %v7125 = vsel %vm3598, %v7124, %v7123
    %v7126 = vrot.slane %v6606, 7
    %v7127 = vsel %vm3586, %v7126, %v6605
    %v7128 = vrot.slane %v6607, 6
    %v7129 = vsel %vm3588, %v7128, %v7127
    %v7130 = vrot.slane %v6608, 5
    %v7131 = vsel %vm3590, %v7130, %v7129
    %v7132 = vrot.slane %v6609, 4
    %v7133 = vsel %vm3592, %v7132, %v7131
    %v7134 = vrot.slane %v6610, 3
    %v7135 = vsel %vm3594, %v7134, %v7133
    %v7136 = vrot.slane %v6611, 2
    %v7137 = vsel %vm3596, %v7136, %v7135
    %v7138 = vrot.slane %v6915, 1
    %v7139 = vsel %vm3598, %v7138, %v7137
    %v7140 = vpack.c.b16 %v6929, %v6929
    %v7141 = vpack.c.b16 %v6943, %v6943
    %v7142 = vpack.c.b16 %v6957, %v6957
    %v7143 = vpack.c.b16 %v6971, %v6971
    %v7144 = vpack.c.b16 %v6985, %v6985
    %v7145 = vpack.c.b16 %v6999, %v6999
    %v7146 = vpack.c.b16 %v7013, %v7013
    %v7147 = vpack.c.b16 %v7027, %v7027
    %v7148 = vpack.c.b16 %v7041, %v7041
    %v7149 = vpack.c.b16 %v7055, %v7055
    %v7150 = vpack.c.b16 %v7069, %v7069
    %v7151 = vpack.c.b16 %v7083, %v7083
    %v7152 = vpack.c.b16 %v7097, %v7097
    %v7153 = vpack.c.b16 %v7111, %v7111
    %v7154 = vpack.c.b16 %v7125, %v7125
    %v7155 = vpack.c.b16 %v7139, %v7139
    %7156 = vrot.lane.b32.xlu0 %v7140, 32
    %v7157 = vpop.permute.xlu0 %7156
    %7158 = vrot.lane.b32.xlu0 %v7141, 32
    %v7159 = vpop.permute.xlu0 %7158
    %7160 = vrot.lane.b32.xlu0 %v7142, 32
    %v7161 = vpop.permute.xlu0 %7160
    %7162 = vrot.lane.b32.xlu0 %v7143, 32
    %v7163 = vpop.permute.xlu0 %7162
    %7164 = vrot.lane.b32.xlu0 %v7144, 32
    %v7165 = vpop.permute.xlu0 %7164
    %7166 = vrot.lane.b32.xlu0 %v7145, 32
    %v7167 = vpop.permute.xlu0 %7166
    %7168 = vrot.lane.b32.xlu0 %v7146, 32
    %v7169 = vpop.permute.xlu0 %7168
    %7170 = vrot.lane.b32.xlu0 %v7147, 32
    %v7171 = vpop.permute.xlu0 %7170
    %7172 = vrot.lane.b32.xlu0 %v7148, 32
    %v7173 = vpop.permute.xlu0 %7172
    %7174 = vrot.lane.b32.xlu0 %v7149, 32
    %v7175 = vpop.permute.xlu0 %7174
    %7176 = vrot.lane.b32.xlu0 %v7150, 32
    %v7177 = vpop.permute.xlu0 %7176
    %7178 = vrot.lane.b32.xlu0 %v7151, 32
    %v7179 = vpop.permute.xlu0 %7178
    %7180 = vrot.lane.b32.xlu0 %v7152, 32
    %v7181 = vpop.permute.xlu0 %7180
    %7182 = vrot.lane.b32.xlu0 %v7153, 32
    %v7183 = vpop.permute.xlu0 %7182
    %7184 = vrot.lane.b32.xlu0 %v7154, 32
    %v7185 = vpop.permute.xlu0 %7184
    %7186 = vrot.lane.b32.xlu0 %v7155, 32
    %v7187 = vpop.permute.xlu0 %7186
    %v7204 = vunpack.c.l.b16 %v5821
    %v7205 = vunpack.c.l.b16 %v5833
    %v7206 = vunpack.c.l.b16 %v5845
    %v7207 = vunpack.c.l.b16 %v5857
    %v7208 = vunpack.c.l.b16 %v5869
    %v7209 = vunpack.c.l.b16 %v5881
    %v7210 = vunpack.c.l.b16 %v5893
    %v7211 = vunpack.c.l.b16 %v5905
    %v7212 = vunpack.c.l.b16 %v5965
    %v7213 = vunpack.c.l.b16 %v5977
    %v7214 = vunpack.c.l.b16 %v5989
    %v7215 = vunpack.c.l.b16 %v6001
    %v7216 = vunpack.c.l.b16 %v6013
    %v7217 = vunpack.c.l.b16 %v6025
    %v7218 = vunpack.c.l.b16 %v6037
    %v7219 = vunpack.c.l.b16 %v6049
    %v7220 = vpack.c.b16 %v7204, %v7204
    %v7221 = vpack.c.b16 %v7205, %v7205
    %v7222 = vpack.c.b16 %v7206, %v7206
    %v7223 = vpack.c.b16 %v7207, %v7207
    %v7224 = vpack.c.b16 %v7208, %v7208
    %v7225 = vpack.c.b16 %v7209, %v7209
    %v7226 = vpack.c.b16 %v7210, %v7210
    %v7227 = vpack.c.b16 %v7211, %v7211
    %v7228 = vpack.c.b16 %v7212, %v7212
    %v7229 = vpack.c.b16 %v7213, %v7213
    %v7230 = vpack.c.b16 %v7214, %v7214
    %v7231 = vpack.c.b16 %v7215, %v7215
    %v7232 = vpack.c.b16 %v7216, %v7216
    %v7233 = vpack.c.b16 %v7217, %v7217
    %v7234 = vpack.c.b16 %v7218, %v7218
    %v7235 = vpack.c.b16 %v7219, %v7219
    %v7236 = vunpack.c.l.b16 %v7220
    %v7237 = vunpack.c.l.b16 %v7221
    %v7238 = vunpack.c.l.b16 %v7222
    %v7239 = vunpack.c.l.b16 %v7223
    %v7240 = vunpack.c.l.b16 %v7224
    %v7241 = vunpack.c.l.b16 %v7225
    %v7242 = vunpack.c.l.b16 %v7226
    %v7243 = vunpack.c.l.b16 %v7227
    %v7244 = vunpack.c.l.b16 %v7228
    %v7245 = vunpack.c.l.b16 %v7229
    %v7246 = vunpack.c.l.b16 %v7230
    %v7247 = vunpack.c.l.b16 %v7231
    %v7248 = vunpack.c.l.b16 %v7232
    %v7249 = vunpack.c.l.b16 %v7233
    %v7250 = vunpack.c.l.b16 %v7234
    %v7251 = vunpack.c.l.b16 %v7235
    %v7252 = vrot.slane %v6487, 7
    %v7253 = vsel %vm3586, %v7252, %v6486
    %v7254 = vrot.slane %v6488, 6
    %v7255 = vsel %vm3588, %v7254, %v7253
    %v7256 = vrot.slane %v6489, 5
    %v7257 = vsel %vm3590, %v7256, %v7255
    %v7258 = vrot.slane %v6490, 4
    %v7259 = vsel %vm3592, %v7258, %v7257
    %v7260 = vrot.slane %v6491, 3
    %v7261 = vsel %vm3594, %v7260, %v7259
    %v7262 = vrot.slane %v6900, 2
    %v7263 = vsel %vm3596, %v7262, %v7261
    %v7264 = vrot.slane %v7236, 1
    %v7265 = vsel %vm3598, %v7264, %v7263
    %v7266 = vrot.slane %v6495, 7
    %v7267 = vsel %vm3586, %v7266, %v6494
    %v7268 = vrot.slane %v6496, 6
    %v7269 = vsel %vm3588, %v7268, %v7267
    %v7270 = vrot.slane %v6497, 5
    %v7271 = vsel %vm3590, %v7270, %v7269
    %v7272 = vrot.slane %v6498, 4
    %v7273 = vsel %vm3592, %v7272, %v7271
    %v7274 = vrot.slane %v6499, 3
    %v7275 = vsel %vm3594, %v7274, %v7273
    %v7276 = vrot.slane %v6901, 2
    %v7277 = vsel %vm3596, %v7276, %v7275
    %v7278 = vrot.slane %v7237, 1
    %v7279 = vsel %vm3598, %v7278, %v7277
    %v7280 = vrot.slane %v6503, 7
    %v7281 = vsel %vm3586, %v7280, %v6502
    %v7282 = vrot.slane %v6504, 6
    %v7283 = vsel %vm3588, %v7282, %v7281
    %v7284 = vrot.slane %v6505, 5
    %v7285 = vsel %vm3590, %v7284, %v7283
    %v7286 = vrot.slane %v6506, 4
    %v7287 = vsel %vm3592, %v7286, %v7285
    %v7288 = vrot.slane %v6507, 3
    %v7289 = vsel %vm3594, %v7288, %v7287
    %v7290 = vrot.slane %v6902, 2
    %v7291 = vsel %vm3596, %v7290, %v7289
    %v7292 = vrot.slane %v7238, 1
    %v7293 = vsel %vm3598, %v7292, %v7291
    %v7294 = vrot.slane %v6511, 7
    %v7295 = vsel %vm3586, %v7294, %v6510
    %v7296 = vrot.slane %v6512, 6
    %v7297 = vsel %vm3588, %v7296, %v7295
    %v7298 = vrot.slane %v6513, 5
    %v7299 = vsel %vm3590, %v7298, %v7297
    %v7300 = vrot.slane %v6514, 4
    %v7301 = vsel %vm3592, %v7300, %v7299
    %v7302 = vrot.slane %v6515, 3
    %v7303 = vsel %vm3594, %v7302, %v7301
    %v7304 = vrot.slane %v6903, 2
    %v7305 = vsel %vm3596, %v7304, %v7303
    %v7306 = vrot.slane %v7239, 1
    %v7307 = vsel %vm3598, %v7306, %v7305
    %v7308 = vrot.slane %v6519, 7
    %v7309 = vsel %vm3586, %v7308, %v6518
    %v7310 = vrot.slane %v6520, 6
    %v7311 = vsel %vm3588, %v7310, %v7309
    %v7312 = vrot.slane %v6521, 5
    %v7313 = vsel %vm3590, %v7312, %v7311
    %v7314 = vrot.slane %v6522, 4
    %v7315 = vsel %vm3592, %v7314, %v7313
    %v7316 = vrot.slane %v6523, 3
    %v7317 = vsel %vm3594, %v7316, %v7315
    %v7318 = vrot.slane %v6904, 2
    %v7319 = vsel %vm3596, %v7318, %v7317
    %v7320 = vrot.slane %v7240, 1
    %v7321 = vsel %vm3598, %v7320, %v7319
    %v7322 = vrot.slane %v6527, 7
    %v7323 = vsel %vm3586, %v7322, %v6526
    %v7324 = vrot.slane %v6528, 6
    %v7325 = vsel %vm3588, %v7324, %v7323
    %v7326 = vrot.slane %v6529, 5
    %v7327 = vsel %vm3590, %v7326, %v7325
    %v7328 = vrot.slane %v6530, 4
    %v7329 = vsel %vm3592, %v7328, %v7327
    %v7330 = vrot.slane %v6531, 3
    %v7331 = vsel %vm3594, %v7330, %v7329
    %v7332 = vrot.slane %v6905, 2
    %v7333 = vsel %vm3596, %v7332, %v7331
    %v7334 = vrot.slane %v7241, 1
    %v7335 = vsel %vm3598, %v7334, %v7333
    %v7336 = vrot.slane %v6535, 7
    %v7337 = vsel %vm3586, %v7336, %v6534
    %v7338 = vrot.slane %v6536, 6
    %v7339 = vsel %vm3588, %v7338, %v7337
    %v7340 = vrot.slane %v6537, 5
    %v7341 = vsel %vm3590, %v7340, %v7339
    %v7342 = vrot.slane %v6538, 4
    %v7343 = vsel %vm3592, %v7342, %v7341
    %v7344 = vrot.slane %v6539, 3
    %v7345 = vsel %vm3594, %v7344, %v7343
    %v7346 = vrot.slane %v6906, 2
    %v7347 = vsel %vm3596, %v7346, %v7345
    %v7348 = vrot.slane %v7242, 1
    %v7349 = vsel %vm3598, %v7348, %v7347
    %v7350 = vrot.slane %v6543, 7
    %v7351 = vsel %vm3586, %v7350, %v6542
    %v7352 = vrot.slane %v6544, 6
    %v7353 = vsel %vm3588, %v7352, %v7351
    %v7354 = vrot.slane %v6545, 5
    %v7355 = vsel %vm3590, %v7354, %v7353
    %v7356 = vrot.slane %v6546, 4
    %v7357 = vsel %vm3592, %v7356, %v7355
    %v7358 = vrot.slane %v6547, 3
    %v7359 = vsel %vm3594, %v7358, %v7357
    %v7360 = vrot.slane %v6907, 2
    %v7361 = vsel %vm3596, %v7360, %v7359
    %v7362 = vrot.slane %v7243, 1
    %v7363 = vsel %vm3598, %v7362, %v7361
    %v7364 = vrot.slane %v6551, 7
    %v7365 = vsel %vm3586, %v7364, %v6550
    %v7366 = vrot.slane %v6552, 6
    %v7367 = vsel %vm3588, %v7366, %v7365
    %v7368 = vrot.slane %v6553, 5
    %v7369 = vsel %vm3590, %v7368, %v7367
    %v7370 = vrot.slane %v6554, 4
    %v7371 = vsel %vm3592, %v7370, %v7369
    %v7372 = vrot.slane %v6555, 3
    %v7373 = vsel %vm3594, %v7372, %v7371
    %v7374 = vrot.slane %v6908, 2
    %v7375 = vsel %vm3596, %v7374, %v7373
    %v7376 = vrot.slane %v7244, 1
    %v7377 = vsel %vm3598, %v7376, %v7375
    %v7378 = vrot.slane %v6559, 7
    %v7379 = vsel %vm3586, %v7378, %v6558
    %v7380 = vrot.slane %v6560, 6
    %v7381 = vsel %vm3588, %v7380, %v7379
    %v7382 = vrot.slane %v6561, 5
    %v7383 = vsel %vm3590, %v7382, %v7381
    %v7384 = vrot.slane %v6562, 4
    %v7385 = vsel %vm3592, %v7384, %v7383
    %v7386 = vrot.slane %v6563, 3
    %v7387 = vsel %vm3594, %v7386, %v7385
    %v7388 = vrot.slane %v6909, 2
    %v7389 = vsel %vm3596, %v7388, %v7387
    %v7390 = vrot.slane %v7245, 1
    %v7391 = vsel %vm3598, %v7390, %v7389
    %v7392 = vrot.slane %v6567, 7
    %v7393 = vsel %vm3586, %v7392, %v6566
    %v7394 = vrot.slane %v6568, 6
    %v7395 = vsel %vm3588, %v7394, %v7393
    %v7396 = vrot.slane %v6569, 5
    %v7397 = vsel %vm3590, %v7396, %v7395
    %v7398 = vrot.slane %v6570, 4
    %v7399 = vsel %vm3592, %v7398, %v7397
    %v7400 = vrot.slane %v6571, 3
    %v7401 = vsel %vm3594, %v7400, %v7399
    %v7402 = vrot.slane %v6910, 2
    %v7403 = vsel %vm3596, %v7402, %v7401
    %v7404 = vrot.slane %v7246, 1
    %v7405 = vsel %vm3598, %v7404, %v7403
    %v7406 = vrot.slane %v6575, 7
    %v7407 = vsel %vm3586, %v7406, %v6574
    %v7408 = vrot.slane %v6576, 6
    %v7409 = vsel %vm3588, %v7408, %v7407
    %v7410 = vrot.slane %v6577, 5
    %v7411 = vsel %vm3590, %v7410, %v7409
    %v7412 = vrot.slane %v6578, 4
    %v7413 = vsel %vm3592, %v7412, %v7411
    %v7414 = vrot.slane %v6579, 3
    %v7415 = vsel %vm3594, %v7414, %v7413
    %v7416 = vrot.slane %v6911, 2
    %v7417 = vsel %vm3596, %v7416, %v7415
    %v7418 = vrot.slane %v7247, 1
    %v7419 = vsel %vm3598, %v7418, %v7417
    %v7420 = vrot.slane %v6583, 7
    %v7421 = vsel %vm3586, %v7420, %v6582
    %v7422 = vrot.slane %v6584, 6
    %v7423 = vsel %vm3588, %v7422, %v7421
    %v7424 = vrot.slane %v6585, 5
    %v7425 = vsel %vm3590, %v7424, %v7423
    %v7426 = vrot.slane %v6586, 4
    %v7427 = vsel %vm3592, %v7426, %v7425
    %v7428 = vrot.slane %v6587, 3
    %v7429 = vsel %vm3594, %v7428, %v7427
    %v7430 = vrot.slane %v6912, 2
    %v7431 = vsel %vm3596, %v7430, %v7429
    %v7432 = vrot.slane %v7248, 1
    %v7433 = vsel %vm3598, %v7432, %v7431
    %v7434 = vrot.slane %v6591, 7
    %v7435 = vsel %vm3586, %v7434, %v6590
    %v7436 = vrot.slane %v6592, 6
    %v7437 = vsel %vm3588, %v7436, %v7435
    %v7438 = vrot.slane %v6593, 5
    %v7439 = vsel %vm3590, %v7438, %v7437
    %v7440 = vrot.slane %v6594, 4
    %v7441 = vsel %vm3592, %v7440, %v7439
    %v7442 = vrot.slane %v6595, 3
    %v7443 = vsel %vm3594, %v7442, %v7441
    %v7444 = vrot.slane %v6913, 2
    %v7445 = vsel %vm3596, %v7444, %v7443
    %v7446 = vrot.slane %v7249, 1
    %v7447 = vsel %vm3598, %v7446, %v7445
    %v7448 = vrot.slane %v6599, 7
    %v7449 = vsel %vm3586, %v7448, %v6598
    %v7450 = vrot.slane %v6600, 6
    %v7451 = vsel %vm3588, %v7450, %v7449
    %v7452 = vrot.slane %v6601, 5
    %v7453 = vsel %vm3590, %v7452, %v7451
    %v7454 = vrot.slane %v6602, 4
    %v7455 = vsel %vm3592, %v7454, %v7453
    %v7456 = vrot.slane %v6603, 3
    %v7457 = vsel %vm3594, %v7456, %v7455
    %v7458 = vrot.slane %v6914, 2
    %v7459 = vsel %vm3596, %v7458, %v7457
    %v7460 = vrot.slane %v7250, 1
    %v7461 = vsel %vm3598, %v7460, %v7459
    %v7462 = vrot.slane %v6607, 7
    %v7463 = vsel %vm3586, %v7462, %v6606
    %v7464 = vrot.slane %v6608, 6
    %v7465 = vsel %vm3588, %v7464, %v7463
    %v7466 = vrot.slane %v6609, 5
    %v7467 = vsel %vm3590, %v7466, %v7465
    %v7468 = vrot.slane %v6610, 4
    %v7469 = vsel %vm3592, %v7468, %v7467
    %v7470 = vrot.slane %v6611, 3
    %v7471 = vsel %vm3594, %v7470, %v7469
    %v7472 = vrot.slane %v6915, 2
    %v7473 = vsel %vm3596, %v7472, %v7471
    %v7474 = vrot.slane %v7251, 1
    %v7475 = vsel %vm3598, %v7474, %v7473
    %v7476 = vpack.c.b16 %v7265, %v7265
    %v7477 = vpack.c.b16 %v7279, %v7279
    %v7478 = vpack.c.b16 %v7293, %v7293
    %v7479 = vpack.c.b16 %v7307, %v7307
    %v7480 = vpack.c.b16 %v7321, %v7321
    %v7481 = vpack.c.b16 %v7335, %v7335
    %v7482 = vpack.c.b16 %v7349, %v7349
    %v7483 = vpack.c.b16 %v7363, %v7363
    %v7484 = vpack.c.b16 %v7377, %v7377
    %v7485 = vpack.c.b16 %v7391, %v7391
    %v7486 = vpack.c.b16 %v7405, %v7405
    %v7487 = vpack.c.b16 %v7419, %v7419
    %v7488 = vpack.c.b16 %v7433, %v7433
    %v7489 = vpack.c.b16 %v7447, %v7447
    %v7490 = vpack.c.b16 %v7461, %v7461
    %v7491 = vpack.c.b16 %v7475, %v7475
    %7492 = vrot.lane.b32.xlu0 %v7476, 64
    %v7493 = vpop.permute.xlu0 %7492
    %7494 = vrot.lane.b32.xlu0 %v7477, 64
    %v7495 = vpop.permute.xlu0 %7494
    %7496 = vrot.lane.b32.xlu0 %v7478, 64
    %v7497 = vpop.permute.xlu0 %7496
    %7498 = vrot.lane.b32.xlu0 %v7479, 64
    %v7499 = vpop.permute.xlu0 %7498
    %7500 = vrot.lane.b32.xlu0 %v7480, 64
    %v7501 = vpop.permute.xlu0 %7500
    %7502 = vrot.lane.b32.xlu0 %v7481, 64
    %v7503 = vpop.permute.xlu0 %7502
    %7504 = vrot.lane.b32.xlu0 %v7482, 64
    %v7505 = vpop.permute.xlu0 %7504
    %7506 = vrot.lane.b32.xlu0 %v7483, 64
    %v7507 = vpop.permute.xlu0 %7506
    %7508 = vrot.lane.b32.xlu0 %v7484, 64
    %v7509 = vpop.permute.xlu0 %7508
    %7510 = vrot.lane.b32.xlu0 %v7485, 64
    %v7511 = vpop.permute.xlu0 %7510
    %7512 = vrot.lane.b32.xlu0 %v7486, 64
    %v7513 = vpop.permute.xlu0 %7512
    %7514 = vrot.lane.b32.xlu0 %v7487, 64
    %v7515 = vpop.permute.xlu0 %7514
    %7516 = vrot.lane.b32.xlu0 %v7488, 64
    %v7517 = vpop.permute.xlu0 %7516
    %7518 = vrot.lane.b32.xlu0 %v7489, 64
    %v7519 = vpop.permute.xlu0 %7518
    %7520 = vrot.lane.b32.xlu0 %v7490, 64
    %v7521 = vpop.permute.xlu0 %7520
    %7522 = vrot.lane.b32.xlu0 %v7491, 64
    %v7523 = vpop.permute.xlu0 %7522
    %v7540 = vunpack.c.l.b16 %v5822
    %v7541 = vunpack.c.l.b16 %v5834
    %v7542 = vunpack.c.l.b16 %v5846
    %v7543 = vunpack.c.l.b16 %v5858
    %v7544 = vunpack.c.l.b16 %v5870
    %v7545 = vunpack.c.l.b16 %v5882
    %v7546 = vunpack.c.l.b16 %v5894
    %v7547 = vunpack.c.l.b16 %v5906
    %v7548 = vunpack.c.l.b16 %v5966
    %v7549 = vunpack.c.l.b16 %v5978
    %v7550 = vunpack.c.l.b16 %v5990
    %v7551 = vunpack.c.l.b16 %v6002
    %v7552 = vunpack.c.l.b16 %v6014
    %v7553 = vunpack.c.l.b16 %v6026
    %v7554 = vunpack.c.l.b16 %v6038
    %v7555 = vunpack.c.l.b16 %v6050
    %v7556 = vpack.c.b16 %v7540, %v7540
    %v7557 = vpack.c.b16 %v7541, %v7541
    %v7558 = vpack.c.b16 %v7542, %v7542
    %v7559 = vpack.c.b16 %v7543, %v7543
    %v7560 = vpack.c.b16 %v7544, %v7544
    %v7561 = vpack.c.b16 %v7545, %v7545
    %v7562 = vpack.c.b16 %v7546, %v7546
    %v7563 = vpack.c.b16 %v7547, %v7547
    %v7564 = vpack.c.b16 %v7548, %v7548
    %v7565 = vpack.c.b16 %v7549, %v7549
    %v7566 = vpack.c.b16 %v7550, %v7550
    %v7567 = vpack.c.b16 %v7551, %v7551
    %v7568 = vpack.c.b16 %v7552, %v7552
    %v7569 = vpack.c.b16 %v7553, %v7553
    %v7570 = vpack.c.b16 %v7554, %v7554
    %v7571 = vpack.c.b16 %v7555, %v7555
    %v7572 = vunpack.c.l.b16 %v7556
    %v7573 = vunpack.c.l.b16 %v7557
    %v7574 = vunpack.c.l.b16 %v7558
    %v7575 = vunpack.c.l.b16 %v7559
    %v7576 = vunpack.c.l.b16 %v7560
    %v7577 = vunpack.c.l.b16 %v7561
    %v7578 = vunpack.c.l.b16 %v7562
    %v7579 = vunpack.c.l.b16 %v7563
    %v7580 = vunpack.c.l.b16 %v7564
    %v7581 = vunpack.c.l.b16 %v7565
    %v7582 = vunpack.c.l.b16 %v7566
    %v7583 = vunpack.c.l.b16 %v7567
    %v7584 = vunpack.c.l.b16 %v7568
    %v7585 = vunpack.c.l.b16 %v7569
    %v7586 = vunpack.c.l.b16 %v7570
    %v7587 = vunpack.c.l.b16 %v7571
    %v7588 = vrot.slane %v6488, 7
    %v7589 = vsel %vm3586, %v7588, %v6487
    %v7590 = vrot.slane %v6489, 6
    %v7591 = vsel %vm3588, %v7590, %v7589
    %v7592 = vrot.slane %v6490, 5
    %v7593 = vsel %vm3590, %v7592, %v7591
    %v7594 = vrot.slane %v6491, 4
    %v7595 = vsel %vm3592, %v7594, %v7593
    %v7596 = vrot.slane %v6900, 3
    %v7597 = vsel %vm3594, %v7596, %v7595
    %v7598 = vrot.slane %v7236, 2
    %v7599 = vsel %vm3596, %v7598, %v7597
    %v7600 = vrot.slane %v7572, 1
    %v7601 = vsel %vm3598, %v7600, %v7599
    %v7602 = vrot.slane %v6496, 7
    %v7603 = vsel %vm3586, %v7602, %v6495
    %v7604 = vrot.slane %v6497, 6
    %v7605 = vsel %vm3588, %v7604, %v7603
    %v7606 = vrot.slane %v6498, 5
    %v7607 = vsel %vm3590, %v7606, %v7605
    %v7608 = vrot.slane %v6499, 4
    %v7609 = vsel %vm3592, %v7608, %v7607
    %v7610 = vrot.slane %v6901, 3
    %v7611 = vsel %vm3594, %v7610, %v7609
    %v7612 = vrot.slane %v7237, 2
    %v7613 = vsel %vm3596, %v7612, %v7611
    %v7614 = vrot.slane %v7573, 1
    %v7615 = vsel %vm3598, %v7614, %v7613
    %v7616 = vrot.slane %v6504, 7
    %v7617 = vsel %vm3586, %v7616, %v6503
    %v7618 = vrot.slane %v6505, 6
    %v7619 = vsel %vm3588, %v7618, %v7617
    %v7620 = vrot.slane %v6506, 5
    %v7621 = vsel %vm3590, %v7620, %v7619
    %v7622 = vrot.slane %v6507, 4
    %v7623 = vsel %vm3592, %v7622, %v7621
    %v7624 = vrot.slane %v6902, 3
    %v7625 = vsel %vm3594, %v7624, %v7623
    %v7626 = vrot.slane %v7238, 2
    %v7627 = vsel %vm3596, %v7626, %v7625
    %v7628 = vrot.slane %v7574, 1
    %v7629 = vsel %vm3598, %v7628, %v7627
    %v7630 = vrot.slane %v6512, 7
    %v7631 = vsel %vm3586, %v7630, %v6511
    %v7632 = vrot.slane %v6513, 6
    %v7633 = vsel %vm3588, %v7632, %v7631
    %v7634 = vrot.slane %v6514, 5
    %v7635 = vsel %vm3590, %v7634, %v7633
    %v7636 = vrot.slane %v6515, 4
    %v7637 = vsel %vm3592, %v7636, %v7635
    %v7638 = vrot.slane %v6903, 3
    %v7639 = vsel %vm3594, %v7638, %v7637
    %v7640 = vrot.slane %v7239, 2
    %v7641 = vsel %vm3596, %v7640, %v7639
    %v7642 = vrot.slane %v7575, 1
    %v7643 = vsel %vm3598, %v7642, %v7641
    %v7644 = vrot.slane %v6520, 7
    %v7645 = vsel %vm3586, %v7644, %v6519
    %v7646 = vrot.slane %v6521, 6
    %v7647 = vsel %vm3588, %v7646, %v7645
    %v7648 = vrot.slane %v6522, 5
    %v7649 = vsel %vm3590, %v7648, %v7647
    %v7650 = vrot.slane %v6523, 4
    %v7651 = vsel %vm3592, %v7650, %v7649
    %v7652 = vrot.slane %v6904, 3
    %v7653 = vsel %vm3594, %v7652, %v7651
    %v7654 = vrot.slane %v7240, 2
    %v7655 = vsel %vm3596, %v7654, %v7653
    %v7656 = vrot.slane %v7576, 1
    %v7657 = vsel %vm3598, %v7656, %v7655
    %v7658 = vrot.slane %v6528, 7
    %v7659 = vsel %vm3586, %v7658, %v6527
    %v7660 = vrot.slane %v6529, 6
    %v7661 = vsel %vm3588, %v7660, %v7659
    %v7662 = vrot.slane %v6530, 5
    %v7663 = vsel %vm3590, %v7662, %v7661
    %v7664 = vrot.slane %v6531, 4
    %v7665 = vsel %vm3592, %v7664, %v7663
    %v7666 = vrot.slane %v6905, 3
    %v7667 = vsel %vm3594, %v7666, %v7665
    %v7668 = vrot.slane %v7241, 2
    %v7669 = vsel %vm3596, %v7668, %v7667
    %v7670 = vrot.slane %v7577, 1
    %v7671 = vsel %vm3598, %v7670, %v7669
    %v7672 = vrot.slane %v6536, 7
    %v7673 = vsel %vm3586, %v7672, %v6535
    %v7674 = vrot.slane %v6537, 6
    %v7675 = vsel %vm3588, %v7674, %v7673
    %v7676 = vrot.slane %v6538, 5
    %v7677 = vsel %vm3590, %v7676, %v7675
    %v7678 = vrot.slane %v6539, 4
    %v7679 = vsel %vm3592, %v7678, %v7677
    %v7680 = vrot.slane %v6906, 3
    %v7681 = vsel %vm3594, %v7680, %v7679
    %v7682 = vrot.slane %v7242, 2
    %v7683 = vsel %vm3596, %v7682, %v7681
    %v7684 = vrot.slane %v7578, 1
    %v7685 = vsel %vm3598, %v7684, %v7683
    %v7686 = vrot.slane %v6544, 7
    %v7687 = vsel %vm3586, %v7686, %v6543
    %v7688 = vrot.slane %v6545, 6
    %v7689 = vsel %vm3588, %v7688, %v7687
    %v7690 = vrot.slane %v6546, 5
    %v7691 = vsel %vm3590, %v7690, %v7689
    %v7692 = vrot.slane %v6547, 4
    %v7693 = vsel %vm3592, %v7692, %v7691
    %v7694 = vrot.slane %v6907, 3
    %v7695 = vsel %vm3594, %v7694, %v7693
    %v7696 = vrot.slane %v7243, 2
    %v7697 = vsel %vm3596, %v7696, %v7695
    %v7698 = vrot.slane %v7579, 1
    %v7699 = vsel %vm3598, %v7698, %v7697
    %v7700 = vrot.slane %v6552, 7
    %v7701 = vsel %vm3586, %v7700, %v6551
    %v7702 = vrot.slane %v6553, 6
    %v7703 = vsel %vm3588, %v7702, %v7701
    %v7704 = vrot.slane %v6554, 5
    %v7705 = vsel %vm3590, %v7704, %v7703
    %v7706 = vrot.slane %v6555, 4
    %v7707 = vsel %vm3592, %v7706, %v7705
    %v7708 = vrot.slane %v6908, 3
    %v7709 = vsel %vm3594, %v7708, %v7707
    %v7710 = vrot.slane %v7244, 2
    %v7711 = vsel %vm3596, %v7710, %v7709
    %v7712 = vrot.slane %v7580, 1
    %v7713 = vsel %vm3598, %v7712, %v7711
    %v7714 = vrot.slane %v6560, 7
    %v7715 = vsel %vm3586, %v7714, %v6559
    %v7716 = vrot.slane %v6561, 6
    %v7717 = vsel %vm3588, %v7716, %v7715
    %v7718 = vrot.slane %v6562, 5
    %v7719 = vsel %vm3590, %v7718, %v7717
    %v7720 = vrot.slane %v6563, 4
    %v7721 = vsel %vm3592, %v7720, %v7719
    %v7722 = vrot.slane %v6909, 3
    %v7723 = vsel %vm3594, %v7722, %v7721
    %v7724 = vrot.slane %v7245, 2
    %v7725 = vsel %vm3596, %v7724, %v7723
    %v7726 = vrot.slane %v7581, 1
    %v7727 = vsel %vm3598, %v7726, %v7725
    %v7728 = vrot.slane %v6568, 7
    %v7729 = vsel %vm3586, %v7728, %v6567
    %v7730 = vrot.slane %v6569, 6
    %v7731 = vsel %vm3588, %v7730, %v7729
    %v7732 = vrot.slane %v6570, 5
    %v7733 = vsel %vm3590, %v7732, %v7731
    %v7734 = vrot.slane %v6571, 4
    %v7735 = vsel %vm3592, %v7734, %v7733
    %v7736 = vrot.slane %v6910, 3
    %v7737 = vsel %vm3594, %v7736, %v7735
    %v7738 = vrot.slane %v7246, 2
    %v7739 = vsel %vm3596, %v7738, %v7737
    %v7740 = vrot.slane %v7582, 1
    %v7741 = vsel %vm3598, %v7740, %v7739
    %v7742 = vrot.slane %v6576, 7
    %v7743 = vsel %vm3586, %v7742, %v6575
    %v7744 = vrot.slane %v6577, 6
    %v7745 = vsel %vm3588, %v7744, %v7743
    %v7746 = vrot.slane %v6578, 5
    %v7747 = vsel %vm3590, %v7746, %v7745
    %v7748 = vrot.slane %v6579, 4
    %v7749 = vsel %vm3592, %v7748, %v7747
    %v7750 = vrot.slane %v6911, 3
    %v7751 = vsel %vm3594, %v7750, %v7749
    %v7752 = vrot.slane %v7247, 2
    %v7753 = vsel %vm3596, %v7752, %v7751
    %v7754 = vrot.slane %v7583, 1
    %v7755 = vsel %vm3598, %v7754, %v7753
    %v7756 = vrot.slane %v6584, 7
    %v7757 = vsel %vm3586, %v7756, %v6583
    %v7758 = vrot.slane %v6585, 6
    %v7759 = vsel %vm3588, %v7758, %v7757
    %v7760 = vrot.slane %v6586, 5
    %v7761 = vsel %vm3590, %v7760, %v7759
    %v7762 = vrot.slane %v6587, 4
    %v7763 = vsel %vm3592, %v7762, %v7761
    %v7764 = vrot.slane %v6912, 3
    %v7765 = vsel %vm3594, %v7764, %v7763
    %v7766 = vrot.slane %v7248, 2
    %v7767 = vsel %vm3596, %v7766, %v7765
    %v7768 = vrot.slane %v7584, 1
    %v7769 = vsel %vm3598, %v7768, %v7767
    %v7770 = vrot.slane %v6592, 7
    %v7771 = vsel %vm3586, %v7770, %v6591
    %v7772 = vrot.slane %v6593, 6
    %v7773 = vsel %vm3588, %v7772, %v7771
    %v7774 = vrot.slane %v6594, 5
    %v7775 = vsel %vm3590, %v7774, %v7773
    %v7776 = vrot.slane %v6595, 4
    %v7777 = vsel %vm3592, %v7776, %v7775
    %v7778 = vrot.slane %v6913, 3
    %v7779 = vsel %vm3594, %v7778, %v7777
    %v7780 = vrot.slane %v7249, 2
    %v7781 = vsel %vm3596, %v7780, %v7779
    %v7782 = vrot.slane %v7585, 1
    %v7783 = vsel %vm3598, %v7782, %v7781
    %v7784 = vrot.slane %v6600, 7
    %v7785 = vsel %vm3586, %v7784, %v6599
    %v7786 = vrot.slane %v6601, 6
    %v7787 = vsel %vm3588, %v7786, %v7785
    %v7788 = vrot.slane %v6602, 5
    %v7789 = vsel %vm3590, %v7788, %v7787
    %v7790 = vrot.slane %v6603, 4
    %v7791 = vsel %vm3592, %v7790, %v7789
    %v7792 = vrot.slane %v6914, 3
    %v7793 = vsel %vm3594, %v7792, %v7791
    %v7794 = vrot.slane %v7250, 2
    %v7795 = vsel %vm3596, %v7794, %v7793
    %v7796 = vrot.slane %v7586, 1
    %v7797 = vsel %vm3598, %v7796, %v7795
    %v7798 = vrot.slane %v6608, 7
    %v7799 = vsel %vm3586, %v7798, %v6607
    %v7800 = vrot.slane %v6609, 6
    %v7801 = vsel %vm3588, %v7800, %v7799
    %v7802 = vrot.slane %v6610, 5
    %v7803 = vsel %vm3590, %v7802, %v7801
    %v7804 = vrot.slane %v6611, 4
    %v7805 = vsel %vm3592, %v7804, %v7803
    %v7806 = vrot.slane %v6915, 3
    %v7807 = vsel %vm3594, %v7806, %v7805
    %v7808 = vrot.slane %v7251, 2
    %v7809 = vsel %vm3596, %v7808, %v7807
    %v7810 = vrot.slane %v7587, 1
    %v7811 = vsel %vm3598, %v7810, %v7809
    %v7812 = vpack.c.b16 %v7601, %v7601
    %v7813 = vpack.c.b16 %v7615, %v7615
    %v7814 = vpack.c.b16 %v7629, %v7629
    %v7815 = vpack.c.b16 %v7643, %v7643
    %v7816 = vpack.c.b16 %v7657, %v7657
    %v7817 = vpack.c.b16 %v7671, %v7671
    %v7818 = vpack.c.b16 %v7685, %v7685
    %v7819 = vpack.c.b16 %v7699, %v7699
    %v7820 = vpack.c.b16 %v7713, %v7713
    %v7821 = vpack.c.b16 %v7727, %v7727
    %v7822 = vpack.c.b16 %v7741, %v7741
    %v7823 = vpack.c.b16 %v7755, %v7755
    %v7824 = vpack.c.b16 %v7769, %v7769
    %v7825 = vpack.c.b16 %v7783, %v7783
    %v7826 = vpack.c.b16 %v7797, %v7797
    %v7827 = vpack.c.b16 %v7811, %v7811
    %7828 = vrot.lane.b32.xlu0 %v7812, 96
    %v7829 = vpop.permute.xlu0 %7828
    %7830 = vrot.lane.b32.xlu0 %v7813, 96
    %v7831 = vpop.permute.xlu0 %7830
    %7832 = vrot.lane.b32.xlu0 %v7814, 96
    %v7833 = vpop.permute.xlu0 %7832
    %7834 = vrot.lane.b32.xlu0 %v7815, 96
    %v7835 = vpop.permute.xlu0 %7834
    %7836 = vrot.lane.b32.xlu0 %v7816, 96
    %v7837 = vpop.permute.xlu0 %7836
    %7838 = vrot.lane.b32.xlu0 %v7817, 96
    %v7839 = vpop.permute.xlu0 %7838
    %7840 = vrot.lane.b32.xlu0 %v7818, 96
    %v7841 = vpop.permute.xlu0 %7840
    %7842 = vrot.lane.b32.xlu0 %v7819, 96
    %v7843 = vpop.permute.xlu0 %7842
    %7844 = vrot.lane.b32.xlu0 %v7820, 96
    %v7845 = vpop.permute.xlu0 %7844
    %7846 = vrot.lane.b32.xlu0 %v7821, 96
    %v7847 = vpop.permute.xlu0 %7846
    %7848 = vrot.lane.b32.xlu0 %v7822, 96
    %v7849 = vpop.permute.xlu0 %7848
    %7850 = vrot.lane.b32.xlu0 %v7823, 96
    %v7851 = vpop.permute.xlu0 %7850
    %7852 = vrot.lane.b32.xlu0 %v7824, 96
    %v7853 = vpop.permute.xlu0 %7852
    %7854 = vrot.lane.b32.xlu0 %v7825, 96
    %v7855 = vpop.permute.xlu0 %7854
    %7856 = vrot.lane.b32.xlu0 %v7826, 96
    %v7857 = vpop.permute.xlu0 %7856
    %7858 = vrot.lane.b32.xlu0 %v7827, 96
    %v7859 = vpop.permute.xlu0 %7858
    %v7862 = vsel %vm552, %v6836, %v7157
    %v7865 = vsel %vm552, %v6837, %v7159
    %v7868 = vsel %vm552, %v6838, %v7161
    %v7871 = vsel %vm552, %v6839, %v7163
    %v7874 = vsel %vm552, %v6840, %v7165
    %v7877 = vsel %vm552, %v6841, %v7167
    %v7880 = vsel %vm552, %v6842, %v7169
    %v7883 = vsel %vm552, %v6843, %v7171
    %v7886 = vsel %vm552, %v6844, %v7173
    %v7889 = vsel %vm552, %v6845, %v7175
    %v7892 = vsel %vm552, %v6846, %v7177
    %v7895 = vsel %vm552, %v6847, %v7179
    %v7898 = vsel %vm552, %v6848, %v7181
    %v7901 = vsel %vm552, %v6849, %v7183
    %v7904 = vsel %vm552, %v6850, %v7185
    %v7907 = vsel %vm552, %v6851, %v7187
    %vm7908 = vcmask 523264
    %v7910 = vsel %vm7908, %v7862, %v7493
    %v7912 = vsel %vm7908, %v7865, %v7495
    %v7914 = vsel %vm7908, %v7868, %v7497
    %v7916 = vsel %vm7908, %v7871, %v7499
    %v7918 = vsel %vm7908, %v7874, %v7501
    %v7920 = vsel %vm7908, %v7877, %v7503
    %v7922 = vsel %vm7908, %v7880, %v7505
    %v7924 = vsel %vm7908, %v7883, %v7507
    %v7926 = vsel %vm7908, %v7886, %v7509
    %v7928 = vsel %vm7908, %v7889, %v7511
    %v7930 = vsel %vm7908, %v7892, %v7513
    %v7932 = vsel %vm7908, %v7895, %v7515
    %v7934 = vsel %vm7908, %v7898, %v7517
    %v7936 = vsel %vm7908, %v7901, %v7519
    %v7938 = vsel %vm7908, %v7904, %v7521
    %v7940 = vsel %vm7908, %v7907, %v7523
    %vm7941 = vcmask 785408
    %v7943 = vsel %vm7941, %v7910, %v7829
    %v7945 = vsel %vm7941, %v7912, %v7831
    %v7947 = vsel %vm7941, %v7914, %v7833
    %v7949 = vsel %vm7941, %v7916, %v7835
    %v7951 = vsel %vm7941, %v7918, %v7837
    %v7953 = vsel %vm7941, %v7920, %v7839
    %v7955 = vsel %vm7941, %v7922, %v7841
    %v7957 = vsel %vm7941, %v7924, %v7843
    %v7959 = vsel %vm7941, %v7926, %v7845
    %v7961 = vsel %vm7941, %v7928, %v7847
    %v7963 = vsel %vm7941, %v7930, %v7849
    %v7965 = vsel %vm7941, %v7932, %v7851
    %v7967 = vsel %vm7941, %v7934, %v7853
    %v7969 = vsel %vm7941, %v7936, %v7855
    %v7971 = vsel %vm7941, %v7938, %v7857
    %v7973 = vsel %vm7941, %v7940, %v7859
    %v7990 = vunpack.c.l.b16 %v5823
    %v7991 = vunpack.c.l.b16 %v5835
    %v7992 = vunpack.c.l.b16 %v5847
    %v7993 = vunpack.c.l.b16 %v5859
    %v7994 = vunpack.c.l.b16 %v5871
    %v7995 = vunpack.c.l.b16 %v5883
    %v7996 = vunpack.c.l.b16 %v5895
    %v7997 = vunpack.c.l.b16 %v5907
    %v7998 = vunpack.c.l.b16 %v5967
    %v7999 = vunpack.c.l.b16 %v5979
    %v8000 = vunpack.c.l.b16 %v5991
    %v8001 = vunpack.c.l.b16 %v6003
    %v8002 = vunpack.c.l.b16 %v6015
    %v8003 = vunpack.c.l.b16 %v6027
    %v8004 = vunpack.c.l.b16 %v6039
    %v8005 = vunpack.c.l.b16 %v6051
    %v8006 = vpack.c.b16 %v7990, %v7990
    %v8007 = vpack.c.b16 %v7991, %v7991
    %v8008 = vpack.c.b16 %v7992, %v7992
    %v8009 = vpack.c.b16 %v7993, %v7993
    %v8010 = vpack.c.b16 %v7994, %v7994
    %v8011 = vpack.c.b16 %v7995, %v7995
    %v8012 = vpack.c.b16 %v7996, %v7996
    %v8013 = vpack.c.b16 %v7997, %v7997
    %v8014 = vpack.c.b16 %v7998, %v7998
    %v8015 = vpack.c.b16 %v7999, %v7999
    %v8016 = vpack.c.b16 %v8000, %v8000
    %v8017 = vpack.c.b16 %v8001, %v8001
    %v8018 = vpack.c.b16 %v8002, %v8002
    %v8019 = vpack.c.b16 %v8003, %v8003
    %v8020 = vpack.c.b16 %v8004, %v8004
    %v8021 = vpack.c.b16 %v8005, %v8005
    %v8022 = vunpack.c.l.b16 %v8006
    %v8023 = vunpack.c.l.b16 %v8007
    %v8024 = vunpack.c.l.b16 %v8008
    %v8025 = vunpack.c.l.b16 %v8009
    %v8026 = vunpack.c.l.b16 %v8010
    %v8027 = vunpack.c.l.b16 %v8011
    %v8028 = vunpack.c.l.b16 %v8012
    %v8029 = vunpack.c.l.b16 %v8013
    %v8030 = vunpack.c.l.b16 %v8014
    %v8031 = vunpack.c.l.b16 %v8015
    %v8032 = vunpack.c.l.b16 %v8016
    %v8033 = vunpack.c.l.b16 %v8017
    %v8034 = vunpack.c.l.b16 %v8018
    %v8035 = vunpack.c.l.b16 %v8019
    %v8036 = vunpack.c.l.b16 %v8020
    %v8037 = vunpack.c.l.b16 %v8021
    %v8038 = vrot.slane %v6489, 7
    %v8039 = vsel %vm3586, %v8038, %v6488
    %v8040 = vrot.slane %v6490, 6
    %v8041 = vsel %vm3588, %v8040, %v8039
    %v8042 = vrot.slane %v6491, 5
    %v8043 = vsel %vm3590, %v8042, %v8041
    %v8044 = vrot.slane %v6900, 4
    %v8045 = vsel %vm3592, %v8044, %v8043
    %v8046 = vrot.slane %v7236, 3
    %v8047 = vsel %vm3594, %v8046, %v8045
    %v8048 = vrot.slane %v7572, 2
    %v8049 = vsel %vm3596, %v8048, %v8047
    %v8050 = vrot.slane %v8022, 1
    %v8051 = vsel %vm3598, %v8050, %v8049
    %v8052 = vrot.slane %v6497, 7
    %v8053 = vsel %vm3586, %v8052, %v6496
    %v8054 = vrot.slane %v6498, 6
    %v8055 = vsel %vm3588, %v8054, %v8053
    %v8056 = vrot.slane %v6499, 5
    %v8057 = vsel %vm3590, %v8056, %v8055
    %v8058 = vrot.slane %v6901, 4
    %v8059 = vsel %vm3592, %v8058, %v8057
    %v8060 = vrot.slane %v7237, 3
    %v8061 = vsel %vm3594, %v8060, %v8059
    %v8062 = vrot.slane %v7573, 2
    %v8063 = vsel %vm3596, %v8062, %v8061
    %v8064 = vrot.slane %v8023, 1
    %v8065 = vsel %vm3598, %v8064, %v8063
    %v8066 = vrot.slane %v6505, 7
    %v8067 = vsel %vm3586, %v8066, %v6504
    %v8068 = vrot.slane %v6506, 6
    %v8069 = vsel %vm3588, %v8068, %v8067
    %v8070 = vrot.slane %v6507, 5
    %v8071 = vsel %vm3590, %v8070, %v8069
    %v8072 = vrot.slane %v6902, 4
    %v8073 = vsel %vm3592, %v8072, %v8071
    %v8074 = vrot.slane %v7238, 3
    %v8075 = vsel %vm3594, %v8074, %v8073
    %v8076 = vrot.slane %v7574, 2
    %v8077 = vsel %vm3596, %v8076, %v8075
    %v8078 = vrot.slane %v8024, 1
    %v8079 = vsel %vm3598, %v8078, %v8077
    %v8080 = vrot.slane %v6513, 7
    %v8081 = vsel %vm3586, %v8080, %v6512
    %v8082 = vrot.slane %v6514, 6
    %v8083 = vsel %vm3588, %v8082, %v8081
    %v8084 = vrot.slane %v6515, 5
    %v8085 = vsel %vm3590, %v8084, %v8083
    %v8086 = vrot.slane %v6903, 4
    %v8087 = vsel %vm3592, %v8086, %v8085
    %v8088 = vrot.slane %v7239, 3
    %v8089 = vsel %vm3594, %v8088, %v8087
    %v8090 = vrot.slane %v7575, 2
    %v8091 = vsel %vm3596, %v8090, %v8089
    %v8092 = vrot.slane %v8025, 1
    %v8093 = vsel %vm3598, %v8092, %v8091
    %v8094 = vrot.slane %v6521, 7
    %v8095 = vsel %vm3586, %v8094, %v6520
    %v8096 = vrot.slane %v6522, 6
    %v8097 = vsel %vm3588, %v8096, %v8095
    %v8098 = vrot.slane %v6523, 5
    %v8099 = vsel %vm3590, %v8098, %v8097
    %v8100 = vrot.slane %v6904, 4
    %v8101 = vsel %vm3592, %v8100, %v8099
    %v8102 = vrot.slane %v7240, 3
    %v8103 = vsel %vm3594, %v8102, %v8101
    %v8104 = vrot.slane %v7576, 2
    %v8105 = vsel %vm3596, %v8104, %v8103
    %v8106 = vrot.slane %v8026, 1
    %v8107 = vsel %vm3598, %v8106, %v8105
    %v8108 = vrot.slane %v6529, 7
    %v8109 = vsel %vm3586, %v8108, %v6528
    %v8110 = vrot.slane %v6530, 6
    %v8111 = vsel %vm3588, %v8110, %v8109
    %v8112 = vrot.slane %v6531, 5
    %v8113 = vsel %vm3590, %v8112, %v8111
    %v8114 = vrot.slane %v6905, 4
    %v8115 = vsel %vm3592, %v8114, %v8113
    %v8116 = vrot.slane %v7241, 3
    %v8117 = vsel %vm3594, %v8116, %v8115
    %v8118 = vrot.slane %v7577, 2
    %v8119 = vsel %vm3596, %v8118, %v8117
    %v8120 = vrot.slane %v8027, 1
    %v8121 = vsel %vm3598, %v8120, %v8119
    %v8122 = vrot.slane %v6537, 7
    %v8123 = vsel %vm3586, %v8122, %v6536
    %v8124 = vrot.slane %v6538, 6
    %v8125 = vsel %vm3588, %v8124, %v8123
    %v8126 = vrot.slane %v6539, 5
    %v8127 = vsel %vm3590, %v8126, %v8125
    %v8128 = vrot.slane %v6906, 4
    %v8129 = vsel %vm3592, %v8128, %v8127
    %v8130 = vrot.slane %v7242, 3
    %v8131 = vsel %vm3594, %v8130, %v8129
    %v8132 = vrot.slane %v7578, 2
    %v8133 = vsel %vm3596, %v8132, %v8131
    %v8134 = vrot.slane %v8028, 1
    %v8135 = vsel %vm3598, %v8134, %v8133
    %v8136 = vrot.slane %v6545, 7
    %v8137 = vsel %vm3586, %v8136, %v6544
    %v8138 = vrot.slane %v6546, 6
    %v8139 = vsel %vm3588, %v8138, %v8137
    %v8140 = vrot.slane %v6547, 5
    %v8141 = vsel %vm3590, %v8140, %v8139
    %v8142 = vrot.slane %v6907, 4
    %v8143 = vsel %vm3592, %v8142, %v8141
    %v8144 = vrot.slane %v7243, 3
    %v8145 = vsel %vm3594, %v8144, %v8143
    %v8146 = vrot.slane %v7579, 2
    %v8147 = vsel %vm3596, %v8146, %v8145
    %v8148 = vrot.slane %v8029, 1
    %v8149 = vsel %vm3598, %v8148, %v8147
    %v8150 = vrot.slane %v6553, 7
    %v8151 = vsel %vm3586, %v8150, %v6552
    %v8152 = vrot.slane %v6554, 6
    %v8153 = vsel %vm3588, %v8152, %v8151
    %v8154 = vrot.slane %v6555, 5
    %v8155 = vsel %vm3590, %v8154, %v8153
    %v8156 = vrot.slane %v6908, 4
    %v8157 = vsel %vm3592, %v8156, %v8155
    %v8158 = vrot.slane %v7244, 3
    %v8159 = vsel %vm3594, %v8158, %v8157
    %v8160 = vrot.slane %v7580, 2
    %v8161 = vsel %vm3596, %v8160, %v8159
    %v8162 = vrot.slane %v8030, 1
    %v8163 = vsel %vm3598, %v8162, %v8161
    %v8164 = vrot.slane %v6561, 7
    %v8165 = vsel %vm3586, %v8164, %v6560
    %v8166 = vrot.slane %v6562, 6
    %v8167 = vsel %vm3588, %v8166, %v8165
    %v8168 = vrot.slane %v6563, 5
    %v8169 = vsel %vm3590, %v8168, %v8167
    %v8170 = vrot.slane %v6909, 4
    %v8171 = vsel %vm3592, %v8170, %v8169
    %v8172 = vrot.slane %v7245, 3
    %v8173 = vsel %vm3594, %v8172, %v8171
    %v8174 = vrot.slane %v7581, 2
    %v8175 = vsel %vm3596, %v8174, %v8173
    %v8176 = vrot.slane %v8031, 1
    %v8177 = vsel %vm3598, %v8176, %v8175
    %v8178 = vrot.slane %v6569, 7
    %v8179 = vsel %vm3586, %v8178, %v6568
    %v8180 = vrot.slane %v6570, 6
    %v8181 = vsel %vm3588, %v8180, %v8179
    %v8182 = vrot.slane %v6571, 5
    %v8183 = vsel %vm3590, %v8182, %v8181
    %v8184 = vrot.slane %v6910, 4
    %v8185 = vsel %vm3592, %v8184, %v8183
    %v8186 = vrot.slane %v7246, 3
    %v8187 = vsel %vm3594, %v8186, %v8185
    %v8188 = vrot.slane %v7582, 2
    %v8189 = vsel %vm3596, %v8188, %v8187
    %v8190 = vrot.slane %v8032, 1
    %v8191 = vsel %vm3598, %v8190, %v8189
    %v8192 = vrot.slane %v6577, 7
    %v8193 = vsel %vm3586, %v8192, %v6576
    %v8194 = vrot.slane %v6578, 6
    %v8195 = vsel %vm3588, %v8194, %v8193
    %v8196 = vrot.slane %v6579, 5
    %v8197 = vsel %vm3590, %v8196, %v8195
    %v8198 = vrot.slane %v6911, 4
    %v8199 = vsel %vm3592, %v8198, %v8197
    %v8200 = vrot.slane %v7247, 3
    %v8201 = vsel %vm3594, %v8200, %v8199
    %v8202 = vrot.slane %v7583, 2
    %v8203 = vsel %vm3596, %v8202, %v8201
    %v8204 = vrot.slane %v8033, 1
    %v8205 = vsel %vm3598, %v8204, %v8203
    %v8206 = vrot.slane %v6585, 7
    %v8207 = vsel %vm3586, %v8206, %v6584
    %v8208 = vrot.slane %v6586, 6
    %v8209 = vsel %vm3588, %v8208, %v8207
    %v8210 = vrot.slane %v6587, 5
    %v8211 = vsel %vm3590, %v8210, %v8209
    %v8212 = vrot.slane %v6912, 4
    %v8213 = vsel %vm3592, %v8212, %v8211
    %v8214 = vrot.slane %v7248, 3
    %v8215 = vsel %vm3594, %v8214, %v8213
    %v8216 = vrot.slane %v7584, 2
    %v8217 = vsel %vm3596, %v8216, %v8215
    %v8218 = vrot.slane %v8034, 1
    %v8219 = vsel %vm3598, %v8218, %v8217
    %v8220 = vrot.slane %v6593, 7
    %v8221 = vsel %vm3586, %v8220, %v6592
    %v8222 = vrot.slane %v6594, 6
    %v8223 = vsel %vm3588, %v8222, %v8221
    %v8224 = vrot.slane %v6595, 5
    %v8225 = vsel %vm3590, %v8224, %v8223
    %v8226 = vrot.slane %v6913, 4
    %v8227 = vsel %vm3592, %v8226, %v8225
    %v8228 = vrot.slane %v7249, 3
    %v8229 = vsel %vm3594, %v8228, %v8227
    %v8230 = vrot.slane %v7585, 2
    %v8231 = vsel %vm3596, %v8230, %v8229
    %v8232 = vrot.slane %v8035, 1
    %v8233 = vsel %vm3598, %v8232, %v8231
    %v8234 = vrot.slane %v6601, 7
    %v8235 = vsel %vm3586, %v8234, %v6600
    %v8236 = vrot.slane %v6602, 6
    %v8237 = vsel %vm3588, %v8236, %v8235
    %v8238 = vrot.slane %v6603, 5
    %v8239 = vsel %vm3590, %v8238, %v8237
    %v8240 = vrot.slane %v6914, 4
    %v8241 = vsel %vm3592, %v8240, %v8239
    %v8242 = vrot.slane %v7250, 3
    %v8243 = vsel %vm3594, %v8242, %v8241
    %v8244 = vrot.slane %v7586, 2
    %v8245 = vsel %vm3596, %v8244, %v8243
    %v8246 = vrot.slane %v8036, 1
    %v8247 = vsel %vm3598, %v8246, %v8245
    %v8248 = vrot.slane %v6609, 7
    %v8249 = vsel %vm3586, %v8248, %v6608
    %v8250 = vrot.slane %v6610, 6
    %v8251 = vsel %vm3588, %v8250, %v8249
    %v8252 = vrot.slane %v6611, 5
    %v8253 = vsel %vm3590, %v8252, %v8251
    %v8254 = vrot.slane %v6915, 4
    %v8255 = vsel %vm3592, %v8254, %v8253
    %v8256 = vrot.slane %v7251, 3
    %v8257 = vsel %vm3594, %v8256, %v8255
    %v8258 = vrot.slane %v7587, 2
    %v8259 = vsel %vm3596, %v8258, %v8257
    %v8260 = vrot.slane %v8037, 1
    %v8261 = vsel %vm3598, %v8260, %v8259
    %v8262 = vpack.c.b16 %v8051, %v8051
    %v8263 = vpack.c.b16 %v8065, %v8065
    %v8264 = vpack.c.b16 %v8079, %v8079
    %v8265 = vpack.c.b16 %v8093, %v8093
    %v8266 = vpack.c.b16 %v8107, %v8107
    %v8267 = vpack.c.b16 %v8121, %v8121
    %v8268 = vpack.c.b16 %v8135, %v8135
    %v8269 = vpack.c.b16 %v8149, %v8149
    %v8270 = vpack.c.b16 %v8163, %v8163
    %v8271 = vpack.c.b16 %v8177, %v8177
    %v8272 = vpack.c.b16 %v8191, %v8191
    %v8273 = vpack.c.b16 %v8205, %v8205
    %v8274 = vpack.c.b16 %v8219, %v8219
    %v8275 = vpack.c.b16 %v8233, %v8233
    %v8276 = vpack.c.b16 %v8247, %v8247
    %v8277 = vpack.c.b16 %v8261, %v8261
    %v8294 = vunpack.c.l.b16 %v5908
    %v8295 = vunpack.c.l.b16 %v5909
    %v8296 = vunpack.c.l.b16 %v5910
    %v8297 = vunpack.c.l.b16 %v5911
    %v8298 = vunpack.c.l.b16 %v5912
    %v8299 = vunpack.c.l.b16 %v5913
    %v8300 = vunpack.c.l.b16 %v5914
    %v8301 = vunpack.c.l.b16 %v5915
    %v8302 = vunpack.c.l.b16 %v6052
    %v8303 = vunpack.c.l.b16 %v6053
    %v8304 = vunpack.c.l.b16 %v6054
    %v8305 = vunpack.c.l.b16 %v6055
    %v8306 = vunpack.c.l.b16 %v6056
    %v8307 = vunpack.c.l.b16 %v6057
    %v8308 = vunpack.c.l.b16 %v6058
    %v8309 = vunpack.c.l.b16 %v6059
    %v8310 = vpack.c.b16 %v8294, %v8294
    %v8311 = vpack.c.b16 %v8295, %v8295
    %v8312 = vpack.c.b16 %v8296, %v8296
    %v8313 = vpack.c.b16 %v8297, %v8297
    %v8314 = vpack.c.b16 %v8298, %v8298
    %v8315 = vpack.c.b16 %v8299, %v8299
    %v8316 = vpack.c.b16 %v8300, %v8300
    %v8317 = vpack.c.b16 %v8301, %v8301
    %v8318 = vpack.c.b16 %v8302, %v8302
    %v8319 = vpack.c.b16 %v8303, %v8303
    %v8320 = vpack.c.b16 %v8304, %v8304
    %v8321 = vpack.c.b16 %v8305, %v8305
    %v8322 = vpack.c.b16 %v8306, %v8306
    %v8323 = vpack.c.b16 %v8307, %v8307
    %v8324 = vpack.c.b16 %v8308, %v8308
    %v8325 = vpack.c.b16 %v8309, %v8309
    %v8326 = vunpack.c.l.b16 %v8310
    %v8327 = vunpack.c.l.b16 %v8311
    %v8328 = vunpack.c.l.b16 %v8312
    %v8329 = vunpack.c.l.b16 %v8313
    %v8330 = vunpack.c.l.b16 %v8314
    %v8331 = vunpack.c.l.b16 %v8315
    %v8332 = vunpack.c.l.b16 %v8316
    %v8333 = vunpack.c.l.b16 %v8317
    %v8334 = vunpack.c.l.b16 %v8318
    %v8335 = vunpack.c.l.b16 %v8319
    %v8336 = vunpack.c.l.b16 %v8320
    %v8337 = vunpack.c.l.b16 %v8321
    %v8338 = vunpack.c.l.b16 %v8322
    %v8339 = vunpack.c.l.b16 %v8323
    %v8340 = vunpack.c.l.b16 %v8324
    %v8341 = vunpack.c.l.b16 %v8325
    %v8342 = vrot.slane %v8327, 7
    %v8343 = vsel %vm3586, %v8342, %v8326
    %v8344 = vrot.slane %v8328, 6
    %v8345 = vsel %vm3588, %v8344, %v8343
    %v8346 = vrot.slane %v8329, 5
    %v8347 = vsel %vm3590, %v8346, %v8345
    %v8348 = vrot.slane %v8330, 4
    %v8349 = vsel %vm3592, %v8348, %v8347
    %v8350 = vrot.slane %v8331, 3
    %v8351 = vsel %vm3594, %v8350, %v8349
    %v8352 = vrot.slane %v8332, 2
    %v8353 = vsel %vm3596, %v8352, %v8351
    %v8354 = vrot.slane %v8333, 1
    %v8355 = vsel %vm3598, %v8354, %v8353
    %v8356 = vrot.slane %v8335, 7
    %v8357 = vsel %vm3586, %v8356, %v8334
    %v8358 = vrot.slane %v8336, 6
    %v8359 = vsel %vm3588, %v8358, %v8357
    %v8360 = vrot.slane %v8337, 5
    %v8361 = vsel %vm3590, %v8360, %v8359
    %v8362 = vrot.slane %v8338, 4
    %v8363 = vsel %vm3592, %v8362, %v8361
    %v8364 = vrot.slane %v8339, 3
    %v8365 = vsel %vm3594, %v8364, %v8363
    %v8366 = vrot.slane %v8340, 2
    %v8367 = vsel %vm3596, %v8366, %v8365
    %v8368 = vrot.slane %v8341, 1
    %v8369 = vsel %vm3598, %v8368, %v8367
    %v8370 = vpack.c.b16 %v8355, %v8355
    %v8371 = vpack.c.b16 %v8369, %v8369
    %8372 = vrot.lane.b32.xlu0 %v6837, 32
    %v8373 = vpop.permute.xlu0 %8372
    %8374 = vrot.lane.b32.xlu0 %v6838, 32
    %v8375 = vpop.permute.xlu0 %8374
    %8376 = vrot.lane.b32.xlu0 %v6839, 32
    %v8377 = vpop.permute.xlu0 %8376
    %8378 = vrot.lane.b32.xlu0 %v6840, 32
    %v8379 = vpop.permute.xlu0 %8378
    %8380 = vrot.lane.b32.xlu0 %v6841, 32
    %v8381 = vpop.permute.xlu0 %8380
    %8382 = vrot.lane.b32.xlu0 %v6842, 32
    %v8383 = vpop.permute.xlu0 %8382
    %8384 = vrot.lane.b32.xlu0 %v6843, 32
    %v8385 = vpop.permute.xlu0 %8384
    %8386 = vrot.lane.b32.xlu0 %v8370, 32
    %v8387 = vpop.permute.xlu0 %8386
    %8388 = vrot.lane.b32.xlu0 %v6845, 32
    %v8389 = vpop.permute.xlu0 %8388
    %8390 = vrot.lane.b32.xlu0 %v6846, 32
    %v8391 = vpop.permute.xlu0 %8390
    %8392 = vrot.lane.b32.xlu0 %v6847, 32
    %v8393 = vpop.permute.xlu0 %8392
    %8394 = vrot.lane.b32.xlu0 %v6848, 32
    %v8395 = vpop.permute.xlu0 %8394
    %8396 = vrot.lane.b32.xlu0 %v6849, 32
    %v8397 = vpop.permute.xlu0 %8396
    %8398 = vrot.lane.b32.xlu0 %v6850, 32
    %v8399 = vpop.permute.xlu0 %8398
    %8400 = vrot.lane.b32.xlu0 %v6851, 32
    %v8401 = vpop.permute.xlu0 %8400
    %8402 = vrot.lane.b32.xlu0 %v8371, 32
    %v8403 = vpop.permute.xlu0 %8402
    %v8406 = vunpack.c.l.b16 %v5916
    %v8407 = vunpack.c.l.b16 %v6060
    %v8408 = vpack.c.b16 %v8406, %v8406
    %v8409 = vpack.c.b16 %v8407, %v8407
    %v8410 = vunpack.c.l.b16 %v8408
    %v8411 = vunpack.c.l.b16 %v8409
    %v8412 = vrot.slane %v8328, 7
    %v8413 = vsel %vm3586, %v8412, %v8327
    %v8414 = vrot.slane %v8329, 6
    %v8415 = vsel %vm3588, %v8414, %v8413
    %v8416 = vrot.slane %v8330, 5
    %v8417 = vsel %vm3590, %v8416, %v8415
    %v8418 = vrot.slane %v8331, 4
    %v8419 = vsel %vm3592, %v8418, %v8417
    %v8420 = vrot.slane %v8332, 3
    %v8421 = vsel %vm3594, %v8420, %v8419
    %v8422 = vrot.slane %v8333, 2
    %v8423 = vsel %vm3596, %v8422, %v8421
    %v8424 = vrot.slane %v8410, 1
    %v8425 = vsel %vm3598, %v8424, %v8423
    %v8426 = vrot.slane %v8336, 7
    %v8427 = vsel %vm3586, %v8426, %v8335
    %v8428 = vrot.slane %v8337, 6
    %v8429 = vsel %vm3588, %v8428, %v8427
    %v8430 = vrot.slane %v8338, 5
    %v8431 = vsel %vm3590, %v8430, %v8429
    %v8432 = vrot.slane %v8339, 4
    %v8433 = vsel %vm3592, %v8432, %v8431
    %v8434 = vrot.slane %v8340, 3
    %v8435 = vsel %vm3594, %v8434, %v8433
    %v8436 = vrot.slane %v8341, 2
    %v8437 = vsel %vm3596, %v8436, %v8435
    %v8438 = vrot.slane %v8411, 1
    %v8439 = vsel %vm3598, %v8438, %v8437
    %v8440 = vpack.c.b16 %v8425, %v8425
    %v8441 = vpack.c.b16 %v8439, %v8439
    %8442 = vrot.lane.b32.xlu0 %v7141, 64
    %v8443 = vpop.permute.xlu0 %8442
    %8444 = vrot.lane.b32.xlu0 %v7142, 64
    %v8445 = vpop.permute.xlu0 %8444
    %8446 = vrot.lane.b32.xlu0 %v7143, 64
    %v8447 = vpop.permute.xlu0 %8446
    %8448 = vrot.lane.b32.xlu0 %v7144, 64
    %v8449 = vpop.permute.xlu0 %8448
    %8450 = vrot.lane.b32.xlu0 %v7145, 64
    %v8451 = vpop.permute.xlu0 %8450
    %8452 = vrot.lane.b32.xlu0 %v7146, 64
    %v8453 = vpop.permute.xlu0 %8452
    %8454 = vrot.lane.b32.xlu0 %v7147, 64
    %v8455 = vpop.permute.xlu0 %8454
    %8456 = vrot.lane.b32.xlu0 %v8440, 64
    %v8457 = vpop.permute.xlu0 %8456
    %8458 = vrot.lane.b32.xlu0 %v7149, 64
    %v8459 = vpop.permute.xlu0 %8458
    %8460 = vrot.lane.b32.xlu0 %v7150, 64
    %v8461 = vpop.permute.xlu0 %8460
    %8462 = vrot.lane.b32.xlu0 %v7151, 64
    %v8463 = vpop.permute.xlu0 %8462
    %8464 = vrot.lane.b32.xlu0 %v7152, 64
    %v8465 = vpop.permute.xlu0 %8464
    %8466 = vrot.lane.b32.xlu0 %v7153, 64
    %v8467 = vpop.permute.xlu0 %8466
    %8468 = vrot.lane.b32.xlu0 %v7154, 64
    %v8469 = vpop.permute.xlu0 %8468
    %8470 = vrot.lane.b32.xlu0 %v7155, 64
    %v8471 = vpop.permute.xlu0 %8470
    %8472 = vrot.lane.b32.xlu0 %v8441, 64
    %v8473 = vpop.permute.xlu0 %8472
    %v8476 = vunpack.c.l.b16 %v5917
    %v8477 = vunpack.c.l.b16 %v6061
    %v8478 = vpack.c.b16 %v8476, %v8476
    %v8479 = vpack.c.b16 %v8477, %v8477
    %v8480 = vunpack.c.l.b16 %v8478
    %v8481 = vunpack.c.l.b16 %v8479
    %v8482 = vrot.slane %v8329, 7
    %v8483 = vsel %vm3586, %v8482, %v8328
    %v8484 = vrot.slane %v8330, 6
    %v8485 = vsel %vm3588, %v8484, %v8483
    %v8486 = vrot.slane %v8331, 5
    %v8487 = vsel %vm3590, %v8486, %v8485
    %v8488 = vrot.slane %v8332, 4
    %v8489 = vsel %vm3592, %v8488, %v8487
    %v8490 = vrot.slane %v8333, 3
    %v8491 = vsel %vm3594, %v8490, %v8489
    %v8492 = vrot.slane %v8410, 2
    %v8493 = vsel %vm3596, %v8492, %v8491
    %v8494 = vrot.slane %v8480, 1
    %v8495 = vsel %vm3598, %v8494, %v8493
    %v8496 = vrot.slane %v8337, 7
    %v8497 = vsel %vm3586, %v8496, %v8336
    %v8498 = vrot.slane %v8338, 6
    %v8499 = vsel %vm3588, %v8498, %v8497
    %v8500 = vrot.slane %v8339, 5
    %v8501 = vsel %vm3590, %v8500, %v8499
    %v8502 = vrot.slane %v8340, 4
    %v8503 = vsel %vm3592, %v8502, %v8501
    %v8504 = vrot.slane %v8341, 3
    %v8505 = vsel %vm3594, %v8504, %v8503
    %v8506 = vrot.slane %v8411, 2
    %v8507 = vsel %vm3596, %v8506, %v8505
    %v8508 = vrot.slane %v8481, 1
    %v8509 = vsel %vm3598, %v8508, %v8507
    %v8510 = vpack.c.b16 %v8495, %v8495
    %v8511 = vpack.c.b16 %v8509, %v8509
    %8512 = vrot.lane.b32.xlu0 %v7477, 96
    %v8513 = vpop.permute.xlu0 %8512
    %8514 = vrot.lane.b32.xlu0 %v7478, 96
    %v8515 = vpop.permute.xlu0 %8514
    %8516 = vrot.lane.b32.xlu0 %v7479, 96
    %v8517 = vpop.permute.xlu0 %8516
    %8518 = vrot.lane.b32.xlu0 %v7480, 96
    %v8519 = vpop.permute.xlu0 %8518
    %8520 = vrot.lane.b32.xlu0 %v7481, 96
    %v8521 = vpop.permute.xlu0 %8520
    %8522 = vrot.lane.b32.xlu0 %v7482, 96
    %v8523 = vpop.permute.xlu0 %8522
    %8524 = vrot.lane.b32.xlu0 %v7483, 96
    %v8525 = vpop.permute.xlu0 %8524
    %8526 = vrot.lane.b32.xlu0 %v8510, 96
    %v8527 = vpop.permute.xlu0 %8526
    %8528 = vrot.lane.b32.xlu0 %v7485, 96
    %v8529 = vpop.permute.xlu0 %8528
    %8530 = vrot.lane.b32.xlu0 %v7486, 96
    %v8531 = vpop.permute.xlu0 %8530
    %8532 = vrot.lane.b32.xlu0 %v7487, 96
    %v8533 = vpop.permute.xlu0 %8532
    %8534 = vrot.lane.b32.xlu0 %v7488, 96
    %v8535 = vpop.permute.xlu0 %8534
    %8536 = vrot.lane.b32.xlu0 %v7489, 96
    %v8537 = vpop.permute.xlu0 %8536
    %8538 = vrot.lane.b32.xlu0 %v7490, 96
    %v8539 = vpop.permute.xlu0 %8538
    %8540 = vrot.lane.b32.xlu0 %v7491, 96
    %v8541 = vpop.permute.xlu0 %8540
    %8542 = vrot.lane.b32.xlu0 %v8511, 96
    %v8543 = vpop.permute.xlu0 %8542
    %v8546 = vsel %vm552, %v8262, %v8373
    %v8549 = vsel %vm552, %v8263, %v8375
    %v8552 = vsel %vm552, %v8264, %v8377
    %v8555 = vsel %vm552, %v8265, %v8379
    %v8558 = vsel %vm552, %v8266, %v8381
    %v8561 = vsel %vm552, %v8267, %v8383
    %v8564 = vsel %vm552, %v8268, %v8385
    %v8567 = vsel %vm552, %v8269, %v8387
    %v8570 = vsel %vm552, %v8270, %v8389
    %v8573 = vsel %vm552, %v8271, %v8391
    %v8576 = vsel %vm552, %v8272, %v8393
    %v8579 = vsel %vm552, %v8273, %v8395
    %v8582 = vsel %vm552, %v8274, %v8397
    %v8585 = vsel %vm552, %v8275, %v8399
    %v8588 = vsel %vm552, %v8276, %v8401
    %v8591 = vsel %vm552, %v8277, %v8403
    %v8593 = vsel %vm7908, %v8546, %v8443
    %v8595 = vsel %vm7908, %v8549, %v8445
    %v8597 = vsel %vm7908, %v8552, %v8447
    %v8599 = vsel %vm7908, %v8555, %v8449
    %v8601 = vsel %vm7908, %v8558, %v8451
    %v8603 = vsel %vm7908, %v8561, %v8453
    %v8605 = vsel %vm7908, %v8564, %v8455
    %v8607 = vsel %vm7908, %v8567, %v8457
    %v8609 = vsel %vm7908, %v8570, %v8459
    %v8611 = vsel %vm7908, %v8573, %v8461
    %v8613 = vsel %vm7908, %v8576, %v8463
    %v8615 = vsel %vm7908, %v8579, %v8465
    %v8617 = vsel %vm7908, %v8582, %v8467
    %v8619 = vsel %vm7908, %v8585, %v8469
    %v8621 = vsel %vm7908, %v8588, %v8471
    %v8623 = vsel %vm7908, %v8591, %v8473
    %v8625 = vsel %vm7941, %v8593, %v8513
    %v8627 = vsel %vm7941, %v8595, %v8515
    %v8629 = vsel %vm7941, %v8597, %v8517
    %v8631 = vsel %vm7941, %v8599, %v8519
    %v8633 = vsel %vm7941, %v8601, %v8521
    %v8635 = vsel %vm7941, %v8603, %v8523
    %v8637 = vsel %vm7941, %v8605, %v8525
    %v8639 = vsel %vm7941, %v8607, %v8527
    %v8641 = vsel %vm7941, %v8609, %v8529
    %v8643 = vsel %vm7941, %v8611, %v8531
    %v8645 = vsel %vm7941, %v8613, %v8533
    %v8647 = vsel %vm7941, %v8615, %v8535
    %v8649 = vsel %vm7941, %v8617, %v8537
    %v8651 = vsel %vm7941, %v8619, %v8539
    %v8653 = vsel %vm7941, %v8621, %v8541
    %v8655 = vsel %vm7941, %v8623, %v8543
    %v8658 = vunpack.c.l.b16 %v5918
    %v8659 = vunpack.c.l.b16 %v6062
    %v8660 = vpack.c.b16 %v8658, %v8658
    %v8661 = vpack.c.b16 %v8659, %v8659
    %v8662 = vunpack.c.l.b16 %v8660
    %v8663 = vunpack.c.l.b16 %v8661
    %v8664 = vrot.slane %v8330, 7
    %v8665 = vsel %vm3586, %v8664, %v8329
    %v8666 = vrot.slane %v8331, 6
    %v8667 = vsel %vm3588, %v8666, %v8665
    %v8668 = vrot.slane %v8332, 5
    %v8669 = vsel %vm3590, %v8668, %v8667
    %v8670 = vrot.slane %v8333, 4
    %v8671 = vsel %vm3592, %v8670, %v8669
    %v8672 = vrot.slane %v8410, 3
    %v8673 = vsel %vm3594, %v8672, %v8671
    %v8674 = vrot.slane %v8480, 2
    %v8675 = vsel %vm3596, %v8674, %v8673
    %v8676 = vrot.slane %v8662, 1
    %v8677 = vsel %vm3598, %v8676, %v8675
    %v8678 = vrot.slane %v8338, 7
    %v8679 = vsel %vm3586, %v8678, %v8337
    %v8680 = vrot.slane %v8339, 6
    %v8681 = vsel %vm3588, %v8680, %v8679
    %v8682 = vrot.slane %v8340, 5
    %v8683 = vsel %vm3590, %v8682, %v8681
    %v8684 = vrot.slane %v8341, 4
    %v8685 = vsel %vm3592, %v8684, %v8683
    %v8686 = vrot.slane %v8411, 3
    %v8687 = vsel %vm3594, %v8686, %v8685
    %v8688 = vrot.slane %v8481, 2
    %v8689 = vsel %vm3596, %v8688, %v8687
    %v8690 = vrot.slane %v8663, 1
    %v8691 = vsel %vm3598, %v8690, %v8689
    %v8692 = vpack.c.b16 %v8677, %v8677
    %v8693 = vpack.c.b16 %v8691, %v8691
    %v8696 = vunpack.c.l.b16 %v5919
    %v8697 = vunpack.c.l.b16 %v6063
    %v8698 = vpack.c.b16 %v8696, %v8696
    %v8699 = vpack.c.b16 %v8697, %v8697
    %v8700 = vunpack.c.l.b16 %v8698
    %v8701 = vunpack.c.l.b16 %v8699
    %v8702 = vrot.slane %v8331, 7
    %v8703 = vsel %vm3586, %v8702, %v8330
    %v8704 = vrot.slane %v8332, 6
    %v8705 = vsel %vm3588, %v8704, %v8703
    %v8706 = vrot.slane %v8333, 5
    %v8707 = vsel %vm3590, %v8706, %v8705
    %v8708 = vrot.slane %v8410, 4
    %v8709 = vsel %vm3592, %v8708, %v8707
    %v8710 = vrot.slane %v8480, 3
    %v8711 = vsel %vm3594, %v8710, %v8709
    %v8712 = vrot.slane %v8662, 2
    %v8713 = vsel %vm3596, %v8712, %v8711
    %v8714 = vrot.slane %v8700, 1
    %v8715 = vsel %vm3598, %v8714, %v8713
    %v8716 = vrot.slane %v8339, 7
    %v8717 = vsel %vm3586, %v8716, %v8338
    %v8718 = vrot.slane %v8340, 6
    %v8719 = vsel %vm3588, %v8718, %v8717
    %v8720 = vrot.slane %v8341, 5
    %v8721 = vsel %vm3590, %v8720, %v8719
    %v8722 = vrot.slane %v8411, 4
    %v8723 = vsel %vm3592, %v8722, %v8721
    %v8724 = vrot.slane %v8481, 3
    %v8725 = vsel %vm3594, %v8724, %v8723
    %v8726 = vrot.slane %v8663, 2
    %v8727 = vsel %vm3596, %v8726, %v8725
    %v8728 = vrot.slane %v8701, 1
    %v8729 = vsel %vm3598, %v8728, %v8727
    %v8730 = vpack.c.b16 %v8715, %v8715
    %v8731 = vpack.c.b16 %v8729, %v8729
    %8732 = vrot.lane.b32.xlu0 %v8263, 32
    %v8733 = vpop.permute.xlu0 %8732
    %8734 = vrot.lane.b32.xlu0 %v8264, 32
    %v8735 = vpop.permute.xlu0 %8734
    %8736 = vrot.lane.b32.xlu0 %v8265, 32
    %v8737 = vpop.permute.xlu0 %8736
    %8738 = vrot.lane.b32.xlu0 %v8266, 32
    %v8739 = vpop.permute.xlu0 %8738
    %8740 = vrot.lane.b32.xlu0 %v8267, 32
    %v8741 = vpop.permute.xlu0 %8740
    %8742 = vrot.lane.b32.xlu0 %v8268, 32
    %v8743 = vpop.permute.xlu0 %8742
    %8744 = vrot.lane.b32.xlu0 %v8269, 32
    %v8745 = vpop.permute.xlu0 %8744
    %8746 = vrot.lane.b32.xlu0 %v8730, 32
    %v8747 = vpop.permute.xlu0 %8746
    %8748 = vrot.lane.b32.xlu0 %v8271, 32
    %v8749 = vpop.permute.xlu0 %8748
    %8750 = vrot.lane.b32.xlu0 %v8272, 32
    %v8751 = vpop.permute.xlu0 %8750
    %8752 = vrot.lane.b32.xlu0 %v8273, 32
    %v8753 = vpop.permute.xlu0 %8752
    %8754 = vrot.lane.b32.xlu0 %v8274, 32
    %v8755 = vpop.permute.xlu0 %8754
    %8756 = vrot.lane.b32.xlu0 %v8275, 32
    %v8757 = vpop.permute.xlu0 %8756
    %8758 = vrot.lane.b32.xlu0 %v8276, 32
    %v8759 = vpop.permute.xlu0 %8758
    %8760 = vrot.lane.b32.xlu0 %v8277, 32
    %v8761 = vpop.permute.xlu0 %8760
    %8762 = vrot.lane.b32.xlu0 %v8731, 32
    %v8763 = vpop.permute.xlu0 %8762
    %v8780 = vunpack.c.l.b16 %v5920
    %v8781 = vunpack.c.l.b16 %v5921
    %v8782 = vunpack.c.l.b16 %v5922
    %v8783 = vunpack.c.l.b16 %v5923
    %v8784 = vunpack.c.l.b16 %v5924
    %v8785 = vunpack.c.l.b16 %v5925
    %v8786 = vunpack.c.l.b16 %v5926
    %v8787 = vunpack.c.l.b16 %v5927
    %v8788 = vunpack.c.l.b16 %v6064
    %v8789 = vunpack.c.l.b16 %v6065
    %v8790 = vunpack.c.l.b16 %v6066
    %v8791 = vunpack.c.l.b16 %v6067
    %v8792 = vunpack.c.l.b16 %v6068
    %v8793 = vunpack.c.l.b16 %v6069
    %v8794 = vunpack.c.l.b16 %v6070
    %v8795 = vunpack.c.l.b16 %v6071
    %v8796 = vpack.c.b16 %v8780, %v8780
    %v8797 = vpack.c.b16 %v8781, %v8781
    %v8798 = vpack.c.b16 %v8782, %v8782
    %v8799 = vpack.c.b16 %v8783, %v8783
    %v8800 = vpack.c.b16 %v8784, %v8784
    %v8801 = vpack.c.b16 %v8785, %v8785
    %v8802 = vpack.c.b16 %v8786, %v8786
    %v8803 = vpack.c.b16 %v8787, %v8787
    %v8804 = vpack.c.b16 %v8788, %v8788
    %v8805 = vpack.c.b16 %v8789, %v8789
    %v8806 = vpack.c.b16 %v8790, %v8790
    %v8807 = vpack.c.b16 %v8791, %v8791
    %v8808 = vpack.c.b16 %v8792, %v8792
    %v8809 = vpack.c.b16 %v8793, %v8793
    %v8810 = vpack.c.b16 %v8794, %v8794
    %v8811 = vpack.c.b16 %v8795, %v8795
    %v8812 = vunpack.c.l.b16 %v8796
    %v8813 = vunpack.c.l.b16 %v8797
    %v8814 = vunpack.c.l.b16 %v8798
    %v8815 = vunpack.c.l.b16 %v8799
    %v8816 = vunpack.c.l.b16 %v8800
    %v8817 = vunpack.c.l.b16 %v8801
    %v8818 = vunpack.c.l.b16 %v8802
    %v8819 = vunpack.c.l.b16 %v8803
    %v8820 = vunpack.c.l.b16 %v8804
    %v8821 = vunpack.c.l.b16 %v8805
    %v8822 = vunpack.c.l.b16 %v8806
    %v8823 = vunpack.c.l.b16 %v8807
    %v8824 = vunpack.c.l.b16 %v8808
    %v8825 = vunpack.c.l.b16 %v8809
    %v8826 = vunpack.c.l.b16 %v8810
    %v8827 = vunpack.c.l.b16 %v8811
    %v8828 = vrot.slane %v8813, 7
    %v8829 = vsel %vm3586, %v8828, %v8812
    %v8830 = vrot.slane %v8814, 6
    %v8831 = vsel %vm3588, %v8830, %v8829
    %v8832 = vrot.slane %v8815, 5
    %v8833 = vsel %vm3590, %v8832, %v8831
    %v8834 = vrot.slane %v8816, 4
    %v8835 = vsel %vm3592, %v8834, %v8833
    %v8836 = vrot.slane %v8817, 3
    %v8837 = vsel %vm3594, %v8836, %v8835
    %v8838 = vrot.slane %v8818, 2
    %v8839 = vsel %vm3596, %v8838, %v8837
    %v8840 = vrot.slane %v8819, 1
    %v8841 = vsel %vm3598, %v8840, %v8839
    %v8842 = vrot.slane %v8821, 7
    %v8843 = vsel %vm3586, %v8842, %v8820
    %v8844 = vrot.slane %v8822, 6
    %v8845 = vsel %vm3588, %v8844, %v8843
    %v8846 = vrot.slane %v8823, 5
    %v8847 = vsel %vm3590, %v8846, %v8845
    %v8848 = vrot.slane %v8824, 4
    %v8849 = vsel %vm3592, %v8848, %v8847
    %v8850 = vrot.slane %v8825, 3
    %v8851 = vsel %vm3594, %v8850, %v8849
    %v8852 = vrot.slane %v8826, 2
    %v8853 = vsel %vm3596, %v8852, %v8851
    %v8854 = vrot.slane %v8827, 1
    %v8855 = vsel %vm3598, %v8854, %v8853
    %v8856 = vpack.c.b16 %v8841, %v8841
    %v8857 = vpack.c.b16 %v8855, %v8855
    %8858 = vrot.lane.b32.xlu0 %v6838, 64
    %v8859 = vpop.permute.xlu0 %8858
    %8860 = vrot.lane.b32.xlu0 %v6839, 64
    %v8861 = vpop.permute.xlu0 %8860
    %8862 = vrot.lane.b32.xlu0 %v6840, 64
    %v8863 = vpop.permute.xlu0 %8862
    %8864 = vrot.lane.b32.xlu0 %v6841, 64
    %v8865 = vpop.permute.xlu0 %8864
    %8866 = vrot.lane.b32.xlu0 %v6842, 64
    %v8867 = vpop.permute.xlu0 %8866
    %8868 = vrot.lane.b32.xlu0 %v6843, 64
    %v8869 = vpop.permute.xlu0 %8868
    %8870 = vrot.lane.b32.xlu0 %v8370, 64
    %v8871 = vpop.permute.xlu0 %8870
    %8872 = vrot.lane.b32.xlu0 %v8856, 64
    %v8873 = vpop.permute.xlu0 %8872
    %8874 = vrot.lane.b32.xlu0 %v6846, 64
    %v8875 = vpop.permute.xlu0 %8874
    %8876 = vrot.lane.b32.xlu0 %v6847, 64
    %v8877 = vpop.permute.xlu0 %8876
    %8878 = vrot.lane.b32.xlu0 %v6848, 64
    %v8879 = vpop.permute.xlu0 %8878
    %8880 = vrot.lane.b32.xlu0 %v6849, 64
    %v8881 = vpop.permute.xlu0 %8880
    %8882 = vrot.lane.b32.xlu0 %v6850, 64
    %v8883 = vpop.permute.xlu0 %8882
    %8884 = vrot.lane.b32.xlu0 %v6851, 64
    %v8885 = vpop.permute.xlu0 %8884
    %8886 = vrot.lane.b32.xlu0 %v8371, 64
    %v8887 = vpop.permute.xlu0 %8886
    %8888 = vrot.lane.b32.xlu0 %v8857, 64
    %v8889 = vpop.permute.xlu0 %8888
    %v8892 = vunpack.c.l.b16 %v5928
    %v8893 = vunpack.c.l.b16 %v6072
    %v8894 = vpack.c.b16 %v8892, %v8892
    %v8895 = vpack.c.b16 %v8893, %v8893
    %v8896 = vunpack.c.l.b16 %v8894
    %v8897 = vunpack.c.l.b16 %v8895
    %v8898 = vrot.slane %v8814, 7
    %v8899 = vsel %vm3586, %v8898, %v8813
    %v8900 = vrot.slane %v8815, 6
    %v8901 = vsel %vm3588, %v8900, %v8899
    %v8902 = vrot.slane %v8816, 5
    %v8903 = vsel %vm3590, %v8902, %v8901
    %v8904 = vrot.slane %v8817, 4
    %v8905 = vsel %vm3592, %v8904, %v8903
    %v8906 = vrot.slane %v8818, 3
    %v8907 = vsel %vm3594, %v8906, %v8905
    %v8908 = vrot.slane %v8819, 2
    %v8909 = vsel %vm3596, %v8908, %v8907
    %v8910 = vrot.slane %v8896, 1
    %v8911 = vsel %vm3598, %v8910, %v8909
    %v8912 = vrot.slane %v8822, 7
    %v8913 = vsel %vm3586, %v8912, %v8821
    %v8914 = vrot.slane %v8823, 6
    %v8915 = vsel %vm3588, %v8914, %v8913
    %v8916 = vrot.slane %v8824, 5
    %v8917 = vsel %vm3590, %v8916, %v8915
    %v8918 = vrot.slane %v8825, 4
    %v8919 = vsel %vm3592, %v8918, %v8917
    %v8920 = vrot.slane %v8826, 3
    %v8921 = vsel %vm3594, %v8920, %v8919
    %v8922 = vrot.slane %v8827, 2
    %v8923 = vsel %vm3596, %v8922, %v8921
    %v8924 = vrot.slane %v8897, 1
    %v8925 = vsel %vm3598, %v8924, %v8923
    %v8926 = vpack.c.b16 %v8911, %v8911
    %v8927 = vpack.c.b16 %v8925, %v8925
    %8928 = vrot.lane.b32.xlu0 %v7142, 96
    %v8929 = vpop.permute.xlu0 %8928
    %8930 = vrot.lane.b32.xlu0 %v7143, 96
    %v8931 = vpop.permute.xlu0 %8930
    %8932 = vrot.lane.b32.xlu0 %v7144, 96
    %v8933 = vpop.permute.xlu0 %8932
    %8934 = vrot.lane.b32.xlu0 %v7145, 96
    %v8935 = vpop.permute.xlu0 %8934
    %8936 = vrot.lane.b32.xlu0 %v7146, 96
    %v8937 = vpop.permute.xlu0 %8936
    %8938 = vrot.lane.b32.xlu0 %v7147, 96
    %v8939 = vpop.permute.xlu0 %8938
    %8940 = vrot.lane.b32.xlu0 %v8440, 96
    %v8941 = vpop.permute.xlu0 %8940
    %8942 = vrot.lane.b32.xlu0 %v8926, 96
    %v8943 = vpop.permute.xlu0 %8942
    %8944 = vrot.lane.b32.xlu0 %v7150, 96
    %v8945 = vpop.permute.xlu0 %8944
    %8946 = vrot.lane.b32.xlu0 %v7151, 96
    %v8947 = vpop.permute.xlu0 %8946
    %8948 = vrot.lane.b32.xlu0 %v7152, 96
    %v8949 = vpop.permute.xlu0 %8948
    %8950 = vrot.lane.b32.xlu0 %v7153, 96
    %v8951 = vpop.permute.xlu0 %8950
    %8952 = vrot.lane.b32.xlu0 %v7154, 96
    %v8953 = vpop.permute.xlu0 %8952
    %8954 = vrot.lane.b32.xlu0 %v7155, 96
    %v8955 = vpop.permute.xlu0 %8954
    %8956 = vrot.lane.b32.xlu0 %v8441, 96
    %v8957 = vpop.permute.xlu0 %8956
    %8958 = vrot.lane.b32.xlu0 %v8927, 96
    %v8959 = vpop.permute.xlu0 %8958
    %v8962 = vsel %vm552, %v7813, %v8733
    %v8965 = vsel %vm552, %v7814, %v8735
    %v8968 = vsel %vm552, %v7815, %v8737
    %v8971 = vsel %vm552, %v7816, %v8739
    %v8974 = vsel %vm552, %v7817, %v8741
    %v8977 = vsel %vm552, %v7818, %v8743
    %v8980 = vsel %vm552, %v7819, %v8745
    %v8983 = vsel %vm552, %v8692, %v8747
    %v8986 = vsel %vm552, %v7821, %v8749
    %v8989 = vsel %vm552, %v7822, %v8751
    %v8992 = vsel %vm552, %v7823, %v8753
    %v8995 = vsel %vm552, %v7824, %v8755
    %v8998 = vsel %vm552, %v7825, %v8757
    %v9001 = vsel %vm552, %v7826, %v8759
    %v9004 = vsel %vm552, %v7827, %v8761
    %v9007 = vsel %vm552, %v8693, %v8763
    %v9009 = vsel %vm7908, %v8962, %v8859
    %v9011 = vsel %vm7908, %v8965, %v8861
    %v9013 = vsel %vm7908, %v8968, %v8863
    %v9015 = vsel %vm7908, %v8971, %v8865
    %v9017 = vsel %vm7908, %v8974, %v8867
    %v9019 = vsel %vm7908, %v8977, %v8869
    %v9021 = vsel %vm7908, %v8980, %v8871
    %v9023 = vsel %vm7908, %v8983, %v8873
    %v9025 = vsel %vm7908, %v8986, %v8875
    %v9027 = vsel %vm7908, %v8989, %v8877
    %v9029 = vsel %vm7908, %v8992, %v8879
    %v9031 = vsel %vm7908, %v8995, %v8881
    %v9033 = vsel %vm7908, %v8998, %v8883
    %v9035 = vsel %vm7908, %v9001, %v8885
    %v9037 = vsel %vm7908, %v9004, %v8887
    %v9039 = vsel %vm7908, %v9007, %v8889
    %v9041 = vsel %vm7941, %v9009, %v8929
    %v9043 = vsel %vm7941, %v9011, %v8931
    %v9045 = vsel %vm7941, %v9013, %v8933
    %v9047 = vsel %vm7941, %v9015, %v8935
    %v9049 = vsel %vm7941, %v9017, %v8937
    %v9051 = vsel %vm7941, %v9019, %v8939
    %v9053 = vsel %vm7941, %v9021, %v8941
    %v9055 = vsel %vm7941, %v9023, %v8943
    %v9057 = vsel %vm7941, %v9025, %v8945
    %v9059 = vsel %vm7941, %v9027, %v8947
    %v9061 = vsel %vm7941, %v9029, %v8949
    %v9063 = vsel %vm7941, %v9031, %v8951
    %v9065 = vsel %vm7941, %v9033, %v8953
    %v9067 = vsel %vm7941, %v9035, %v8955
    %v9069 = vsel %vm7941, %v9037, %v8957
    %v9071 = vsel %vm7941, %v9039, %v8959
    %v9074 = vunpack.c.l.b16 %v5929
    %v9075 = vunpack.c.l.b16 %v6073
    %v9076 = vpack.c.b16 %v9074, %v9074
    %v9077 = vpack.c.b16 %v9075, %v9075
    %v9078 = vunpack.c.l.b16 %v9076
    %v9079 = vunpack.c.l.b16 %v9077
    %v9080 = vrot.slane %v8815, 7
    %v9081 = vsel %vm3586, %v9080, %v8814
    %v9082 = vrot.slane %v8816, 6
    %v9083 = vsel %vm3588, %v9082, %v9081
    %v9084 = vrot.slane %v8817, 5
    %v9085 = vsel %vm3590, %v9084, %v9083
    %v9086 = vrot.slane %v8818, 4
    %v9087 = vsel %vm3592, %v9086, %v9085
    %v9088 = vrot.slane %v8819, 3
    %v9089 = vsel %vm3594, %v9088, %v9087
    %v9090 = vrot.slane %v8896, 2
    %v9091 = vsel %vm3596, %v9090, %v9089
    %v9092 = vrot.slane %v9078, 1
    %v9093 = vsel %vm3598, %v9092, %v9091
    %v9094 = vrot.slane %v8823, 7
    %v9095 = vsel %vm3586, %v9094, %v8822
    %v9096 = vrot.slane %v8824, 6
    %v9097 = vsel %vm3588, %v9096, %v9095
    %v9098 = vrot.slane %v8825, 5
    %v9099 = vsel %vm3590, %v9098, %v9097
    %v9100 = vrot.slane %v8826, 4
    %v9101 = vsel %vm3592, %v9100, %v9099
    %v9102 = vrot.slane %v8827, 3
    %v9103 = vsel %vm3594, %v9102, %v9101
    %v9104 = vrot.slane %v8897, 2
    %v9105 = vsel %vm3596, %v9104, %v9103
    %v9106 = vrot.slane %v9079, 1
    %v9107 = vsel %vm3598, %v9106, %v9105
    %v9108 = vpack.c.b16 %v9093, %v9093
    %v9109 = vpack.c.b16 %v9107, %v9107
    %v9112 = vunpack.c.l.b16 %v5930
    %v9113 = vunpack.c.l.b16 %v6074
    %v9114 = vpack.c.b16 %v9112, %v9112
    %v9115 = vpack.c.b16 %v9113, %v9113
    %v9116 = vunpack.c.l.b16 %v9114
    %v9117 = vunpack.c.l.b16 %v9115
    %v9118 = vrot.slane %v8816, 7
    %v9119 = vsel %vm3586, %v9118, %v8815
    %v9120 = vrot.slane %v8817, 6
    %v9121 = vsel %vm3588, %v9120, %v9119
    %v9122 = vrot.slane %v8818, 5
    %v9123 = vsel %vm3590, %v9122, %v9121
    %v9124 = vrot.slane %v8819, 4
    %v9125 = vsel %vm3592, %v9124, %v9123
    %v9126 = vrot.slane %v8896, 3
    %v9127 = vsel %vm3594, %v9126, %v9125
    %v9128 = vrot.slane %v9078, 2
    %v9129 = vsel %vm3596, %v9128, %v9127
    %v9130 = vrot.slane %v9116, 1
    %v9131 = vsel %vm3598, %v9130, %v9129
    %v9132 = vrot.slane %v8824, 7
    %v9133 = vsel %vm3586, %v9132, %v8823
    %v9134 = vrot.slane %v8825, 6
    %v9135 = vsel %vm3588, %v9134, %v9133
    %v9136 = vrot.slane %v8826, 5
    %v9137 = vsel %vm3590, %v9136, %v9135
    %v9138 = vrot.slane %v8827, 4
    %v9139 = vsel %vm3592, %v9138, %v9137
    %v9140 = vrot.slane %v8897, 3
    %v9141 = vsel %vm3594, %v9140, %v9139
    %v9142 = vrot.slane %v9079, 2
    %v9143 = vsel %vm3596, %v9142, %v9141
    %v9144 = vrot.slane %v9117, 1
    %v9145 = vsel %vm3598, %v9144, %v9143
    %v9146 = vpack.c.b16 %v9131, %v9131
    %v9147 = vpack.c.b16 %v9145, %v9145
    %9148 = vrot.lane.b32.xlu0 %v7814, 32
    %v9149 = vpop.permute.xlu0 %9148
    %9150 = vrot.lane.b32.xlu0 %v7815, 32
    %v9151 = vpop.permute.xlu0 %9150
    %9152 = vrot.lane.b32.xlu0 %v7816, 32
    %v9153 = vpop.permute.xlu0 %9152
    %9154 = vrot.lane.b32.xlu0 %v7817, 32
    %v9155 = vpop.permute.xlu0 %9154
    %9156 = vrot.lane.b32.xlu0 %v7818, 32
    %v9157 = vpop.permute.xlu0 %9156
    %9158 = vrot.lane.b32.xlu0 %v7819, 32
    %v9159 = vpop.permute.xlu0 %9158
    %9160 = vrot.lane.b32.xlu0 %v8692, 32
    %v9161 = vpop.permute.xlu0 %9160
    %9162 = vrot.lane.b32.xlu0 %v9146, 32
    %v9163 = vpop.permute.xlu0 %9162
    %9164 = vrot.lane.b32.xlu0 %v7822, 32
    %v9165 = vpop.permute.xlu0 %9164
    %9166 = vrot.lane.b32.xlu0 %v7823, 32
    %v9167 = vpop.permute.xlu0 %9166
    %9168 = vrot.lane.b32.xlu0 %v7824, 32
    %v9169 = vpop.permute.xlu0 %9168
    %9170 = vrot.lane.b32.xlu0 %v7825, 32
    %v9171 = vpop.permute.xlu0 %9170
    %9172 = vrot.lane.b32.xlu0 %v7826, 32
    %v9173 = vpop.permute.xlu0 %9172
    %9174 = vrot.lane.b32.xlu0 %v7827, 32
    %v9175 = vpop.permute.xlu0 %9174
    %9176 = vrot.lane.b32.xlu0 %v8693, 32
    %v9177 = vpop.permute.xlu0 %9176
    %9178 = vrot.lane.b32.xlu0 %v9147, 32
    %v9179 = vpop.permute.xlu0 %9178
    %v9182 = vunpack.c.l.b16 %v5931
    %v9183 = vunpack.c.l.b16 %v6075
    %v9184 = vpack.c.b16 %v9182, %v9182
    %v9185 = vpack.c.b16 %v9183, %v9183
    %v9186 = vunpack.c.l.b16 %v9184
    %v9187 = vunpack.c.l.b16 %v9185
    %v9188 = vrot.slane %v8817, 7
    %v9189 = vsel %vm3586, %v9188, %v8816
    %v9190 = vrot.slane %v8818, 6
    %v9191 = vsel %vm3588, %v9190, %v9189
    %v9192 = vrot.slane %v8819, 5
    %v9193 = vsel %vm3590, %v9192, %v9191
    %v9194 = vrot.slane %v8896, 4
    %v9195 = vsel %vm3592, %v9194, %v9193
    %v9196 = vrot.slane %v9078, 3
    %v9197 = vsel %vm3594, %v9196, %v9195
    %v9198 = vrot.slane %v9116, 2
    %v9199 = vsel %vm3596, %v9198, %v9197
    %v9200 = vrot.slane %v9186, 1
    %v9201 = vsel %vm3598, %v9200, %v9199
    %v9202 = vrot.slane %v8825, 7
    %v9203 = vsel %vm3586, %v9202, %v8824
    %v9204 = vrot.slane %v8826, 6
    %v9205 = vsel %vm3588, %v9204, %v9203
    %v9206 = vrot.slane %v8827, 5
    %v9207 = vsel %vm3590, %v9206, %v9205
    %v9208 = vrot.slane %v8897, 4
    %v9209 = vsel %vm3592, %v9208, %v9207
    %v9210 = vrot.slane %v9079, 3
    %v9211 = vsel %vm3594, %v9210, %v9209
    %v9212 = vrot.slane %v9117, 2
    %v9213 = vsel %vm3596, %v9212, %v9211
    %v9214 = vrot.slane %v9187, 1
    %v9215 = vsel %vm3598, %v9214, %v9213
    %v9216 = vpack.c.b16 %v9201, %v9201
    %v9217 = vpack.c.b16 %v9215, %v9215
    %9218 = vrot.lane.b32.xlu0 %v8264, 64
    %v9219 = vpop.permute.xlu0 %9218
    %9220 = vrot.lane.b32.xlu0 %v8265, 64
    %v9221 = vpop.permute.xlu0 %9220
    %9222 = vrot.lane.b32.xlu0 %v8266, 64
    %v9223 = vpop.permute.xlu0 %9222
    %9224 = vrot.lane.b32.xlu0 %v8267, 64
    %v9225 = vpop.permute.xlu0 %9224
    %9226 = vrot.lane.b32.xlu0 %v8268, 64
    %v9227 = vpop.permute.xlu0 %9226
    %9228 = vrot.lane.b32.xlu0 %v8269, 64
    %v9229 = vpop.permute.xlu0 %9228
    %9230 = vrot.lane.b32.xlu0 %v8730, 64
    %v9231 = vpop.permute.xlu0 %9230
    %9232 = vrot.lane.b32.xlu0 %v9216, 64
    %v9233 = vpop.permute.xlu0 %9232
    %9234 = vrot.lane.b32.xlu0 %v8272, 64
    %v9235 = vpop.permute.xlu0 %9234
    %9236 = vrot.lane.b32.xlu0 %v8273, 64
    %v9237 = vpop.permute.xlu0 %9236
    %9238 = vrot.lane.b32.xlu0 %v8274, 64
    %v9239 = vpop.permute.xlu0 %9238
    %9240 = vrot.lane.b32.xlu0 %v8275, 64
    %v9241 = vpop.permute.xlu0 %9240
    %9242 = vrot.lane.b32.xlu0 %v8276, 64
    %v9243 = vpop.permute.xlu0 %9242
    %9244 = vrot.lane.b32.xlu0 %v8277, 64
    %v9245 = vpop.permute.xlu0 %9244
    %9246 = vrot.lane.b32.xlu0 %v8731, 64
    %v9247 = vpop.permute.xlu0 %9246
    %9248 = vrot.lane.b32.xlu0 %v9217, 64
    %v9249 = vpop.permute.xlu0 %9248
    %v9266 = vunpack.c.l.b16 %v5932
    %v9267 = vunpack.c.l.b16 %v5933
    %v9268 = vunpack.c.l.b16 %v5934
    %v9269 = vunpack.c.l.b16 %v5935
    %v9270 = vunpack.c.l.b16 %v5936
    %v9271 = vunpack.c.l.b16 %v5937
    %v9272 = vunpack.c.l.b16 %v5938
    %v9273 = vunpack.c.l.b16 %v5939
    %v9274 = vunpack.c.l.b16 %v6076
    %v9275 = vunpack.c.l.b16 %v6077
    %v9276 = vunpack.c.l.b16 %v6078
    %v9277 = vunpack.c.l.b16 %v6079
    %v9278 = vunpack.c.l.b16 %v6080
    %v9279 = vunpack.c.l.b16 %v6081
    %v9280 = vunpack.c.l.b16 %v6082
    %v9281 = vunpack.c.l.b16 %v6083
    %v9282 = vpack.c.b16 %v9266, %v9266
    %v9283 = vpack.c.b16 %v9267, %v9267
    %v9284 = vpack.c.b16 %v9268, %v9268
    %v9285 = vpack.c.b16 %v9269, %v9269
    %v9286 = vpack.c.b16 %v9270, %v9270
    %v9287 = vpack.c.b16 %v9271, %v9271
    %v9288 = vpack.c.b16 %v9272, %v9272
    %v9289 = vpack.c.b16 %v9273, %v9273
    %v9290 = vpack.c.b16 %v9274, %v9274
    %v9291 = vpack.c.b16 %v9275, %v9275
    %v9292 = vpack.c.b16 %v9276, %v9276
    %v9293 = vpack.c.b16 %v9277, %v9277
    %v9294 = vpack.c.b16 %v9278, %v9278
    %v9295 = vpack.c.b16 %v9279, %v9279
    %v9296 = vpack.c.b16 %v9280, %v9280
    %v9297 = vpack.c.b16 %v9281, %v9281
    %v9298 = vunpack.c.l.b16 %v9282
    %v9299 = vunpack.c.l.b16 %v9283
    %v9300 = vunpack.c.l.b16 %v9284
    %v9301 = vunpack.c.l.b16 %v9285
    %v9302 = vunpack.c.l.b16 %v9286
    %v9303 = vunpack.c.l.b16 %v9287
    %v9304 = vunpack.c.l.b16 %v9288
    %v9305 = vunpack.c.l.b16 %v9289
    %v9306 = vunpack.c.l.b16 %v9290
    %v9307 = vunpack.c.l.b16 %v9291
    %v9308 = vunpack.c.l.b16 %v9292
    %v9309 = vunpack.c.l.b16 %v9293
    %v9310 = vunpack.c.l.b16 %v9294
    %v9311 = vunpack.c.l.b16 %v9295
    %v9312 = vunpack.c.l.b16 %v9296
    %v9313 = vunpack.c.l.b16 %v9297
    %v9314 = vrot.slane %v9299, 7
    %v9315 = vsel %vm3586, %v9314, %v9298
    %v9316 = vrot.slane %v9300, 6
    %v9317 = vsel %vm3588, %v9316, %v9315
    %v9318 = vrot.slane %v9301, 5
    %v9319 = vsel %vm3590, %v9318, %v9317
    %v9320 = vrot.slane %v9302, 4
    %v9321 = vsel %vm3592, %v9320, %v9319
    %v9322 = vrot.slane %v9303, 3
    %v9323 = vsel %vm3594, %v9322, %v9321
    %v9324 = vrot.slane %v9304, 2
    %v9325 = vsel %vm3596, %v9324, %v9323
    %v9326 = vrot.slane %v9305, 1
    %v9327 = vsel %vm3598, %v9326, %v9325
    %v9328 = vrot.slane %v9307, 7
    %v9329 = vsel %vm3586, %v9328, %v9306
    %v9330 = vrot.slane %v9308, 6
    %v9331 = vsel %vm3588, %v9330, %v9329
    %v9332 = vrot.slane %v9309, 5
    %v9333 = vsel %vm3590, %v9332, %v9331
    %v9334 = vrot.slane %v9310, 4
    %v9335 = vsel %vm3592, %v9334, %v9333
    %v9336 = vrot.slane %v9311, 3
    %v9337 = vsel %vm3594, %v9336, %v9335
    %v9338 = vrot.slane %v9312, 2
    %v9339 = vsel %vm3596, %v9338, %v9337
    %v9340 = vrot.slane %v9313, 1
    %v9341 = vsel %vm3598, %v9340, %v9339
    %v9342 = vpack.c.b16 %v9327, %v9327
    %v9343 = vpack.c.b16 %v9341, %v9341
    %9344 = vrot.lane.b32.xlu0 %v6839, 96
    %v9345 = vpop.permute.xlu0 %9344
    %9346 = vrot.lane.b32.xlu0 %v6840, 96
    %v9347 = vpop.permute.xlu0 %9346
    %9348 = vrot.lane.b32.xlu0 %v6841, 96
    %v9349 = vpop.permute.xlu0 %9348
    %9350 = vrot.lane.b32.xlu0 %v6842, 96
    %v9351 = vpop.permute.xlu0 %9350
    %9352 = vrot.lane.b32.xlu0 %v6843, 96
    %v9353 = vpop.permute.xlu0 %9352
    %9354 = vrot.lane.b32.xlu0 %v8370, 96
    %v9355 = vpop.permute.xlu0 %9354
    %9356 = vrot.lane.b32.xlu0 %v8856, 96
    %v9357 = vpop.permute.xlu0 %9356
    %9358 = vrot.lane.b32.xlu0 %v9342, 96
    %v9359 = vpop.permute.xlu0 %9358
    %9360 = vrot.lane.b32.xlu0 %v6847, 96
    %v9361 = vpop.permute.xlu0 %9360
    %9362 = vrot.lane.b32.xlu0 %v6848, 96
    %v9363 = vpop.permute.xlu0 %9362
    %9364 = vrot.lane.b32.xlu0 %v6849, 96
    %v9365 = vpop.permute.xlu0 %9364
    %9366 = vrot.lane.b32.xlu0 %v6850, 96
    %v9367 = vpop.permute.xlu0 %9366
    %9368 = vrot.lane.b32.xlu0 %v6851, 96
    %v9369 = vpop.permute.xlu0 %9368
    %9370 = vrot.lane.b32.xlu0 %v8371, 96
    %v9371 = vpop.permute.xlu0 %9370
    %9372 = vrot.lane.b32.xlu0 %v8857, 96
    %v9373 = vpop.permute.xlu0 %9372
    %9374 = vrot.lane.b32.xlu0 %v9343, 96
    %v9375 = vpop.permute.xlu0 %9374
    %v9378 = vsel %vm552, %v7478, %v9149
    %v9381 = vsel %vm552, %v7479, %v9151
    %v9384 = vsel %vm552, %v7480, %v9153
    %v9387 = vsel %vm552, %v7481, %v9155
    %v9390 = vsel %vm552, %v7482, %v9157
    %v9393 = vsel %vm552, %v7483, %v9159
    %v9396 = vsel %vm552, %v8510, %v9161
    %v9399 = vsel %vm552, %v9108, %v9163
    %v9402 = vsel %vm552, %v7486, %v9165
    %v9405 = vsel %vm552, %v7487, %v9167
    %v9408 = vsel %vm552, %v7488, %v9169
    %v9411 = vsel %vm552, %v7489, %v9171
    %v9414 = vsel %vm552, %v7490, %v9173
    %v9417 = vsel %vm552, %v7491, %v9175
    %v9420 = vsel %vm552, %v8511, %v9177
    %v9423 = vsel %vm552, %v9109, %v9179
    %v9425 = vsel %vm7908, %v9378, %v9219
    %v9427 = vsel %vm7908, %v9381, %v9221
    %v9429 = vsel %vm7908, %v9384, %v9223
    %v9431 = vsel %vm7908, %v9387, %v9225
    %v9433 = vsel %vm7908, %v9390, %v9227
    %v9435 = vsel %vm7908, %v9393, %v9229
    %v9437 = vsel %vm7908, %v9396, %v9231
    %v9439 = vsel %vm7908, %v9399, %v9233
    %v9441 = vsel %vm7908, %v9402, %v9235
    %v9443 = vsel %vm7908, %v9405, %v9237
    %v9445 = vsel %vm7908, %v9408, %v9239
    %v9447 = vsel %vm7908, %v9411, %v9241
    %v9449 = vsel %vm7908, %v9414, %v9243
    %v9451 = vsel %vm7908, %v9417, %v9245
    %v9453 = vsel %vm7908, %v9420, %v9247
    %v9455 = vsel %vm7908, %v9423, %v9249
    %v9457 = vsel %vm7941, %v9425, %v9345
    %v9459 = vsel %vm7941, %v9427, %v9347
    %v9461 = vsel %vm7941, %v9429, %v9349
    %v9463 = vsel %vm7941, %v9431, %v9351
    %v9465 = vsel %vm7941, %v9433, %v9353
    %v9467 = vsel %vm7941, %v9435, %v9355
    %v9469 = vsel %vm7941, %v9437, %v9357
    %v9471 = vsel %vm7941, %v9439, %v9359
    %v9473 = vsel %vm7941, %v9441, %v9361
    %v9475 = vsel %vm7941, %v9443, %v9363
    %v9477 = vsel %vm7941, %v9445, %v9365
    %v9479 = vsel %vm7941, %v9447, %v9367
    %v9481 = vsel %vm7941, %v9449, %v9369
    %v9483 = vsel %vm7941, %v9451, %v9371
    %v9485 = vsel %vm7941, %v9453, %v9373
    %v9487 = vsel %vm7941, %v9455, %v9375
    %v9490 = vunpack.c.l.b16 %v5940
    %v9491 = vunpack.c.l.b16 %v6084
    %v9492 = vpack.c.b16 %v9490, %v9490
    %v9493 = vpack.c.b16 %v9491, %v9491
    %v9494 = vunpack.c.l.b16 %v9492
    %v9495 = vunpack.c.l.b16 %v9493
    %v9496 = vrot.slane %v9300, 7
    %v9497 = vsel %vm3586, %v9496, %v9299
    %v9498 = vrot.slane %v9301, 6
    %v9499 = vsel %vm3588, %v9498, %v9497
    %v9500 = vrot.slane %v9302, 5
    %v9501 = vsel %vm3590, %v9500, %v9499
    %v9502 = vrot.slane %v9303, 4
    %v9503 = vsel %vm3592, %v9502, %v9501
    %v9504 = vrot.slane %v9304, 3
    %v9505 = vsel %vm3594, %v9504, %v9503
    %v9506 = vrot.slane %v9305, 2
    %v9507 = vsel %vm3596, %v9506, %v9505
    %v9508 = vrot.slane %v9494, 1
    %v9509 = vsel %vm3598, %v9508, %v9507
    %v9510 = vrot.slane %v9308, 7
    %v9511 = vsel %vm3586, %v9510, %v9307
    %v9512 = vrot.slane %v9309, 6
    %v9513 = vsel %vm3588, %v9512, %v9511
    %v9514 = vrot.slane %v9310, 5
    %v9515 = vsel %vm3590, %v9514, %v9513
    %v9516 = vrot.slane %v9311, 4
    %v9517 = vsel %vm3592, %v9516, %v9515
    %v9518 = vrot.slane %v9312, 3
    %v9519 = vsel %vm3594, %v9518, %v9517
    %v9520 = vrot.slane %v9313, 2
    %v9521 = vsel %vm3596, %v9520, %v9519
    %v9522 = vrot.slane %v9495, 1
    %v9523 = vsel %vm3598, %v9522, %v9521
    %v9524 = vpack.c.b16 %v9509, %v9509
    %v9525 = vpack.c.b16 %v9523, %v9523
    %v9528 = vunpack.c.l.b16 %v5941
    %v9529 = vunpack.c.l.b16 %v6085
    %v9530 = vpack.c.b16 %v9528, %v9528
    %v9531 = vpack.c.b16 %v9529, %v9529
    %v9532 = vunpack.c.l.b16 %v9530
    %v9533 = vunpack.c.l.b16 %v9531
    %v9534 = vrot.slane %v9301, 7
    %v9535 = vsel %vm3586, %v9534, %v9300
    %v9536 = vrot.slane %v9302, 6
    %v9537 = vsel %vm3588, %v9536, %v9535
    %v9538 = vrot.slane %v9303, 5
    %v9539 = vsel %vm3590, %v9538, %v9537
    %v9540 = vrot.slane %v9304, 4
    %v9541 = vsel %vm3592, %v9540, %v9539
    %v9542 = vrot.slane %v9305, 3
    %v9543 = vsel %vm3594, %v9542, %v9541
    %v9544 = vrot.slane %v9494, 2
    %v9545 = vsel %vm3596, %v9544, %v9543
    %v9546 = vrot.slane %v9532, 1
    %v9547 = vsel %vm3598, %v9546, %v9545
    %v9548 = vrot.slane %v9309, 7
    %v9549 = vsel %vm3586, %v9548, %v9308
    %v9550 = vrot.slane %v9310, 6
    %v9551 = vsel %vm3588, %v9550, %v9549
    %v9552 = vrot.slane %v9311, 5
    %v9553 = vsel %vm3590, %v9552, %v9551
    %v9554 = vrot.slane %v9312, 4
    %v9555 = vsel %vm3592, %v9554, %v9553
    %v9556 = vrot.slane %v9313, 3
    %v9557 = vsel %vm3594, %v9556, %v9555
    %v9558 = vrot.slane %v9495, 2
    %v9559 = vsel %vm3596, %v9558, %v9557
    %v9560 = vrot.slane %v9533, 1
    %v9561 = vsel %vm3598, %v9560, %v9559
    %v9562 = vpack.c.b16 %v9547, %v9547
    %v9563 = vpack.c.b16 %v9561, %v9561
    %9564 = vrot.lane.b32.xlu0 %v7479, 32
    %v9565 = vpop.permute.xlu0 %9564
    %9566 = vrot.lane.b32.xlu0 %v7480, 32
    %v9567 = vpop.permute.xlu0 %9566
    %9568 = vrot.lane.b32.xlu0 %v7481, 32
    %v9569 = vpop.permute.xlu0 %9568
    %9570 = vrot.lane.b32.xlu0 %v7482, 32
    %v9571 = vpop.permute.xlu0 %9570
    %9572 = vrot.lane.b32.xlu0 %v7483, 32
    %v9573 = vpop.permute.xlu0 %9572
    %9574 = vrot.lane.b32.xlu0 %v8510, 32
    %v9575 = vpop.permute.xlu0 %9574
    %9576 = vrot.lane.b32.xlu0 %v9108, 32
    %v9577 = vpop.permute.xlu0 %9576
    %9578 = vrot.lane.b32.xlu0 %v9562, 32
    %v9579 = vpop.permute.xlu0 %9578
    %9580 = vrot.lane.b32.xlu0 %v7487, 32
    %v9581 = vpop.permute.xlu0 %9580
    %9582 = vrot.lane.b32.xlu0 %v7488, 32
    %v9583 = vpop.permute.xlu0 %9582
    %9584 = vrot.lane.b32.xlu0 %v7489, 32
    %v9585 = vpop.permute.xlu0 %9584
    %9586 = vrot.lane.b32.xlu0 %v7490, 32
    %v9587 = vpop.permute.xlu0 %9586
    %9588 = vrot.lane.b32.xlu0 %v7491, 32
    %v9589 = vpop.permute.xlu0 %9588
    %9590 = vrot.lane.b32.xlu0 %v8511, 32
    %v9591 = vpop.permute.xlu0 %9590
    %9592 = vrot.lane.b32.xlu0 %v9109, 32
    %v9593 = vpop.permute.xlu0 %9592
    %9594 = vrot.lane.b32.xlu0 %v9563, 32
    %v9595 = vpop.permute.xlu0 %9594
    %v9598 = vunpack.c.l.b16 %v5942
    %v9599 = vunpack.c.l.b16 %v6086
    %v9600 = vpack.c.b16 %v9598, %v9598
    %v9601 = vpack.c.b16 %v9599, %v9599
    %v9602 = vunpack.c.l.b16 %v9600
    %v9603 = vunpack.c.l.b16 %v9601
    %v9604 = vrot.slane %v9302, 7
    %v9605 = vsel %vm3586, %v9604, %v9301
    %v9606 = vrot.slane %v9303, 6
    %v9607 = vsel %vm3588, %v9606, %v9605
    %v9608 = vrot.slane %v9304, 5
    %v9609 = vsel %vm3590, %v9608, %v9607
    %v9610 = vrot.slane %v9305, 4
    %v9611 = vsel %vm3592, %v9610, %v9609
    %v9612 = vrot.slane %v9494, 3
    %v9613 = vsel %vm3594, %v9612, %v9611
    %v9614 = vrot.slane %v9532, 2
    %v9615 = vsel %vm3596, %v9614, %v9613
    %v9616 = vrot.slane %v9602, 1
    %v9617 = vsel %vm3598, %v9616, %v9615
    %v9618 = vrot.slane %v9310, 7
    %v9619 = vsel %vm3586, %v9618, %v9309
    %v9620 = vrot.slane %v9311, 6
    %v9621 = vsel %vm3588, %v9620, %v9619
    %v9622 = vrot.slane %v9312, 5
    %v9623 = vsel %vm3590, %v9622, %v9621
    %v9624 = vrot.slane %v9313, 4
    %v9625 = vsel %vm3592, %v9624, %v9623
    %v9626 = vrot.slane %v9495, 3
    %v9627 = vsel %vm3594, %v9626, %v9625
    %v9628 = vrot.slane %v9533, 2
    %v9629 = vsel %vm3596, %v9628, %v9627
    %v9630 = vrot.slane %v9603, 1
    %v9631 = vsel %vm3598, %v9630, %v9629
    %v9632 = vpack.c.b16 %v9617, %v9617
    %v9633 = vpack.c.b16 %v9631, %v9631
    %9634 = vrot.lane.b32.xlu0 %v7815, 64
    %v9635 = vpop.permute.xlu0 %9634
    %9636 = vrot.lane.b32.xlu0 %v7816, 64
    %v9637 = vpop.permute.xlu0 %9636
    %9638 = vrot.lane.b32.xlu0 %v7817, 64
    %v9639 = vpop.permute.xlu0 %9638
    %9640 = vrot.lane.b32.xlu0 %v7818, 64
    %v9641 = vpop.permute.xlu0 %9640
    %9642 = vrot.lane.b32.xlu0 %v7819, 64
    %v9643 = vpop.permute.xlu0 %9642
    %9644 = vrot.lane.b32.xlu0 %v8692, 64
    %v9645 = vpop.permute.xlu0 %9644
    %9646 = vrot.lane.b32.xlu0 %v9146, 64
    %v9647 = vpop.permute.xlu0 %9646
    %9648 = vrot.lane.b32.xlu0 %v9632, 64
    %v9649 = vpop.permute.xlu0 %9648
    %9650 = vrot.lane.b32.xlu0 %v7823, 64
    %v9651 = vpop.permute.xlu0 %9650
    %9652 = vrot.lane.b32.xlu0 %v7824, 64
    %v9653 = vpop.permute.xlu0 %9652
    %9654 = vrot.lane.b32.xlu0 %v7825, 64
    %v9655 = vpop.permute.xlu0 %9654
    %9656 = vrot.lane.b32.xlu0 %v7826, 64
    %v9657 = vpop.permute.xlu0 %9656
    %9658 = vrot.lane.b32.xlu0 %v7827, 64
    %v9659 = vpop.permute.xlu0 %9658
    %9660 = vrot.lane.b32.xlu0 %v8693, 64
    %v9661 = vpop.permute.xlu0 %9660
    %9662 = vrot.lane.b32.xlu0 %v9147, 64
    %v9663 = vpop.permute.xlu0 %9662
    %9664 = vrot.lane.b32.xlu0 %v9633, 64
    %v9665 = vpop.permute.xlu0 %9664
    %v9668 = vunpack.c.l.b16 %v5943
    %v9669 = vunpack.c.l.b16 %v6087
    %v9670 = vpack.c.b16 %v9668, %v9668
    %v9671 = vpack.c.b16 %v9669, %v9669
    %v9672 = vunpack.c.l.b16 %v9670
    %v9673 = vunpack.c.l.b16 %v9671
    %v9674 = vrot.slane %v9303, 7
    %v9675 = vsel %vm3586, %v9674, %v9302
    %v9676 = vrot.slane %v9304, 6
    %v9677 = vsel %vm3588, %v9676, %v9675
    %v9678 = vrot.slane %v9305, 5
    %v9679 = vsel %vm3590, %v9678, %v9677
    %v9680 = vrot.slane %v9494, 4
    %v9681 = vsel %vm3592, %v9680, %v9679
    %v9682 = vrot.slane %v9532, 3
    %v9683 = vsel %vm3594, %v9682, %v9681
    %v9684 = vrot.slane %v9602, 2
    %v9685 = vsel %vm3596, %v9684, %v9683
    %v9686 = vrot.slane %v9672, 1
    %v9687 = vsel %vm3598, %v9686, %v9685
    %v9688 = vrot.slane %v9311, 7
    %v9689 = vsel %vm3586, %v9688, %v9310
    %v9690 = vrot.slane %v9312, 6
    %v9691 = vsel %vm3588, %v9690, %v9689
    %v9692 = vrot.slane %v9313, 5
    %v9693 = vsel %vm3590, %v9692, %v9691
    %v9694 = vrot.slane %v9495, 4
    %v9695 = vsel %vm3592, %v9694, %v9693
    %v9696 = vrot.slane %v9533, 3
    %v9697 = vsel %vm3594, %v9696, %v9695
    %v9698 = vrot.slane %v9603, 2
    %v9699 = vsel %vm3596, %v9698, %v9697
    %v9700 = vrot.slane %v9673, 1
    %v9701 = vsel %vm3598, %v9700, %v9699
    %v9702 = vpack.c.b16 %v9687, %v9687
    %v9703 = vpack.c.b16 %v9701, %v9701
    %9704 = vrot.lane.b32.xlu0 %v8265, 96
    %v9705 = vpop.permute.xlu0 %9704
    %9706 = vrot.lane.b32.xlu0 %v8266, 96
    %v9707 = vpop.permute.xlu0 %9706
    %9708 = vrot.lane.b32.xlu0 %v8267, 96
    %v9709 = vpop.permute.xlu0 %9708
    %9710 = vrot.lane.b32.xlu0 %v8268, 96
    %v9711 = vpop.permute.xlu0 %9710
    %9712 = vrot.lane.b32.xlu0 %v8269, 96
    %v9713 = vpop.permute.xlu0 %9712
    %9714 = vrot.lane.b32.xlu0 %v8730, 96
    %v9715 = vpop.permute.xlu0 %9714
    %9716 = vrot.lane.b32.xlu0 %v9216, 96
    %v9717 = vpop.permute.xlu0 %9716
    %9718 = vrot.lane.b32.xlu0 %v9702, 96
    %v9719 = vpop.permute.xlu0 %9718
    %9720 = vrot.lane.b32.xlu0 %v8273, 96
    %v9721 = vpop.permute.xlu0 %9720
    %9722 = vrot.lane.b32.xlu0 %v8274, 96
    %v9723 = vpop.permute.xlu0 %9722
    %9724 = vrot.lane.b32.xlu0 %v8275, 96
    %v9725 = vpop.permute.xlu0 %9724
    %9726 = vrot.lane.b32.xlu0 %v8276, 96
    %v9727 = vpop.permute.xlu0 %9726
    %9728 = vrot.lane.b32.xlu0 %v8277, 96
    %v9729 = vpop.permute.xlu0 %9728
    %9730 = vrot.lane.b32.xlu0 %v8731, 96
    %v9731 = vpop.permute.xlu0 %9730
    %9732 = vrot.lane.b32.xlu0 %v9217, 96
    %v9733 = vpop.permute.xlu0 %9732
    %9734 = vrot.lane.b32.xlu0 %v9703, 96
    %v9735 = vpop.permute.xlu0 %9734
    %v9738 = vsel %vm552, %v7143, %v9565
    %v9741 = vsel %vm552, %v7144, %v9567
    %v9744 = vsel %vm552, %v7145, %v9569
    %v9747 = vsel %vm552, %v7146, %v9571
    %v9750 = vsel %vm552, %v7147, %v9573
    %v9753 = vsel %vm552, %v8440, %v9575
    %v9756 = vsel %vm552, %v8926, %v9577
    %v9759 = vsel %vm552, %v9524, %v9579
    %v9762 = vsel %vm552, %v7151, %v9581
    %v9765 = vsel %vm552, %v7152, %v9583
    %v9768 = vsel %vm552, %v7153, %v9585
    %v9771 = vsel %vm552, %v7154, %v9587
    %v9774 = vsel %vm552, %v7155, %v9589
    %v9777 = vsel %vm552, %v8441, %v9591
    %v9780 = vsel %vm552, %v8927, %v9593
    %v9783 = vsel %vm552, %v9525, %v9595
    %v9785 = vsel %vm7908, %v9738, %v9635
    %v9787 = vsel %vm7908, %v9741, %v9637
    %v9789 = vsel %vm7908, %v9744, %v9639
    %v9791 = vsel %vm7908, %v9747, %v9641
    %v9793 = vsel %vm7908, %v9750, %v9643
    %v9795 = vsel %vm7908, %v9753, %v9645
    %v9797 = vsel %vm7908, %v9756, %v9647
    %v9799 = vsel %vm7908, %v9759, %v9649
    %v9801 = vsel %vm7908, %v9762, %v9651
    %v9803 = vsel %vm7908, %v9765, %v9653
    %v9805 = vsel %vm7908, %v9768, %v9655
    %v9807 = vsel %vm7908, %v9771, %v9657
    %v9809 = vsel %vm7908, %v9774, %v9659
    %v9811 = vsel %vm7908, %v9777, %v9661
    %v9813 = vsel %vm7908, %v9780, %v9663
    %v9815 = vsel %vm7908, %v9783, %v9665
    %v9817 = vsel %vm7941, %v9785, %v9705
    %v9819 = vsel %vm7941, %v9787, %v9707
    %v9821 = vsel %vm7941, %v9789, %v9709
    %v9823 = vsel %vm7941, %v9791, %v9711
    %v9825 = vsel %vm7941, %v9793, %v9713
    %v9827 = vsel %vm7941, %v9795, %v9715
    %v9829 = vsel %vm7941, %v9797, %v9717
    %v9831 = vsel %vm7941, %v9799, %v9719
    %v9833 = vsel %vm7941, %v9801, %v9721
    %v9835 = vsel %vm7941, %v9803, %v9723
    %v9837 = vsel %vm7941, %v9805, %v9725
    %v9839 = vsel %vm7941, %v9807, %v9727
    %v9841 = vsel %vm7941, %v9809, %v9729
    %v9843 = vsel %vm7941, %v9811, %v9731
    %v9845 = vsel %vm7941, %v9813, %v9733
    %v9847 = vsel %vm7941, %v9815, %v9735
    %v9864 = vunpack.c.l.b16 %v5944
    %v9865 = vunpack.c.l.b16 %v5945
    %v9866 = vunpack.c.l.b16 %v5946
    %v9867 = vunpack.c.l.b16 %v5947
    %v9868 = vunpack.c.l.b16 %v5948
    %v9869 = vunpack.c.l.b16 %v5949
    %v9870 = vunpack.c.l.b16 %v5950
    %v9871 = vunpack.c.l.b16 %v5951
    %v9872 = vunpack.c.l.b16 %v6088
    %v9873 = vunpack.c.l.b16 %v6089
    %v9874 = vunpack.c.l.b16 %v6090
    %v9875 = vunpack.c.l.b16 %v6091
    %v9876 = vunpack.c.l.b16 %v6092
    %v9877 = vunpack.c.l.b16 %v6093
    %v9878 = vunpack.c.l.b16 %v6094
    %v9879 = vunpack.c.l.b16 %v6095
    %v9880 = vpack.c.b16 %v9864, %v9864
    %v9881 = vpack.c.b16 %v9865, %v9865
    %v9882 = vpack.c.b16 %v9866, %v9866
    %v9883 = vpack.c.b16 %v9867, %v9867
    %v9884 = vpack.c.b16 %v9868, %v9868
    %v9885 = vpack.c.b16 %v9869, %v9869
    %v9886 = vpack.c.b16 %v9870, %v9870
    %v9887 = vpack.c.b16 %v9871, %v9871
    %v9888 = vpack.c.b16 %v9872, %v9872
    %v9889 = vpack.c.b16 %v9873, %v9873
    %v9890 = vpack.c.b16 %v9874, %v9874
    %v9891 = vpack.c.b16 %v9875, %v9875
    %v9892 = vpack.c.b16 %v9876, %v9876
    %v9893 = vpack.c.b16 %v9877, %v9877
    %v9894 = vpack.c.b16 %v9878, %v9878
    %v9895 = vpack.c.b16 %v9879, %v9879
    %v9896 = vunpack.c.l.b16 %v9880
    %v9897 = vunpack.c.l.b16 %v9881
    %v9898 = vunpack.c.l.b16 %v9882
    %v9899 = vunpack.c.l.b16 %v9883
    %v9900 = vunpack.c.l.b16 %v9884
    %v9901 = vunpack.c.l.b16 %v9885
    %v9902 = vunpack.c.l.b16 %v9886
    %v9903 = vunpack.c.l.b16 %v9887
    %v9904 = vunpack.c.l.b16 %v9888
    %v9905 = vunpack.c.l.b16 %v9889
    %v9906 = vunpack.c.l.b16 %v9890
    %v9907 = vunpack.c.l.b16 %v9891
    %v9908 = vunpack.c.l.b16 %v9892
    %v9909 = vunpack.c.l.b16 %v9893
    %v9910 = vunpack.c.l.b16 %v9894
    %v9911 = vunpack.c.l.b16 %v9895
    %v9912 = vrot.slane %v9897, 7
    %v9913 = vsel %vm3586, %v9912, %v9896
    %v9914 = vrot.slane %v9898, 6
    %v9915 = vsel %vm3588, %v9914, %v9913
    %v9916 = vrot.slane %v9899, 5
    %v9917 = vsel %vm3590, %v9916, %v9915
    %v9918 = vrot.slane %v9900, 4
    %v9919 = vsel %vm3592, %v9918, %v9917
    %v9920 = vrot.slane %v9901, 3
    %v9921 = vsel %vm3594, %v9920, %v9919
    %v9922 = vrot.slane %v9902, 2
    %v9923 = vsel %vm3596, %v9922, %v9921
    %v9924 = vrot.slane %v9903, 1
    %v9925 = vsel %vm3598, %v9924, %v9923
    %v9926 = vrot.slane %v9905, 7
    %v9927 = vsel %vm3586, %v9926, %v9904
    %v9928 = vrot.slane %v9906, 6
    %v9929 = vsel %vm3588, %v9928, %v9927
    %v9930 = vrot.slane %v9907, 5
    %v9931 = vsel %vm3590, %v9930, %v9929
    %v9932 = vrot.slane %v9908, 4
    %v9933 = vsel %vm3592, %v9932, %v9931
    %v9934 = vrot.slane %v9909, 3
    %v9935 = vsel %vm3594, %v9934, %v9933
    %v9936 = vrot.slane %v9910, 2
    %v9937 = vsel %vm3596, %v9936, %v9935
    %v9938 = vrot.slane %v9911, 1
    %v9939 = vsel %vm3598, %v9938, %v9937
    %v9940 = vpack.c.b16 %v9925, %v9925
    %v9941 = vpack.c.b16 %v9939, %v9939
    %v9944 = vunpack.c.l.b16 %v5952
    %v9945 = vunpack.c.l.b16 %v6096
    %v9946 = vpack.c.b16 %v9944, %v9944
    %v9947 = vpack.c.b16 %v9945, %v9945
    %v9948 = vunpack.c.l.b16 %v9946
    %v9949 = vunpack.c.l.b16 %v9947
    %v9950 = vrot.slane %v9898, 7
    %v9951 = vsel %vm3586, %v9950, %v9897
    %v9952 = vrot.slane %v9899, 6
    %v9953 = vsel %vm3588, %v9952, %v9951
    %v9954 = vrot.slane %v9900, 5
    %v9955 = vsel %vm3590, %v9954, %v9953
    %v9956 = vrot.slane %v9901, 4
    %v9957 = vsel %vm3592, %v9956, %v9955
    %v9958 = vrot.slane %v9902, 3
    %v9959 = vsel %vm3594, %v9958, %v9957
    %v9960 = vrot.slane %v9903, 2
    %v9961 = vsel %vm3596, %v9960, %v9959
    %v9962 = vrot.slane %v9948, 1
    %v9963 = vsel %vm3598, %v9962, %v9961
    %v9964 = vrot.slane %v9906, 7
    %v9965 = vsel %vm3586, %v9964, %v9905
    %v9966 = vrot.slane %v9907, 6
    %v9967 = vsel %vm3588, %v9966, %v9965
    %v9968 = vrot.slane %v9908, 5
    %v9969 = vsel %vm3590, %v9968, %v9967
    %v9970 = vrot.slane %v9909, 4
    %v9971 = vsel %vm3592, %v9970, %v9969
    %v9972 = vrot.slane %v9910, 3
    %v9973 = vsel %vm3594, %v9972, %v9971
    %v9974 = vrot.slane %v9911, 2
    %v9975 = vsel %vm3596, %v9974, %v9973
    %v9976 = vrot.slane %v9949, 1
    %v9977 = vsel %vm3598, %v9976, %v9975
    %v9978 = vpack.c.b16 %v9963, %v9963
    %v9979 = vpack.c.b16 %v9977, %v9977
    %9980 = vrot.lane.b32.xlu0 %v8440, 32
    %v9981 = vpop.permute.xlu0 %9980
    %9982 = vrot.lane.b32.xlu0 %v8926, 32
    %v9983 = vpop.permute.xlu0 %9982
    %9984 = vrot.lane.b32.xlu0 %v9524, 32
    %v9985 = vpop.permute.xlu0 %9984
    %9986 = vrot.lane.b32.xlu0 %v9978, 32
    %v9987 = vpop.permute.xlu0 %9986
    %9988 = vrot.lane.b32.xlu0 %v8441, 32
    %v9989 = vpop.permute.xlu0 %9988
    %9990 = vrot.lane.b32.xlu0 %v8927, 32
    %v9991 = vpop.permute.xlu0 %9990
    %9992 = vrot.lane.b32.xlu0 %v9525, 32
    %v9993 = vpop.permute.xlu0 %9992
    %9994 = vrot.lane.b32.xlu0 %v9979, 32
    %v9995 = vpop.permute.xlu0 %9994
    %v9998 = vunpack.c.l.b16 %v5953
    %v9999 = vunpack.c.l.b16 %v6097
    %v10000 = vpack.c.b16 %v9998, %v9998
    %v10001 = vpack.c.b16 %v9999, %v9999
    %v10002 = vunpack.c.l.b16 %v10000
    %v10003 = vunpack.c.l.b16 %v10001
    %v10004 = vrot.slane %v9899, 7
    %v10005 = vsel %vm3586, %v10004, %v9898
    %v10006 = vrot.slane %v9900, 6
    %v10007 = vsel %vm3588, %v10006, %v10005
    %v10008 = vrot.slane %v9901, 5
    %v10009 = vsel %vm3590, %v10008, %v10007
    %v10010 = vrot.slane %v9902, 4
    %v10011 = vsel %vm3592, %v10010, %v10009
    %v10012 = vrot.slane %v9903, 3
    %v10013 = vsel %vm3594, %v10012, %v10011
    %v10014 = vrot.slane %v9948, 2
    %v10015 = vsel %vm3596, %v10014, %v10013
    %v10016 = vrot.slane %v10002, 1
    %v10017 = vsel %vm3598, %v10016, %v10015
    %v10018 = vrot.slane %v9907, 7
    %v10019 = vsel %vm3586, %v10018, %v9906
    %v10020 = vrot.slane %v9908, 6
    %v10021 = vsel %vm3588, %v10020, %v10019
    %v10022 = vrot.slane %v9909, 5
    %v10023 = vsel %vm3590, %v10022, %v10021
    %v10024 = vrot.slane %v9910, 4
    %v10025 = vsel %vm3592, %v10024, %v10023
    %v10026 = vrot.slane %v9911, 3
    %v10027 = vsel %vm3594, %v10026, %v10025
    %v10028 = vrot.slane %v9949, 2
    %v10029 = vsel %vm3596, %v10028, %v10027
    %v10030 = vrot.slane %v10003, 1
    %v10031 = vsel %vm3598, %v10030, %v10029
    %v10032 = vpack.c.b16 %v10017, %v10017
    %v10033 = vpack.c.b16 %v10031, %v10031
    %10034 = vrot.lane.b32.xlu0 %v8510, 64
    %v10035 = vpop.permute.xlu0 %10034
    %10036 = vrot.lane.b32.xlu0 %v9108, 64
    %v10037 = vpop.permute.xlu0 %10036
    %10038 = vrot.lane.b32.xlu0 %v9562, 64
    %v10039 = vpop.permute.xlu0 %10038
    %10040 = vrot.lane.b32.xlu0 %v10032, 64
    %v10041 = vpop.permute.xlu0 %10040
    %10042 = vrot.lane.b32.xlu0 %v8511, 64
    %v10043 = vpop.permute.xlu0 %10042
    %10044 = vrot.lane.b32.xlu0 %v9109, 64
    %v10045 = vpop.permute.xlu0 %10044
    %10046 = vrot.lane.b32.xlu0 %v9563, 64
    %v10047 = vpop.permute.xlu0 %10046
    %10048 = vrot.lane.b32.xlu0 %v10033, 64
    %v10049 = vpop.permute.xlu0 %10048
    %v10052 = vunpack.c.l.b16 %v5954
    %v10053 = vunpack.c.l.b16 %v6098
    %v10054 = vpack.c.b16 %v10052, %v10052
    %v10055 = vpack.c.b16 %v10053, %v10053
    %v10056 = vunpack.c.l.b16 %v10054
    %v10057 = vunpack.c.l.b16 %v10055
    %v10058 = vrot.slane %v9900, 7
    %v10059 = vsel %vm3586, %v10058, %v9899
    %v10060 = vrot.slane %v9901, 6
    %v10061 = vsel %vm3588, %v10060, %v10059
    %v10062 = vrot.slane %v9902, 5
    %v10063 = vsel %vm3590, %v10062, %v10061
    %v10064 = vrot.slane %v9903, 4
    %v10065 = vsel %vm3592, %v10064, %v10063
    %v10066 = vrot.slane %v9948, 3
    %v10067 = vsel %vm3594, %v10066, %v10065
    %v10068 = vrot.slane %v10002, 2
    %v10069 = vsel %vm3596, %v10068, %v10067
    %v10070 = vrot.slane %v10056, 1
    %v10071 = vsel %vm3598, %v10070, %v10069
    %v10072 = vrot.slane %v9908, 7
    %v10073 = vsel %vm3586, %v10072, %v9907
    %v10074 = vrot.slane %v9909, 6
    %v10075 = vsel %vm3588, %v10074, %v10073
    %v10076 = vrot.slane %v9910, 5
    %v10077 = vsel %vm3590, %v10076, %v10075
    %v10078 = vrot.slane %v9911, 4
    %v10079 = vsel %vm3592, %v10078, %v10077
    %v10080 = vrot.slane %v9949, 3
    %v10081 = vsel %vm3594, %v10080, %v10079
    %v10082 = vrot.slane %v10003, 2
    %v10083 = vsel %vm3596, %v10082, %v10081
    %v10084 = vrot.slane %v10057, 1
    %v10085 = vsel %vm3598, %v10084, %v10083
    %v10086 = vpack.c.b16 %v10071, %v10071
    %v10087 = vpack.c.b16 %v10085, %v10085
    %10088 = vrot.lane.b32.xlu0 %v8692, 96
    %v10089 = vpop.permute.xlu0 %10088
    %10090 = vrot.lane.b32.xlu0 %v9146, 96
    %v10091 = vpop.permute.xlu0 %10090
    %10092 = vrot.lane.b32.xlu0 %v9632, 96
    %v10093 = vpop.permute.xlu0 %10092
    %10094 = vrot.lane.b32.xlu0 %v10086, 96
    %v10095 = vpop.permute.xlu0 %10094
    %10096 = vrot.lane.b32.xlu0 %v8693, 96
    %v10097 = vpop.permute.xlu0 %10096
    %10098 = vrot.lane.b32.xlu0 %v9147, 96
    %v10099 = vpop.permute.xlu0 %10098
    %10100 = vrot.lane.b32.xlu0 %v9633, 96
    %v10101 = vpop.permute.xlu0 %10100
    %10102 = vrot.lane.b32.xlu0 %v10087, 96
    %v10103 = vpop.permute.xlu0 %10102
    %v10106 = vsel %vm552, %v8370, %v9981
    %v10109 = vsel %vm552, %v8856, %v9983
    %v10112 = vsel %vm552, %v9342, %v9985
    %v10115 = vsel %vm552, %v9940, %v9987
    %v10118 = vsel %vm552, %v8371, %v9989
    %v10121 = vsel %vm552, %v8857, %v9991
    %v10124 = vsel %vm552, %v9343, %v9993
    %v10127 = vsel %vm552, %v9941, %v9995
    %v10129 = vsel %vm7908, %v10106, %v10035
    %v10131 = vsel %vm7908, %v10109, %v10037
    %v10133 = vsel %vm7908, %v10112, %v10039
    %v10135 = vsel %vm7908, %v10115, %v10041
    %v10137 = vsel %vm7908, %v10118, %v10043
    %v10139 = vsel %vm7908, %v10121, %v10045
    %v10141 = vsel %vm7908, %v10124, %v10047
    %v10143 = vsel %vm7908, %v10127, %v10049
    %v10145 = vsel %vm7941, %v10129, %v10089
    %v10147 = vsel %vm7941, %v10131, %v10091
    %v10149 = vsel %vm7941, %v10133, %v10093
    %v10151 = vsel %vm7941, %v10135, %v10095
    %v10153 = vsel %vm7941, %v10137, %v10097
    %v10155 = vsel %vm7941, %v10139, %v10099
    %v10157 = vsel %vm7941, %v10141, %v10101
    %v10159 = vsel %vm7941, %v10143, %v10103
    %v10162 = vunpack.c.l.b16 %v5955
    %v10163 = vunpack.c.l.b16 %v6099
    %v10164 = vpack.c.b16 %v10162, %v10162
    %v10165 = vpack.c.b16 %v10163, %v10163
    %v10166 = vunpack.c.l.b16 %v10164
    %v10167 = vunpack.c.l.b16 %v10165
    %v10168 = vrot.slane %v9901, 7
    %v10169 = vsel %vm3586, %v10168, %v9900
    %v10170 = vrot.slane %v9902, 6
    %v10171 = vsel %vm3588, %v10170, %v10169
    %v10172 = vrot.slane %v9903, 5
    %v10173 = vsel %vm3590, %v10172, %v10171
    %v10174 = vrot.slane %v9948, 4
    %v10175 = vsel %vm3592, %v10174, %v10173
    %v10176 = vrot.slane %v10002, 3
    %v10177 = vsel %vm3594, %v10176, %v10175
    %v10178 = vrot.slane %v10056, 2
    %v10179 = vsel %vm3596, %v10178, %v10177
    %v10180 = vrot.slane %v10166, 1
    %v10181 = vsel %vm3598, %v10180, %v10179
    %v10182 = vrot.slane %v9909, 7
    %v10183 = vsel %vm3586, %v10182, %v9908
    %v10184 = vrot.slane %v9910, 6
    %v10185 = vsel %vm3588, %v10184, %v10183
    %v10186 = vrot.slane %v9911, 5
    %v10187 = vsel %vm3590, %v10186, %v10185
    %v10188 = vrot.slane %v9949, 4
    %v10189 = vsel %vm3592, %v10188, %v10187
    %v10190 = vrot.slane %v10003, 3
    %v10191 = vsel %vm3594, %v10190, %v10189
    %v10192 = vrot.slane %v10057, 2
    %v10193 = vsel %vm3596, %v10192, %v10191
    %v10194 = vrot.slane %v10167, 1
    %v10195 = vsel %vm3598, %v10194, %v10193
    %v10196 = vpack.c.b16 %v10181, %v10181
    %v10197 = vpack.c.b16 %v10195, %v10195
    %v10199 = vsel %vm552, %v8266, 0
    %v10200 = vsel %vm552, %v8267, 0
    %v10201 = vsel %vm552, %v8268, 0
    %v10202 = vsel %vm552, %v8269, 0
    %v10204 = vsel %vm552, %v8730, 0
    %v10206 = vsel %vm552, %v9216, 0
    %v10208 = vsel %vm552, %v9702, 0
    %v10210 = vsel %vm552, %v10196, 0
    %v10211 = vsel %vm552, %v8274, 0
    %v10212 = vsel %vm552, %v8275, 0
    %v10213 = vsel %vm552, %v8276, 0
    %v10214 = vsel %vm552, %v8277, 0
    %v10216 = vsel %vm552, %v8731, 0
    %v10218 = vsel %vm552, %v9217, 0
    %v10220 = vsel %vm552, %v9703, 0
    %v10222 = vsel %vm552, %v10197, 0
    %v10327 = vunpack.c.l.b16 %v7943
    %v10328 = vunpack.c.l.b16 %v8625
    %v10329 = vunpack.c.l.b16 %v9041
    %v10330 = vunpack.c.l.b16 %v9457
    %v10331 = vunpack.c.l.b16 %v9817
    %v10332 = vunpack.c.l.b16 %v7951
    %v10333 = vunpack.c.l.b16 %v10199
    %v10334 = vunpack.c.l.b16 %v7945
    %v10335 = vunpack.c.l.b16 %v8627
    %v10336 = vunpack.c.l.b16 %v9043
    %v10337 = vunpack.c.l.b16 %v9459
    %v10338 = vunpack.c.l.b16 %v9819
    %v10339 = vunpack.c.l.b16 %v7953
    %v10340 = vunpack.c.l.b16 %v10200
    %v10341 = vunpack.c.l.b16 %v7947
    %v10342 = vunpack.c.l.b16 %v8629
    %v10343 = vunpack.c.l.b16 %v9045
    %v10344 = vunpack.c.l.b16 %v9461
    %v10345 = vunpack.c.l.b16 %v9821
    %v10346 = vunpack.c.l.b16 %v7955
    %v10347 = vunpack.c.l.b16 %v10201
    %v10348 = vunpack.c.l.b16 %v7949
    %v10349 = vunpack.c.l.b16 %v8631
    %v10350 = vunpack.c.l.b16 %v9047
    %v10351 = vunpack.c.l.b16 %v9463
    %v10352 = vunpack.c.l.b16 %v9823
    %v10353 = vunpack.c.l.b16 %v7957
    %v10354 = vunpack.c.l.b16 %v10202
    %v10355 = vunpack.c.l.b16 %v8633
    %v10356 = vunpack.c.l.b16 %v9049
    %v10357 = vunpack.c.l.b16 %v9465
    %v10358 = vunpack.c.l.b16 %v9825
    %v10359 = vunpack.c.l.b16 %v10145
    %v10360 = vunpack.c.l.b16 %v10204
    %v10361 = vunpack.c.l.b16 %v8635
    %v10362 = vunpack.c.l.b16 %v9051
    %v10363 = vunpack.c.l.b16 %v9467
    %v10364 = vunpack.c.l.b16 %v9827
    %v10365 = vunpack.c.l.b16 %v10147
    %v10366 = vunpack.c.l.b16 %v10206
    %v10367 = vunpack.c.l.b16 %v8637
    %v10368 = vunpack.c.l.b16 %v9053
    %v10369 = vunpack.c.l.b16 %v9469
    %v10370 = vunpack.c.l.b16 %v9829
    %v10371 = vunpack.c.l.b16 %v10149
    %v10372 = vunpack.c.l.b16 %v10208
    %v10373 = vunpack.c.l.b16 %v8639
    %v10374 = vunpack.c.l.b16 %v9055
    %v10375 = vunpack.c.l.b16 %v9471
    %v10376 = vunpack.c.l.b16 %v9831
    %v10377 = vunpack.c.l.b16 %v10151
    %v10378 = vunpack.c.l.b16 %v10210
    %v10379 = vunpack.c.l.b16 %v7959
    %v10380 = vunpack.c.l.b16 %v8641
    %v10381 = vunpack.c.l.b16 %v9057
    %v10382 = vunpack.c.l.b16 %v9473
    %v10383 = vunpack.c.l.b16 %v9833
    %v10384 = vunpack.c.l.b16 %v7967
    %v10385 = vunpack.c.l.b16 %v10211
    %v10386 = vunpack.c.l.b16 %v7961
    %v10387 = vunpack.c.l.b16 %v8643
    %v10388 = vunpack.c.l.b16 %v9059
    %v10389 = vunpack.c.l.b16 %v9475
    %v10390 = vunpack.c.l.b16 %v9835
    %v10391 = vunpack.c.l.b16 %v7969
    %v10392 = vunpack.c.l.b16 %v10212
    %v10393 = vunpack.c.l.b16 %v7963
    %v10394 = vunpack.c.l.b16 %v8645
    %v10395 = vunpack.c.l.b16 %v9061
    %v10396 = vunpack.c.l.b16 %v9477
    %v10397 = vunpack.c.l.b16 %v9837
    %v10398 = vunpack.c.l.b16 %v7971
    %v10399 = vunpack.c.l.b16 %v10213
    %v10400 = vunpack.c.l.b16 %v7965
    %v10401 = vunpack.c.l.b16 %v8647
    %v10402 = vunpack.c.l.b16 %v9063
    %v10403 = vunpack.c.l.b16 %v9479
    %v10404 = vunpack.c.l.b16 %v9839
    %v10405 = vunpack.c.l.b16 %v7973
    %v10406 = vunpack.c.l.b16 %v10214
    %v10407 = vunpack.c.l.b16 %v8649
    %v10408 = vunpack.c.l.b16 %v9065
    %v10409 = vunpack.c.l.b16 %v9481
    %v10410 = vunpack.c.l.b16 %v9841
    %v10411 = vunpack.c.l.b16 %v10153
    %v10412 = vunpack.c.l.b16 %v10216
    %v10413 = vunpack.c.l.b16 %v8651
    %v10414 = vunpack.c.l.b16 %v9067
    %v10415 = vunpack.c.l.b16 %v9483
    %v10416 = vunpack.c.l.b16 %v9843
    %v10417 = vunpack.c.l.b16 %v10155
    %v10418 = vunpack.c.l.b16 %v10218
    %v10419 = vunpack.c.l.b16 %v8653
    %v10420 = vunpack.c.l.b16 %v9069
    %v10421 = vunpack.c.l.b16 %v9485
    %v10422 = vunpack.c.l.b16 %v9845
    %v10423 = vunpack.c.l.b16 %v10157
    %v10424 = vunpack.c.l.b16 %v10220
    %v10425 = vunpack.c.l.b16 %v8655
    %v10426 = vunpack.c.l.b16 %v9071
    %v10427 = vunpack.c.l.b16 %v9487
    %v10428 = vunpack.c.l.b16 %v9847
    %v10429 = vunpack.c.l.b16 %v10159
    %v10430 = vunpack.c.l.b16 %v10222
    %v10431 = vld [vmem:[%s3] sm:$0xf]
    %v10432 = vld [vmem:[%s3 + $0x4] sm:$0xf]
    %v10433 = vld [vmem:[%s3 + $0x8] sm:$0xf]
    %v10434 = vld [vmem:[%s3 + $0xc] sm:$0xf]
    %v10435 = vld [vmem:[%s3 + $0x10] sm:$0xf]
    %v10436 = vld [vmem:[%s3 + $0x14] sm:$0xf]
    %v10437 = vld [vmem:[%s3 + $0x18] sm:$0xf]
    %v10438 = vld [vmem:[%s3 + $0x1c] sm:$0xf]
    %v10439 = vld [vmem:[%s3 + $0x20] sm:$0xf]
    %v10440 = vld [vmem:[%s3 + $0x24] sm:$0xf]
    %v10441 = vld [vmem:[%s3 + $0x28] sm:$0xf]
    %v10442 = vld [vmem:[%s3 + $0x2c] sm:$0xf]
    %v10443 = vld [vmem:[%s3 + $0x30] sm:$0xf]
    %v10444 = vld [vmem:[%s3 + $0x34] sm:$0xf]
    %v10445 = vld [vmem:[%s3 + $0x38] sm:$0xf]
    %v10446 = vld [vmem:[%s3 + $0x3c] sm:$0xf]
    %v10447 = vld [vmem:[%s3 + $0x40] sm:$0xf]
    %v10448 = vld [vmem:[%s3 + $0x44] sm:$0xf]
    %v10449 = vld [vmem:[%s3 + $0x48] sm:$0xf]
    %v10450 = vld [vmem:[%s3 + $0x4c] sm:$0xf]
    %v10451 = vld [vmem:[%s3 + $0x50] sm:$0xf]
    %v10452 = vld [vmem:[%s3 + $0x54] sm:$0xf]
    %v10453 = vld [vmem:[%s3 + $0x58] sm:$0xf]
    %v10454 = vld [vmem:[%s3 + $0x5c] sm:$0xf]
    %v10455 = vld [vmem:[%s3 + $0x60] sm:$0xf]
    %v10456 = vld [vmem:[%s3 + $0x64] sm:$0xf]
    %v10457 = vld [vmem:[%s3 + $0x68] sm:$0xf]
    %v10458 = vld [vmem:[%s3 + $0x6c] sm:$0xf]
    %v10459 = vld [vmem:[%s3 + $0x70] sm:$0xf]
    %v10460 = vld [vmem:[%s3 + $0x74] sm:$0xf]
    %v10461 = vld [vmem:[%s3 + $0x78] sm:$0xf]
    %v10462 = vld [vmem:[%s3 + $0x7c] sm:$0xf]
    %v10463 = vld [vmem:[%s3 + $0x80] sm:$0xf]
    %v10464 = vld [vmem:[%s3 + $0x84] sm:$0xf]
    %v10465 = vld [vmem:[%s3 + $0x88] sm:$0xf]
    %v10466 = vld [vmem:[%s3 + $0x8c] sm:$0xf]
    %v10467 = vld [vmem:[%s3 + $0x90] sm:$0xf]
    %v10468 = vld [vmem:[%s3 + $0x94] sm:$0xf]
    %v10469 = vld [vmem:[%s3 + $0x98] sm:$0xf]
    %v10470 = vld [vmem:[%s3 + $0x9c] sm:$0xf]
    %v10471 = vld [vmem:[%s3 + $0xa0] sm:$0xf]
    %v10472 = vld [vmem:[%s3 + $0xa4] sm:$0xf]
    %v10473 = vld [vmem:[%s3 + $0xa8] sm:$0xf]
    %v10474 = vld [vmem:[%s3 + $0xac] sm:$0xf]
    %v10475 = vld [vmem:[%s3 + $0xb0] sm:$0xf]
    %v10476 = vld [vmem:[%s3 + $0xb4] sm:$0xf]
    %v10477 = vld [vmem:[%s3 + $0xb8] sm:$0xf]
    %v10478 = vld [vmem:[%s3 + $0xbc] sm:$0xf]
    %v10479 = vld [vmem:[%s3 + $0xc0] sm:$0xf]
    %v10480 = vld [vmem:[%s3 + $0xc4] sm:$0xf]
    %v10481 = vld [vmem:[%s3 + $0xc8] sm:$0xf]
    %v10482 = vld [vmem:[%s3 + $0xcc] sm:$0xf]
    %v10483 = vld [vmem:[%s3 + $0xd0] sm:$0xf]
    %v10484 = vld [vmem:[%s3 + $0xd4] sm:$0xf]
    %v10485 = vld [vmem:[%s3 + $0xd8] sm:$0xf]
    %v10486 = vld [vmem:[%s3 + $0xdc] sm:$0xf]
    %v10487 = vld [vmem:[%s3 + $0xe0] sm:$0xf]
    %v10488 = vld [vmem:[%s3 + $0xe4] sm:$0xf]
    %v10489 = vld [vmem:[%s3 + $0xe8] sm:$0xf]
    %v10490 = vld [vmem:[%s3 + $0xec] sm:$0xf]
    %v10491 = vld [vmem:[%s3 + $0xf0] sm:$0xf]
    %v10492 = vld [vmem:[%s3 + $0xf4] sm:$0xf]
    %v10493 = vld [vmem:[%s3 + $0xf8] sm:$0xf]
    %v10494 = vld [vmem:[%s3 + $0xfc] sm:$0xf]
    %v10495 = vld [vmem:[%s3 + $0x100] sm:$0xf]
    %v10496 = vld [vmem:[%s3 + $0x104] sm:$0xf]
    %v10497 = vld [vmem:[%s3 + $0x108] sm:$0xf]
    %v10498 = vld [vmem:[%s3 + $0x10c] sm:$0xf]
    %v10499 = vld [vmem:[%s3 + $0x110] sm:$0xf]
    %v10500 = vld [vmem:[%s3 + $0x114] sm:$0xf]
    %v10501 = vld [vmem:[%s3 + $0x118] sm:$0xf]
    %v10502 = vld [vmem:[%s3 + $0x11c] sm:$0xf]
    %v10503 = vld [vmem:[%s3 + $0x120] sm:$0xf]
    %v10504 = vld [vmem:[%s3 + $0x124] sm:$0xf]
    %v10505 = vld [vmem:[%s3 + $0x128] sm:$0xf]
    %v10506 = vld [vmem:[%s3 + $0x12c] sm:$0xf]
    %v10507 = vld [vmem:[%s3 + $0x130] sm:$0xf]
    %v10508 = vld [vmem:[%s3 + $0x134] sm:$0xf]
    %v10509 = vld [vmem:[%s3 + $0x138] sm:$0xf]
    %v10510 = vld [vmem:[%s3 + $0x13c] sm:$0xf]
    %v10511 = vld [vmem:[%s3 + $0x140] sm:$0xf]
    %v10512 = vld [vmem:[%s3 + $0x144] sm:$0xf]
    %v10513 = vld [vmem:[%s3 + $0x148] sm:$0xf]
    %v10514 = vld [vmem:[%s3 + $0x14c] sm:$0xf]
    %v10515 = vld [vmem:[%s3 + $0x150] sm:$0xf]
    %v10516 = vld [vmem:[%s3 + $0x154] sm:$0xf]
    %v10517 = vld [vmem:[%s3 + $0x158] sm:$0xf]
    %v10518 = vld [vmem:[%s3 + $0x15c] sm:$0xf]
    %v10519 = vld [vmem:[%s3 + $0x160] sm:$0xf]
    %v10520 = vld [vmem:[%s3 + $0x164] sm:$0xf]
    %v10521 = vld [vmem:[%s3 + $0x168] sm:$0xf]
    %v10522 = vld [vmem:[%s3 + $0x16c] sm:$0xf]
    %v10523 = vld [vmem:[%s3 + $0x170] sm:$0xf]
    %v10524 = vld [vmem:[%s3 + $0x174] sm:$0xf]
    %v10525 = vld [vmem:[%s3 + $0x178] sm:$0xf]
    %v10526 = vld [vmem:[%s3 + $0x17c] sm:$0xf]
    %v10527 = vld [vmem:[%s3 + $0x180] sm:$0xf]
    %v10528 = vld [vmem:[%s3 + $0x184] sm:$0xf]
    %v10529 = vld [vmem:[%s3 + $0x188] sm:$0xf]
    %v10530 = vld [vmem:[%s3 + $0x18c] sm:$0xf]
    %v10531 = vld [vmem:[%s3 + $0x190] sm:$0xf]
    %v10532 = vld [vmem:[%s3 + $0x194] sm:$0xf]
    %v10533 = vld [vmem:[%s3 + $0x198] sm:$0xf]
    %v10534 = vld [vmem:[%s3 + $0x19c] sm:$0xf]
    %v10535 = vld [vmem:[%s3 + $0x1a0] sm:$0xf]
    %v10536 = vld [vmem:[%s3 + $0x1a4] sm:$0xf]
    %v10537 = vld [vmem:[%s3 + $0x1a8] sm:$0xf]
    %v10538 = vld [vmem:[%s3 + $0x1ac] sm:$0xf]
    %v10539 = vld [vmem:[%s3 + $0x1b0] sm:$0xf]
    %v10540 = vld [vmem:[%s3 + $0x1b4] sm:$0xf]
    %v10541 = vld [vmem:[%s3 + $0x1b8] sm:$0xf]
    %v10542 = vld [vmem:[%s3 + $0x1bc] sm:$0xf]
    %v10543 = vld [vmem:[%s4] sm:$0x1]
    %v10545 = vperm.slane %v10543, 0
    %v10547 = vpack.c.b16 %v10334, %v10327
    %v10548 = vpack.c.b16 %v10335, %v10328
    %v10549 = vpack.c.b16 %v10336, %v10329
    %v10550 = vpack.c.b16 %v10337, %v10330
    %v10551 = vpack.c.b16 %v10338, %v10331
    %v10552 = vpack.c.b16 %v10339, %v10332
    %v10553 = vpack.c.b16 %v10340, %v10333
    %v10554 = vpack.c.b16 %v10348, %v10341
    %v10555 = vpack.c.b16 %v10349, %v10342
    %v10556 = vpack.c.b16 %v10350, %v10343
    %v10557 = vpack.c.b16 %v10351, %v10344
    %v10558 = vpack.c.b16 %v10352, %v10345
    %v10559 = vpack.c.b16 %v10353, %v10346
    %v10560 = vpack.c.b16 %v10354, %v10347
    %v10561 = vpack.c.b16 %v10361, %v10355
    %v10562 = vpack.c.b16 %v10362, %v10356
    %v10563 = vpack.c.b16 %v10363, %v10357
    %v10564 = vpack.c.b16 %v10364, %v10358
    %v10565 = vpack.c.b16 %v10365, %v10359
    %v10566 = vpack.c.b16 %v10366, %v10360
    %v10567 = vpack.c.b16 %v10373, %v10367
    %v10568 = vpack.c.b16 %v10374, %v10368
    %v10569 = vpack.c.b16 %v10375, %v10369
    %v10570 = vpack.c.b16 %v10376, %v10370
    %v10571 = vpack.c.b16 %v10377, %v10371
    %v10572 = vpack.c.b16 %v10378, %v10372
    %v10573 = vpack.c.b16 %v10386, %v10379
    %v10574 = vpack.c.b16 %v10387, %v10380
    %v10575 = vpack.c.b16 %v10388, %v10381
    %v10576 = vpack.c.b16 %v10389, %v10382
    %v10577 = vpack.c.b16 %v10390, %v10383
    %v10578 = vpack.c.b16 %v10391, %v10384
    %v10579 = vpack.c.b16 %v10392, %v10385
    %v10580 = vpack.c.b16 %v10400, %v10393
    %v10581 = vpack.c.b16 %v10401, %v10394
    %v10582 = vpack.c.b16 %v10402, %v10395
    %v10583 = vpack.c.b16 %v10403, %v10396
    %v10584 = vpack.c.b16 %v10404, %v10397
    %v10585 = vpack.c.b16 %v10405, %v10398
    %v10586 = vpack.c.b16 %v10406, %v10399
    %v10587 = vpack.c.b16 %v10413, %v10407
    %v10588 = vpack.c.b16 %v10414, %v10408
    %v10589 = vpack.c.b16 %v10415, %v10409
    %v10590 = vpack.c.b16 %v10416, %v10410
    %v10591 = vpack.c.b16 %v10417, %v10411
    %v10592 = vpack.c.b16 %v10418, %v10412
    %v10593 = vpack.c.b16 %v10425, %v10419
    %v10594 = vpack.c.b16 %v10426, %v10420
    %v10595 = vpack.c.b16 %v10427, %v10421
    %v10596 = vpack.c.b16 %v10428, %v10422
    %v10597 = vpack.c.b16 %v10429, %v10423
    %v10598 = vpack.c.b16 %v10430, %v10424
    %v10763 = vunpack.c.l.b16 %v10431
    %v10764 = vunpack.c.l.b16 %v10432
    %v10765 = vunpack.c.l.b16 %v10433
    %v10766 = vunpack.c.l.b16 %v10434
    %v10767 = vunpack.c.l.b16 %v10435
    %v10768 = vunpack.c.l.b16 %v10436
    %v10769 = vunpack.c.l.b16 %v10437
    %v10770 = vunpack.c.l.b16 %v10438
    %v10771 = vunpack.c.l.b16 %v10439
    %v10772 = vunpack.c.l.b16 %v10440
    %v10773 = vunpack.c.l.b16 %v10441
    %v10774 = vunpack.c.l.b16 %v10442
    %v10775 = vunpack.c.l.b16 %v10443
    %v10776 = vunpack.c.l.b16 %v10444
    %v10777 = vunpack.c.l.b16 %v10445
    %v10778 = vunpack.c.l.b16 %v10446
    %v10779 = vunpack.c.l.b16 %v10447
    %v10780 = vunpack.c.l.b16 %v10448
    %v10781 = vunpack.c.l.b16 %v10449
    %v10782 = vunpack.c.l.b16 %v10450
    %v10783 = vunpack.c.l.b16 %v10451
    %v10784 = vunpack.c.l.b16 %v10452
    %v10785 = vunpack.c.l.b16 %v10453
    %v10786 = vunpack.c.l.b16 %v10454
    %v10787 = vunpack.c.l.b16 %v10455
    %v10788 = vunpack.c.l.b16 %v10456
    %v10789 = vunpack.c.l.b16 %v10457
    %v10790 = vunpack.c.l.b16 %v10458
    %v10791 = vunpack.c.l.b16 %v10459
    %v10792 = vunpack.c.l.b16 %v10460
    %v10793 = vunpack.c.l.b16 %v10461
    %v10794 = vunpack.c.l.b16 %v10462
    %v10795 = vunpack.c.l.b16 %v10463
    %v10796 = vunpack.c.l.b16 %v10464
    %v10797 = vunpack.c.l.b16 %v10465
    %v10798 = vunpack.c.l.b16 %v10466
    %v10799 = vunpack.c.l.b16 %v10467
    %v10800 = vunpack.c.l.b16 %v10468
    %v10801 = vunpack.c.l.b16 %v10469
    %v10802 = vunpack.c.l.b16 %v10470
    %v10803 = vunpack.c.l.b16 %v10471
    %v10804 = vunpack.c.l.b16 %v10472
    %v10805 = vunpack.c.l.b16 %v10473
    %v10806 = vunpack.c.l.b16 %v10474
    %v10807 = vunpack.c.l.b16 %v10475
    %v10808 = vunpack.c.l.b16 %v10476
    %v10809 = vunpack.c.l.b16 %v10477
    %v10810 = vunpack.c.l.b16 %v10478
    %v10811 = vunpack.c.l.b16 %v10479
    %v10812 = vunpack.c.l.b16 %v10480
    %v10813 = vunpack.c.l.b16 %v10481
    %v10814 = vunpack.c.l.b16 %v10482
    %v10815 = vunpack.c.l.b16 %v10483
    %v10816 = vunpack.c.l.b16 %v10484
    %v10817 = vunpack.c.l.b16 %v10485
    %v10818 = vunpack.c.l.b16 %v10486
    %v10819 = vunpack.c.l.b16 %v10487
    %v10820 = vunpack.c.l.b16 %v10488
    %v10821 = vunpack.c.l.b16 %v10489
    %v10822 = vunpack.c.l.b16 %v10490
    %v10823 = vunpack.c.l.b16 %v10491
    %v10824 = vunpack.c.l.b16 %v10492
    %v10825 = vunpack.c.l.b16 %v10493
    %v10826 = vunpack.c.l.b16 %v10494
    %v10827 = vunpack.c.l.b16 %v10495
    %v10828 = vunpack.c.l.b16 %v10496
    %v10829 = vunpack.c.l.b16 %v10497
    %v10830 = vunpack.c.l.b16 %v10498
    %v10831 = vunpack.c.l.b16 %v10499
    %v10832 = vunpack.c.l.b16 %v10500
    %v10833 = vunpack.c.l.b16 %v10501
    %v10834 = vunpack.c.l.b16 %v10502
    %v10835 = vunpack.c.l.b16 %v10503
    %v10836 = vunpack.c.l.b16 %v10504
    %v10837 = vunpack.c.l.b16 %v10505
    %v10838 = vunpack.c.l.b16 %v10506
    %v10839 = vunpack.c.l.b16 %v10507
    %v10840 = vunpack.c.l.b16 %v10508
    %v10841 = vunpack.c.l.b16 %v10509
    %v10842 = vunpack.c.l.b16 %v10510
    %v10843 = vunpack.c.l.b16 %v10511
    %v10844 = vunpack.c.l.b16 %v10512
    %v10845 = vunpack.c.l.b16 %v10513
    %v10846 = vunpack.c.l.b16 %v10514
    %v10847 = vunpack.c.l.b16 %v10515
    %v10848 = vunpack.c.l.b16 %v10516
    %v10849 = vunpack.c.l.b16 %v10517
    %v10850 = vunpack.c.l.b16 %v10518
    %v10851 = vunpack.c.l.b16 %v10519
    %v10852 = vunpack.c.l.b16 %v10520
    %v10853 = vunpack.c.l.b16 %v10521
    %v10854 = vunpack.c.l.b16 %v10522
    %v10855 = vunpack.c.l.b16 %v10523
    %v10856 = vunpack.c.l.b16 %v10524
    %v10857 = vunpack.c.l.b16 %v10525
    %v10858 = vunpack.c.l.b16 %v10526
    %v10859 = vunpack.c.l.b16 %v10527
    %v10860 = vunpack.c.l.b16 %v10528
    %v10861 = vunpack.c.l.b16 %v10529
    %v10862 = vunpack.c.l.b16 %v10530
    %v10863 = vunpack.c.l.b16 %v10531
    %v10864 = vunpack.c.l.b16 %v10532
    %v10865 = vunpack.c.l.b16 %v10533
    %v10866 = vunpack.c.l.b16 %v10534
    %v10867 = vunpack.c.l.b16 %v10535
    %v10868 = vunpack.c.l.b16 %v10536
    %v10869 = vunpack.c.l.b16 %v10537
    %v10870 = vunpack.c.l.b16 %v10538
    %v10871 = vunpack.c.l.b16 %v10539
    %v10872 = vunpack.c.l.b16 %v10540
    %v10873 = vunpack.c.l.b16 %v10541
    %v10874 = vunpack.c.l.b16 %v10542
    %v10875 = vpack.c.b16 %v10764, %v10763
    %v10876 = vpack.c.b16 %v10766, %v10765
    %v10877 = vpack.c.b16 %v10768, %v10767
    %v10878 = vpack.c.b16 %v10770, %v10769
    %v10879 = vpack.c.b16 %v10772, %v10771
    %v10880 = vpack.c.b16 %v10774, %v10773
    %v10881 = vpack.c.b16 %v10776, %v10775
    %v10882 = vpack.c.b16 %v10778, %v10777
    %v10883 = vpack.c.b16 %v10780, %v10779
    %v10884 = vpack.c.b16 %v10782, %v10781
    %v10885 = vpack.c.b16 %v10784, %v10783
    %v10886 = vpack.c.b16 %v10786, %v10785
    %v10887 = vpack.c.b16 %v10788, %v10787
    %v10888 = vpack.c.b16 %v10790, %v10789
    %v10889 = vpack.c.b16 %v10792, %v10791
    %v10890 = vpack.c.b16 %v10794, %v10793
    %v10891 = vpack.c.b16 %v10796, %v10795
    %v10892 = vpack.c.b16 %v10798, %v10797
    %v10893 = vpack.c.b16 %v10800, %v10799
    %v10894 = vpack.c.b16 %v10802, %v10801
    %v10895 = vpack.c.b16 %v10804, %v10803
    %v10896 = vpack.c.b16 %v10806, %v10805
    %v10897 = vpack.c.b16 %v10808, %v10807
    %v10898 = vpack.c.b16 %v10810, %v10809
    %v10899 = vpack.c.b16 %v10812, %v10811
    %v10900 = vpack.c.b16 %v10814, %v10813
    %v10901 = vpack.c.b16 %v10816, %v10815
    %v10902 = vpack.c.b16 %v10818, %v10817
    %v10903 = vpack.c.b16 %v10820, %v10819
    %v10904 = vpack.c.b16 %v10822, %v10821
    %v10905 = vpack.c.b16 %v10824, %v10823
    %v10906 = vpack.c.b16 %v10826, %v10825
    %v10907 = vpack.c.b16 %v10828, %v10827
    %v10908 = vpack.c.b16 %v10830, %v10829
    %v10909 = vpack.c.b16 %v10832, %v10831
    %v10910 = vpack.c.b16 %v10834, %v10833
    %v10911 = vpack.c.b16 %v10836, %v10835
    %v10912 = vpack.c.b16 %v10838, %v10837
    %v10913 = vpack.c.b16 %v10840, %v10839
    %v10914 = vpack.c.b16 %v10842, %v10841
    %v10915 = vpack.c.b16 %v10844, %v10843
    %v10916 = vpack.c.b16 %v10846, %v10845
    %v10917 = vpack.c.b16 %v10848, %v10847
    %v10918 = vpack.c.b16 %v10850, %v10849
    %v10919 = vpack.c.b16 %v10852, %v10851
    %v10920 = vpack.c.b16 %v10854, %v10853
    %v10921 = vpack.c.b16 %v10856, %v10855
    %v10922 = vpack.c.b16 %v10858, %v10857
    %v10923 = vpack.c.b16 %v10860, %v10859
    %v10924 = vpack.c.b16 %v10862, %v10861
    %v10925 = vpack.c.b16 %v10864, %v10863
    %v10926 = vpack.c.b16 %v10866, %v10865
    %v10927 = vpack.c.b16 %v10868, %v10867
    %v10928 = vpack.c.b16 %v10870, %v10869
    %v10929 = vpack.c.b16 %v10872, %v10871
    %v10930 = vpack.c.b16 %v10874, %v10873
    %10987 = vmatpush.bf16.msra.mxu0 %v10882
    %10988 = vmatpush.bf16.msra.mxu0 %v10881
    %10989 = vmatpush.bf16.msra.mxu0 %v10880
    %10990 = vmatpush.bf16.msra.mxu0 %v10879
    %10991 = vmatpush.bf16.msra.mxu0 %v10878
    %10992 = vmatpush.bf16.msra.mxu0 %v10877
    %10993 = vmatpush.bf16.msra.mxu0 %v10876
    %10994 = vmatpush.bf16.msra.mxu0 %v10875
    %10995 = vmatmul.bf16.gmra.mxu0 %v10547
    %v10996 = vpop.f32.mrf.mxu0
    %v10997 = vadd.f32 %v10545, %v10996
    %v10998 = vpop.f32.mrf.mxu0
    %v10999 = vadd.f32 %v10545, %v10998
    %11000 = vmatmul.bf16.gmra.mxu0 %v10554
    %v11001 = vpop.f32.mrf.mxu0
    %v11002 = vadd.f32 %v10545, %v11001
    %v11003 = vpop.f32.mrf.mxu0
    %v11004 = vadd.f32 %v10545, %v11003
    %11005 = vmatmul.bf16.gmra.mxu0 %v10552
    %v11006 = vpop.f32.mrf.mxu0
    %v11007 = vadd.f32 %v10545, %v11006
    %v11008 = vpop.f32.mrf.mxu0
    %v11009 = vadd.f32 %v10545, %v11008
    %11010 = vmatmul.bf16.gmra.mxu0 %v10559
    %v11011 = vpop.f32.mrf.mxu0
    %v11012 = vadd.f32 %v10545, %v11011
    %v11013 = vpop.f32.mrf.mxu0
    %v11014 = vadd.f32 %v10545, %v11013
    %11015 = vmatmul.bf16.gmra.mxu0 %v10573
    %v11016 = vpop.f32.mrf.mxu0
    %v11017 = vadd.f32 %v10545, %v11016
    %v11018 = vpop.f32.mrf.mxu0
    %v11019 = vadd.f32 %v10545, %v11018
    %11020 = vmatmul.bf16.gmra.mxu0 %v10580
    %v11021 = vpop.f32.mrf.mxu0
    %v11022 = vadd.f32 %v10545, %v11021
    %v11023 = vpop.f32.mrf.mxu0
    %v11024 = vadd.f32 %v10545, %v11023
    %11025 = vmatmul.bf16.gmra.mxu0 %v10578
    %v11026 = vpop.f32.mrf.mxu0
    %v11027 = vadd.f32 %v10545, %v11026
    %v11028 = vpop.f32.mrf.mxu0
    %v11029 = vadd.f32 %v10545, %v11028
    %11030 = vmatmul.bf16.gmra.mxu0 %v10585
    %v11031 = vpop.f32.mrf.mxu0
    %v11032 = vadd.f32 %v10545, %v11031
    %v11033 = vpop.f32.mrf.mxu0
    %v11034 = vadd.f32 %v10545, %v11033
    %11035 = vdwg.mxu0
    %11036 = vmatpush.bf16.msra.mxu0 %v10890
    %11037 = vmatpush.bf16.msra.mxu0 %v10889
    %11038 = vmatpush.bf16.msra.mxu0 %v10888
    %11039 = vmatpush.bf16.msra.mxu0 %v10887
    %11040 = vmatpush.bf16.msra.mxu0 %v10886
    %11041 = vmatpush.bf16.msra.mxu0 %v10885
    %11042 = vmatpush.bf16.msra.mxu0 %v10884
    %11043 = vmatpush.bf16.msra.mxu0 %v10883
    %11044 = vmatmul.bf16.gmra.mxu0 %v10548
    %v11045 = vpop.f32.mrf.mxu0
    %v11046 = vadd.f32 %v10997, %v11045
    %v11047 = vpop.f32.mrf.mxu0
    %v11048 = vadd.f32 %v10999, %v11047
    %11049 = vmatmul.bf16.gmra.mxu0 %v10555
    %v11050 = vpop.f32.mrf.mxu0
    %v11051 = vadd.f32 %v11002, %v11050
    %v11052 = vpop.f32.mrf.mxu0
    %v11053 = vadd.f32 %v11004, %v11052
    %11054 = vmatmul.bf16.gmra.mxu0 %v10561
    %v11055 = vpop.f32.mrf.mxu0
    %v11056 = vadd.f32 %v11007, %v11055
    %v11057 = vpop.f32.mrf.mxu0
    %v11058 = vadd.f32 %v11009, %v11057
    %11059 = vmatmul.bf16.gmra.mxu0 %v10567
    %v11060 = vpop.f32.mrf.mxu0
    %v11061 = vadd.f32 %v11012, %v11060
    %v11062 = vpop.f32.mrf.mxu0
    %v11063 = vadd.f32 %v11014, %v11062
    %11064 = vmatmul.bf16.gmra.mxu0 %v10574
    %v11065 = vpop.f32.mrf.mxu0
    %v11066 = vadd.f32 %v11017, %v11065
    %v11067 = vpop.f32.mrf.mxu0
    %v11068 = vadd.f32 %v11019, %v11067
    %11069 = vmatmul.bf16.gmra.mxu0 %v10581
    %v11070 = vpop.f32.mrf.mxu0
    %v11071 = vadd.f32 %v11022, %v11070
    %v11072 = vpop.f32.mrf.mxu0
    %v11073 = vadd.f32 %v11024, %v11072
    %11074 = vmatmul.bf16.gmra.mxu0 %v10587
    %v11075 = vpop.f32.mrf.mxu0
    %v11076 = vadd.f32 %v11027, %v11075
    %v11077 = vpop.f32.mrf.mxu0
    %v11078 = vadd.f32 %v11029, %v11077
    %11079 = vmatmul.bf16.gmra.mxu0 %v10593
    %v11080 = vpop.f32.mrf.mxu0
    %v11081 = vadd.f32 %v11032, %v11080
    %v11082 = vpop.f32.mrf.mxu0
    %v11083 = vadd.f32 %v11034, %v11082
    %11084 = vdwg.mxu0
    %11085 = vmatpush.bf16.msra.mxu0 %v10898
    %11086 = vmatpush.bf16.msra.mxu0 %v10897
    %11087 = vmatpush.bf16.msra.mxu0 %v10896
    %11088 = vmatpush.bf16.msra.mxu0 %v10895
    %11089 = vmatpush.bf16.msra.mxu0 %v10894
    %11090 = vmatpush.bf16.msra.mxu0 %v10893
    %11091 = vmatpush.bf16.msra.mxu0 %v10892
    %11092 = vmatpush.bf16.msra.mxu0 %v10891
    %11093 = vmatmul.bf16.gmra.mxu0 %v10549
    %v11094 = vpop.f32.mrf.mxu0
    %v11095 = vadd.f32 %v11046, %v11094
    %v11096 = vpop.f32.mrf.mxu0
    %v11097 = vadd.f32 %v11048, %v11096
    %11098 = vmatmul.bf16.gmra.mxu0 %v10556
    %v11099 = vpop.f32.mrf.mxu0
    %v11100 = vadd.f32 %v11051, %v11099
    %v11101 = vpop.f32.mrf.mxu0
    %v11102 = vadd.f32 %v11053, %v11101
    %11103 = vmatmul.bf16.gmra.mxu0 %v10562
    %v11104 = vpop.f32.mrf.mxu0
    %v11105 = vadd.f32 %v11056, %v11104
    %v11106 = vpop.f32.mrf.mxu0
    %v11107 = vadd.f32 %v11058, %v11106
    %11108 = vmatmul.bf16.gmra.mxu0 %v10568
    %v11109 = vpop.f32.mrf.mxu0
    %v11110 = vadd.f32 %v11061, %v11109
    %v11111 = vpop.f32.mrf.mxu0
    %v11112 = vadd.f32 %v11063, %v11111
    %11113 = vmatmul.bf16.gmra.mxu0 %v10575
    %v11114 = vpop.f32.mrf.mxu0
    %v11115 = vadd.f32 %v11066, %v11114
    %v11116 = vpop.f32.mrf.mxu0
    %v11117 = vadd.f32 %v11068, %v11116
    %11118 = vmatmul.bf16.gmra.mxu0 %v10582
    %v11119 = vpop.f32.mrf.mxu0
    %v11120 = vadd.f32 %v11071, %v11119
    %v11121 = vpop.f32.mrf.mxu0
    %v11122 = vadd.f32 %v11073, %v11121
    %11123 = vmatmul.bf16.gmra.mxu0 %v10588
    %v11124 = vpop.f32.mrf.mxu0
    %v11125 = vadd.f32 %v11076, %v11124
    %v11126 = vpop.f32.mrf.mxu0
    %v11127 = vadd.f32 %v11078, %v11126
    %11128 = vmatmul.bf16.gmra.mxu0 %v10594
    %v11129 = vpop.f32.mrf.mxu0
    %v11130 = vadd.f32 %v11081, %v11129
    %v11131 = vpop.f32.mrf.mxu0
    %v11132 = vadd.f32 %v11083, %v11131
    %11133 = vdwg.mxu0
    %11134 = vmatpush.bf16.msra.mxu0 %v10906
    %11135 = vmatpush.bf16.msra.mxu0 %v10905
    %11136 = vmatpush.bf16.msra.mxu0 %v10904
    %11137 = vmatpush.bf16.msra.mxu0 %v10903
    %11138 = vmatpush.bf16.msra.mxu0 %v10902
    %11139 = vmatpush.bf16.msra.mxu0 %v10901
    %11140 = vmatpush.bf16.msra.mxu0 %v10900
    %11141 = vmatpush.bf16.msra.mxu0 %v10899
    %11142 = vmatmul.bf16.gmra.mxu0 %v10550
    %v11143 = vpop.f32.mrf.mxu0
    %v11144 = vadd.f32 %v11095, %v11143
    %v11145 = vpop.f32.mrf.mxu0
    %v11146 = vadd.f32 %v11097, %v11145
    %11147 = vmatmul.bf16.gmra.mxu0 %v10557
    %v11148 = vpop.f32.mrf.mxu0
    %v11149 = vadd.f32 %v11100, %v11148
    %v11150 = vpop.f32.mrf.mxu0
    %v11151 = vadd.f32 %v11102, %v11150
    %11152 = vmatmul.bf16.gmra.mxu0 %v10563
    %v11153 = vpop.f32.mrf.mxu0
    %v11154 = vadd.f32 %v11105, %v11153
    %v11155 = vpop.f32.mrf.mxu0
    %v11156 = vadd.f32 %v11107, %v11155
    %11157 = vmatmul.bf16.gmra.mxu0 %v10569
    %v11158 = vpop.f32.mrf.mxu0
    %v11159 = vadd.f32 %v11110, %v11158
    %v11160 = vpop.f32.mrf.mxu0
    %v11161 = vadd.f32 %v11112, %v11160
    %11162 = vmatmul.bf16.gmra.mxu0 %v10576
    %v11163 = vpop.f32.mrf.mxu0
    %v11164 = vadd.f32 %v11115, %v11163
    %v11165 = vpop.f32.mrf.mxu0
    %v11166 = vadd.f32 %v11117, %v11165
    %11167 = vmatmul.bf16.gmra.mxu0 %v10583
    %v11168 = vpop.f32.mrf.mxu0
    %v11169 = vadd.f32 %v11120, %v11168
    %v11170 = vpop.f32.mrf.mxu0
    %v11171 = vadd.f32 %v11122, %v11170
    %11172 = vmatmul.bf16.gmra.mxu0 %v10589
    %v11173 = vpop.f32.mrf.mxu0
    %v11174 = vadd.f32 %v11125, %v11173
    %v11175 = vpop.f32.mrf.mxu0
    %v11176 = vadd.f32 %v11127, %v11175
    %11177 = vmatmul.bf16.gmra.mxu0 %v10595
    %v11178 = vpop.f32.mrf.mxu0
    %v11179 = vadd.f32 %v11130, %v11178
    %v11180 = vpop.f32.mrf.mxu0
    %v11181 = vadd.f32 %v11132, %v11180
    %11182 = vdwg.mxu0
    %11183 = vmatpush.bf16.msra.mxu0 %v10914
    %11184 = vmatpush.bf16.msra.mxu0 %v10913
    %11185 = vmatpush.bf16.msra.mxu0 %v10912
    %11186 = vmatpush.bf16.msra.mxu0 %v10911
    %11187 = vmatpush.bf16.msra.mxu0 %v10910
    %11188 = vmatpush.bf16.msra.mxu0 %v10909
    %11189 = vmatpush.bf16.msra.mxu0 %v10908
    %11190 = vmatpush.bf16.msra.mxu0 %v10907
    %11191 = vmatmul.bf16.gmra.mxu0 %v10551
    %v11192 = vpop.f32.mrf.mxu0
    %v11193 = vadd.f32 %v11144, %v11192
    %v11194 = vpop.f32.mrf.mxu0
    %v11195 = vadd.f32 %v11146, %v11194
    %11196 = vmatmul.bf16.gmra.mxu0 %v10558
    %v11197 = vpop.f32.mrf.mxu0
    %v11198 = vadd.f32 %v11149, %v11197
    %v11199 = vpop.f32.mrf.mxu0
    %v11200 = vadd.f32 %v11151, %v11199
    %11201 = vmatmul.bf16.gmra.mxu0 %v10564
    %v11202 = vpop.f32.mrf.mxu0
    %v11203 = vadd.f32 %v11154, %v11202
    %v11204 = vpop.f32.mrf.mxu0
    %v11205 = vadd.f32 %v11156, %v11204
    %11206 = vmatmul.bf16.gmra.mxu0 %v10570
    %v11207 = vpop.f32.mrf.mxu0
    %v11208 = vadd.f32 %v11159, %v11207
    %v11209 = vpop.f32.mrf.mxu0
    %v11210 = vadd.f32 %v11161, %v11209
    %11211 = vmatmul.bf16.gmra.mxu0 %v10577
    %v11212 = vpop.f32.mrf.mxu0
    %v11213 = vadd.f32 %v11164, %v11212
    %v11214 = vpop.f32.mrf.mxu0
    %v11215 = vadd.f32 %v11166, %v11214
    %11216 = vmatmul.bf16.gmra.mxu0 %v10584
    %v11217 = vpop.f32.mrf.mxu0
    %v11218 = vadd.f32 %v11169, %v11217
    %v11219 = vpop.f32.mrf.mxu0
    %v11220 = vadd.f32 %v11171, %v11219
    %11221 = vmatmul.bf16.gmra.mxu0 %v10590
    %v11222 = vpop.f32.mrf.mxu0
    %v11223 = vadd.f32 %v11174, %v11222
    %v11224 = vpop.f32.mrf.mxu0
    %v11225 = vadd.f32 %v11176, %v11224
    %11226 = vmatmul.bf16.gmra.mxu0 %v10596
    %v11227 = vpop.f32.mrf.mxu0
    %v11228 = vadd.f32 %v11179, %v11227
    %v11229 = vpop.f32.mrf.mxu0
    %v11230 = vadd.f32 %v11181, %v11229
    %11231 = vdwg.mxu0
    %11232 = vmatpush.bf16.msra.mxu0 %v10922
    %11233 = vmatpush.bf16.msra.mxu0 %v10921
    %11234 = vmatpush.bf16.msra.mxu0 %v10920
    %11235 = vmatpush.bf16.msra.mxu0 %v10919
    %11236 = vmatpush.bf16.msra.mxu0 %v10918
    %11237 = vmatpush.bf16.msra.mxu0 %v10917
    %11238 = vmatpush.bf16.msra.mxu0 %v10916
    %11239 = vmatpush.bf16.msra.mxu0 %v10915
    %11240 = vmatmul.bf16.gmra.mxu0 %v10552
    %v11241 = vpop.f32.mrf.mxu0
    %v11242 = vadd.f32 %v11193, %v11241
    %v11243 = vpop.f32.mrf.mxu0
    %v11244 = vadd.f32 %v11195, %v11243
    %11245 = vmatmul.bf16.gmra.mxu0 %v10559
    %v11246 = vpop.f32.mrf.mxu0
    %v11247 = vadd.f32 %v11198, %v11246
    %v11248 = vpop.f32.mrf.mxu0
    %v11249 = vadd.f32 %v11200, %v11248
    %11250 = vmatmul.bf16.gmra.mxu0 %v10565
    %v11251 = vpop.f32.mrf.mxu0
    %v11252 = vadd.f32 %v11203, %v11251
    %v11253 = vpop.f32.mrf.mxu0
    %v11254 = vadd.f32 %v11205, %v11253
    %11255 = vmatmul.bf16.gmra.mxu0 %v10571
    %v11256 = vpop.f32.mrf.mxu0
    %v11257 = vadd.f32 %v11208, %v11256
    %v11258 = vpop.f32.mrf.mxu0
    %v11259 = vadd.f32 %v11210, %v11258
    %11260 = vmatmul.bf16.gmra.mxu0 %v10578
    %v11261 = vpop.f32.mrf.mxu0
    %v11262 = vadd.f32 %v11213, %v11261
    %v11263 = vpop.f32.mrf.mxu0
    %v11264 = vadd.f32 %v11215, %v11263
    %11265 = vmatmul.bf16.gmra.mxu0 %v10585
    %v11266 = vpop.f32.mrf.mxu0
    %v11267 = vadd.f32 %v11218, %v11266
    %v11268 = vpop.f32.mrf.mxu0
    %v11269 = vadd.f32 %v11220, %v11268
    %11270 = vmatmul.bf16.gmra.mxu0 %v10591
    %v11271 = vpop.f32.mrf.mxu0
    %v11272 = vadd.f32 %v11223, %v11271
    %v11273 = vpop.f32.mrf.mxu0
    %v11274 = vadd.f32 %v11225, %v11273
    %11275 = vmatmul.bf16.gmra.mxu0 %v10597
    %v11276 = vpop.f32.mrf.mxu0
    %v11277 = vadd.f32 %v11228, %v11276
    %v11278 = vpop.f32.mrf.mxu0
    %v11279 = vadd.f32 %v11230, %v11278
    %11280 = vdwg.mxu0
    %11281 = vmatpush.bf16.msra.mxu0 %v10930
    %11282 = vmatpush.bf16.msra.mxu0 %v10929
    %11283 = vmatpush.bf16.msra.mxu0 %v10928
    %11284 = vmatpush.bf16.msra.mxu0 %v10927
    %11285 = vmatpush.bf16.msra.mxu0 %v10926
    %11286 = vmatpush.bf16.msra.mxu0 %v10925
    %11287 = vmatpush.bf16.msra.mxu0 %v10924
    %11288 = vmatpush.bf16.msra.mxu0 %v10923
    %11289 = vmatmul.bf16.gmra.mxu0 %v10553
    %v11290 = vpop.f32.mrf.mxu0
    %v11291 = vadd.f32 %v11242, %v11290
    %v11292 = vpop.f32.mrf.mxu0
    %v11293 = vadd.f32 %v11244, %v11292
    %11294 = vmatmul.bf16.gmra.mxu0 %v10560
    %v11295 = vpop.f32.mrf.mxu0
    %v11296 = vadd.f32 %v11247, %v11295
    %v11297 = vpop.f32.mrf.mxu0
    %v11298 = vadd.f32 %v11249, %v11297
    %11299 = vmatmul.bf16.gmra.mxu0 %v10566
    %v11300 = vpop.f32.mrf.mxu0
    %v11301 = vadd.f32 %v11252, %v11300
    %v11302 = vpop.f32.mrf.mxu0
    %v11303 = vadd.f32 %v11254, %v11302
    %11304 = vmatmul.bf16.gmra.mxu0 %v10572
    %v11305 = vpop.f32.mrf.mxu0
    %v11306 = vadd.f32 %v11257, %v11305
    %v11307 = vpop.f32.mrf.mxu0
    %v11308 = vadd.f32 %v11259, %v11307
    %11309 = vmatmul.bf16.gmra.mxu0 %v10579
    %v11310 = vpop.f32.mrf.mxu0
    %v11311 = vadd.f32 %v11262, %v11310
    %v11312 = vpop.f32.mrf.mxu0
    %v11313 = vadd.f32 %v11264, %v11312
    %11314 = vmatmul.bf16.gmra.mxu0 %v10586
    %v11315 = vpop.f32.mrf.mxu0
    %v11316 = vadd.f32 %v11267, %v11315
    %v11317 = vpop.f32.mrf.mxu0
    %v11318 = vadd.f32 %v11269, %v11317
    %11319 = vmatmul.bf16.gmra.mxu0 %v10592
    %v11320 = vpop.f32.mrf.mxu0
    %v11321 = vadd.f32 %v11272, %v11320
    %v11322 = vpop.f32.mrf.mxu0
    %v11323 = vadd.f32 %v11274, %v11322
    %11324 = vmatmul.bf16.gmra.mxu0 %v10598
    %v11325 = vpop.f32.mrf.mxu0
    %v11326 = vadd.f32 %v11277, %v11325
    %v11327 = vpop.f32.mrf.mxu0
    %v11328 = vadd.f32 %v11279, %v11327
    %11329 = vdwg.mxu0
    %v11330 = vmax.f32 %v11291, 0.0
    %v11331 = vmax.f32 %v11293, 0.0
    %v11332 = vmax.f32 %v11296, 0.0
    %v11333 = vmax.f32 %v11298, 0.0
    %v11334 = vmax.f32 %v11301, 0.0
    %v11335 = vmax.f32 %v11303, 0.0
    %v11336 = vmax.f32 %v11306, 0.0
    %v11337 = vmax.f32 %v11308, 0.0
    %v11338 = vmax.f32 %v11311, 0.0
    %v11339 = vmax.f32 %v11313, 0.0
    %v11340 = vmax.f32 %v11316, 0.0
    %v11341 = vmax.f32 %v11318, 0.0
    %v11342 = vmax.f32 %v11321, 0.0
    %v11343 = vmax.f32 %v11323, 0.0
    %v11344 = vmax.f32 %v11326, 0.0
    %v11345 = vmax.f32 %v11328, 0.0
    %v11346 = vmax.f32 %v11330, %v11331
    %v11347 = vmax.f32 %v11332, %v11333
    %v11348 = vmax.f32 %v11334, %v11335
    %v11349 = vmax.f32 %v11336, %v11337
    %v11350 = vmax.f32 %v11338, %v11339
    %v11351 = vmax.f32 %v11340, %v11341
    %v11352 = vmax.f32 %v11342, %v11343
    %v11353 = vmax.f32 %v11344, %v11345
    %v11362 = vrot.slane %v11346, 2
    %v11363 = vrot.slane %v11346, 4
    %v11364 = vrot.slane %v11346, 6
    %v11365 = vrot.slane %v11347, 2
    %v11366 = vrot.slane %v11347, 4
    %v11367 = vrot.slane %v11347, 6
    %v11368 = vrot.slane %v11348, 2
    %v11369 = vrot.slane %v11348, 4
    %v11370 = vrot.slane %v11348, 6
    %v11371 = vrot.slane %v11349, 2
    %v11372 = vrot.slane %v11349, 4
    %v11373 = vrot.slane %v11349, 6
    %v11374 = vrot.slane %v11350, 2
    %v11375 = vrot.slane %v11350, 4
    %v11376 = vrot.slane %v11350, 6
    %v11377 = vrot.slane %v11351, 2
    %v11378 = vrot.slane %v11351, 4
    %v11379 = vrot.slane %v11351, 6
    %v11380 = vrot.slane %v11352, 2
    %v11381 = vrot.slane %v11352, 4
    %v11382 = vrot.slane %v11352, 6
    %v11383 = vrot.slane %v11353, 2
    %v11384 = vrot.slane %v11353, 4
    %v11385 = vrot.slane %v11353, 6
    %v11410 = vrot.slane %v11346, 7
    %v11411 = vrot.slane %v11410, 2
    %v11412 = vrot.slane %v11362, 7
    %v11413 = vrot.slane %v11412, 2
    %v11414 = vrot.slane %v11363, 7
    %v11415 = vrot.slane %v11414, 2
    %v11416 = vrot.slane %v11364, 7
    %v11417 = vrot.slane %v11416, 2
    %v11418 = vrot.slane %v11347, 7
    %v11419 = vrot.slane %v11418, 2
    %v11420 = vrot.slane %v11365, 7
    %v11421 = vrot.slane %v11420, 2
    %v11422 = vrot.slane %v11366, 7
    %v11423 = vrot.slane %v11422, 2
    %v11424 = vrot.slane %v11367, 7
    %v11425 = vrot.slane %v11424, 2
    %v11426 = vrot.slane %v11348, 7
    %v11427 = vrot.slane %v11426, 2
    %v11428 = vrot.slane %v11368, 7
    %v11429 = vrot.slane %v11428, 2
    %v11430 = vrot.slane %v11369, 7
    %v11431 = vrot.slane %v11430, 2
    %v11432 = vrot.slane %v11370, 7
    %v11433 = vrot.slane %v11432, 2
    %v11434 = vrot.slane %v11349, 7
    %v11435 = vrot.slane %v11434, 2
    %v11436 = vrot.slane %v11371, 7
    %v11437 = vrot.slane %v11436, 2
    %v11438 = vrot.slane %v11372, 7
    %v11439 = vrot.slane %v11438, 2
    %v11440 = vrot.slane %v11373, 7
    %v11441 = vrot.slane %v11440, 2
    %v11442 = vrot.slane %v11350, 7
    %v11443 = vrot.slane %v11442, 2
    %v11444 = vrot.slane %v11374, 7
    %v11445 = vrot.slane %v11444, 2
    %v11446 = vrot.slane %v11375, 7
    %v11447 = vrot.slane %v11446, 2
    %v11448 = vrot.slane %v11376, 7
    %v11449 = vrot.slane %v11448, 2
    %v11450 = vrot.slane %v11351, 7
    %v11451 = vrot.slane %v11450, 2
    %v11452 = vrot.slane %v11377, 7
    %v11453 = vrot.slane %v11452, 2
    %v11454 = vrot.slane %v11378, 7
    %v11455 = vrot.slane %v11454, 2
    %v11456 = vrot.slane %v11379, 7
    %v11457 = vrot.slane %v11456, 2
    %v11458 = vrot.slane %v11352, 7
    %v11459 = vrot.slane %v11458, 2
    %v11460 = vrot.slane %v11380, 7
    %v11461 = vrot.slane %v11460, 2
    %v11462 = vrot.slane %v11381, 7
    %v11463 = vrot.slane %v11462, 2
    %v11464 = vrot.slane %v11382, 7
    %v11465 = vrot.slane %v11464, 2
    %v11466 = vrot.slane %v11353, 7
    %v11467 = vrot.slane %v11466, 2
    %v11468 = vrot.slane %v11383, 7
    %v11469 = vrot.slane %v11468, 2
    %v11470 = vrot.slane %v11384, 7
    %v11471 = vrot.slane %v11470, 2
    %v11472 = vrot.slane %v11385, 7
    %v11473 = vrot.slane %v11472, 2
    %v11506 = vmax.f32 %v11346, %v11411
    %v11507 = vmax.f32 %v11362, %v11413
    %v11508 = vmax.f32 %v11363, %v11415
    %v11509 = vmax.f32 %v11364, %v11417
    %v11510 = vmax.f32 %v11347, %v11419
    %v11511 = vmax.f32 %v11365, %v11421
    %v11512 = vmax.f32 %v11366, %v11423
    %v11513 = vmax.f32 %v11367, %v11425
    %v11514 = vmax.f32 %v11348, %v11427
    %v11515 = vmax.f32 %v11368, %v11429
    %v11516 = vmax.f32 %v11369, %v11431
    %v11517 = vmax.f32 %v11370, %v11433
    %v11518 = vmax.f32 %v11349, %v11435
    %v11519 = vmax.f32 %v11371, %v11437
    %v11520 = vmax.f32 %v11372, %v11439
    %v11521 = vmax.f32 %v11373, %v11441
    %v11522 = vmax.f32 %v11350, %v11443
    %v11523 = vmax.f32 %v11374, %v11445
    %v11524 = vmax.f32 %v11375, %v11447
    %v11525 = vmax.f32 %v11376, %v11449
    %v11526 = vmax.f32 %v11351, %v11451
    %v11527 = vmax.f32 %v11377, %v11453
    %v11528 = vmax.f32 %v11378, %v11455
    %v11529 = vmax.f32 %v11379, %v11457
    %v11530 = vmax.f32 %v11352, %v11459
    %v11531 = vmax.f32 %v11380, %v11461
    %v11532 = vmax.f32 %v11381, %v11463
    %v11533 = vmax.f32 %v11382, %v11465
    %v11534 = vmax.f32 %v11353, %v11467
    %v11535 = vmax.f32 %v11383, %v11469
    %v11536 = vmax.f32 %v11384, %v11471
    %v11537 = vmax.f32 %v11385, %v11473
    %v11570 = vperm.slane %v11506, 0
    %v11571 = vperm.slane %v11507, 0
    %v11572 = vperm.slane %v11508, 0
    %v11573 = vperm.slane %v11509, 0
    %v11574 = vperm.slane %v11510, 0
    %v11575 = vperm.slane %v11511, 0
    %v11576 = vperm.slane %v11512, 0
    %v11577 = vperm.slane %v11513, 0
    %v11578 = vperm.slane %v11514, 0
    %v11579 = vperm.slane %v11515, 0
    %v11580 = vperm.slane %v11516, 0
    %v11581 = vperm.slane %v11517, 0
    %v11582 = vperm.slane %v11518, 0
    %v11583 = vperm.slane %v11519, 0
    %v11584 = vperm.slane %v11520, 0
    %v11585 = vperm.slane %v11521, 0
    %v11586 = vperm.slane %v11522, 0
    %v11587 = vperm.slane %v11523, 0
    %v11588 = vperm.slane %v11524, 0
    %v11589 = vperm.slane %v11525, 0
    %v11590 = vperm.slane %v11526, 0
    %v11591 = vperm.slane %v11527, 0
    %v11592 = vperm.slane %v11528, 0
    %v11593 = vperm.slane %v11529, 0
    %v11594 = vperm.slane %v11530, 0
    %v11595 = vperm.slane %v11531, 0
    %v11596 = vperm.slane %v11532, 0
    %v11597 = vperm.slane %v11533, 0
    %v11598 = vperm.slane %v11534, 0
    %v11599 = vperm.slane %v11535, 0
    %v11600 = vperm.slane %v11536, 0
    %v11601 = vperm.slane %v11537, 0
    %v11602 = vsel %vm3586, %v11571, %v11570
    %v11603 = vsel %vm3588, %v11572, %v11602
    %v11604 = vsel %vm3590, %v11573, %v11603
    %v11605 = vsel %vm3592, %v11574, %v11604
    %v11606 = vsel %vm3594, %v11575, %v11605
    %v11607 = vsel %vm3596, %v11576, %v11606
    %v11608 = vsel %vm3598, %v11577, %v11607
    %v11609 = vsel %vm3586, %v11579, %v11578
    %v11610 = vsel %vm3588, %v11580, %v11609
    %v11611 = vsel %vm3590, %v11581, %v11610
    %v11612 = vsel %vm3592, %v11582, %v11611
    %v11613 = vsel %vm3594, %v11583, %v11612
    %v11614 = vsel %vm3596, %v11584, %v11613
    %v11615 = vsel %vm3598, %v11585, %v11614
    %v11616 = vsel %vm3586, %v11587, %v11586
    %v11617 = vsel %vm3588, %v11588, %v11616
    %v11618 = vsel %vm3590, %v11589, %v11617
    %v11619 = vsel %vm3592, %v11590, %v11618
    %v11620 = vsel %vm3594, %v11591, %v11619
    %v11621 = vsel %vm3596, %v11592, %v11620
    %v11622 = vsel %vm3598, %v11593, %v11621
    %v11623 = vsel %vm3586, %v11595, %v11594
    %v11624 = vsel %vm3588, %v11596, %v11623
    %v11625 = vsel %vm3590, %v11597, %v11624
    %v11626 = vsel %vm3592, %v11598, %v11625
    %v11627 = vsel %vm3594, %v11599, %v11626
    %v11628 = vsel %vm3596, %v11600, %v11627
    %v11629 = vsel %vm3598, %v11601, %v11628
    %v11634 = vsel %vm7908, %v11608, 0.0
    %v11635 = vsel %vm7908, %v11615, 0.0
    %v11636 = vadd.f32 %v11634, %v11635
    %v11637 = vsel %vm7908, %v11622, 0.0
    %v11638 = vadd.f32 %v11636, %v11637
    %v11639 = vsel %vm7908, %v11629, 0.0
    %v11640 = vadd.f32 %v11638, %v11639
    %v11641 = vrot.slane %v11640, 4
    %v11642 = vadd.f32 %v11640, %v11641
    %v11643 = vrot.slane %v11642, 2
    %v11644 = vadd.f32 %v11642, %v11643
    %v11645 = vrot.slane %v11644, 1
    %v11646 = vadd.f32 %v11644, %v11645
    %v11647 = vmul.f32 %v11646, 0.03125
    %v11648 = vmul.f32 %v11506, %v11506
    %v11649 = vmul.f32 %v11507, %v11507
    %v11650 = vmul.f32 %v11508, %v11508
    %v11651 = vmul.f32 %v11509, %v11509
    %v11652 = vmul.f32 %v11510, %v11510
    %v11653 = vmul.f32 %v11511, %v11511
    %v11654 = vmul.f32 %v11512, %v11512
    %v11655 = vmul.f32 %v11513, %v11513
    %v11656 = vmul.f32 %v11514, %v11514
    %v11657 = vmul.f32 %v11515, %v11515
    %v11658 = vmul.f32 %v11516, %v11516
    %v11659 = vmul.f32 %v11517, %v11517
    %v11660 = vmul.f32 %v11518, %v11518
    %v11661 = vmul.f32 %v11519, %v11519
    %v11662 = vmul.f32 %v11520, %v11520
    %v11663 = vmul.f32 %v11521, %v11521
    %v11664 = vmul.f32 %v11522, %v11522
    %v11665 = vmul.f32 %v11523, %v11523
    %v11666 = vmul.f32 %v11524, %v11524
    %v11667 = vmul.f32 %v11525, %v11525
    %v11668 = vmul.f32 %v11526, %v11526
    %v11669 = vmul.f32 %v11527, %v11527
    %v11670 = vmul.f32 %v11528, %v11528
    %v11671 = vmul.f32 %v11529, %v11529
    %v11672 = vmul.f32 %v11530, %v11530
    %v11673 = vmul.f32 %v11531, %v11531
    %v11674 = vmul.f32 %v11532, %v11532
    %v11675 = vmul.f32 %v11533, %v11533
    %v11676 = vmul.f32 %v11534, %v11534
    %v11677 = vmul.f32 %v11535, %v11535
    %v11678 = vmul.f32 %v11536, %v11536
    %v11679 = vmul.f32 %v11537, %v11537
    %v11712 = vperm.slane %v11648, 0
    %v11713 = vperm.slane %v11649, 0
    %v11714 = vperm.slane %v11650, 0
    %v11715 = vperm.slane %v11651, 0
    %v11716 = vperm.slane %v11652, 0
    %v11717 = vperm.slane %v11653, 0
    %v11718 = vperm.slane %v11654, 0
    %v11719 = vperm.slane %v11655, 0
    %v11720 = vperm.slane %v11656, 0
    %v11721 = vperm.slane %v11657, 0
    %v11722 = vperm.slane %v11658, 0
    %v11723 = vperm.slane %v11659, 0
    %v11724 = vperm.slane %v11660, 0
    %v11725 = vperm.slane %v11661, 0
    %v11726 = vperm.slane %v11662, 0
    %v11727 = vperm.slane %v11663, 0
    %v11728 = vperm.slane %v11664, 0
    %v11729 = vperm.slane %v11665, 0
    %v11730 = vperm.slane %v11666, 0
    %v11731 = vperm.slane %v11667, 0
    %v11732 = vperm.slane %v11668, 0
    %v11733 = vperm.slane %v11669, 0
    %v11734 = vperm.slane %v11670, 0
    %v11735 = vperm.slane %v11671, 0
    %v11736 = vperm.slane %v11672, 0
    %v11737 = vperm.slane %v11673, 0
    %v11738 = vperm.slane %v11674, 0
    %v11739 = vperm.slane %v11675, 0
    %v11740 = vperm.slane %v11676, 0
    %v11741 = vperm.slane %v11677, 0
    %v11742 = vperm.slane %v11678, 0
    %v11743 = vperm.slane %v11679, 0
    %v11744 = vsel %vm3586, %v11713, %v11712
    %v11745 = vsel %vm3588, %v11714, %v11744
    %v11746 = vsel %vm3590, %v11715, %v11745
    %v11747 = vsel %vm3592, %v11716, %v11746
    %v11748 = vsel %vm3594, %v11717, %v11747
    %v11749 = vsel %vm3596, %v11718, %v11748
    %v11750 = vsel %vm3598, %v11719, %v11749
    %v11751 = vsel %vm3586, %v11721, %v11720
    %v11752 = vsel %vm3588, %v11722, %v11751
    %v11753 = vsel %vm3590, %v11723, %v11752
    %v11754 = vsel %vm3592, %v11724, %v11753
    %v11755 = vsel %vm3594, %v11725, %v11754
    %v11756 = vsel %vm3596, %v11726, %v11755
    %v11757 = vsel %vm3598, %v11727, %v11756
    %v11758 = vsel %vm3586, %v11729, %v11728
    %v11759 = vsel %vm3588, %v11730, %v11758
    %v11760 = vsel %vm3590, %v11731, %v11759
    %v11761 = vsel %vm3592, %v11732, %v11760
    %v11762 = vsel %vm3594, %v11733, %v11761
    %v11763 = vsel %vm3596, %v11734, %v11762
    %v11764 = vsel %vm3598, %v11735, %v11763
    %v11765 = vsel %vm3586, %v11737, %v11736
    %v11766 = vsel %vm3588, %v11738, %v11765
    %v11767 = vsel %vm3590, %v11739, %v11766
    %v11768 = vsel %vm3592, %v11740, %v11767
    %v11769 = vsel %vm3594, %v11741, %v11768
    %v11770 = vsel %vm3596, %v11742, %v11769
    %v11771 = vsel %vm3598, %v11743, %v11770
    %v11776 = vsel %vm7908, %v11750, 0.0
    %v11777 = vsel %vm7908, %v11757, 0.0
    %v11778 = vadd.f32 %v11776, %v11777
    %v11779 = vsel %vm7908, %v11764, 0.0
    %v11780 = vadd.f32 %v11778, %v11779
    %v11781 = vsel %vm7908, %v11771, 0.0
    %v11782 = vadd.f32 %v11780, %v11781
    %v11783 = vrot.slane %v11782, 4
    %v11784 = vadd.f32 %v11782, %v11783
    %v11785 = vrot.slane %v11784, 2
    %v11786 = vadd.f32 %v11784, %v11785
    %v11787 = vrot.slane %v11786, 1
    %v11788 = vadd.f32 %v11786, %v11787
    %v11789 = vmul.f32 %v11788, 0.03125
    %v11790 = vmul.f32 %v11647, %v11647
    %v11791 = vsub.f32 %v11789, %v11790
    %v11792 = vperm.slane %v11647, 0
    %v11794 = vrot.slane %v11792, 2
    %v11795 = vrot.slane %v11792, 1
    %v11796 = vrot.slane %v11794, 1
    %v11801 = vsub.f32 %v11506, %v11792
    %v11802 = vsub.f32 %v11507, %v11795
    %v11803 = vsub.f32 %v11508, %v11794
    %v11804 = vsub.f32 %v11509, %v11796
    %v11805 = vsub.f32 %v11510, %v11792
    %v11806 = vsub.f32 %v11511, %v11795
    %v11807 = vsub.f32 %v11512, %v11794
    %v11808 = vsub.f32 %v11513, %v11796
    %v11809 = vsub.f32 %v11514, %v11792
    %v11810 = vsub.f32 %v11515, %v11795
    %v11811 = vsub.f32 %v11516, %v11794
    %v11812 = vsub.f32 %v11517, %v11796
    %v11813 = vsub.f32 %v11518, %v11792
    %v11814 = vsub.f32 %v11519, %v11795
    %v11815 = vsub.f32 %v11520, %v11794
    %v11816 = vsub.f32 %v11521, %v11796
    %v11817 = vsub.f32 %v11522, %v11792
    %v11818 = vsub.f32 %v11523, %v11795
    %v11819 = vsub.f32 %v11524, %v11794
    %v11820 = vsub.f32 %v11525, %v11796
    %v11821 = vsub.f32 %v11526, %v11792
    %v11822 = vsub.f32 %v11527, %v11795
    %v11823 = vsub.f32 %v11528, %v11794
    %v11824 = vsub.f32 %v11529, %v11796
    %v11825 = vsub.f32 %v11530, %v11792
    %v11826 = vsub.f32 %v11531, %v11795
    %v11827 = vsub.f32 %v11532, %v11794
    %v11828 = vsub.f32 %v11533, %v11796
    %v11829 = vsub.f32 %v11534, %v11792
    %v11830 = vsub.f32 %v11535, %v11795
    %v11831 = vsub.f32 %v11536, %v11794
    %v11832 = vsub.f32 %v11537, %v11796
    %v11833 = vadd.f32 %v11791, 1e-05
    %v11834 = vrsqrt.pop %v11833
    %v11835 = vmul.f32 %v11834, %v11833
    %v11836 = vmul.f32 %v11835, %v11834
    %v11837 = vmul.f32 0.5, %v11836
    %v11838 = vsub.f32 1.5, %v11837
    %v11839 = vmul.f32 %v11834, %v11838
    %vm11840 = vweird.f32 %v11833
    %vm11841 = vweird.f32 %v11834
    %vm11842 = vmor %vm11840, %vm11841
    %v11843 = vsel %vm11842, %v11834, %v11839
    %v11844 = vperm.slane %v11843, 0
    %v11846 = vrot.slane %v11844, 2
    %v11847 = vrot.slane %v11844, 1
    %v11848 = vrot.slane %v11846, 1
    %v11853 = vmul.f32 %v11801, %v11844
    %v11854 = vmul.f32 %v11802, %v11847
    %v11855 = vmul.f32 %v11803, %v11846
    %v11856 = vmul.f32 %v11804, %v11848
    %v11857 = vmul.f32 %v11805, %v11844
    %v11858 = vmul.f32 %v11806, %v11847
    %v11859 = vmul.f32 %v11807, %v11846
    %v11860 = vmul.f32 %v11808, %v11848
    %v11861 = vmul.f32 %v11809, %v11844
    %v11862 = vmul.f32 %v11810, %v11847
    %v11863 = vmul.f32 %v11811, %v11846
    %v11864 = vmul.f32 %v11812, %v11848
    %v11865 = vmul.f32 %v11813, %v11844
    %v11866 = vmul.f32 %v11814, %v11847
    %v11867 = vmul.f32 %v11815, %v11846
    %v11868 = vmul.f32 %v11816, %v11848
    %v11869 = vmul.f32 %v11817, %v11844
    %v11870 = vmul.f32 %v11818, %v11847
    %v11871 = vmul.f32 %v11819, %v11846
    %v11872 = vmul.f32 %v11820, %v11848
    %v11873 = vmul.f32 %v11821, %v11844
    %v11874 = vmul.f32 %v11822, %v11847
    %v11875 = vmul.f32 %v11823, %v11846
    %v11876 = vmul.f32 %v11824, %v11848
    %v11877 = vmul.f32 %v11825, %v11844
    %v11878 = vmul.f32 %v11826, %v11847
    %v11879 = vmul.f32 %v11827, %v11846
    %v11880 = vmul.f32 %v11828, %v11848
    %v11881 = vmul.f32 %v11829, %v11844
    %v11882 = vmul.f32 %v11830, %v11847
    %v11883 = vmul.f32 %v11831, %v11846
    %v11884 = vmul.f32 %v11832, %v11848
    %v11885 = vpack.c.bf16 %v11853, %v11853
    %v11886 = vpack.c.bf16 %v11854, %v11854
    %v11887 = vpack.c.bf16 %v11855, %v11855
    %v11888 = vpack.c.bf16 %v11856, %v11856
    %v11889 = vpack.c.bf16 %v11857, %v11857
    %v11890 = vpack.c.bf16 %v11858, %v11858
    %v11891 = vpack.c.bf16 %v11859, %v11859
    %v11892 = vpack.c.bf16 %v11860, %v11860
    %v11893 = vpack.c.bf16 %v11861, %v11861
    %v11894 = vpack.c.bf16 %v11862, %v11862
    %v11895 = vpack.c.bf16 %v11863, %v11863
    %v11896 = vpack.c.bf16 %v11864, %v11864
    %v11897 = vpack.c.bf16 %v11865, %v11865
    %v11898 = vpack.c.bf16 %v11866, %v11866
    %v11899 = vpack.c.bf16 %v11867, %v11867
    %v11900 = vpack.c.bf16 %v11868, %v11868
    %v11901 = vpack.c.bf16 %v11869, %v11869
    %v11902 = vpack.c.bf16 %v11870, %v11870
    %v11903 = vpack.c.bf16 %v11871, %v11871
    %v11904 = vpack.c.bf16 %v11872, %v11872
    %v11905 = vpack.c.bf16 %v11873, %v11873
    %v11906 = vpack.c.bf16 %v11874, %v11874
    %v11907 = vpack.c.bf16 %v11875, %v11875
    %v11908 = vpack.c.bf16 %v11876, %v11876
    %v11909 = vpack.c.bf16 %v11877, %v11877
    %v11910 = vpack.c.bf16 %v11878, %v11878
    %v11911 = vpack.c.bf16 %v11879, %v11879
    %v11912 = vpack.c.bf16 %v11880, %v11880
    %v11913 = vpack.c.bf16 %v11881, %v11881
    %v11914 = vpack.c.bf16 %v11882, %v11882
    %v11915 = vpack.c.bf16 %v11883, %v11883
    %v11916 = vpack.c.bf16 %v11884, %v11884
    %v11919 = vunpack.c.l.b16 %v11885
    %v11920 = vunpack.c.l.b16 %v11901
    %v11921 = vpack.c.b16 %v11919, %v11919
    %v11922 = vpack.c.b16 %v11920, %v11920
    %v11923 = vunpack.c.l.b16 %v11921
    %v11924 = vunpack.c.l.b16 %v11922
    %v11925 = vrot.slane %v11924, 7
    %v11926 = vsel %vm3586, %v11925, %v11923
    %v11927 = vpack.c.b16 %v11926, %v11926
    %v11930 = vunpack.c.l.b16 %v11886
    %v11931 = vunpack.c.l.b16 %v11902
    %v11932 = vpack.c.b16 %v11930, %v11930
    %v11933 = vpack.c.b16 %v11931, %v11931
    %v11934 = vunpack.c.l.b16 %v11932
    %v11935 = vunpack.c.l.b16 %v11933
    %v11936 = vrot.slane %v11935, 7
    %v11937 = vsel %vm3586, %v11936, %v11934
    %v11938 = vpack.c.b16 %v11937, %v11937
    %11939 = vrot.lane.b32.xlu0 %v11938, 64
    %v11940 = vpop.permute.xlu0 %11939
    %v11943 = vsel %vm7908, %v11927, %v11940
    %v11947 = vunpack.c.l.b16 %v11887
    %v11948 = vunpack.c.l.b16 %v11903
    %v11949 = vpack.c.b16 %v11947, %v11947
    %v11950 = vpack.c.b16 %v11948, %v11948
    %v11951 = vunpack.c.l.b16 %v11949
    %v11952 = vunpack.c.l.b16 %v11950
    %v11953 = vrot.slane %v11952, 7
    %v11954 = vsel %vm3586, %v11953, %v11951
    %v11955 = vpack.c.b16 %v11954, %v11954
    %v11958 = vunpack.c.l.b16 %v11888
    %v11959 = vunpack.c.l.b16 %v11904
    %v11960 = vpack.c.b16 %v11958, %v11958
    %v11961 = vpack.c.b16 %v11959, %v11959
    %v11962 = vunpack.c.l.b16 %v11960
    %v11963 = vunpack.c.l.b16 %v11961
    %v11964 = vrot.slane %v11963, 7
    %v11965 = vsel %vm3586, %v11964, %v11962
    %v11966 = vpack.c.b16 %v11965, %v11965
    %11967 = vrot.lane.b32.xlu0 %v11966, 64
    %v11968 = vpop.permute.xlu0 %11967
    %v11971 = vsel %vm7908, %v11955, %v11968
    %v11975 = vunpack.c.l.b16 %v11889
    %v11976 = vunpack.c.l.b16 %v11905
    %v11977 = vpack.c.b16 %v11975, %v11975
    %v11978 = vpack.c.b16 %v11976, %v11976
    %v11979 = vunpack.c.l.b16 %v11977
    %v11980 = vunpack.c.l.b16 %v11978
    %v11981 = vrot.slane %v11980, 7
    %v11982 = vsel %vm3586, %v11981, %v11979
    %v11983 = vpack.c.b16 %v11982, %v11982
    %v11986 = vunpack.c.l.b16 %v11890
    %v11987 = vunpack.c.l.b16 %v11906
    %v11988 = vpack.c.b16 %v11986, %v11986
    %v11989 = vpack.c.b16 %v11987, %v11987
    %v11990 = vunpack.c.l.b16 %v11988
    %v11991 = vunpack.c.l.b16 %v11989
    %v11992 = vrot.slane %v11991, 7
    %v11993 = vsel %vm3586, %v11992, %v11990
    %v11994 = vpack.c.b16 %v11993, %v11993
    %11995 = vrot.lane.b32.xlu0 %v11994, 64
    %v11996 = vpop.permute.xlu0 %11995
    %v11999 = vsel %vm7908, %v11983, %v11996
    %v12003 = vunpack.c.l.b16 %v11891
    %v12004 = vunpack.c.l.b16 %v11907
    %v12005 = vpack.c.b16 %v12003, %v12003
    %v12006 = vpack.c.b16 %v12004, %v12004
    %v12007 = vunpack.c.l.b16 %v12005
    %v12008 = vunpack.c.l.b16 %v12006
    %v12009 = vrot.slane %v12008, 7
    %v12010 = vsel %vm3586, %v12009, %v12007
    %v12011 = vpack.c.b16 %v12010, %v12010
    %v12014 = vunpack.c.l.b16 %v11892
    %v12015 = vunpack.c.l.b16 %v11908
    %v12016 = vpack.c.b16 %v12014, %v12014
    %v12017 = vpack.c.b16 %v12015, %v12015
    %v12018 = vunpack.c.l.b16 %v12016
    %v12019 = vunpack.c.l.b16 %v12017
    %v12020 = vrot.slane %v12019, 7
    %v12021 = vsel %vm3586, %v12020, %v12018
    %v12022 = vpack.c.b16 %v12021, %v12021
    %12023 = vrot.lane.b32.xlu0 %v12022, 64
    %v12024 = vpop.permute.xlu0 %12023
    %v12027 = vsel %vm7908, %v12011, %v12024
    %v12031 = vunpack.c.l.b16 %v11893
    %v12032 = vunpack.c.l.b16 %v11909
    %v12033 = vpack.c.b16 %v12031, %v12031
    %v12034 = vpack.c.b16 %v12032, %v12032
    %v12035 = vunpack.c.l.b16 %v12033
    %v12036 = vunpack.c.l.b16 %v12034
    %v12037 = vrot.slane %v12036, 7
    %v12038 = vsel %vm3586, %v12037, %v12035
    %v12039 = vpack.c.b16 %v12038, %v12038
    %v12042 = vunpack.c.l.b16 %v11894
    %v12043 = vunpack.c.l.b16 %v11910
    %v12044 = vpack.c.b16 %v12042, %v12042
    %v12045 = vpack.c.b16 %v12043, %v12043
    %v12046 = vunpack.c.l.b16 %v12044
    %v12047 = vunpack.c.l.b16 %v12045
    %v12048 = vrot.slane %v12047, 7
    %v12049 = vsel %vm3586, %v12048, %v12046
    %v12050 = vpack.c.b16 %v12049, %v12049
    %12051 = vrot.lane.b32.xlu0 %v12050, 64
    %v12052 = vpop.permute.xlu0 %12051
    %v12055 = vsel %vm7908, %v12039, %v12052
    %v12059 = vunpack.c.l.b16 %v11895
    %v12060 = vunpack.c.l.b16 %v11911
    %v12061 = vpack.c.b16 %v12059, %v12059
    %v12062 = vpack.c.b16 %v12060, %v12060
    %v12063 = vunpack.c.l.b16 %v12061
    %v12064 = vunpack.c.l.b16 %v12062
    %v12065 = vrot.slane %v12064, 7
    %v12066 = vsel %vm3586, %v12065, %v12063
    %v12067 = vpack.c.b16 %v12066, %v12066
    %v12070 = vunpack.c.l.b16 %v11896
    %v12071 = vunpack.c.l.b16 %v11912
    %v12072 = vpack.c.b16 %v12070, %v12070
    %v12073 = vpack.c.b16 %v12071, %v12071
    %v12074 = vunpack.c.l.b16 %v12072
    %v12075 = vunpack.c.l.b16 %v12073
    %v12076 = vrot.slane %v12075, 7
    %v12077 = vsel %vm3586, %v12076, %v12074
    %v12078 = vpack.c.b16 %v12077, %v12077
    %12079 = vrot.lane.b32.xlu0 %v12078, 64
    %v12080 = vpop.permute.xlu0 %12079
    %v12083 = vsel %vm7908, %v12067, %v12080
    %v12087 = vunpack.c.l.b16 %v11897
    %v12088 = vunpack.c.l.b16 %v11913
    %v12089 = vpack.c.b16 %v12087, %v12087
    %v12090 = vpack.c.b16 %v12088, %v12088
    %v12091 = vunpack.c.l.b16 %v12089
    %v12092 = vunpack.c.l.b16 %v12090
    %v12093 = vrot.slane %v12092, 7
    %v12094 = vsel %vm3586, %v12093, %v12091
    %v12095 = vpack.c.b16 %v12094, %v12094
    %v12098 = vunpack.c.l.b16 %v11898
    %v12099 = vunpack.c.l.b16 %v11914
    %v12100 = vpack.c.b16 %v12098, %v12098
    %v12101 = vpack.c.b16 %v12099, %v12099
    %v12102 = vunpack.c.l.b16 %v12100
    %v12103 = vunpack.c.l.b16 %v12101
    %v12104 = vrot.slane %v12103, 7
    %v12105 = vsel %vm3586, %v12104, %v12102
    %v12106 = vpack.c.b16 %v12105, %v12105
    %12107 = vrot.lane.b32.xlu0 %v12106, 64
    %v12108 = vpop.permute.xlu0 %12107
    %v12111 = vsel %vm7908, %v12095, %v12108
    %v12115 = vunpack.c.l.b16 %v11899
    %v12116 = vunpack.c.l.b16 %v11915
    %v12117 = vpack.c.b16 %v12115, %v12115
    %v12118 = vpack.c.b16 %v12116, %v12116
    %v12119 = vunpack.c.l.b16 %v12117
    %v12120 = vunpack.c.l.b16 %v12118
    %v12121 = vrot.slane %v12120, 7
    %v12122 = vsel %vm3586, %v12121, %v12119
    %v12123 = vpack.c.b16 %v12122, %v12122
    %v12126 = vunpack.c.l.b16 %v11900
    %v12127 = vunpack.c.l.b16 %v11916
    %v12128 = vpack.c.b16 %v12126, %v12126
    %v12129 = vpack.c.b16 %v12127, %v12127
    %v12130 = vunpack.c.l.b16 %v12128
    %v12131 = vunpack.c.l.b16 %v12129
    %v12132 = vrot.slane %v12131, 7
    %v12133 = vsel %vm3586, %v12132, %v12130
    %v12134 = vpack.c.b16 %v12133, %v12133
    %12135 = vrot.lane.b32.xlu0 %v12134, 64
    %v12136 = vpop.permute.xlu0 %12135
    %v12139 = vsel %vm7908, %v12123, %v12136
    %v12141 = vld [vmem:[%s5] sm:$0xf]
    %v12142 = vld [vmem:[%s5 + $0x4] sm:$0xf]
    %v12143 = vld [vmem:[%s5 + $0x8] sm:$0xf]
    %v12144 = vld [vmem:[%s5 + $0xc] sm:$0xf]
    %v12145 = vld [vmem:[%s5 + $0x10] sm:$0xf]
    %v12146 = vld [vmem:[%s5 + $0x14] sm:$0xf]
    %v12147 = vld [vmem:[%s5 + $0x18] sm:$0xf]
    %v12148 = vld [vmem:[%s5 + $0x1c] sm:$0xf]
    %v12149 = vld [vmem:[%s5 + $0x20] sm:$0xf]
    %v12150 = vld [vmem:[%s5 + $0x24] sm:$0xf]
    %v12151 = vld [vmem:[%s5 + $0x28] sm:$0xf]
    %v12152 = vld [vmem:[%s5 + $0x2c] sm:$0xf]
    %v12153 = vld [vmem:[%s5 + $0x30] sm:$0xf]
    %v12154 = vld [vmem:[%s5 + $0x34] sm:$0xf]
    %v12155 = vld [vmem:[%s5 + $0x38] sm:$0xf]
    %v12156 = vld [vmem:[%s5 + $0x3c] sm:$0xf]
    %v12157 = vld [vmem:[%s5 + $0x40] sm:$0xf]
    %v12158 = vld [vmem:[%s5 + $0x44] sm:$0xf]
    %v12159 = vld [vmem:[%s5 + $0x48] sm:$0xf]
    %v12160 = vld [vmem:[%s5 + $0x4c] sm:$0xf]
    %v12161 = vld [vmem:[%s5 + $0x50] sm:$0xf]
    %v12162 = vld [vmem:[%s5 + $0x54] sm:$0xf]
    %v12163 = vld [vmem:[%s5 + $0x58] sm:$0xf]
    %v12164 = vld [vmem:[%s5 + $0x5c] sm:$0xf]
    %v12165 = vld [vmem:[%s5 + $0x60] sm:$0xf]
    %v12166 = vld [vmem:[%s5 + $0x64] sm:$0xf]
    %v12167 = vld [vmem:[%s5 + $0x68] sm:$0xf]
    %v12168 = vld [vmem:[%s5 + $0x6c] sm:$0xf]
    %v12169 = vld [vmem:[%s5 + $0x70] sm:$0xf]
    %v12170 = vld [vmem:[%s5 + $0x74] sm:$0xf]
    %v12171 = vld [vmem:[%s5 + $0x78] sm:$0xf]
    %v12172 = vld [vmem:[%s5 + $0x7c] sm:$0xf]
    %v12173 = vld [vmem:[%s5 + $0x80] sm:$0xf]
    %v12174 = vld [vmem:[%s5 + $0x84] sm:$0xf]
    %v12175 = vld [vmem:[%s5 + $0x88] sm:$0xf]
    %v12176 = vld [vmem:[%s5 + $0x8c] sm:$0xf]
    %v12177 = vld [vmem:[%s5 + $0x90] sm:$0xf]
    %v12178 = vld [vmem:[%s5 + $0x94] sm:$0xf]
    %v12179 = vld [vmem:[%s5 + $0x98] sm:$0xf]
    %v12180 = vld [vmem:[%s5 + $0x9c] sm:$0xf]
    %v12181 = vld [vmem:[%s5 + $0xa0] sm:$0xf]
    %v12182 = vld [vmem:[%s5 + $0xa4] sm:$0xf]
    %v12183 = vld [vmem:[%s5 + $0xa8] sm:$0xf]
    %v12184 = vld [vmem:[%s5 + $0xac] sm:$0xf]
    %v12185 = vld [vmem:[%s5 + $0xb0] sm:$0xf]
    %v12186 = vld [vmem:[%s5 + $0xb4] sm:$0xf]
    %v12187 = vld [vmem:[%s5 + $0xb8] sm:$0xf]
    %v12188 = vld [vmem:[%s5 + $0xbc] sm:$0xf]
    %v12189 = vld [vmem:[%s5 + $0xc0] sm:$0xf]
    %v12190 = vld [vmem:[%s5 + $0xc4] sm:$0xf]
    %v12191 = vld [vmem:[%s5 + $0xc8] sm:$0xf]
    %v12192 = vld [vmem:[%s5 + $0xcc] sm:$0xf]
    %v12193 = vld [vmem:[%s5 + $0xd0] sm:$0xf]
    %v12194 = vld [vmem:[%s5 + $0xd4] sm:$0xf]
    %v12195 = vld [vmem:[%s5 + $0xd8] sm:$0xf]
    %v12196 = vld [vmem:[%s5 + $0xdc] sm:$0xf]
    %v12197 = vld [vmem:[%s5 + $0xe0] sm:$0xf]
    %v12198 = vld [vmem:[%s5 + $0xe4] sm:$0xf]
    %v12199 = vld [vmem:[%s5 + $0xe8] sm:$0xf]
    %v12200 = vld [vmem:[%s5 + $0xec] sm:$0xf]
    %v12201 = vld [vmem:[%s5 + $0xf0] sm:$0xf]
    %v12202 = vld [vmem:[%s5 + $0xf4] sm:$0xf]
    %v12203 = vld [vmem:[%s5 + $0xf8] sm:$0xf]
    %v12204 = vld [vmem:[%s5 + $0xfc] sm:$0xf]
    %v12205 = vld [vmem:[%s5 + $0x100] sm:$0xf]
    %v12206 = vld [vmem:[%s5 + $0x104] sm:$0xf]
    %v12207 = vld [vmem:[%s5 + $0x108] sm:$0xf]
    %v12208 = vld [vmem:[%s5 + $0x10c] sm:$0xf]
    %v12209 = vld [vmem:[%s5 + $0x110] sm:$0xf]
    %v12210 = vld [vmem:[%s5 + $0x114] sm:$0xf]
    %v12211 = vld [vmem:[%s5 + $0x118] sm:$0xf]
    %v12212 = vld [vmem:[%s5 + $0x11c] sm:$0xf]
    %v12213 = vld [vmem:[%s5 + $0x120] sm:$0xf]
    %v12214 = vld [vmem:[%s5 + $0x124] sm:$0xf]
    %v12215 = vld [vmem:[%s5 + $0x128] sm:$0xf]
    %v12216 = vld [vmem:[%s5 + $0x12c] sm:$0xf]
    %v12217 = vld [vmem:[%s5 + $0x130] sm:$0xf]
    %v12218 = vld [vmem:[%s5 + $0x134] sm:$0xf]
    %v12219 = vld [vmem:[%s5 + $0x138] sm:$0xf]
    %v12220 = vld [vmem:[%s5 + $0x13c] sm:$0xf]
    %v12221 = vld [vmem:[%s5 + $0x140] sm:$0xf]
    %v12222 = vld [vmem:[%s5 + $0x144] sm:$0xf]
    %v12223 = vld [vmem:[%s5 + $0x148] sm:$0xf]
    %v12224 = vld [vmem:[%s5 + $0x14c] sm:$0xf]
    %v12225 = vld [vmem:[%s5 + $0x150] sm:$0xf]
    %v12226 = vld [vmem:[%s5 + $0x154] sm:$0xf]
    %v12227 = vld [vmem:[%s5 + $0x158] sm:$0xf]
    %v12228 = vld [vmem:[%s5 + $0x15c] sm:$0xf]
    %v12229 = vld [vmem:[%s5 + $0x160] sm:$0xf]
    %v12230 = vld [vmem:[%s5 + $0x164] sm:$0xf]
    %v12231 = vld [vmem:[%s5 + $0x168] sm:$0xf]
    %v12232 = vld [vmem:[%s5 + $0x16c] sm:$0xf]
    %v12233 = vld [vmem:[%s5 + $0x170] sm:$0xf]
    %v12234 = vld [vmem:[%s5 + $0x174] sm:$0xf]
    %v12235 = vld [vmem:[%s5 + $0x178] sm:$0xf]
    %v12236 = vld [vmem:[%s5 + $0x17c] sm:$0xf]
    %v12237 = vld [vmem:[%s5 + $0x180] sm:$0xf]
    %v12238 = vld [vmem:[%s5 + $0x184] sm:$0xf]
    %v12239 = vld [vmem:[%s5 + $0x188] sm:$0xf]
    %v12240 = vld [vmem:[%s5 + $0x18c] sm:$0xf]
    %v12241 = vld [vmem:[%s5 + $0x190] sm:$0xf]
    %v12242 = vld [vmem:[%s5 + $0x194] sm:$0xf]
    %v12243 = vld [vmem:[%s5 + $0x198] sm:$0xf]
    %v12244 = vld [vmem:[%s5 + $0x19c] sm:$0xf]
    %v12245 = vld [vmem:[%s5 + $0x1a0] sm:$0xf]
    %v12246 = vld [vmem:[%s5 + $0x1a4] sm:$0xf]
    %v12247 = vld [vmem:[%s5 + $0x1a8] sm:$0xf]
    %v12248 = vld [vmem:[%s5 + $0x1ac] sm:$0xf]
    %v12249 = vld [vmem:[%s5 + $0x1b0] sm:$0xf]
    %v12250 = vld [vmem:[%s5 + $0x1b4] sm:$0xf]
    %v12251 = vld [vmem:[%s5 + $0x1b8] sm:$0xf]
    %v12252 = vld [vmem:[%s5 + $0x1bc] sm:$0xf]
    %v12253 = vld [vmem:[%s5 + $0x1c0] sm:$0xf]
    %v12254 = vld [vmem:[%s5 + $0x1c4] sm:$0xf]
    %v12255 = vld [vmem:[%s5 + $0x1c8] sm:$0xf]
    %v12256 = vld [vmem:[%s5 + $0x1cc] sm:$0xf]
    %v12257 = vld [vmem:[%s5 + $0x1d0] sm:$0xf]
    %v12258 = vld [vmem:[%s5 + $0x1d4] sm:$0xf]
    %v12259 = vld [vmem:[%s5 + $0x1d8] sm:$0xf]
    %v12260 = vld [vmem:[%s5 + $0x1dc] sm:$0xf]
    %v12261 = vld [vmem:[%s5 + $0x1e0] sm:$0xf]
    %v12262 = vld [vmem:[%s5 + $0x1e4] sm:$0xf]
    %v12263 = vld [vmem:[%s5 + $0x1e8] sm:$0xf]
    %v12264 = vld [vmem:[%s5 + $0x1ec] sm:$0xf]
    %v12265 = vld [vmem:[%s5 + $0x1f0] sm:$0xf]
    %v12266 = vld [vmem:[%s5 + $0x1f4] sm:$0xf]
    %v12267 = vld [vmem:[%s5 + $0x1f8] sm:$0xf]
    %v12268 = vld [vmem:[%s5 + $0x1fc] sm:$0xf]
    %v12269 = vld [vmem:[%s6] sm:$0x1]
    %v12271 = vperm.slane %v12269, 0
    %v12401 = vunpack.c.l.b16 %v12141
    %v12402 = vunpack.c.l.b16 %v12142
    %v12403 = vunpack.c.l.b16 %v12143
    %v12404 = vunpack.c.l.b16 %v12144
    %v12405 = vunpack.c.l.b16 %v12145
    %v12406 = vunpack.c.l.b16 %v12146
    %v12407 = vunpack.c.l.b16 %v12147
    %v12408 = vunpack.c.l.b16 %v12148
    %v12409 = vunpack.c.l.b16 %v12149
    %v12410 = vunpack.c.l.b16 %v12150
    %v12411 = vunpack.c.l.b16 %v12151
    %v12412 = vunpack.c.l.b16 %v12152
    %v12413 = vunpack.c.l.b16 %v12153
    %v12414 = vunpack.c.l.b16 %v12154
    %v12415 = vunpack.c.l.b16 %v12155
    %v12416 = vunpack.c.l.b16 %v12156
    %v12417 = vunpack.c.l.b16 %v12157
    %v12418 = vunpack.c.l.b16 %v12158
    %v12419 = vunpack.c.l.b16 %v12159
    %v12420 = vunpack.c.l.b16 %v12160
    %v12421 = vunpack.c.l.b16 %v12161
    %v12422 = vunpack.c.l.b16 %v12162
    %v12423 = vunpack.c.l.b16 %v12163
    %v12424 = vunpack.c.l.b16 %v12164
    %v12425 = vunpack.c.l.b16 %v12165
    %v12426 = vunpack.c.l.b16 %v12166
    %v12427 = vunpack.c.l.b16 %v12167
    %v12428 = vunpack.c.l.b16 %v12168
    %v12429 = vunpack.c.l.b16 %v12169
    %v12430 = vunpack.c.l.b16 %v12170
    %v12431 = vunpack.c.l.b16 %v12171
    %v12432 = vunpack.c.l.b16 %v12172
    %v12433 = vunpack.c.l.b16 %v12173
    %v12434 = vunpack.c.l.b16 %v12174
    %v12435 = vunpack.c.l.b16 %v12175
    %v12436 = vunpack.c.l.b16 %v12176
    %v12437 = vunpack.c.l.b16 %v12177
    %v12438 = vunpack.c.l.b16 %v12178
    %v12439 = vunpack.c.l.b16 %v12179
    %v12440 = vunpack.c.l.b16 %v12180
    %v12441 = vunpack.c.l.b16 %v12181
    %v12442 = vunpack.c.l.b16 %v12182
    %v12443 = vunpack.c.l.b16 %v12183
    %v12444 = vunpack.c.l.b16 %v12184
    %v12445 = vunpack.c.l.b16 %v12185
    %v12446 = vunpack.c.l.b16 %v12186
    %v12447 = vunpack.c.l.b16 %v12187
    %v12448 = vunpack.c.l.b16 %v12188
    %v12449 = vunpack.c.l.b16 %v12189
    %v12450 = vunpack.c.l.b16 %v12190
    %v12451 = vunpack.c.l.b16 %v12191
    %v12452 = vunpack.c.l.b16 %v12192
    %v12453 = vunpack.c.l.b16 %v12193
    %v12454 = vunpack.c.l.b16 %v12194
    %v12455 = vunpack.c.l.b16 %v12195
    %v12456 = vunpack.c.l.b16 %v12196
    %v12457 = vunpack.c.l.b16 %v12197
    %v12458 = vunpack.c.l.b16 %v12198
    %v12459 = vunpack.c.l.b16 %v12199
    %v12460 = vunpack.c.l.b16 %v12200
    %v12461 = vunpack.c.l.b16 %v12201
    %v12462 = vunpack.c.l.b16 %v12202
    %v12463 = vunpack.c.l.b16 %v12203
    %v12464 = vunpack.c.l.b16 %v12204
    %v12465 = vunpack.c.l.b16 %v12205
    %v12466 = vunpack.c.l.b16 %v12206
    %v12467 = vunpack.c.l.b16 %v12207
    %v12468 = vunpack.c.l.b16 %v12208
    %v12469 = vunpack.c.l.b16 %v12209
    %v12470 = vunpack.c.l.b16 %v12210
    %v12471 = vunpack.c.l.b16 %v12211
    %v12472 = vunpack.c.l.b16 %v12212
    %v12473 = vunpack.c.l.b16 %v12213
    %v12474 = vunpack.c.l.b16 %v12214
    %v12475 = vunpack.c.l.b16 %v12215
    %v12476 = vunpack.c.l.b16 %v12216
    %v12477 = vunpack.c.l.b16 %v12217
    %v12478 = vunpack.c.l.b16 %v12218
    %v12479 = vunpack.c.l.b16 %v12219
    %v12480 = vunpack.c.l.b16 %v12220
    %v12481 = vunpack.c.l.b16 %v12221
    %v12482 = vunpack.c.l.b16 %v12222
    %v12483 = vunpack.c.l.b16 %v12223
    %v12484 = vunpack.c.l.b16 %v12224
    %v12485 = vunpack.c.l.b16 %v12225
    %v12486 = vunpack.c.l.b16 %v12226
    %v12487 = vunpack.c.l.b16 %v12227
    %v12488 = vunpack.c.l.b16 %v12228
    %v12489 = vunpack.c.l.b16 %v12229
    %v12490 = vunpack.c.l.b16 %v12230
    %v12491 = vunpack.c.l.b16 %v12231
    %v12492 = vunpack.c.l.b16 %v12232
    %v12493 = vunpack.c.l.b16 %v12233
    %v12494 = vunpack.c.l.b16 %v12234
    %v12495 = vunpack.c.l.b16 %v12235
    %v12496 = vunpack.c.l.b16 %v12236
    %v12497 = vunpack.c.l.b16 %v12237
    %v12498 = vunpack.c.l.b16 %v12238
    %v12499 = vunpack.c.l.b16 %v12239
    %v12500 = vunpack.c.l.b16 %v12240
    %v12501 = vunpack.c.l.b16 %v12241
    %v12502 = vunpack.c.l.b16 %v12242
    %v12503 = vunpack.c.l.b16 %v12243
    %v12504 = vunpack.c.l.b16 %v12244
    %v12505 = vunpack.c.l.b16 %v12245
    %v12506 = vunpack.c.l.b16 %v12246
    %v12507 = vunpack.c.l.b16 %v12247
    %v12508 = vunpack.c.l.b16 %v12248
    %v12509 = vunpack.c.l.b16 %v12249
    %v12510 = vunpack.c.l.b16 %v12250
    %v12511 = vunpack.c.l.b16 %v12251
    %v12512 = vunpack.c.l.b16 %v12252
    %v12513 = vunpack.c.l.b16 %v12253
    %v12514 = vunpack.c.l.b16 %v12254
    %v12515 = vunpack.c.l.b16 %v12255
    %v12516 = vunpack.c.l.b16 %v12256
    %v12517 = vunpack.c.l.b16 %v12257
    %v12518 = vunpack.c.l.b16 %v12258
    %v12519 = vunpack.c.l.b16 %v12259
    %v12520 = vunpack.c.l.b16 %v12260
    %v12521 = vunpack.c.l.b16 %v12261
    %v12522 = vunpack.c.l.b16 %v12262
    %v12523 = vunpack.c.l.b16 %v12263
    %v12524 = vunpack.c.l.b16 %v12264
    %v12525 = vunpack.c.l.b16 %v12265
    %v12526 = vunpack.c.l.b16 %v12266
    %v12527 = vunpack.c.l.b16 %v12267
    %v12528 = vunpack.c.l.b16 %v12268
    %v12529 = vpack.c.b16 %v12402, %v12401
    %v12530 = vpack.c.b16 %v12404, %v12403
    %v12531 = vpack.c.b16 %v12406, %v12405
    %v12532 = vpack.c.b16 %v12408, %v12407
    %v12533 = vpack.c.b16 %v12410, %v12409
    %v12534 = vpack.c.b16 %v12412, %v12411
    %v12535 = vpack.c.b16 %v12414, %v12413
    %v12536 = vpack.c.b16 %v12416, %v12415
    %v12537 = vpack.c.b16 %v12418, %v12417
    %v12538 = vpack.c.b16 %v12420, %v12419
    %v12539 = vpack.c.b16 %v12422, %v12421
    %v12540 = vpack.c.b16 %v12424, %v12423
    %v12541 = vpack.c.b16 %v12426, %v12425
    %v12542 = vpack.c.b16 %v12428, %v12427
    %v12543 = vpack.c.b16 %v12430, %v12429
    %v12544 = vpack.c.b16 %v12432, %v12431
    %v12545 = vpack.c.b16 %v12434, %v12433
    %v12546 = vpack.c.b16 %v12436, %v12435
    %v12547 = vpack.c.b16 %v12438, %v12437
    %v12548 = vpack.c.b16 %v12440, %v12439
    %v12549 = vpack.c.b16 %v12442, %v12441
    %v12550 = vpack.c.b16 %v12444, %v12443
    %v12551 = vpack.c.b16 %v12446, %v12445
    %v12552 = vpack.c.b16 %v12448, %v12447
    %v12553 = vpack.c.b16 %v12450, %v12449
    %v12554 = vpack.c.b16 %v12452, %v12451
    %v12555 = vpack.c.b16 %v12454, %v12453
    %v12556 = vpack.c.b16 %v12456, %v12455
    %v12557 = vpack.c.b16 %v12458, %v12457
    %v12558 = vpack.c.b16 %v12460, %v12459
    %v12559 = vpack.c.b16 %v12462, %v12461
    %v12560 = vpack.c.b16 %v12464, %v12463
    %v12561 = vpack.c.b16 %v12466, %v12465
    %v12562 = vpack.c.b16 %v12468, %v12467
    %v12563 = vpack.c.b16 %v12470, %v12469
    %v12564 = vpack.c.b16 %v12472, %v12471
    %v12565 = vpack.c.b16 %v12474, %v12473
    %v12566 = vpack.c.b16 %v12476, %v12475
    %v12567 = vpack.c.b16 %v12478, %v12477
    %v12568 = vpack.c.b16 %v12480, %v12479
    %v12569 = vpack.c.b16 %v12482, %v12481
    %v12570 = vpack.c.b16 %v12484, %v12483
    %v12571 = vpack.c.b16 %v12486, %v12485
    %v12572 = vpack.c.b16 %v12488, %v12487
    %v12573 = vpack.c.b16 %v12490, %v12489
    %v12574 = vpack.c.b16 %v12492, %v12491
    %v12575 = vpack.c.b16 %v12494, %v12493
    %v12576 = vpack.c.b16 %v12496, %v12495
    %v12577 = vpack.c.b16 %v12498, %v12497
    %v12578 = vpack.c.b16 %v12500, %v12499
    %v12579 = vpack.c.b16 %v12502, %v12501
    %v12580 = vpack.c.b16 %v12504, %v12503
    %v12581 = vpack.c.b16 %v12506, %v12505
    %v12582 = vpack.c.b16 %v12508, %v12507
    %v12583 = vpack.c.b16 %v12510, %v12509
    %v12584 = vpack.c.b16 %v12512, %v12511
    %v12585 = vpack.c.b16 %v12514, %v12513
    %v12586 = vpack.c.b16 %v12516, %v12515
    %v12587 = vpack.c.b16 %v12518, %v12517
    %v12588 = vpack.c.b16 %v12520, %v12519
    %v12589 = vpack.c.b16 %v12522, %v12521
    %v12590 = vpack.c.b16 %v12524, %v12523
    %v12591 = vpack.c.b16 %v12526, %v12525
    %v12592 = vpack.c.b16 %v12528, %v12527
    %12657 = vmatpush.bf16.msra.mxu0 %v12536
    %12658 = vmatpush.bf16.msra.mxu0 %v12535
    %12659 = vmatpush.bf16.msra.mxu0 %v12534
    %12660 = vmatpush.bf16.msra.mxu0 %v12533
    %12661 = vmatpush.bf16.msra.mxu0 %v12532
    %12662 = vmatpush.bf16.msra.mxu0 %v12531
    %12663 = vmatpush.bf16.msra.mxu0 %v12530
    %12664 = vmatpush.bf16.msra.mxu0 %v12529
    %12665 = vmatmul.bf16.gmra.mxu0 %v11943
    %v12666 = vpop.f32.mrf.mxu0
    %v12667 = vadd.f32 %v12271, %v12666
    %v12668 = vpop.f32.mrf.mxu0
    %12669 = vdwg.mxu0
    %12670 = vmatpush.bf16.msra.mxu0 %v12544
    %12671 = vmatpush.bf16.msra.mxu0 %v12543
    %12672 = vmatpush.bf16.msra.mxu0 %v12542
    %12673 = vmatpush.bf16.msra.mxu0 %v12541
    %12674 = vmatpush.bf16.msra.mxu0 %v12540
    %12675 = vmatpush.bf16.msra.mxu0 %v12539
    %12676 = vmatpush.bf16.msra.mxu0 %v12538
    %12677 = vmatpush.bf16.msra.mxu0 %v12537
    %12678 = vmatmul.bf16.gmra.mxu0 %v11971
    %v12679 = vpop.f32.mrf.mxu0
    %v12680 = vadd.f32 %v12667, %v12679
    %v12681 = vpop.f32.mrf.mxu0
    %12682 = vdwg.mxu0
    %12683 = vmatpush.bf16.msra.mxu0 %v12552
    %12684 = vmatpush.bf16.msra.mxu0 %v12551
    %12685 = vmatpush.bf16.msra.mxu0 %v12550
    %12686 = vmatpush.bf16.msra.mxu0 %v12549
    %12687 = vmatpush.bf16.msra.mxu0 %v12548
    %12688 = vmatpush.bf16.msra.mxu0 %v12547
    %12689 = vmatpush.bf16.msra.mxu0 %v12546
    %12690 = vmatpush.bf16.msra.mxu0 %v12545
    %12691 = vmatmul.bf16.gmra.mxu0 %v11999
    %v12692 = vpop.f32.mrf.mxu0
    %v12693 = vadd.f32 %v12680, %v12692
    %v12694 = vpop.f32.mrf.mxu0
    %12695 = vdwg.mxu0
    %12696 = vmatpush.bf16.msra.mxu0 %v12560
    %12697 = vmatpush.bf16.msra.mxu0 %v12559
    %12698 = vmatpush.bf16.msra.mxu0 %v12558
    %12699 = vmatpush.bf16.msra.mxu0 %v12557
    %12700 = vmatpush.bf16.msra.mxu0 %v12556
    %12701 = vmatpush.bf16.msra.mxu0 %v12555
    %12702 = vmatpush.bf16.msra.mxu0 %v12554
    %12703 = vmatpush.bf16.msra.mxu0 %v12553
    %12704 = vmatmul.bf16.gmra.mxu0 %v12027
    %v12705 = vpop.f32.mrf.mxu0
    %v12706 = vadd.f32 %v12693, %v12705
    %v12707 = vpop.f32.mrf.mxu0
    %12708 = vdwg.mxu0
    %12709 = vmatpush.bf16.msra.mxu0 %v12568
    %12710 = vmatpush.bf16.msra.mxu0 %v12567
    %12711 = vmatpush.bf16.msra.mxu0 %v12566
    %12712 = vmatpush.bf16.msra.mxu0 %v12565
    %12713 = vmatpush.bf16.msra.mxu0 %v12564
    %12714 = vmatpush.bf16.msra.mxu0 %v12563
    %12715 = vmatpush.bf16.msra.mxu0 %v12562
    %12716 = vmatpush.bf16.msra.mxu0 %v12561
    %12717 = vmatmul.bf16.gmra.mxu0 %v12055
    %v12718 = vpop.f32.mrf.mxu0
    %v12719 = vadd.f32 %v12706, %v12718
    %v12720 = vpop.f32.mrf.mxu0
    %12721 = vdwg.mxu0
    %12722 = vmatpush.bf16.msra.mxu0 %v12576
    %12723 = vmatpush.bf16.msra.mxu0 %v12575
    %12724 = vmatpush.bf16.msra.mxu0 %v12574
    %12725 = vmatpush.bf16.msra.mxu0 %v12573
    %12726 = vmatpush.bf16.msra.mxu0 %v12572
    %12727 = vmatpush.bf16.msra.mxu0 %v12571
    %12728 = vmatpush.bf16.msra.mxu0 %v12570
    %12729 = vmatpush.bf16.msra.mxu0 %v12569
    %12730 = vmatmul.bf16.gmra.mxu0 %v12083
    %v12731 = vpop.f32.mrf.mxu0
    %v12732 = vadd.f32 %v12719, %v12731
    %v12733 = vpop.f32.mrf.mxu0
    %12734 = vdwg.mxu0
    %12735 = vmatpush.bf16.msra.mxu0 %v12584
    %12736 = vmatpush.bf16.msra.mxu0 %v12583
    %12737 = vmatpush.bf16.msra.mxu0 %v12582
    %12738 = vmatpush.bf16.msra.mxu0 %v12581
    %12739 = vmatpush.bf16.msra.mxu0 %v12580
    %12740 = vmatpush.bf16.msra.mxu0 %v12579
    %12741 = vmatpush.bf16.msra.mxu0 %v12578
    %12742 = vmatpush.bf16.msra.mxu0 %v12577
    %12743 = vmatmul.bf16.gmra.mxu0 %v12111
    %v12744 = vpop.f32.mrf.mxu0
    %v12745 = vadd.f32 %v12732, %v12744
    %v12746 = vpop.f32.mrf.mxu0
    %12747 = vdwg.mxu0
    %12748 = vmatpush.bf16.msra.mxu0 %v12592
    %12749 = vmatpush.bf16.msra.mxu0 %v12591
    %12750 = vmatpush.bf16.msra.mxu0 %v12590
    %12751 = vmatpush.bf16.msra.mxu0 %v12589
    %12752 = vmatpush.bf16.msra.mxu0 %v12588
    %12753 = vmatpush.bf16.msra.mxu0 %v12587
    %12754 = vmatpush.bf16.msra.mxu0 %v12586
    %12755 = vmatpush.bf16.msra.mxu0 %v12585
    %12756 = vmatmul.bf16.gmra.mxu0 %v12139
    %v12757 = vpop.f32.mrf.mxu0
    %v12758 = vadd.f32 %v12745, %v12757
    %v12759 = vpop.f32.mrf.mxu0
    %12760 = vdwg.mxu0
    %12761 = vst [vmem:[#allocation2] sm:$0x3] %v12758
    // Predicated region
    $region30: #{conv_model_forward.1} parent=1 // pred_check
      _
    $region31: #{conv_model_forward.1} parent=1 // pred_check_branch
      %12763 = sbr.rel (0) target = $region33
    $region32: #{conv_model_forward.1} parent=1 // pred_region
      %12765 = vsyncadd [#allocation3], 0
      %s12767 = sshll.u32 [#allocation2], 4
      %s12768 = int_to_ptr.vmem [resolvable:$true] %s12767
      %s12769 = sshll.u32 %s7, 4
      %s12770 = int_to_ptr.hbm [resolvable:$true] %s12769
      %12772 = dma.vmem_to_hbm [thread:$0]  %s12768, 32, %s12770, [#allocation3]
    $region33: #{conv_model_forward.1} parent=1 // pred_fallthru
      _
    // Predicated region
    $region34: #{conv_model_forward.1} parent=1 // pred_check
      _
    $region35: #{conv_model_forward.1} parent=1 // pred_check_branch
      %12774 = sbr.rel (0) target = $region37
    $region36: #{conv_model_forward.1} parent=1 // pred_region
      %12776 = dma.done [#allocation3], 32
    $region37: #{conv_model_forward.1} parent=1 // pred_fallthru
      _
    %12777 = vsyncpa [#allocation3], 1

</llo_original>
